<compile_context>
chip_gen: v7x
topology: tpu7x:2x2x1
jax: 0.10.0
libtpu: 0.0.40
codegen_flags: <defaults>
</compile_context>

<pallas_src>
import math
from functools import partial

import jax
import jax.numpy as jnp
from jax.experimental import pallas as pl
from jax.experimental.pallas import tpu as pltpu


# Raised-but-bounded scoped VMEM: safe on v5e/v6e (128 MiB phys) and v7x (64 MiB).
_VMEM_LIMIT_BYTES = 48 * 1024 * 1024


def _fit_tile(dim, target, multiple):
    """Largest tile <= target that divides `dim` and is a multiple of `multiple`.
    Falls back to the full dim (a full-extent block is always legal)."""
    if dim <= target:
        return dim
    t = (target // multiple) * multiple
    while t >= multiple:
        if dim % t == 0:
            return t
        t -= multiple
    return dim


# ----------------------------------------------------------------------------
# Generic tiled linear:  o = x @ W + b, W already stored (K, N), bf16 inputs,
# f32 accumulation.  grid = (M//tm, N//tn, K//tk), K last / "arbitrary".
# ----------------------------------------------------------------------------
def _linear_kernel(x_ref, w_ref, b_ref, o_ref, acc_ref):
    kk = pl.program_id(2)

    @pl.when(kk == 0)
    def _():
        acc_ref[...] = jnp.zeros_like(acc_ref)

    acc_ref[...] += jnp.dot(x_ref[...], w_ref[...],
                            preferred_element_type=jnp.float32)

    @pl.when(kk == pl.num_programs(2) - 1)
    def _():
        o_ref[...] = (acc_ref[...] + b_ref[...]).astype(o_ref.dtype)


def pallas_linear(x2d, w_kn, b_1n, *, out_dtype, tm=512, tn=256, tk=512):
    """x2d: (M, K) bf16, w_kn: (K, N) bf16, b_1n: (1, N) f32."""
    M, K = x2d.shape
    K2, N = w_kn.shape
    assert K2 == K and b_1n.shape == (1, N)
    tm = _fit_tile(M, tm, 8)
    tn = _fit_tile(N, tn, 128)
    tk = _fit_tile(K, tk, 128)
    grid = (M // tm, N // tn, K // tk)
    return pl.pallas_call(
        _linear_kernel,
        out_shape=jax.ShapeDtypeStruct((M, N), out_dtype),
        grid=grid,
        in_specs=[
            pl.BlockSpec((tm, tk), lambda i, j, k: (i, k)),
            pl.BlockSpec((tk, tn), lambda i, j, k: (k, j)),
            pl.BlockSpec((1, tn), lambda i, j, k: (0, j)),
        ],
        out_specs=pl.BlockSpec((tm, tn), lambda i, j, k: (i, j)),
        scratch_shapes=[pltpu.VMEM((tm, tn), jnp.float32)],
        compiler_params=pltpu.CompilerParams(
            dimension_semantics=("parallel", "parallel", "arbitrary"),
            vmem_limit_bytes=_VMEM_LIMIT_BYTES),
    )(x2d, w_kn, b_1n)


# ----------------------------------------------------------------------------
# Fused qkv projection: one pass over x produces q, k, v as three outputs, so
# no wrapper-side split of the (M, 3C) qkv buffer is needed afterwards.
# grid = (M//tm, K//tk); each head-sized N (= C) kept as one lane-dense block.
# ----------------------------------------------------------------------------
def _qkv_proj_kernel(x_ref, wq_ref, wk_ref, wv_ref, bq_ref, bk_ref, bv_ref,
                     q_ref, k_ref, v_ref, accq, acck, accv):
    kk = pl.program_id(1)

    @pl.when(kk == 0)
    def _():
        accq[...] = jnp.zeros_like(accq)
        acck[...] = jnp.zeros_like(acck)
        accv[...] = jnp.zeros_like(accv)

    x = x_ref[...]
    accq[...] += jnp.dot(x, wq_ref[...], preferred_element_type=jnp.float32)
    acck[...] += jnp.dot(x, wk_ref[...], preferred_element_type=jnp.float32)
    accv[...] += jnp.dot(x, wv_ref[...], preferred_element_type=jnp.float32)

    @pl.when(kk == pl.num_programs(1) - 1)
    def _():
        q_ref[...] = (accq[...] + bq_ref[...]).astype(q_ref.dtype)
        k_ref[...] = (acck[...] + bk_ref[...]).astype(k_ref.dtype)
        v_ref[...] = (accv[...] + bv_ref[...]).astype(v_ref.dtype)


def pallas_qkv_proj(x2d, params, *, tm=256, tk=512):
    """x2d: (M, K) bf16 -> (q, k, v), each (M, C) bf16."""
    M, K = x2d.shape
    C = params["w_q"].shape[1]
    tm = _fit_tile(M, tm, 8)
    tk = _fit_tile(K, tk, 128)
    grid = (M // tm, K // tk)
    x_spec = pl.BlockSpec((tm, tk), lambda i, k: (i, k))
    w_spec = pl.BlockSpec((tk, C), lambda i, k: (k, 0))
    b_spec = pl.BlockSpec((1, C), lambda i, k: (0, 0))
    o_spec = pl.BlockSpec((tm, C), lambda i, k: (i, 0))
    out_sd = jax.ShapeDtypeStruct((M, C), jnp.bfloat16)
    return pl.pallas_call(
        _qkv_proj_kernel,
        out_shape=(out_sd, out_sd, out_sd),
        grid=grid,
        in_specs=[x_spec, w_spec, w_spec, w_spec, b_spec, b_spec, b_spec],
        out_specs=(o_spec, o_spec, o_spec),
        scratch_shapes=[
            pltpu.VMEM((tm, C), jnp.float32),
            pltpu.VMEM((tm, C), jnp.float32),
            pltpu.VMEM((tm, C), jnp.float32),
        ],
        compiler_params=pltpu.CompilerParams(
            dimension_semantics=("parallel", "arbitrary"),
            vmem_limit_bytes=_VMEM_LIMIT_BYTES),
    )(x2d, params["w_q"], params["w_k"], params["w_v"],
      params["b_q"], params["b_k"], params["b_v"])


# ----------------------------------------------------------------------------
# Flash-style causal attention.  grid = (B*nh, T//tq, T//tkv), kv innermost
# ("arbitrary").  Online softmax with m/l/acc VMEM scratch.  Fully-masked
# (above-diagonal) kv tiles skip the matmul/softmax via pl.when.
# ----------------------------------------------------------------------------
def _flash_attn_kernel(q_ref, k_ref, v_ref, o_ref, m_sc, l_sc, acc_sc, *,
                       scale, tq, tkv):
    qi = pl.program_id(1)
    ki = pl.program_id(2)

    @pl.when(ki == 0)
    def _():
        m_sc[...] = jnp.full_like(m_sc, -1e30)
        l_sc[...] = jnp.zeros_like(l_sc)
        acc_sc[...] = jnp.zeros_like(acc_sc)

    q_last = (qi + 1) * tq - 1      # last query row covered by this q tile
    kv_first = ki * tkv             # first key column covered by this kv tile

    @pl.when(kv_first <= q_last)    # skip tiles entirely above the diagonal
    def _():
        q = q_ref[0]                # (tq, hd)  bf16
        k = k_ref[0]                # (tkv, hd) bf16
        v = v_ref[0]                # (tkv, hd) bf16

        # Contract trailing dims directly (no k.T materialization).
        s = jax.lax.dot_general(
            q, k, (((1,), (1,)), ((), ())),
            preferred_element_type=jnp.float32) * scale          # (tq, tkv) f32

        row = qi * tq + jax.lax.broadcasted_iota(jnp.int32, (tq, tkv), 0)
        col = kv_first + jax.lax.broadcasted_iota(jnp.int32, (tq, tkv), 1)
        s = jnp.where(col <= row, s, jnp.float32(-1e30))

        m_prev = m_sc[...]                                        # (tq, 1)
        m_new = jnp.maximum(m_prev, jnp.max(s, axis=-1, keepdims=True))
        alpha = jnp.exp(m_prev - m_new)
        p = jnp.exp(s - m_new)
        l_sc[...] = alpha * l_sc[...] + jnp.sum(p, axis=-1, keepdims=True)
        acc_sc[...] = alpha * acc_sc[...] + jax.lax.dot_general(
            p.astype(v.dtype), v, (((1,), (0,)), ((), ())),
            preferred_element_type=jnp.float32)
        m_sc[...] = m_new

    @pl.when(ki == pl.num_programs(2) - 1)
    def _():
        inv_l = pl.reciprocal(l_sc[...], approx=True)             # EUP slot
        o_ref[0] = (acc_sc[...] * inv_l).astype(o_ref.dtype)


def pallas_flash_causal_attention(q, k, v, *, tq=256, tkv=256):
    """q, k, v: (B*nh, T, hd) bf16 -> (B*nh, T, hd) bf16."""
    BH, T, hd = q.shape
    scale = 1.0 / math.sqrt(hd)
    tq = _fit_tile(T, tq, 8)
    tkv = _fit_tile(T, tkv, 8)
    grid = (BH, T // tq, T // tkv)
    q_spec = pl.BlockSpec((1, tq, hd), lambda b, qi, ki: (b, qi, 0))
    kv_spec = pl.BlockSpec((1, tkv, hd), lambda b, qi, ki: (b, ki, 0))
    return pl.pallas_call(
        partial(_flash_attn_kernel, scale=scale, tq=tq, tkv=tkv),
        out_shape=jax.ShapeDtypeStruct((BH, T, hd), q.dtype),
        grid=grid,
        in_specs=[q_spec, kv_spec, kv_spec],
        out_specs=q_spec,
        scratch_shapes=[
            pltpu.VMEM((tq, 1), jnp.float32),     # running max m
            pltpu.VMEM((tq, 1), jnp.float32),     # running denom l
            pltpu.VMEM((tq, hd), jnp.float32),    # output accumulator
        ],
        compiler_params=pltpu.CompilerParams(
            dimension_semantics=("parallel", "parallel", "arbitrary"),
            vmem_limit_bytes=_VMEM_LIMIT_BYTES),
    )(q, k, v)


# ----------------------------------------------------------------------------
# Parameter preparation: done ONCE (hoisted out of the per-forward path).
# Torch layout (out, in) -> kernel layout (K, N), bf16 weights, f32 biases.
# ----------------------------------------------------------------------------
def prepare_params(raw):
    C = raw["w_proj"].shape[0]
    w_attn_kn = raw["w_attn"].T                       # (C, 3C)
    wq, wk, wv = jnp.split(w_attn_kn, 3, axis=1)      # each (C, C)
    bq, bk, bv = jnp.split(raw["b_attn"], 3)
    return {
        "w_q": wq.astype(jnp.bfloat16),
        "w_k": wk.astype(jnp.bfloat16),
        "w_v": wv.astype(jnp.bfloat16),
        "b_q": bq.reshape(1, C).astype(jnp.float32),
        "b_k": bk.reshape(1, C).astype(jnp.float32),
        "b_v": bv.reshape(1, C).astype(jnp.float32),
        "w_proj_kn": raw["w_proj"].T.astype(jnp.bfloat16),   # (C, C)
        "b_proj": raw["b_proj"].reshape(1, C).astype(jnp.float32),
    }


# ----------------------------------------------------------------------------
# Full module forward (matches the PyTorch CausalSelfAttention.forward).
# ----------------------------------------------------------------------------
def causal_self_attention(x, params, n_head):
    B, T, C = x.shape
    hd = C // n_head
    # The given forward applies c_proj to (B, nh, T, hd) without merging heads;
    # that only typechecks when hd == C, i.e. n_head == 1.
    assert hd == C, "given module's forward only typechecks when n_head == 1"

    xb = x.reshape(B * T, C).astype(jnp.bfloat16)

    # c_attn, fused: three (B*T, C) bf16 outputs -> no qkv split afterwards.
    q, k, v = pallas_qkv_proj(xb, params)

    # (B*T, C) -> (B*nh, T, hd).  For n_head == 1 the head transpose is a no-op.
    def to_heads(t):
        return (t.reshape(B, T, n_head, hd)
                 .transpose(0, 2, 1, 3)
                 .reshape(B * n_head, T, hd))
    q, k, v = to_heads(q), to_heads(k), to_heads(v)

    y = pallas_flash_causal_attention(q, k, v)            # (B*nh, T, hd) bf16

    # c_proj applied to the LAST dim of y, exactly as in the given forward.
    y2d = y.reshape(B * n_head * T, hd)
    out = pallas_linear(y2d, params["w_proj_kn"], params["b_proj"],
                        out_dtype=jnp.float32)
    return out.reshape(B, n_head, T, C)


# ----------------------------------------------------------------------------
# Plain-JAX f32 reference (module semantics) for a sanity check.
# ----------------------------------------------------------------------------
def reference(x, raw, n_head):
    B, T, C = x.shape
    hd = C // n_head
    qkv = x @ raw["w_attn"].T + raw["b_attn"]
    q, k, v = jnp.split(qkv, 3, axis=2)
    q = q.reshape(B, T, n_head, hd).transpose(0, 2, 1, 3)
    k = k.reshape(B, T, n_head, hd).transpose(0, 2, 1, 3)
    v = v.reshape(B, T, n_head, hd).transpose(0, 2, 1, 3)
    s = jnp.einsum("bhqd,bhkd->bhqk", q, k) / math.sqrt(hd)
    mask = jnp.tril(jnp.ones((T, T), dtype=bool))
    s = jnp.where(mask[None, None], s, -jnp.inf)
    att = jax.nn.softmax(s, axis=-1)
    y = jnp.einsum("bhqk,bhkd->bhqd", att, v)
    return y @ raw["w_proj"].T + raw["b_proj"]


if __name__ == "__main__":
    # Small, deterministic config consistent with the module (lane-dense C=128,
    # T large enough to exercise the kv-tiled flash loop and causal skipping).
    batch, seq, n_embd, n_head = 2, 512, 128, 1

    key = jax.random.PRNGKey(0)
    kx, k1, k2, k3, k4 = jax.random.split(key, 5)

    x = jax.random.normal(kx, (batch, seq, n_embd), dtype=jnp.float32)

    # nn.Linear-style uniform init, deterministic, torch (out, in) layout.
    lim = 1.0 / math.sqrt(n_embd)
    raw = {
        "w_attn": jax.random.uniform(k1, (3 * n_embd, n_embd), jnp.float32, -lim, lim),
        "b_attn": jax.random.uniform(k2, (3 * n_embd,), jnp.float32, -lim, lim),
        "w_proj": jax.random.uniform(k3, (n_embd, n_embd), jnp.float32, -lim, lim),
        "b_proj": jax.random.uniform(k4, (n_embd,), jnp.float32, -lim, lim),
    }
    params = prepare_params(raw)   # one-time layout/dtype prep (hoisted)

    fwd = jax.jit(partial(causal_self_attention, n_head=n_head))
    y = jax.block_until_ready(fwd(x, params))
    assert y.shape == (batch, n_head, seq, n_embd), y.shape

    y_ref = reference(x, raw, n_head)
    # bf16 matmul inputs with f32 accumulation -> loose-ish tolerance vs f32 ref.
    err = float(jnp.max(jnp.abs(y - y_ref)))
    assert jnp.allclose(y, y_ref, atol=5e-2, rtol=5e-2), err

    print("KERNEL_OK")
</pallas_src>

<mosaic_0001>
module attributes {stable_mosaic.version = 11 : i64} {
  func.func @_flash_attn_kernel(%arg0: i32, %arg1: i32, %arg2: i32, %arg3: memref<1x256x128xbf16, #tpu.memory_space<vmem>>, %arg4: memref<1x256x128xbf16, #tpu.memory_space<vmem>>, %arg5: memref<1x256x128xbf16, #tpu.memory_space<vmem>>, %arg6: memref<1x256x128xbf16, #tpu.memory_space<vmem>>, %arg7: memref<256x1xf32, #tpu.memory_space<vmem>>, %arg8: memref<256x1xf32, #tpu.memory_space<vmem>>, %arg9: memref<256x128xf32, #tpu.memory_space<vmem>>) attributes {dimension_semantics = [#tpu.dimension_semantics<parallel>, #tpu.dimension_semantics<parallel>, #tpu.dimension_semantics<arbitrary>], iteration_bounds = array<i64: 2, 2, 2>, scalar_prefetch = 0 : i64, scratch_operands = 3 : i64, tpu.core_type = #tpu.core_type<tc>, window_params = [{transform_indices = @transform_0, window_bounds = array<i64: 1, 256, 128>}, {transform_indices = @transform_1, window_bounds = array<i64: 1, 256, 128>}, {transform_indices = @transform_2, window_bounds = array<i64: 1, 256, 128>}, {transform_indices = @transform_3, window_bounds = array<i64: 1, 256, 128>}]} {
    %c0_i32 = arith.constant 0 : i32
    %0 = arith.cmpi eq, %arg2, %c0_i32 : i32
    %1 = arith.extui %0 : i1 to i32
    %c0_i32_0 = arith.constant 0 : i32
    %2 = arith.cmpi ne, %1, %c0_i32_0 : i32
    scf.if %2 {
      %cst = arith.constant -1.000000e+30 : f32
      %13 = vector.broadcast %cst : f32 to vector<256x1xf32>
      %c0 = arith.constant 0 : index
      %c0_6 = arith.constant 0 : index
      %14 = vector.load %arg7[%c0, %c0_6] : memref<256x1xf32, #tpu.memory_space<vmem>>, vector<256x1xf32>
      tpu.vector_store %arg7[%c0, %c0_6], %13 {strides = array<i32>} : memref<256x1xf32, #tpu.memory_space<vmem>>, vector<256x1xf32>,
      %cst_7 = arith.constant 0.000000e+00 : f32
      %15 = vector.broadcast %cst_7 : f32 to vector<256x1xf32>
      %c0_8 = arith.constant 0 : index
      %c0_9 = arith.constant 0 : index
      %16 = vector.load %arg8[%c0_8, %c0_9] : memref<256x1xf32, #tpu.memory_space<vmem>>, vector<256x1xf32>
      tpu.vector_store %arg8[%c0_8, %c0_9], %15 {strides = array<i32>} : memref<256x1xf32, #tpu.memory_space<vmem>>, vector<256x1xf32>,
      %cst_10 = arith.constant 0.000000e+00 : f32
      %17 = vector.broadcast %cst_10 : f32 to vector<256x128xf32>
      %c0_11 = arith.constant 0 : index
      %c0_12 = arith.constant 0 : index
      %18 = vector.load %arg9[%c0_11, %c0_12] : memref<256x128xf32, #tpu.memory_space<vmem>>, vector<256x128xf32>
      tpu.vector_store %arg9[%c0_11, %c0_12], %17 {strides = array<i32>} : memref<256x128xf32, #tpu.memory_space<vmem>>, vector<256x128xf32>,
    } else {
    }
    %c1_i32 = arith.constant 1 : i32
    %3 = arith.addi %arg1, %c1_i32 : i32
    %c256_i32 = arith.constant 256 : i32
    %4 = arith.muli %3, %c256_i32 : i32
    %c1_i32_1 = arith.constant 1 : i32
    %5 = arith.subi %4, %c1_i32_1 : i32
    %c256_i32_2 = arith.constant 256 : i32
    %6 = arith.muli %arg2, %c256_i32_2 : i32
    %7 = arith.cmpi sle, %6, %5 : i32
    %8 = arith.extui %7 : i1 to i32
    %c0_i32_3 = arith.constant 0 : i32
    %9 = arith.cmpi ne, %8, %c0_i32_3 : i32
    scf.if %9 {
      %c0 = arith.constant 0 : index
      %c0_6 = arith.constant 0 : index
      %c0_7 = arith.constant 0 : index
      %13 = vector.load %arg3[%c0, %c0_6, %c0_7] : memref<1x256x128xbf16, #tpu.memory_space<vmem>>, vector<1x256x128xbf16>
      %14 = vector.shape_cast %13 : vector<1x256x128xbf16> to vector<256x128xbf16>
      %c0_8 = arith.constant 0 : index
      %c0_9 = arith.constant 0 : index
      %c0_10 = arith.constant 0 : index
      %15 = vector.load %arg4[%c0_8, %c0_9, %c0_10] : memref<1x256x128xbf16, #tpu.memory_space<vmem>>, vector<1x256x128xbf16>
      %16 = vector.shape_cast %15 : vector<1x256x128xbf16> to vector<256x128xbf16>
      %c0_11 = arith.constant 0 : index
      %c0_12 = arith.constant 0 : index
      %c0_13 = arith.constant 0 : index
      %17 = vector.load %arg5[%c0_11, %c0_12, %c0_13] : memref<1x256x128xbf16, #tpu.memory_space<vmem>>, vector<1x256x128xbf16>
      %18 = vector.shape_cast %17 : vector<1x256x128xbf16> to vector<256x128xbf16>
      %cst = arith.constant dense<0.000000e+00> : vector<256x256xf32>
      %19 = tpu.matmul %14, %16, %cst {dimension_numbers = #tpu.dot_dimension_numbers<[1], [1], [0], [0], [0, 0, 1, 0], [], []>} : vector<256x128xbf16>, vector<256x128xbf16>, vector<256x256xf32> -> vector<256x256xf32>
      %cst_14 = arith.constant 0.0883883461 : f32
      %20 = vector.broadcast %cst_14 : f32 to vector<256x256xf32>
      %21 = arith.mulf %19, %20 : vector<256x256xf32>
      %c256_i32_15 = arith.constant 256 : i32
      %22 = arith.muli %arg1, %c256_i32_15 : i32
      %23 = tpu.iota {dimensions = array<i32: 0>} : vector<256x256xi32>
      %24 = vector.broadcast %22 : i32 to vector<256x256xi32>
      %25 = arith.addi %24, %23 : vector<256x256xi32>
      %26 = tpu.iota {dimensions = array<i32: 1>} : vector<256x256xi32>
      %27 = vector.broadcast %6 : i32 to vector<256x256xi32>
      %28 = arith.addi %27, %26 : vector<256x256xi32>
      %29 = arith.cmpi sle, %28, %25 : vector<256x256xi32>
      %cst_16 = arith.constant -1.000000e+30 : f32
      %30 = vector.broadcast %cst_16 : f32 to vector<256x256xf32>
      %31 = arith.select %29, %21, %30 : vector<256x256xi1>, vector<256x256xf32>
      %c0_17 = arith.constant 0 : index
      %c0_18 = arith.constant 0 : index
      %32 = vector.load %arg7[%c0_17, %c0_18] : memref<256x1xf32, #tpu.memory_space<vmem>>, vector<256x1xf32>
      %cst_19 = arith.constant dense<0xFF800000> : vector<256xf32>
      %33 = vector.multi_reduction <maximumf>, %31, %cst_19 [1] : vector<256x256xf32> to vector<256xf32>
      %34 = vector.shape_cast %33 : vector<256xf32> to vector<256x1xf32>
      %35 = arith.maximumf %32, %34 : vector<256x1xf32>
      %36 = arith.subf %32, %35 : vector<256x1xf32>
      %37 = math.exp %36 : vector<256x1xf32>
      %38 = vector.broadcast %35 : vector<256x1xf32> to vector<256x256xf32>
      %39 = arith.subf %31, %38 : vector<256x256xf32>
      %40 = math.exp %39 : vector<256x256xf32>
      %c0_20 = arith.constant 0 : index
      %c0_21 = arith.constant 0 : index
      %41 = vector.load %arg8[%c0_20, %c0_21] : memref<256x1xf32, #tpu.memory_space<vmem>>, vector<256x1xf32>
      %42 = arith.mulf %37, %41 : vector<256x1xf32>
      %cst_22 = arith.constant dense<0.000000e+00> : vector<256xf32>
      %43 = vector.multi_reduction <add>, %40, %cst_22 [1] : vector<256x256xf32> to vector<256xf32>
      %44 = vector.shape_cast %43 : vector<256xf32> to vector<256x1xf32>
      %45 = arith.addf %42, %44 : vector<256x1xf32>
      %c0_23 = arith.constant 0 : index
      %c0_24 = arith.constant 0 : index
      %46 = vector.load %arg8[%c0_23, %c0_24] : memref<256x1xf32, #tpu.memory_space<vmem>>, vector<256x1xf32>
      tpu.vector_store %arg8[%c0_23, %c0_24], %45 {strides = array<i32>} : memref<256x1xf32, #tpu.memory_space<vmem>>, vector<256x1xf32>,
      %c0_25 = arith.constant 0 : index
      %c0_26 = arith.constant 0 : index
      %47 = vector.load %arg9[%c0_25, %c0_26] : memref<256x128xf32, #tpu.memory_space<vmem>>, vector<256x128xf32>
      %48 = vector.broadcast %37 : vector<256x1xf32> to vector<256x128xf32>
      %49 = arith.mulf %48, %47 : vector<256x128xf32>
      %50 = arith.truncf %40 : vector<256x256xf32> to vector<256x256xbf16>
      %cst_27 = arith.constant dense<0.000000e+00> : vector<256x128xf32>
      %51 = tpu.matmul %50, %18, %cst_27 {dimension_numbers = #tpu.dot_dimension_numbers<[1], [0], [0], [1], [0, 0, 1, 1], [], []>} : vector<256x256xbf16>, vector<256x128xbf16>, vector<256x128xf32> -> vector<256x128xf32>
      %52 = arith.addf %49, %51 : vector<256x128xf32>
      %c0_28 = arith.constant 0 : index
      %c0_29 = arith.constant 0 : index
      %53 = vector.load %arg9[%c0_28, %c0_29] : memref<256x128xf32, #tpu.memory_space<vmem>>, vector<256x128xf32>
      tpu.vector_store %arg9[%c0_28, %c0_29], %52 {strides = array<i32>} : memref<256x128xf32, #tpu.memory_space<vmem>>, vector<256x128xf32>,
      %c0_30 = arith.constant 0 : index
      %c0_31 = arith.constant 0 : index
      %54 = vector.load %arg7[%c0_30, %c0_31] : memref<256x1xf32, #tpu.memory_space<vmem>>, vector<256x1xf32>
      tpu.vector_store %arg7[%c0_30, %c0_31], %35 {strides = array<i32>} : memref<256x1xf32, #tpu.memory_space<vmem>>, vector<256x1xf32>,
    } else {
    }
    %c1_i32_4 = arith.constant 1 : i32
    %10 = arith.cmpi eq, %arg2, %c1_i32_4 : i32
    %11 = arith.extui %10 : i1 to i32
    %c0_i32_5 = arith.constant 0 : i32
    %12 = arith.cmpi ne, %11, %c0_i32_5 : i32
    scf.if %12 {
      %c0 = arith.constant 0 : index
      %c0_6 = arith.constant 0 : index
      %13 = vector.load %arg8[%c0, %c0_6] : memref<256x1xf32, #tpu.memory_space<vmem>>, vector<256x1xf32>
      %14 = tpu.reciprocal %13 {approx = true} : vector<256x1xf32> -> vector<256x1xf32>
      %c0_7 = arith.constant 0 : index
      %c0_8 = arith.constant 0 : index
      %15 = vector.load %arg9[%c0_7, %c0_8] : memref<256x128xf32, #tpu.memory_space<vmem>>, vector<256x128xf32>
      %16 = vector.broadcast %14 : vector<256x1xf32> to vector<256x128xf32>
      %17 = arith.mulf %15, %16 : vector<256x128xf32>
      %18 = arith.truncf %17 : vector<256x128xf32> to vector<256x128xbf16>
      %c0_9 = arith.constant 0 : index
      %c0_10 = arith.constant 0 : index
      %c0_11 = arith.constant 0 : index
      %19 = vector.load %arg6[%c0_9, %c0_10, %c0_11] : memref<1x256x128xbf16, #tpu.memory_space<vmem>>, vector<1x256x128xbf16>
      %20 = vector.shape_cast %19 : vector<1x256x128xbf16> to vector<256x128xbf16>
      %21 = vector.shape_cast %18 : vector<256x128xbf16> to vector<1x256x128xbf16>
      tpu.vector_store %arg6[%c0_9, %c0_10, %c0_11], %21 {strides = array<i32>} : memref<1x256x128xbf16, #tpu.memory_space<vmem>>, vector<1x256x128xbf16>,
    } else {
    }
    return
  }
  func.func @transform_0(%arg0: i32, %arg1: i32, %arg2: i32) -> (i32, i32, i32) {
    %c0_i32 = arith.constant 0 : i32
    %c0_i32_0 = arith.constant 0 : i32
    return %arg0, %arg1, %c0_i32 : i32, i32, i32
  }
  func.func @transform_1(%arg0: i32, %arg1: i32, %arg2: i32) -> (i32, i32, i32) {
    %c0_i32 = arith.constant 0 : i32
    %c0_i32_0 = arith.constant 0 : i32
    return %arg0, %arg2, %c0_i32 : i32, i32, i32
  }
  func.func @transform_2(%arg0: i32, %arg1: i32, %arg2: i32) -> (i32, i32, i32) {
    %c0_i32 = arith.constant 0 : i32
    %c0_i32_0 = arith.constant 0 : i32
    return %arg0, %arg2, %c0_i32 : i32, i32, i32
  }
  func.func @transform_3(%arg0: i32, %arg1: i32, %arg2: i32) -> (i32, i32, i32) {
    %c0_i32 = arith.constant 0 : i32
    %c0_i32_0 = arith.constant 0 : i32
    return %arg0, %arg1, %c0_i32 : i32, i32, i32
  }
}

module attributes {stable_mosaic.version = 11 : i64} {
  func.func @_linear_kernel(%arg0: i32, %arg1: i32, %arg2: i32, %arg3: memref<512x128xbf16, #tpu.memory_space<vmem>>, %arg4: memref<128x128xbf16, #tpu.memory_space<vmem>>, %arg5: memref<1x128xf32, #tpu.memory_space<vmem>>, %arg6: memref<512x128xf32, #tpu.memory_space<vmem>>, %arg7: memref<512x128xf32, #tpu.memory_space<vmem>>) attributes {dimension_semantics = [#tpu.dimension_semantics<parallel>, #tpu.dimension_semantics<parallel>, #tpu.dimension_semantics<arbitrary>], iteration_bounds = array<i64: 2, 1, 1>, scalar_prefetch = 0 : i64, scratch_operands = 1 : i64, tpu.core_type = #tpu.core_type<tc>, window_params = [{transform_indices = @transform_0, window_bounds = array<i64: 512, 128>}, {transform_indices = @transform_1, window_bounds = array<i64: 128, 128>}, {transform_indices = @transform_2, window_bounds = array<i64: 1, 128>}, {transform_indices = @transform_3, window_bounds = array<i64: 512, 128>}]} {
    %c0_i32 = arith.constant 0 : i32
    %0 = arith.cmpi eq, %arg2, %c0_i32 : i32
    %1 = arith.extui %0 : i1 to i32
    %c0_i32_0 = arith.constant 0 : i32
    %2 = arith.cmpi ne, %1, %c0_i32_0 : i32
    scf.if %2 {
      %cst_10 = arith.constant 0.000000e+00 : f32
      %12 = vector.broadcast %cst_10 : f32 to vector<512x128xf32>
      %c0_11 = arith.constant 0 : index
      %c0_12 = arith.constant 0 : index
      %13 = vector.load %arg7[%c0_11, %c0_12] : memref<512x128xf32, #tpu.memory_space<vmem>>, vector<512x128xf32>
      tpu.vector_store %arg7[%c0_11, %c0_12], %12 {strides = array<i32>} : memref<512x128xf32, #tpu.memory_space<vmem>>, vector<512x128xf32>,
    } else {
    }
    %c0 = arith.constant 0 : index
    %c0_1 = arith.constant 0 : index
    %3 = vector.load %arg7[%c0, %c0_1] : memref<512x128xf32, #tpu.memory_space<vmem>>, vector<512x128xf32>
    %c0_2 = arith.constant 0 : index
    %c0_3 = arith.constant 0 : index
    %4 = vector.load %arg3[%c0_2, %c0_3] : memref<512x128xbf16, #tpu.memory_space<vmem>>, vector<512x128xbf16>
    %c0_4 = arith.constant 0 : index
    %c0_5 = arith.constant 0 : index
    %5 = vector.load %arg4[%c0_4, %c0_5] : memref<128x128xbf16, #tpu.memory_space<vmem>>, vector<128x128xbf16>
    %cst = arith.constant dense<0.000000e+00> : vector<512x128xf32>
    %6 = tpu.matmul %4, %5, %cst {dimension_numbers = #tpu.dot_dimension_numbers<[1], [0], [0], [1], [0, 0, 1, 1], [], []>} : vector<512x128xbf16>, vector<128x128xbf16>, vector<512x128xf32> -> vector<512x128xf32>
    %7 = arith.addf %3, %6 : vector<512x128xf32>
    %c0_6 = arith.constant 0 : index
    %c0_7 = arith.constant 0 : index
    %8 = vector.load %arg7[%c0_6, %c0_7] : memref<512x128xf32, #tpu.memory_space<vmem>>, vector<512x128xf32>
    tpu.vector_store %arg7[%c0_6, %c0_7], %7 {strides = array<i32>} : memref<512x128xf32, #tpu.memory_space<vmem>>, vector<512x128xf32>,
    %c0_i32_8 = arith.constant 0 : i32
    %9 = arith.cmpi eq, %arg2, %c0_i32_8 : i32
    %10 = arith.extui %9 : i1 to i32
    %c0_i32_9 = arith.constant 0 : i32
    %11 = arith.cmpi ne, %10, %c0_i32_9 : i32
    scf.if %11 {
      %c0_10 = arith.constant 0 : index
      %c0_11 = arith.constant 0 : index
      %12 = vector.load %arg7[%c0_10, %c0_11] : memref<512x128xf32, #tpu.memory_space<vmem>>, vector<512x128xf32>
      %c0_12 = arith.constant 0 : index
      %c0_13 = arith.constant 0 : index
      %13 = vector.load %arg5[%c0_12, %c0_13] : memref<1x128xf32, #tpu.memory_space<vmem>>, vector<1x128xf32>
      %14 = vector.broadcast %13 : vector<1x128xf32> to vector<512x128xf32>
      %15 = arith.addf %12, %14 : vector<512x128xf32>
      %c0_14 = arith.constant 0 : index
      %c0_15 = arith.constant 0 : index
      %16 = vector.load %arg6[%c0_14, %c0_15] : memref<512x128xf32, #tpu.memory_space<vmem>>, vector<512x128xf32>
      tpu.vector_store %arg6[%c0_14, %c0_15], %15 {strides = array<i32>} : memref<512x128xf32, #tpu.memory_space<vmem>>, vector<512x128xf32>,
    } else {
    }
    return
  }
  func.func @transform_0(%arg0: i32, %arg1: i32, %arg2: i32) -> (i32, i32) {
    %c0_i32 = arith.constant 0 : i32
    return %arg0, %arg2 : i32, i32
  }
  func.func @transform_1(%arg0: i32, %arg1: i32, %arg2: i32) -> (i32, i32) {
    %c0_i32 = arith.constant 0 : i32
    return %arg2, %arg1 : i32, i32
  }
  func.func @transform_2(%arg0: i32, %arg1: i32, %arg2: i32) -> (i32, i32) {
    %c0_i32 = arith.constant 0 : i32
    %c0_i32_0 = arith.constant 0 : i32
    return %c0_i32, %arg1 : i32, i32
  }
  func.func @transform_3(%arg0: i32, %arg1: i32, %arg2: i32) -> (i32, i32) {
    %c0_i32 = arith.constant 0 : i32
    return %arg0, %arg1 : i32, i32
  }
}

module attributes {stable_mosaic.version = 11 : i64} {
  func.func @_qkv_proj_kernel(%arg0: i32, %arg1: i32, %arg2: memref<256x128xbf16, #tpu.memory_space<vmem>>, %arg3: memref<128x128xbf16, #tpu.memory_space<vmem>>, %arg4: memref<128x128xbf16, #tpu.memory_space<vmem>>, %arg5: memref<128x128xbf16, #tpu.memory_space<vmem>>, %arg6: memref<1x128xf32, #tpu.memory_space<vmem>>, %arg7: memref<1x128xf32, #tpu.memory_space<vmem>>, %arg8: memref<1x128xf32, #tpu.memory_space<vmem>>, %arg9: memref<256x128xbf16, #tpu.memory_space<vmem>>, %arg10: memref<256x128xbf16, #tpu.memory_space<vmem>>, %arg11: memref<256x128xbf16, #tpu.memory_space<vmem>>, %arg12: memref<256x128xf32, #tpu.memory_space<vmem>>, %arg13: memref<256x128xf32, #tpu.memory_space<vmem>>, %arg14: memref<256x128xf32, #tpu.memory_space<vmem>>) attributes {dimension_semantics = [#tpu.dimension_semantics<parallel>, #tpu.dimension_semantics<arbitrary>], iteration_bounds = array<i64: 4, 1>, scalar_prefetch = 0 : i64, scratch_operands = 3 : i64, tpu.core_type = #tpu.core_type<tc>, window_params = [{transform_indices = @transform_0, window_bounds = array<i64: 256, 128>}, {transform_indices = @transform_1, window_bounds = array<i64: 128, 128>}, {transform_indices = @transform_2, window_bounds = array<i64: 128, 128>}, {transform_indices = @transform_3, window_bounds = array<i64: 128, 128>}, {pipeline_mode = #tpu.pipeline_mode<synchronous>, transform_indices = @transform_4, window_bounds = array<i64: 1, 128>}, {pipeline_mode = #tpu.pipeline_mode<synchronous>, transform_indices = @transform_5, window_bounds = array<i64: 1, 128>}, {pipeline_mode = #tpu.pipeline_mode<synchronous>, transform_indices = @transform_6, window_bounds = array<i64: 1, 128>}, {transform_indices = @transform_7, window_bounds = array<i64: 256, 128>}, {transform_indices = @transform_8, window_bounds = array<i64: 256, 128>}, {transform_indices = @transform_9, window_bounds = array<i64: 256, 128>}]} {
    %c0_i32 = arith.constant 0 : i32
    %0 = arith.cmpi eq, %arg1, %c0_i32 : i32
    %1 = arith.extui %0 : i1 to i32
    %c0_i32_0 = arith.constant 0 : i32
    %2 = arith.cmpi ne, %1, %c0_i32_0 : i32
    scf.if %2 {
      %cst_24 = arith.constant 0.000000e+00 : f32
      %22 = vector.broadcast %cst_24 : f32 to vector<256x128xf32>
      %c0_25 = arith.constant 0 : index
      %c0_26 = arith.constant 0 : index
      %23 = vector.load %arg12[%c0_25, %c0_26] : memref<256x128xf32, #tpu.memory_space<vmem>>, vector<256x128xf32>
      tpu.vector_store %arg12[%c0_25, %c0_26], %22 {strides = array<i32>} : memref<256x128xf32, #tpu.memory_space<vmem>>, vector<256x128xf32>,
      %cst_27 = arith.constant 0.000000e+00 : f32
      %24 = vector.broadcast %cst_27 : f32 to vector<256x128xf32>
      %c0_28 = arith.constant 0 : index
      %c0_29 = arith.constant 0 : index
      %25 = vector.load %arg13[%c0_28, %c0_29] : memref<256x128xf32, #tpu.memory_space<vmem>>, vector<256x128xf32>
      tpu.vector_store %arg13[%c0_28, %c0_29], %24 {strides = array<i32>} : memref<256x128xf32, #tpu.memory_space<vmem>>, vector<256x128xf32>,
      %cst_30 = arith.constant 0.000000e+00 : f32
      %26 = vector.broadcast %cst_30 : f32 to vector<256x128xf32>
      %c0_31 = arith.constant 0 : index
      %c0_32 = arith.constant 0 : index
      %27 = vector.load %arg14[%c0_31, %c0_32] : memref<256x128xf32, #tpu.memory_space<vmem>>, vector<256x128xf32>
      tpu.vector_store %arg14[%c0_31, %c0_32], %26 {strides = array<i32>} : memref<256x128xf32, #tpu.memory_space<vmem>>, vector<256x128xf32>,
    } else {
    }
    %c0 = arith.constant 0 : index
    %c0_1 = arith.constant 0 : index
    %3 = vector.load %arg2[%c0, %c0_1] : memref<256x128xbf16, #tpu.memory_space<vmem>>, vector<256x128xbf16>
    %c0_2 = arith.constant 0 : index
    %c0_3 = arith.constant 0 : index
    %4 = vector.load %arg12[%c0_2, %c0_3] : memref<256x128xf32, #tpu.memory_space<vmem>>, vector<256x128xf32>
    %c0_4 = arith.constant 0 : index
    %c0_5 = arith.constant 0 : index
    %5 = vector.load %arg3[%c0_4, %c0_5] : memref<128x128xbf16, #tpu.memory_space<vmem>>, vector<128x128xbf16>
    %cst = arith.constant dense<0.000000e+00> : vector<256x128xf32>
    %6 = tpu.matmul %3, %5, %cst {dimension_numbers = #tpu.dot_dimension_numbers<[1], [0], [0], [1], [0, 0, 1, 1], [], []>} : vector<256x128xbf16>, vector<128x128xbf16>, vector<256x128xf32> -> vector<256x128xf32>
    %7 = arith.addf %4, %6 : vector<256x128xf32>
    %c0_6 = arith.constant 0 : index
    %c0_7 = arith.constant 0 : index
    %8 = vector.load %arg12[%c0_6, %c0_7] : memref<256x128xf32, #tpu.memory_space<vmem>>, vector<256x128xf32>
    tpu.vector_store %arg12[%c0_6, %c0_7], %7 {strides = array<i32>} : memref<256x128xf32, #tpu.memory_space<vmem>>, vector<256x128xf32>,
    %c0_8 = arith.constant 0 : index
    %c0_9 = arith.constant 0 : index
    %9 = vector.load %arg13[%c0_8, %c0_9] : memref<256x128xf32, #tpu.memory_space<vmem>>, vector<256x128xf32>
    %c0_10 = arith.constant 0 : index
    %c0_11 = arith.constant 0 : index
    %10 = vector.load %arg4[%c0_10, %c0_11] : memref<128x128xbf16, #tpu.memory_space<vmem>>, vector<128x128xbf16>
    %cst_12 = arith.constant dense<0.000000e+00> : vector<256x128xf32>
    %11 = tpu.matmul %3, %10, %cst_12 {dimension_numbers = #tpu.dot_dimension_numbers<[1], [0], [0], [1], [0, 0, 1, 1], [], []>} : vector<256x128xbf16>, vector<128x128xbf16>, vector<256x128xf32> -> vector<256x128xf32>
    %12 = arith.addf %9, %11 : vector<256x128xf32>
    %c0_13 = arith.constant 0 : index
    %c0_14 = arith.constant 0 : index
    %13 = vector.load %arg13[%c0_13, %c0_14] : memref<256x128xf32, #tpu.memory_space<vmem>>, vector<256x128xf32>
    tpu.vector_store %arg13[%c0_13, %c0_14], %12 {strides = array<i32>} : memref<256x128xf32, #tpu.memory_space<vmem>>, vector<256x128xf32>,
    %c0_15 = arith.constant 0 : index
    %c0_16 = arith.constant 0 : index
    %14 = vector.load %arg14[%c0_15, %c0_16] : memref<256x128xf32, #tpu.memory_space<vmem>>, vector<256x128xf32>
    %c0_17 = arith.constant 0 : index
    %c0_18 = arith.constant 0 : index
    %15 = vector.load %arg5[%c0_17, %c0_18] : memref<128x128xbf16, #tpu.memory_space<vmem>>, vector<128x128xbf16>
    %cst_19 = arith.constant dense<0.000000e+00> : vector<256x128xf32>
    %16 = tpu.matmul %3, %15, %cst_19 {dimension_numbers = #tpu.dot_dimension_numbers<[1], [0], [0], [1], [0, 0, 1, 1], [], []>} : vector<256x128xbf16>, vector<128x128xbf16>, vector<256x128xf32> -> vector<256x128xf32>
    %17 = arith.addf %14, %16 : vector<256x128xf32>
    %c0_20 = arith.constant 0 : index
    %c0_21 = arith.constant 0 : index
    %18 = vector.load %arg14[%c0_20, %c0_21] : memref<256x128xf32, #tpu.memory_space<vmem>>, vector<256x128xf32>
    tpu.vector_store %arg14[%c0_20, %c0_21], %17 {strides = array<i32>} : memref<256x128xf32, #tpu.memory_space<vmem>>, vector<256x128xf32>,
    %c0_i32_22 = arith.constant 0 : i32
    %19 = arith.cmpi eq, %arg1, %c0_i32_22 : i32
    %20 = arith.extui %19 : i1 to i32
    %c0_i32_23 = arith.constant 0 : i32
    %21 = arith.cmpi ne, %20, %c0_i32_23 : i32
    scf.if %21 {
      %c0_24 = arith.constant 0 : index
      %c0_25 = arith.constant 0 : index
      %22 = vector.load %arg12[%c0_24, %c0_25] : memref<256x128xf32, #tpu.memory_space<vmem>>, vector<256x128xf32>
      %c0_26 = arith.constant 0 : index
      %c0_27 = arith.constant 0 : index
      %23 = vector.load %arg6[%c0_26, %c0_27] : memref<1x128xf32, #tpu.memory_space<vmem>>, vector<1x128xf32>
      %24 = vector.broadcast %23 : vector<1x128xf32> to vector<256x128xf32>
      %25 = arith.addf %22, %24 : vector<256x128xf32>
      %26 = arith.truncf %25 : vector<256x128xf32> to vector<256x128xbf16>
      %c0_28 = arith.constant 0 : index
      %c0_29 = arith.constant 0 : index
      %27 = vector.load %arg9[%c0_28, %c0_29] : memref<256x128xbf16, #tpu.memory_space<vmem>>, vector<256x128xbf16>
      tpu.vector_store %arg9[%c0_28, %c0_29], %26 {strides = array<i32>} : memref<256x128xbf16, #tpu.memory_space<vmem>>, vector<256x128xbf16>,
      %c0_30 = arith.constant 0 : index
      %c0_31 = arith.constant 0 : index
      %28 = vector.load %arg13[%c0_30, %c0_31] : memref<256x128xf32, #tpu.memory_space<vmem>>, vector<256x128xf32>
      %c0_32 = arith.constant 0 : index
      %c0_33 = arith.constant 0 : index
      %29 = vector.load %arg7[%c0_32, %c0_33] : memref<1x128xf32, #tpu.memory_space<vmem>>, vector<1x128xf32>
      %30 = vector.broadcast %29 : vector<1x128xf32> to vector<256x128xf32>
      %31 = arith.addf %28, %30 : vector<256x128xf32>
      %32 = arith.truncf %31 : vector<256x128xf32> to vector<256x128xbf16>
      %c0_34 = arith.constant 0 : index
      %c0_35 = arith.constant 0 : index
      %33 = vector.load %arg10[%c0_34, %c0_35] : memref<256x128xbf16, #tpu.memory_space<vmem>>, vector<256x128xbf16>
      tpu.vector_store %arg10[%c0_34, %c0_35], %32 {strides = array<i32>} : memref<256x128xbf16, #tpu.memory_space<vmem>>, vector<256x128xbf16>,
      %c0_36 = arith.constant 0 : index
      %c0_37 = arith.constant 0 : index
      %34 = vector.load %arg14[%c0_36, %c0_37] : memref<256x128xf32, #tpu.memory_space<vmem>>, vector<256x128xf32>
      %c0_38 = arith.constant 0 : index
      %c0_39 = arith.constant 0 : index
      %35 = vector.load %arg8[%c0_38, %c0_39] : memref<1x128xf32, #tpu.memory_space<vmem>>, vector<1x128xf32>
      %36 = vector.broadcast %35 : vector<1x128xf32> to vector<256x128xf32>
      %37 = arith.addf %34, %36 : vector<256x128xf32>
      %38 = arith.truncf %37 : vector<256x128xf32> to vector<256x128xbf16>
      %c0_40 = arith.constant 0 : index
      %c0_41 = arith.constant 0 : index
      %39 = vector.load %arg11[%c0_40, %c0_41] : memref<256x128xbf16, #tpu.memory_space<vmem>>, vector<256x128xbf16>
      tpu.vector_store %arg11[%c0_40, %c0_41], %38 {strides = array<i32>} : memref<256x128xbf16, #tpu.memory_space<vmem>>, vector<256x128xbf16>,
    } else {
    }
    return
  }
  func.func @transform_0(%arg0: i32, %arg1: i32) -> (i32, i32) {
    %c0_i32 = arith.constant 0 : i32
    return %arg0, %arg1 : i32, i32
  }
  func.func @transform_1(%arg0: i32, %arg1: i32) -> (i32, i32) {
    %c0_i32 = arith.constant 0 : i32
    %c0_i32_0 = arith.constant 0 : i32
    return %arg1, %c0_i32 : i32, i32
  }
  func.func @transform_2(%arg0: i32, %arg1: i32) -> (i32, i32) {
    %c0_i32 = arith.constant 0 : i32
    %c0_i32_0 = arith.constant 0 : i32
    return %arg1, %c0_i32 : i32, i32
  }
  func.func @transform_3(%arg0: i32, %arg1: i32) -> (i32, i32) {
    %c0_i32 = arith.constant 0 : i32
    %c0_i32_0 = arith.constant 0 : i32
    return %arg1, %c0_i32 : i32, i32
  }
  func.func @transform_4(%arg0: i32, %arg1: i32) -> (i32, i32) {
    %c0_i32 = arith.constant 0 : i32
    %c0_i32_0 = arith.constant 0 : i32
    %c0_i32_1 = arith.constant 0 : i32
    return %c0_i32, %c0_i32_0 : i32, i32
  }
  func.func @transform_5(%arg0: i32, %arg1: i32) -> (i32, i32) {
    %c0_i32 = arith.constant 0 : i32
    %c0_i32_0 = arith.constant 0 : i32
    %c0_i32_1 = arith.constant 0 : i32
    return %c0_i32, %c0_i32_0 : i32, i32
  }
  func.func @transform_6(%arg0: i32, %arg1: i32) -> (i32, i32) {
    %c0_i32 = arith.constant 0 : i32
    %c0_i32_0 = arith.constant 0 : i32
    %c0_i32_1 = arith.constant 0 : i32
    return %c0_i32, %c0_i32_0 : i32, i32
  }
  func.func @transform_7(%arg0: i32, %arg1: i32) -> (i32, i32) {
    %c0_i32 = arith.constant 0 : i32
    %c0_i32_0 = arith.constant 0 : i32
    return %arg0, %c0_i32 : i32, i32
  }
  func.func @transform_8(%arg0: i32, %arg1: i32) -> (i32, i32) {
    %c0_i32 = arith.constant 0 : i32
    %c0_i32_0 = arith.constant 0 : i32
    return %arg0, %c0_i32 : i32, i32
  }
  func.func @transform_9(%arg0: i32, %arg1: i32) -> (i32, i32) {
    %c0_i32 = arith.constant 0 : i32
    %c0_i32_0 = arith.constant 0 : i32
    return %arg0, %c0_i32 : i32, i32
  }
}

</mosaic_0001>

<llo_original>
// kernel: causal_self_attention.5
$region0: #{causal_self_attention.5}
  #allocation0 [shape = 'u32[]', space=smem, size = 0x4, offset = 0x4, fixed_abs, tag = 'smem constant byte address 0x4 - core index']
  #allocation1 [shape = 'u32[144,128]{1,0:T(1,128)}', space=vmem, size = 0x12000, scoped, tag = 'internal scratch']
  #allocation2 [shape = 'f32[512,128]{1,0:T(8,128)}', space=vmem, size = 0x40000, scoped, tag = 'scratch operand']
  %s0 = inlined_call_operand.vmem [shape: bf16[1024,128], index: 0, kind: input, shape index: {}]
  %s1 = inlined_call_operand.vmem [shape: bf16[128,128], index: 1, kind: input, shape index: {}]
  %s2 = inlined_call_operand.vmem [shape: f32[1,128], index: 2, kind: input, shape index: {}]
  %s3 = inlined_call_operand.hbm [shape: f32[1024,128], index: 3, kind: output, shape index: {}]
  %s4 = sld [smem:[#allocation0]]
  $region53: #{causal_self_attention.5} parent=0
    _
  %s6 = ssub.s32 1, %s4
  %s7 = scalar_select 0, %s6, %s4
  $region1: #{causal_self_attention.5} parent=0
    #allocation3 [shape = 'u8[524288]{0}', space=vmem, size = 0x80000, scoped, tag = 'output window, operand 0']
    #allocation4 [shape = 's32[2]{0}', space=sflag, size = 0x8, scoped, tag = 'scoped memory for causal_self_attention.5']
    %8 = vsyncpa [#allocation4], 0
    %s9 = scalar_lea.sflag [#allocation4], 1
    %10 = vsyncpa %s9, 0
    loop: start=0, step=1, limit=4
    $region2: #{causal_self_attention.5} parent=1 // loop_pre_header
      _
    $region3: #{causal_self_attention.5} parent=1 // loop_header
      %s12 = sphi 0, %s16
      %p13 = scmp.ge.s32.totalorder %s12, 4
      %s19 = sphi 0, %s38
      %s20 = sphi 0, %s34
      %s21 = sphi 0, %s30
      %s22 = sphi 0, %s19
      %s23 = sphi 0, %s20
      %s24 = sphi 0, %s21
      %s25 = sphi 0, %s22
      %s26 = sphi 0, %s23
      %s27 = sphi 0, %s24
      %s43 = sphi 0, %s45
      %s46 = sphi 0, %s43
      %s47 = sphi 0, %s46
      %s63 = sphi 0, %s47
      %s71 = sphi 0, %s73
      %s74 = sphi 0, %s71
      %s75 = sphi 0, %s74
      %s91 = sphi 0, %s75
      %s97 = sphi 0, %s99
      %s100 = sphi 0, %s97
      %s101 = sphi 0, %s100
      %s117 = sphi 0, %s101
      %s125 = sphi 0, %s127
      %s128 = sphi 0, %s125
      %s129 = sphi 0, %s128
      %s145 = sphi 0, %s129
    $region4: #{causal_self_attention.5} parent=1 // loop_header_branch
      %15 = sbr.rel (%p13) target = $region8
    $region5: #{causal_self_attention.5} parent=1 // loop_body
      %s17 = ssub.s32 %s12, 1
      %s18 = ssub.s32 %s12, 2
      %s28 = sadd.s32 1, %s21
      %p29 = scmp.ge.s32.totalorder %s28, 1
      %s30 = scalar_select %p29, 0, %s28
      %s31 = sadd.s32 1, %s20
      %s32 = scalar_select %p29, %s31, %s20
      %p33 = scmp.ge.s32.totalorder %s32, 1
      %s34 = scalar_select %p33, 0, %s32
      %s35 = sadd.s32 1, %s19
      %s36 = scalar_select %p33, %s35, %s19
      %p37 = scmp.ge.s32.totalorder %s36, 2
      %s38 = scalar_select %p37, 0, %s36
      %s39 = ssub.s32 %s19, %s38
      %s40 = ssub.s32 %s21, %s30
      %s41 = sor.u32 %s39, %s40
      %p42 = scmp.eq.s32.totalorder %s41, 0
      %s44 = sadd.s32 %s43, 1
      %s45 = scalar_select %p42, %s43, %s44
      %p48 = pneg %p42
      %p49 = scmp.eq.s32.totalorder %s12, 1
      %p50 = por %p48, %p49
      %p51 = scmp.ne.s32.totalorder %s43, %s46
      %p52 = scmp.eq.s32.totalorder %s12, 0
      %p53 = por %p51, %p52
      %p54 = scmp.ne.s32.totalorder %s43, %s46
      %p55 = scmp.eq.s32.totalorder %s17, 1
      %p56 = por %p54, %p55
      %p57 = scmp.ne.s32.totalorder %s46, %s47
      %p58 = scmp.eq.s32.totalorder %s17, 0
      %p59 = por %p57, %p58
      %p60 = scmp.ne.s32.totalorder %s46, %s47
      %p61 = scmp.eq.s32.totalorder %s18, 1
      %p62 = por %p60, %p61
      %p64 = scmp.ne.s32.totalorder %s47, %s63
      %p65 = scmp.eq.s32.totalorder %s18, 0
      %p66 = por %p64, %p65
      %s67 = ssub.s32 %s21, %s30
      %s68 = ssub.s32 %s20, %s34
      %s69 = sor.u32 %s67, %s68
      %p70 = scmp.eq.s32.totalorder %s69, 0
      %s72 = sadd.s32 %s71, 1
      %s73 = scalar_select %p70, %s71, %s72
      %p76 = pneg %p70
      %p77 = scmp.eq.s32.totalorder %s12, 1
      %p78 = por %p76, %p77
      %p79 = scmp.ne.s32.totalorder %s71, %s74
      %p80 = scmp.eq.s32.totalorder %s12, 0
      %p81 = por %p79, %p80
      %p82 = scmp.ne.s32.totalorder %s71, %s74
      %p83 = scmp.eq.s32.totalorder %s17, 1
      %p84 = por %p82, %p83
      %p85 = scmp.ne.s32.totalorder %s74, %s75
      %p86 = scmp.eq.s32.totalorder %s17, 0
      %p87 = por %p85, %p86
      %p88 = scmp.ne.s32.totalorder %s74, %s75
      %p89 = scmp.eq.s32.totalorder %s18, 1
      %p90 = por %p88, %p89
      %p92 = scmp.ne.s32.totalorder %s75, %s91
      %p93 = scmp.eq.s32.totalorder %s18, 0
      %p94 = por %p92, %p93
      %s95 = ssub.s32 %s20, %s34
      %p96 = scmp.eq.s32.totalorder %s95, 0
      %s98 = sadd.s32 %s97, 1
      %s99 = scalar_select %p96, %s97, %s98
      %p102 = pneg %p96
      %p103 = scmp.eq.s32.totalorder %s12, 1
      %p104 = por %p102, %p103
      %p105 = scmp.ne.s32.totalorder %s97, %s100
      %p106 = scmp.eq.s32.totalorder %s12, 0
      %p107 = por %p105, %p106
      %p108 = scmp.ne.s32.totalorder %s97, %s100
      %p109 = scmp.eq.s32.totalorder %s17, 1
      %p110 = por %p108, %p109
      %p111 = scmp.ne.s32.totalorder %s100, %s101
      %p112 = scmp.eq.s32.totalorder %s17, 0
      %p113 = por %p111, %p112
      %p114 = scmp.ne.s32.totalorder %s100, %s101
      %p115 = scmp.eq.s32.totalorder %s18, 1
      %p116 = por %p114, %p115
      %p118 = scmp.ne.s32.totalorder %s101, %s117
      %p119 = scmp.eq.s32.totalorder %s18, 0
      %p120 = por %p118, %p119
      %s121 = ssub.s32 %s19, %s38
      %s122 = ssub.s32 %s20, %s34
      %s123 = sor.u32 %s121, %s122
      %p124 = scmp.eq.s32.totalorder %s123, 0
      %s126 = sadd.s32 %s125, 1
      %s127 = scalar_select %p124, %s125, %s126
      %p130 = pneg %p124
      %p131 = scmp.eq.s32.totalorder %s12, 1
      %p132 = por %p130, %p131
      %p133 = scmp.ne.s32.totalorder %s125, %s128
      %p134 = scmp.eq.s32.totalorder %s12, 0
      %p135 = por %p133, %p134
      %p136 = scmp.ne.s32.totalorder %s125, %s128
      %p137 = scmp.eq.s32.totalorder %s17, 1
      %p138 = por %p136, %p137
      %p139 = scmp.ne.s32.totalorder %s128, %s129
      %p140 = scmp.eq.s32.totalorder %s17, 0
      %p141 = por %p139, %p140
      %p142 = scmp.ne.s32.totalorder %s128, %s129
      %p143 = scmp.eq.s32.totalorder %s18, 1
      %p144 = por %p142, %p143
      %p146 = scmp.ne.s32.totalorder %s129, %s145
      %p147 = scmp.eq.s32.totalorder %s18, 0
      %p148 = por %p146, %p147
      %p149 = scmp.le.s32.totalorder 1, %s12
      %p150 = scmp.lt.s32.totalorder %s12, 3
      %p151 = pnand %p149, %p150
      %p152 = pneg %p151
      // Predicated region
      $region9: #{causal_self_attention.5} parent=5 // pred_check
        _
      $region10: #{causal_self_attention.5} parent=5 // pred_check_branch
        %154 = sbr.rel (%p151) target = $region12
      $region11: #{causal_self_attention.5} parent=5 // pred_region
        %s155 = ssub.s32 %s12, 1
        // Predicated region
        $region13: #{causal_self_attention.5} parent=11 // pred_check
          %p156 = pneg %p87
        $region14: #{causal_self_attention.5} parent=11 // pred_check_branch
          %158 = sbr.rel (%p156) target = $region16
        $region15: #{causal_self_attention.5} parent=11 // pred_region
          %s159 = smul.u32 16, %s24
          %p160 = scmp.lt.s32.totalorder %s159, 15
          %s161 = scalar_select %p160, %s159, 15
          %p162 = scmp.lt.s32.totalorder %s23, 0
          %s163 = scalar_select %p162, %s23, 0
          %s164 = sadd.s32 %s163, %s161
          %s165 = smul.addr %s164, 4
          %s166 = scalar_lea.vmem %s1, %s165
          %s167 = smul.u32 16, %s24
        $region16: #{causal_self_attention.5} parent=11 // pred_fallthru
          _
        // Predicated region
        $region17: #{causal_self_attention.5} parent=11 // pred_check
          %p168 = pneg %p113
        $region18: #{causal_self_attention.5} parent=11 // pred_check_branch
          %170 = sbr.rel (%p168) target = $region20
        $region19: #{causal_self_attention.5} parent=11 // pred_region
          %p171 = scmp.lt.s32.totalorder %s23, 0
          %s172 = scalar_select %p171, %s23, 0
          %s173 = scalar_lea.vmem %s2, %s172
        $region20: #{causal_self_attention.5} parent=11 // pred_fallthru
          _
      $region12: #{causal_self_attention.5} parent=5 // pred_fallthru
        _
      %p174 = scmp.lt.s32.totalorder %s12, 2
      // Predicated region
      $region21: #{causal_self_attention.5} parent=5 // pred_check
        %p175 = pneg %p174
      $region22: #{causal_self_attention.5} parent=5 // pred_check_branch
        %177 = sbr.rel (%p175) target = $region24
      $region23: #{causal_self_attention.5} parent=5 // pred_region
        // Predicated region
        $region25: #{causal_self_attention.5} parent=23 // pred_check
          %p178 = pneg %p53
        $region26: #{causal_self_attention.5} parent=23 // pred_check_branch
          %180 = sbr.rel (%p178) target = $region28
        $region27: #{causal_self_attention.5} parent=23 // pred_region
          %s181 = smul.u32 64, %s19
          %p182 = scmp.lt.s32.totalorder %s181, 127
          %s183 = scalar_select %p182, %s181, 127
          %p184 = scmp.lt.s32.totalorder %s21, 0
          %s185 = scalar_select %p184, %s21, 0
          %s186 = sadd.s32 %s185, %s183
          %s187 = smul.addr %s186, 4
          %s188 = scalar_lea.vmem %s0, %s187
          %s189 = smul.u32 64, %s19
        $region28: #{causal_self_attention.5} parent=23 // pred_fallthru
          _
      $region24: #{causal_self_attention.5} parent=5 // pred_fallthru
        _
      %p190 = scmp.le.s32.totalorder 1, %s12
      %p191 = scmp.lt.s32.totalorder %s12, 3
      %p192 = pnand %p190, %p191
      %p193 = pneg %p192
      // Predicated region
      $region29: #{causal_self_attention.5} parent=5 // pred_check
        _
      $region30: #{causal_self_attention.5} parent=5 // pred_check_branch
        %195 = sbr.rel (%p192) target = $region32
      $region31: #{causal_self_attention.5} parent=5 // pred_region
        %s196 = ssub.s32 %s12, 1
        %s197 = smul.u32 64, %s22
        %p198 = scmp.lt.s32.totalorder %s197, 127
        %s199 = scalar_select %p198, %s197, 127
        %p200 = scmp.lt.s32.totalorder %s24, 0
        %s201 = scalar_select %p200, %s24, 0
        %s202 = sadd.s32 %s201, %s199
        %s203 = smul.addr %s202, 4
        %s204 = scalar_lea.vmem %s0, %s203
        %p205 = pneg %p59
        %p206 = pneg %p56
        %s207 = smul.u32 16, %s24
        %p208 = scmp.lt.s32.totalorder %s207, 15
        %s209 = scalar_select %p208, %s207, 15
        %p210 = scmp.lt.s32.totalorder %s23, 0
        %s211 = scalar_select %p210, %s23, 0
        %s212 = sadd.s32 %s211, %s209
        %s213 = smul.addr %s212, 4
        %s214 = scalar_lea.vmem %s1, %s213
        %p215 = pneg %p87
        %p216 = pneg %p84
        %p217 = scmp.lt.s32.totalorder %s23, 0
        %s218 = scalar_select %p217, %s23, 0
        %s219 = scalar_lea.vmem %s2, %s218
        %p220 = pneg %p113
        %p221 = pneg %p110
        %p222 = pneg %p141
        %p223 = pneg %p138
        %s224 = sand.u32 %s128, 1
        %s225 = scalar_lea.sflag [#allocation4], %s224
        %s226 = sand.u32 %s128, 1
        %s227 = smul.addr %s226, 512
        %s228 = scalar_lea.vmem [#allocation3], %s227
        %s229 = smul.u32 64, %s22
        %p230 = scmp.lt.s32.totalorder %s229, 127
        %s231 = scalar_select %p230, %s229, 127
        %p232 = scmp.lt.s32.totalorder %s24, 0
        %s233 = scalar_select %p232, %s24, 0
        %s234 = sadd.s32 %s233, %s231
        %s235 = smul.addr %s234, 4
        %s236 = scalar_lea.vmem %s0, %s235
        %s237 = smul.u32 64, %s22
        %s238 = smul.u32 16, %s24
        %p239 = scmp.lt.s32.totalorder %s238, 15
        %s240 = scalar_select %p239, %s238, 15
        %p241 = scmp.lt.s32.totalorder %s23, 0
        %s242 = scalar_select %p241, %s23, 0
        %s243 = sadd.s32 %s242, %s240
        %s244 = smul.addr %s243, 4
        %s245 = scalar_lea.vmem %s1, %s244
        %s246 = smul.u32 16, %s24
        %p247 = scmp.lt.s32.totalorder %s23, 0
        %s248 = scalar_select %p247, %s23, 0
        %s249 = scalar_lea.vmem %s2, %s248
        %s250 = smul.u32 64, %s22
        %p252 = scmp.eq.s32.totalorder %s24, 0
        // Predicated region
        $region33: #{causal_self_attention.5} parent=31 // pred_check
          %p253 = pneg %p252
        $region34: #{causal_self_attention.5} parent=31 // pred_check_branch
          %255 = sbr.rel (%p253) target = $region36
        $region35: #{causal_self_attention.5} parent=31 // pred_region
          %256 = vst [vmem:[#allocation2] sm:$0xff] 0.0
          %257 = vst [vmem:[#allocation2 + $0x8] sm:$0xff] 0.0
          %258 = vst [vmem:[#allocation2 + $0x10] sm:$0xff] 0.0
          %259 = vst [vmem:[#allocation2 + $0x18] sm:$0xff] 0.0
          %260 = vst [vmem:[#allocation2 + $0x20] sm:$0xff] 0.0
          %261 = vst [vmem:[#allocation2 + $0x28] sm:$0xff] 0.0
          %262 = vst [vmem:[#allocation2 + $0x30] sm:$0xff] 0.0
          %263 = vst [vmem:[#allocation2 + $0x38] sm:$0xff] 0.0
          %264 = vst [vmem:[#allocation2 + $0x40] sm:$0xff] 0.0
          %265 = vst [vmem:[#allocation2 + $0x48] sm:$0xff] 0.0
          %266 = vst [vmem:[#allocation2 + $0x50] sm:$0xff] 0.0
          %267 = vst [vmem:[#allocation2 + $0x58] sm:$0xff] 0.0
          %268 = vst [vmem:[#allocation2 + $0x60] sm:$0xff] 0.0
          %269 = vst [vmem:[#allocation2 + $0x68] sm:$0xff] 0.0
          %270 = vst [vmem:[#allocation2 + $0x70] sm:$0xff] 0.0
          %271 = vst [vmem:[#allocation2 + $0x78] sm:$0xff] 0.0
          %272 = vst [vmem:[#allocation2 + $0x80] sm:$0xff] 0.0
          %273 = vst [vmem:[#allocation2 + $0x88] sm:$0xff] 0.0
          %274 = vst [vmem:[#allocation2 + $0x90] sm:$0xff] 0.0
          %275 = vst [vmem:[#allocation2 + $0x98] sm:$0xff] 0.0
          %276 = vst [vmem:[#allocation2 + $0xa0] sm:$0xff] 0.0
          %277 = vst [vmem:[#allocation2 + $0xa8] sm:$0xff] 0.0
          %278 = vst [vmem:[#allocation2 + $0xb0] sm:$0xff] 0.0
          %279 = vst [vmem:[#allocation2 + $0xb8] sm:$0xff] 0.0
          %280 = vst [vmem:[#allocation2 + $0xc0] sm:$0xff] 0.0
          %281 = vst [vmem:[#allocation2 + $0xc8] sm:$0xff] 0.0
          %282 = vst [vmem:[#allocation2 + $0xd0] sm:$0xff] 0.0
          %283 = vst [vmem:[#allocation2 + $0xd8] sm:$0xff] 0.0
          %284 = vst [vmem:[#allocation2 + $0xe0] sm:$0xff] 0.0
          %285 = vst [vmem:[#allocation2 + $0xe8] sm:$0xff] 0.0
          %286 = vst [vmem:[#allocation2 + $0xf0] sm:$0xff] 0.0
          %287 = vst [vmem:[#allocation2 + $0xf8] sm:$0xff] 0.0
          %288 = vst [vmem:[#allocation2 + $0x100] sm:$0xff] 0.0
          %289 = vst [vmem:[#allocation2 + $0x108] sm:$0xff] 0.0
          %290 = vst [vmem:[#allocation2 + $0x110] sm:$0xff] 0.0
          %291 = vst [vmem:[#allocation2 + $0x118] sm:$0xff] 0.0
          %292 = vst [vmem:[#allocation2 + $0x120] sm:$0xff] 0.0
          %293 = vst [vmem:[#allocation2 + $0x128] sm:$0xff] 0.0
          %294 = vst [vmem:[#allocation2 + $0x130] sm:$0xff] 0.0
          %295 = vst [vmem:[#allocation2 + $0x138] sm:$0xff] 0.0
          %296 = vst [vmem:[#allocation2 + $0x140] sm:$0xff] 0.0
          %297 = vst [vmem:[#allocation2 + $0x148] sm:$0xff] 0.0
          %298 = vst [vmem:[#allocation2 + $0x150] sm:$0xff] 0.0
          %299 = vst [vmem:[#allocation2 + $0x158] sm:$0xff] 0.0
          %300 = vst [vmem:[#allocation2 + $0x160] sm:$0xff] 0.0
          %301 = vst [vmem:[#allocation2 + $0x168] sm:$0xff] 0.0
          %302 = vst [vmem:[#allocation2 + $0x170] sm:$0xff] 0.0
          %303 = vst [vmem:[#allocation2 + $0x178] sm:$0xff] 0.0
          %304 = vst [vmem:[#allocation2 + $0x180] sm:$0xff] 0.0
          %305 = vst [vmem:[#allocation2 + $0x188] sm:$0xff] 0.0
          %306 = vst [vmem:[#allocation2 + $0x190] sm:$0xff] 0.0
          %307 = vst [vmem:[#allocation2 + $0x198] sm:$0xff] 0.0
          %308 = vst [vmem:[#allocation2 + $0x1a0] sm:$0xff] 0.0
          %309 = vst [vmem:[#allocation2 + $0x1a8] sm:$0xff] 0.0
          %310 = vst [vmem:[#allocation2 + $0x1b0] sm:$0xff] 0.0
          %311 = vst [vmem:[#allocation2 + $0x1b8] sm:$0xff] 0.0
          %312 = vst [vmem:[#allocation2 + $0x1c0] sm:$0xff] 0.0
          %313 = vst [vmem:[#allocation2 + $0x1c8] sm:$0xff] 0.0
          %314 = vst [vmem:[#allocation2 + $0x1d0] sm:$0xff] 0.0
          %315 = vst [vmem:[#allocation2 + $0x1d8] sm:$0xff] 0.0
          %316 = vst [vmem:[#allocation2 + $0x1e0] sm:$0xff] 0.0
          %317 = vst [vmem:[#allocation2 + $0x1e8] sm:$0xff] 0.0
          %318 = vst [vmem:[#allocation2 + $0x1f0] sm:$0xff] 0.0
          %319 = vst [vmem:[#allocation2 + $0x1f8] sm:$0xff] 0.0
        $region36: #{causal_self_attention.5} parent=31 // pred_fallthru
          _
        %v320 = vld [vmem:[#allocation2] sm:$0xff]
        %v321 = vld [vmem:[#allocation2 + $0x8] sm:$0xff]
        %v322 = vld [vmem:[#allocation2 + $0x10] sm:$0xff]
        %v323 = vld [vmem:[#allocation2 + $0x18] sm:$0xff]
        %v324 = vld [vmem:[#allocation2 + $0x20] sm:$0xff]
        %v325 = vld [vmem:[#allocation2 + $0x28] sm:$0xff]
        %v326 = vld [vmem:[#allocation2 + $0x30] sm:$0xff]
        %v327 = vld [vmem:[#allocation2 + $0x38] sm:$0xff]
        %v328 = vld [vmem:[#allocation2 + $0x40] sm:$0xff]
        %v329 = vld [vmem:[#allocation2 + $0x48] sm:$0xff]
        %v330 = vld [vmem:[#allocation2 + $0x50] sm:$0xff]
        %v331 = vld [vmem:[#allocation2 + $0x58] sm:$0xff]
        %v332 = vld [vmem:[#allocation2 + $0x60] sm:$0xff]
        %v333 = vld [vmem:[#allocation2 + $0x68] sm:$0xff]
        %v334 = vld [vmem:[#allocation2 + $0x70] sm:$0xff]
        %v335 = vld [vmem:[#allocation2 + $0x78] sm:$0xff]
        %v336 = vld [vmem:[#allocation2 + $0x80] sm:$0xff]
        %v337 = vld [vmem:[#allocation2 + $0x88] sm:$0xff]
        %v338 = vld [vmem:[#allocation2 + $0x90] sm:$0xff]
        %v339 = vld [vmem:[#allocation2 + $0x98] sm:$0xff]
        %v340 = vld [vmem:[#allocation2 + $0xa0] sm:$0xff]
        %v341 = vld [vmem:[#allocation2 + $0xa8] sm:$0xff]
        %v342 = vld [vmem:[#allocation2 + $0xb0] sm:$0xff]
        %v343 = vld [vmem:[#allocation2 + $0xb8] sm:$0xff]
        %v344 = vld [vmem:[#allocation2 + $0xc0] sm:$0xff]
        %v345 = vld [vmem:[#allocation2 + $0xc8] sm:$0xff]
        %v346 = vld [vmem:[#allocation2 + $0xd0] sm:$0xff]
        %v347 = vld [vmem:[#allocation2 + $0xd8] sm:$0xff]
        %v348 = vld [vmem:[#allocation2 + $0xe0] sm:$0xff]
        %v349 = vld [vmem:[#allocation2 + $0xe8] sm:$0xff]
        %v350 = vld [vmem:[#allocation2 + $0xf0] sm:$0xff]
        %v351 = vld [vmem:[#allocation2 + $0xf8] sm:$0xff]
        %v352 = vld [vmem:[#allocation2 + $0x100] sm:$0xff]
        %v353 = vld [vmem:[#allocation2 + $0x108] sm:$0xff]
        %v354 = vld [vmem:[#allocation2 + $0x110] sm:$0xff]
        %v355 = vld [vmem:[#allocation2 + $0x118] sm:$0xff]
        %v356 = vld [vmem:[#allocation2 + $0x120] sm:$0xff]
        %v357 = vld [vmem:[#allocation2 + $0x128] sm:$0xff]
        %v358 = vld [vmem:[#allocation2 + $0x130] sm:$0xff]
        %v359 = vld [vmem:[#allocation2 + $0x138] sm:$0xff]
        %v360 = vld [vmem:[#allocation2 + $0x140] sm:$0xff]
        %v361 = vld [vmem:[#allocation2 + $0x148] sm:$0xff]
        %v362 = vld [vmem:[#allocation2 + $0x150] sm:$0xff]
        %v363 = vld [vmem:[#allocation2 + $0x158] sm:$0xff]
        %v364 = vld [vmem:[#allocation2 + $0x160] sm:$0xff]
        %v365 = vld [vmem:[#allocation2 + $0x168] sm:$0xff]
        %v366 = vld [vmem:[#allocation2 + $0x170] sm:$0xff]
        %v367 = vld [vmem:[#allocation2 + $0x178] sm:$0xff]
        %v368 = vld [vmem:[#allocation2 + $0x180] sm:$0xff]
        %v369 = vld [vmem:[#allocation2 + $0x188] sm:$0xff]
        %v370 = vld [vmem:[#allocation2 + $0x190] sm:$0xff]
        %v371 = vld [vmem:[#allocation2 + $0x198] sm:$0xff]
        %v372 = vld [vmem:[#allocation2 + $0x1a0] sm:$0xff]
        %v373 = vld [vmem:[#allocation2 + $0x1a8] sm:$0xff]
        %v374 = vld [vmem:[#allocation2 + $0x1b0] sm:$0xff]
        %v375 = vld [vmem:[#allocation2 + $0x1b8] sm:$0xff]
        %v376 = vld [vmem:[#allocation2 + $0x1c0] sm:$0xff]
        %v377 = vld [vmem:[#allocation2 + $0x1c8] sm:$0xff]
        %v378 = vld [vmem:[#allocation2 + $0x1d0] sm:$0xff]
        %v379 = vld [vmem:[#allocation2 + $0x1d8] sm:$0xff]
        %v380 = vld [vmem:[#allocation2 + $0x1e0] sm:$0xff]
        %v381 = vld [vmem:[#allocation2 + $0x1e8] sm:$0xff]
        %v382 = vld [vmem:[#allocation2 + $0x1f0] sm:$0xff]
        %v383 = vld [vmem:[#allocation2 + $0x1f8] sm:$0xff]
        %v384 = vld [vmem:[%s236] sm:$0xf]
        %v385 = vld [vmem:[%s236 + $0x4] sm:$0xf]
        %v386 = vld [vmem:[%s236 + $0x8] sm:$0xf]
        %v387 = vld [vmem:[%s236 + $0xc] sm:$0xf]
        %v388 = vld [vmem:[%s236 + $0x10] sm:$0xf]
        %v389 = vld [vmem:[%s236 + $0x14] sm:$0xf]
        %v390 = vld [vmem:[%s236 + $0x18] sm:$0xf]
        %v391 = vld [vmem:[%s236 + $0x1c] sm:$0xf]
        %v392 = vld [vmem:[%s236 + $0x20] sm:$0xf]
        %v393 = vld [vmem:[%s236 + $0x24] sm:$0xf]
        %v394 = vld [vmem:[%s236 + $0x28] sm:$0xf]
        %v395 = vld [vmem:[%s236 + $0x2c] sm:$0xf]
        %v396 = vld [vmem:[%s236 + $0x30] sm:$0xf]
        %v397 = vld [vmem:[%s236 + $0x34] sm:$0xf]
        %v398 = vld [vmem:[%s236 + $0x38] sm:$0xf]
        %v399 = vld [vmem:[%s236 + $0x3c] sm:$0xf]
        %v400 = vld [vmem:[%s236 + $0x40] sm:$0xf]
        %v401 = vld [vmem:[%s236 + $0x44] sm:$0xf]
        %v402 = vld [vmem:[%s236 + $0x48] sm:$0xf]
        %v403 = vld [vmem:[%s236 + $0x4c] sm:$0xf]
        %v404 = vld [vmem:[%s236 + $0x50] sm:$0xf]
        %v405 = vld [vmem:[%s236 + $0x54] sm:$0xf]
        %v406 = vld [vmem:[%s236 + $0x58] sm:$0xf]
        %v407 = vld [vmem:[%s236 + $0x5c] sm:$0xf]
        %v408 = vld [vmem:[%s236 + $0x60] sm:$0xf]
        %v409 = vld [vmem:[%s236 + $0x64] sm:$0xf]
        %v410 = vld [vmem:[%s236 + $0x68] sm:$0xf]
        %v411 = vld [vmem:[%s236 + $0x6c] sm:$0xf]
        %v412 = vld [vmem:[%s236 + $0x70] sm:$0xf]
        %v413 = vld [vmem:[%s236 + $0x74] sm:$0xf]
        %v414 = vld [vmem:[%s236 + $0x78] sm:$0xf]
        %v415 = vld [vmem:[%s236 + $0x7c] sm:$0xf]
        %v416 = vld [vmem:[%s236 + $0x80] sm:$0xf]
        %v417 = vld [vmem:[%s236 + $0x84] sm:$0xf]
        %v418 = vld [vmem:[%s236 + $0x88] sm:$0xf]
        %v419 = vld [vmem:[%s236 + $0x8c] sm:$0xf]
        %v420 = vld [vmem:[%s236 + $0x90] sm:$0xf]
        %v421 = vld [vmem:[%s236 + $0x94] sm:$0xf]
        %v422 = vld [vmem:[%s236 + $0x98] sm:$0xf]
        %v423 = vld [vmem:[%s236 + $0x9c] sm:$0xf]
        %v424 = vld [vmem:[%s236 + $0xa0] sm:$0xf]
        %v425 = vld [vmem:[%s236 + $0xa4] sm:$0xf]
        %v426 = vld [vmem:[%s236 + $0xa8] sm:$0xf]
        %v427 = vld [vmem:[%s236 + $0xac] sm:$0xf]
        %v428 = vld [vmem:[%s236 + $0xb0] sm:$0xf]
        %v429 = vld [vmem:[%s236 + $0xb4] sm:$0xf]
        %v430 = vld [vmem:[%s236 + $0xb8] sm:$0xf]
        %v431 = vld [vmem:[%s236 + $0xbc] sm:$0xf]
        %v432 = vld [vmem:[%s236 + $0xc0] sm:$0xf]
        %v433 = vld [vmem:[%s236 + $0xc4] sm:$0xf]
        %v434 = vld [vmem:[%s236 + $0xc8] sm:$0xf]
        %v435 = vld [vmem:[%s236 + $0xcc] sm:$0xf]
        %v436 = vld [vmem:[%s236 + $0xd0] sm:$0xf]
        %v437 = vld [vmem:[%s236 + $0xd4] sm:$0xf]
        %v438 = vld [vmem:[%s236 + $0xd8] sm:$0xf]
        %v439 = vld [vmem:[%s236 + $0xdc] sm:$0xf]
        %v440 = vld [vmem:[%s236 + $0xe0] sm:$0xf]
        %v441 = vld [vmem:[%s236 + $0xe4] sm:$0xf]
        %v442 = vld [vmem:[%s236 + $0xe8] sm:$0xf]
        %v443 = vld [vmem:[%s236 + $0xec] sm:$0xf]
        %v444 = vld [vmem:[%s236 + $0xf0] sm:$0xf]
        %v445 = vld [vmem:[%s236 + $0xf4] sm:$0xf]
        %v446 = vld [vmem:[%s236 + $0xf8] sm:$0xf]
        %v447 = vld [vmem:[%s236 + $0xfc] sm:$0xf]
        %v448 = vld [vmem:[%s245] sm:$0xf]
        %v449 = vld [vmem:[%s245 + $0x4] sm:$0xf]
        %v450 = vld [vmem:[%s245 + $0x8] sm:$0xf]
        %v451 = vld [vmem:[%s245 + $0xc] sm:$0xf]
        %v452 = vld [vmem:[%s245 + $0x10] sm:$0xf]
        %v453 = vld [vmem:[%s245 + $0x14] sm:$0xf]
        %v454 = vld [vmem:[%s245 + $0x18] sm:$0xf]
        %v455 = vld [vmem:[%s245 + $0x1c] sm:$0xf]
        %v456 = vld [vmem:[%s245 + $0x20] sm:$0xf]
        %v457 = vld [vmem:[%s245 + $0x24] sm:$0xf]
        %v458 = vld [vmem:[%s245 + $0x28] sm:$0xf]
        %v459 = vld [vmem:[%s245 + $0x2c] sm:$0xf]
        %v460 = vld [vmem:[%s245 + $0x30] sm:$0xf]
        %v461 = vld [vmem:[%s245 + $0x34] sm:$0xf]
        %v462 = vld [vmem:[%s245 + $0x38] sm:$0xf]
        %v463 = vld [vmem:[%s245 + $0x3c] sm:$0xf]
        %v528 = vunpack.c.l.b16 %v384
        %v529 = vunpack.c.l.b16 %v385
        %v530 = vunpack.c.l.b16 %v386
        %v531 = vunpack.c.l.b16 %v387
        %v532 = vunpack.c.l.b16 %v388
        %v533 = vunpack.c.l.b16 %v389
        %v534 = vunpack.c.l.b16 %v390
        %v535 = vunpack.c.l.b16 %v391
        %v536 = vunpack.c.l.b16 %v392
        %v537 = vunpack.c.l.b16 %v393
        %v538 = vunpack.c.l.b16 %v394
        %v539 = vunpack.c.l.b16 %v395
        %v540 = vunpack.c.l.b16 %v396
        %v541 = vunpack.c.l.b16 %v397
        %v542 = vunpack.c.l.b16 %v398
        %v543 = vunpack.c.l.b16 %v399
        %v544 = vunpack.c.l.b16 %v400
        %v545 = vunpack.c.l.b16 %v401
        %v546 = vunpack.c.l.b16 %v402
        %v547 = vunpack.c.l.b16 %v403
        %v548 = vunpack.c.l.b16 %v404
        %v549 = vunpack.c.l.b16 %v405
        %v550 = vunpack.c.l.b16 %v406
        %v551 = vunpack.c.l.b16 %v407
        %v552 = vunpack.c.l.b16 %v408
        %v553 = vunpack.c.l.b16 %v409
        %v554 = vunpack.c.l.b16 %v410
        %v555 = vunpack.c.l.b16 %v411
        %v556 = vunpack.c.l.b16 %v412
        %v557 = vunpack.c.l.b16 %v413
        %v558 = vunpack.c.l.b16 %v414
        %v559 = vunpack.c.l.b16 %v415
        %v560 = vunpack.c.l.b16 %v416
        %v561 = vunpack.c.l.b16 %v417
        %v562 = vunpack.c.l.b16 %v418
        %v563 = vunpack.c.l.b16 %v419
        %v564 = vunpack.c.l.b16 %v420
        %v565 = vunpack.c.l.b16 %v421
        %v566 = vunpack.c.l.b16 %v422
        %v567 = vunpack.c.l.b16 %v423
        %v568 = vunpack.c.l.b16 %v424
        %v569 = vunpack.c.l.b16 %v425
        %v570 = vunpack.c.l.b16 %v426
        %v571 = vunpack.c.l.b16 %v427
        %v572 = vunpack.c.l.b16 %v428
        %v573 = vunpack.c.l.b16 %v429
        %v574 = vunpack.c.l.b16 %v430
        %v575 = vunpack.c.l.b16 %v431
        %v576 = vunpack.c.l.b16 %v432
        %v577 = vunpack.c.l.b16 %v433
        %v578 = vunpack.c.l.b16 %v434
        %v579 = vunpack.c.l.b16 %v435
        %v580 = vunpack.c.l.b16 %v436
        %v581 = vunpack.c.l.b16 %v437
        %v582 = vunpack.c.l.b16 %v438
        %v583 = vunpack.c.l.b16 %v439
        %v584 = vunpack.c.l.b16 %v440
        %v585 = vunpack.c.l.b16 %v441
        %v586 = vunpack.c.l.b16 %v442
        %v587 = vunpack.c.l.b16 %v443
        %v588 = vunpack.c.l.b16 %v444
        %v589 = vunpack.c.l.b16 %v445
        %v590 = vunpack.c.l.b16 %v446
        %v591 = vunpack.c.l.b16 %v447
        %v592 = vpack.c.b16 %v529, %v528
        %v593 = vpack.c.b16 %v531, %v530
        %v594 = vpack.c.b16 %v533, %v532
        %v595 = vpack.c.b16 %v535, %v534
        %v596 = vpack.c.b16 %v537, %v536
        %v597 = vpack.c.b16 %v539, %v538
        %v598 = vpack.c.b16 %v541, %v540
        %v599 = vpack.c.b16 %v543, %v542
        %v600 = vpack.c.b16 %v545, %v544
        %v601 = vpack.c.b16 %v547, %v546
        %v602 = vpack.c.b16 %v549, %v548
        %v603 = vpack.c.b16 %v551, %v550
        %v604 = vpack.c.b16 %v553, %v552
        %v605 = vpack.c.b16 %v555, %v554
        %v606 = vpack.c.b16 %v557, %v556
        %v607 = vpack.c.b16 %v559, %v558
        %v608 = vpack.c.b16 %v561, %v560
        %v609 = vpack.c.b16 %v563, %v562
        %v610 = vpack.c.b16 %v565, %v564
        %v611 = vpack.c.b16 %v567, %v566
        %v612 = vpack.c.b16 %v569, %v568
        %v613 = vpack.c.b16 %v571, %v570
        %v614 = vpack.c.b16 %v573, %v572
        %v615 = vpack.c.b16 %v575, %v574
        %v616 = vpack.c.b16 %v577, %v576
        %v617 = vpack.c.b16 %v579, %v578
        %v618 = vpack.c.b16 %v581, %v580
        %v619 = vpack.c.b16 %v583, %v582
        %v620 = vpack.c.b16 %v585, %v584
        %v621 = vpack.c.b16 %v587, %v586
        %v622 = vpack.c.b16 %v589, %v588
        %v623 = vpack.c.b16 %v591, %v590
        %v672 = vunpack.c.l.b16 %v448
        %v673 = vunpack.c.l.b16 %v449
        %v674 = vunpack.c.l.b16 %v450
        %v675 = vunpack.c.l.b16 %v451
        %v676 = vunpack.c.l.b16 %v452
        %v677 = vunpack.c.l.b16 %v453
        %v678 = vunpack.c.l.b16 %v454
        %v679 = vunpack.c.l.b16 %v455
        %v680 = vunpack.c.l.b16 %v456
        %v681 = vunpack.c.l.b16 %v457
        %v682 = vunpack.c.l.b16 %v458
        %v683 = vunpack.c.l.b16 %v459
        %v684 = vunpack.c.l.b16 %v460
        %v685 = vunpack.c.l.b16 %v461
        %v686 = vunpack.c.l.b16 %v462
        %v687 = vunpack.c.l.b16 %v463
        %v688 = vpack.c.b16 %v673, %v672
        %v689 = vpack.c.b16 %v675, %v674
        %v690 = vpack.c.b16 %v677, %v676
        %v691 = vpack.c.b16 %v679, %v678
        %v692 = vpack.c.b16 %v681, %v680
        %v693 = vpack.c.b16 %v683, %v682
        %v694 = vpack.c.b16 %v685, %v684
        %v695 = vpack.c.b16 %v687, %v686
        %704 = vmatprep.subr.bf16.mxu0 0
        %705 = vmatpush1.bf16.msra.mxu0 %v688
        %706 = vmatprep.subr.bf16.mxu0 0
        %707 = vmatpush1.bf16.msra.mxu0 %v689
        %708 = vmatprep.subr.bf16.mxu0 0
        %709 = vmatpush1.bf16.msra.mxu0 %v690
        %710 = vmatprep.subr.bf16.mxu0 0
        %711 = vmatpush1.bf16.msra.mxu0 %v691
        %712 = vmatprep.subr.bf16.mxu0 0
        %713 = vmatpush1.bf16.msra.mxu0 %v692
        %714 = vmatprep.subr.bf16.mxu0 0
        %715 = vmatpush1.bf16.msra.mxu0 %v693
        %716 = vmatprep.subr.bf16.mxu0 0
        %717 = vmatpush1.bf16.msra.mxu0 %v694
        %718 = vmatprep.subr.bf16.mxu0 0
        %719 = vmatpush1.bf16.msra.mxu0 %v695
        %720 = vmatprep.subr.bf16.mxu0 0
        %721 = vmatpush1.bf16.msra.mxu0 0
        %722 = vmatprep.subr.bf16.mxu0 0
        %723 = vmatpush1.bf16.msra.mxu0 0
        %724 = vmatprep.subr.bf16.mxu0 0
        %725 = vmatpush1.bf16.msra.mxu0 0
        %726 = vmatprep.subr.bf16.mxu0 0
        %727 = vmatpush1.bf16.msra.mxu0 0
        %728 = vmatprep.subr.bf16.mxu0 0
        %729 = vmatpush1.bf16.msra.mxu0 0
        %730 = vmatprep.subr.bf16.mxu0 0
        %731 = vmatpush1.bf16.msra.mxu0 0
        %732 = vmatprep.subr.bf16.mxu0 0
        %733 = vmatpush1.bf16.msra.mxu0 0
        %734 = vmatprep.subr.bf16.mxu0 0
        %735 = vmatpush1.bf16.msra.mxu0 0
        %736 = vmatprep.mubr.bf16.mxu0 0
        %737 = vmatmul.mubr.bf16.gmra.mrb[0].mxu0 %v592
        %v738 = vpop.f32.mrb[0].mxu0
        %v739 = vadd.f32 0.0, %v738
        %v740 = vpop.f32.mrb[0].mxu0
        %v741 = vpop.f32.mrb[0].mxu0
        %v742 = vadd.f32 0.0, %v741
        %v743 = vpop.f32.mrb[0].mxu0
        %744 = vmatprep.mubr.bf16.mxu0 0
        %745 = vmatmul.mubr.bf16.gmra.mrb[0].mxu0 %v593
        %v746 = vpop.f32.mrb[0].mxu0
        %v747 = vadd.f32 0.0, %v746
        %v748 = vpop.f32.mrb[0].mxu0
        %v749 = vpop.f32.mrb[0].mxu0
        %v750 = vadd.f32 0.0, %v749
        %v751 = vpop.f32.mrb[0].mxu0
        %752 = vmatprep.mubr.bf16.mxu0 0
        %753 = vmatmul.mubr.bf16.gmra.mrb[0].mxu0 %v594
        %v754 = vpop.f32.mrb[0].mxu0
        %v755 = vadd.f32 0.0, %v754
        %v756 = vpop.f32.mrb[0].mxu0
        %v757 = vpop.f32.mrb[0].mxu0
        %v758 = vadd.f32 0.0, %v757
        %v759 = vpop.f32.mrb[0].mxu0
        %760 = vmatprep.mubr.bf16.mxu0 0
        %761 = vmatmul.mubr.bf16.gmra.mrb[0].mxu0 %v595
        %v762 = vpop.f32.mrb[0].mxu0
        %v763 = vadd.f32 0.0, %v762
        %v764 = vpop.f32.mrb[0].mxu0
        %v765 = vpop.f32.mrb[0].mxu0
        %v766 = vadd.f32 0.0, %v765
        %v767 = vpop.f32.mrb[0].mxu0
        %768 = vmatprep.mubr.bf16.mxu0 0
        %769 = vmatmul.mubr.bf16.gmra.mrb[0].mxu0 %v596
        %v770 = vpop.f32.mrb[0].mxu0
        %v771 = vadd.f32 0.0, %v770
        %v772 = vpop.f32.mrb[0].mxu0
        %v773 = vpop.f32.mrb[0].mxu0
        %v774 = vadd.f32 0.0, %v773
        %v775 = vpop.f32.mrb[0].mxu0
        %776 = vmatprep.mubr.bf16.mxu0 0
        %777 = vmatmul.mubr.bf16.gmra.mrb[0].mxu0 %v597
        %v778 = vpop.f32.mrb[0].mxu0
        %v779 = vadd.f32 0.0, %v778
        %v780 = vpop.f32.mrb[0].mxu0
        %v781 = vpop.f32.mrb[0].mxu0
        %v782 = vadd.f32 0.0, %v781
        %v783 = vpop.f32.mrb[0].mxu0
        %784 = vmatprep.mubr.bf16.mxu0 0
        %785 = vmatmul.mubr.bf16.gmra.mrb[0].mxu0 %v598
        %v786 = vpop.f32.mrb[0].mxu0
        %v787 = vadd.f32 0.0, %v786
        %v788 = vpop.f32.mrb[0].mxu0
        %v789 = vpop.f32.mrb[0].mxu0
        %v790 = vadd.f32 0.0, %v789
        %v791 = vpop.f32.mrb[0].mxu0
        %792 = vmatprep.mubr.bf16.mxu0 0
        %793 = vmatmul.mubr.bf16.gmra.mrb[0].mxu0 %v599
        %v794 = vpop.f32.mrb[0].mxu0
        %v795 = vadd.f32 0.0, %v794
        %v796 = vpop.f32.mrb[0].mxu0
        %v797 = vpop.f32.mrb[0].mxu0
        %v798 = vadd.f32 0.0, %v797
        %v799 = vpop.f32.mrb[0].mxu0
        %800 = vmatprep.mubr.bf16.mxu0 0
        %801 = vmatmul.mubr.bf16.gmra.mrb[0].mxu0 %v600
        %v802 = vpop.f32.mrb[0].mxu0
        %v803 = vadd.f32 0.0, %v802
        %v804 = vpop.f32.mrb[0].mxu0
        %v805 = vpop.f32.mrb[0].mxu0
        %v806 = vadd.f32 0.0, %v805
        %v807 = vpop.f32.mrb[0].mxu0
        %808 = vmatprep.mubr.bf16.mxu0 0
        %809 = vmatmul.mubr.bf16.gmra.mrb[0].mxu0 %v601
        %v810 = vpop.f32.mrb[0].mxu0
        %v811 = vadd.f32 0.0, %v810
        %v812 = vpop.f32.mrb[0].mxu0
        %v813 = vpop.f32.mrb[0].mxu0
        %v814 = vadd.f32 0.0, %v813
        %v815 = vpop.f32.mrb[0].mxu0
        %816 = vmatprep.mubr.bf16.mxu0 0
        %817 = vmatmul.mubr.bf16.gmra.mrb[0].mxu0 %v602
        %v818 = vpop.f32.mrb[0].mxu0
        %v819 = vadd.f32 0.0, %v818
        %v820 = vpop.f32.mrb[0].mxu0
        %v821 = vpop.f32.mrb[0].mxu0
        %v822 = vadd.f32 0.0, %v821
        %v823 = vpop.f32.mrb[0].mxu0
        %824 = vmatprep.mubr.bf16.mxu0 0
        %825 = vmatmul.mubr.bf16.gmra.mrb[0].mxu0 %v603
        %v826 = vpop.f32.mrb[0].mxu0
        %v827 = vadd.f32 0.0, %v826
        %v828 = vpop.f32.mrb[0].mxu0
        %v829 = vpop.f32.mrb[0].mxu0
        %v830 = vadd.f32 0.0, %v829
        %v831 = vpop.f32.mrb[0].mxu0
        %832 = vmatprep.mubr.bf16.mxu0 0
        %833 = vmatmul.mubr.bf16.gmra.mrb[0].mxu0 %v604
        %v834 = vpop.f32.mrb[0].mxu0
        %v835 = vadd.f32 0.0, %v834
        %v836 = vpop.f32.mrb[0].mxu0
        %v837 = vpop.f32.mrb[0].mxu0
        %v838 = vadd.f32 0.0, %v837
        %v839 = vpop.f32.mrb[0].mxu0
        %840 = vmatprep.mubr.bf16.mxu0 0
        %841 = vmatmul.mubr.bf16.gmra.mrb[0].mxu0 %v605
        %v842 = vpop.f32.mrb[0].mxu0
        %v843 = vadd.f32 0.0, %v842
        %v844 = vpop.f32.mrb[0].mxu0
        %v845 = vpop.f32.mrb[0].mxu0
        %v846 = vadd.f32 0.0, %v845
        %v847 = vpop.f32.mrb[0].mxu0
        %848 = vmatprep.mubr.bf16.mxu0 0
        %849 = vmatmul.mubr.bf16.gmra.mrb[0].mxu0 %v606
        %v850 = vpop.f32.mrb[0].mxu0
        %v851 = vadd.f32 0.0, %v850
        %v852 = vpop.f32.mrb[0].mxu0
        %v853 = vpop.f32.mrb[0].mxu0
        %v854 = vadd.f32 0.0, %v853
        %v855 = vpop.f32.mrb[0].mxu0
        %856 = vmatprep.mubr.bf16.mxu0 0
        %857 = vmatmul.mubr.bf16.gmra.mrb[0].mxu0 %v607
        %v858 = vpop.f32.mrb[0].mxu0
        %v859 = vadd.f32 0.0, %v858
        %v860 = vpop.f32.mrb[0].mxu0
        %v861 = vpop.f32.mrb[0].mxu0
        %v862 = vadd.f32 0.0, %v861
        %v863 = vpop.f32.mrb[0].mxu0
        %864 = vmatprep.mubr.bf16.mxu0 0
        %865 = vmatmul.mubr.bf16.gmra.mrb[0].mxu0 %v608
        %v866 = vpop.f32.mrb[0].mxu0
        %v867 = vadd.f32 0.0, %v866
        %v868 = vpop.f32.mrb[0].mxu0
        %v869 = vpop.f32.mrb[0].mxu0
        %v870 = vadd.f32 0.0, %v869
        %v871 = vpop.f32.mrb[0].mxu0
        %872 = vmatprep.mubr.bf16.mxu0 0
        %873 = vmatmul.mubr.bf16.gmra.mrb[0].mxu0 %v609
        %v874 = vpop.f32.mrb[0].mxu0
        %v875 = vadd.f32 0.0, %v874
        %v876 = vpop.f32.mrb[0].mxu0
        %v877 = vpop.f32.mrb[0].mxu0
        %v878 = vadd.f32 0.0, %v877
        %v879 = vpop.f32.mrb[0].mxu0
        %880 = vmatprep.mubr.bf16.mxu0 0
        %881 = vmatmul.mubr.bf16.gmra.mrb[0].mxu0 %v610
        %v882 = vpop.f32.mrb[0].mxu0
        %v883 = vadd.f32 0.0, %v882
        %v884 = vpop.f32.mrb[0].mxu0
        %v885 = vpop.f32.mrb[0].mxu0
        %v886 = vadd.f32 0.0, %v885
        %v887 = vpop.f32.mrb[0].mxu0
        %888 = vmatprep.mubr.bf16.mxu0 0
        %889 = vmatmul.mubr.bf16.gmra.mrb[0].mxu0 %v611
        %v890 = vpop.f32.mrb[0].mxu0
        %v891 = vadd.f32 0.0, %v890
        %v892 = vpop.f32.mrb[0].mxu0
        %v893 = vpop.f32.mrb[0].mxu0
        %v894 = vadd.f32 0.0, %v893
        %v895 = vpop.f32.mrb[0].mxu0
        %896 = vmatprep.mubr.bf16.mxu0 0
        %897 = vmatmul.mubr.bf16.gmra.mrb[0].mxu0 %v612
        %v898 = vpop.f32.mrb[0].mxu0
        %v899 = vadd.f32 0.0, %v898
        %v900 = vpop.f32.mrb[0].mxu0
        %v901 = vpop.f32.mrb[0].mxu0
        %v902 = vadd.f32 0.0, %v901
        %v903 = vpop.f32.mrb[0].mxu0
        %904 = vmatprep.mubr.bf16.mxu0 0
        %905 = vmatmul.mubr.bf16.gmra.mrb[0].mxu0 %v613
        %v906 = vpop.f32.mrb[0].mxu0
        %v907 = vadd.f32 0.0, %v906
        %v908 = vpop.f32.mrb[0].mxu0
        %v909 = vpop.f32.mrb[0].mxu0
        %v910 = vadd.f32 0.0, %v909
        %v911 = vpop.f32.mrb[0].mxu0
        %912 = vmatprep.mubr.bf16.mxu0 0
        %913 = vmatmul.mubr.bf16.gmra.mrb[0].mxu0 %v614
        %v914 = vpop.f32.mrb[0].mxu0
        %v915 = vadd.f32 0.0, %v914
        %v916 = vpop.f32.mrb[0].mxu0
        %v917 = vpop.f32.mrb[0].mxu0
        %v918 = vadd.f32 0.0, %v917
        %v919 = vpop.f32.mrb[0].mxu0
        %920 = vmatprep.mubr.bf16.mxu0 0
        %921 = vmatmul.mubr.bf16.gmra.mrb[0].mxu0 %v615
        %v922 = vpop.f32.mrb[0].mxu0
        %v923 = vadd.f32 0.0, %v922
        %v924 = vpop.f32.mrb[0].mxu0
        %v925 = vpop.f32.mrb[0].mxu0
        %v926 = vadd.f32 0.0, %v925
        %v927 = vpop.f32.mrb[0].mxu0
        %928 = vmatprep.mubr.bf16.mxu0 0
        %929 = vmatmul.mubr.bf16.gmra.mrb[0].mxu0 %v616
        %v930 = vpop.f32.mrb[0].mxu0
        %v931 = vadd.f32 0.0, %v930
        %v932 = vpop.f32.mrb[0].mxu0
        %v933 = vpop.f32.mrb[0].mxu0
        %v934 = vadd.f32 0.0, %v933
        %v935 = vpop.f32.mrb[0].mxu0
        %936 = vmatprep.mubr.bf16.mxu0 0
        %937 = vmatmul.mubr.bf16.gmra.mrb[0].mxu0 %v617
        %v938 = vpop.f32.mrb[0].mxu0
        %v939 = vadd.f32 0.0, %v938
        %v940 = vpop.f32.mrb[0].mxu0
        %v941 = vpop.f32.mrb[0].mxu0
        %v942 = vadd.f32 0.0, %v941
        %v943 = vpop.f32.mrb[0].mxu0
        %944 = vmatprep.mubr.bf16.mxu0 0
        %945 = vmatmul.mubr.bf16.gmra.mrb[0].mxu0 %v618
        %v946 = vpop.f32.mrb[0].mxu0
        %v947 = vadd.f32 0.0, %v946
        %v948 = vpop.f32.mrb[0].mxu0
        %v949 = vpop.f32.mrb[0].mxu0
        %v950 = vadd.f32 0.0, %v949
        %v951 = vpop.f32.mrb[0].mxu0
        %952 = vmatprep.mubr.bf16.mxu0 0
        %953 = vmatmul.mubr.bf16.gmra.mrb[0].mxu0 %v619
        %v954 = vpop.f32.mrb[0].mxu0
        %v955 = vadd.f32 0.0, %v954
        %v956 = vpop.f32.mrb[0].mxu0
        %v957 = vpop.f32.mrb[0].mxu0
        %v958 = vadd.f32 0.0, %v957
        %v959 = vpop.f32.mrb[0].mxu0
        %960 = vmatprep.mubr.bf16.mxu0 0
        %961 = vmatmul.mubr.bf16.gmra.mrb[0].mxu0 %v620
        %v962 = vpop.f32.mrb[0].mxu0
        %v963 = vadd.f32 0.0, %v962
        %v964 = vpop.f32.mrb[0].mxu0
        %v965 = vpop.f32.mrb[0].mxu0
        %v966 = vadd.f32 0.0, %v965
        %v967 = vpop.f32.mrb[0].mxu0
        %968 = vmatprep.mubr.bf16.mxu0 0
        %969 = vmatmul.mubr.bf16.gmra.mrb[0].mxu0 %v621
        %v970 = vpop.f32.mrb[0].mxu0
        %v971 = vadd.f32 0.0, %v970
        %v972 = vpop.f32.mrb[0].mxu0
        %v973 = vpop.f32.mrb[0].mxu0
        %v974 = vadd.f32 0.0, %v973
        %v975 = vpop.f32.mrb[0].mxu0
        %976 = vmatprep.mubr.bf16.mxu0 0
        %977 = vmatmul.mubr.bf16.gmra.mrb[0].mxu0 %v622
        %v978 = vpop.f32.mrb[0].mxu0
        %v979 = vadd.f32 0.0, %v978
        %v980 = vpop.f32.mrb[0].mxu0
        %v981 = vpop.f32.mrb[0].mxu0
        %v982 = vadd.f32 0.0, %v981
        %v983 = vpop.f32.mrb[0].mxu0
        %984 = vmatprep.mubr.bf16.mxu0 0
        %985 = vmatmul.mubr.bf16.gmra.mrb[0].mxu0 %v623
        %v986 = vpop.f32.mrb[0].mxu0
        %v987 = vadd.f32 0.0, %v986
        %v988 = vpop.f32.mrb[0].mxu0
        %v989 = vpop.f32.mrb[0].mxu0
        %v990 = vadd.f32 0.0, %v989
        %v991 = vpop.f32.mrb[0].mxu0
        %992 = vdwg.mxu0
        %v993 = vadd.f32 %v320, %v739
        %v994 = vadd.f32 %v321, %v742
        %v995 = vadd.f32 %v322, %v747
        %v996 = vadd.f32 %v323, %v750
        %v997 = vadd.f32 %v324, %v755
        %v998 = vadd.f32 %v325, %v758
        %v999 = vadd.f32 %v326, %v763
        %v1000 = vadd.f32 %v327, %v766
        %v1001 = vadd.f32 %v328, %v771
        %v1002 = vadd.f32 %v329, %v774
        %v1003 = vadd.f32 %v330, %v779
        %v1004 = vadd.f32 %v331, %v782
        %v1005 = vadd.f32 %v332, %v787
        %v1006 = vadd.f32 %v333, %v790
        %v1007 = vadd.f32 %v334, %v795
        %v1008 = vadd.f32 %v335, %v798
        %v1009 = vadd.f32 %v336, %v803
        %v1010 = vadd.f32 %v337, %v806
        %v1011 = vadd.f32 %v338, %v811
        %v1012 = vadd.f32 %v339, %v814
        %v1013 = vadd.f32 %v340, %v819
        %v1014 = vadd.f32 %v341, %v822
        %v1015 = vadd.f32 %v342, %v827
        %v1016 = vadd.f32 %v343, %v830
        %v1017 = vadd.f32 %v344, %v835
        %v1018 = vadd.f32 %v345, %v838
        %v1019 = vadd.f32 %v346, %v843
        %v1020 = vadd.f32 %v347, %v846
        %v1021 = vadd.f32 %v348, %v851
        %v1022 = vadd.f32 %v349, %v854
        %v1023 = vadd.f32 %v350, %v859
        %v1024 = vadd.f32 %v351, %v862
        %v1025 = vadd.f32 %v352, %v867
        %v1026 = vadd.f32 %v353, %v870
        %v1027 = vadd.f32 %v354, %v875
        %v1028 = vadd.f32 %v355, %v878
        %v1029 = vadd.f32 %v356, %v883
        %v1030 = vadd.f32 %v357, %v886
        %v1031 = vadd.f32 %v358, %v891
        %v1032 = vadd.f32 %v359, %v894
        %v1033 = vadd.f32 %v360, %v899
        %v1034 = vadd.f32 %v361, %v902
        %v1035 = vadd.f32 %v362, %v907
        %v1036 = vadd.f32 %v363, %v910
        %v1037 = vadd.f32 %v364, %v915
        %v1038 = vadd.f32 %v365, %v918
        %v1039 = vadd.f32 %v366, %v923
        %v1040 = vadd.f32 %v367, %v926
        %v1041 = vadd.f32 %v368, %v931
        %v1042 = vadd.f32 %v369, %v934
        %v1043 = vadd.f32 %v370, %v939
        %v1044 = vadd.f32 %v371, %v942
        %v1045 = vadd.f32 %v372, %v947
        %v1046 = vadd.f32 %v373, %v950
        %v1047 = vadd.f32 %v374, %v955
        %v1048 = vadd.f32 %v375, %v958
        %v1049 = vadd.f32 %v376, %v963
        %v1050 = vadd.f32 %v377, %v966
        %v1051 = vadd.f32 %v378, %v971
        %v1052 = vadd.f32 %v379, %v974
        %v1053 = vadd.f32 %v380, %v979
        %v1054 = vadd.f32 %v381, %v982
        %v1055 = vadd.f32 %v382, %v987
        %v1056 = vadd.f32 %v383, %v990
        %1057 = vst [vmem:[#allocation2] sm:$0xff] %v993
        %1058 = vst [vmem:[#allocation2 + $0x8] sm:$0xff] %v994
        %1059 = vst [vmem:[#allocation2 + $0x10] sm:$0xff] %v995
        %1060 = vst [vmem:[#allocation2 + $0x18] sm:$0xff] %v996
        %1061 = vst [vmem:[#allocation2 + $0x20] sm:$0xff] %v997
        %1062 = vst [vmem:[#allocation2 + $0x28] sm:$0xff] %v998
        %1063 = vst [vmem:[#allocation2 + $0x30] sm:$0xff] %v999
        %1064 = vst [vmem:[#allocation2 + $0x38] sm:$0xff] %v1000
        %1065 = vst [vmem:[#allocation2 + $0x40] sm:$0xff] %v1001
        %1066 = vst [vmem:[#allocation2 + $0x48] sm:$0xff] %v1002
        %1067 = vst [vmem:[#allocation2 + $0x50] sm:$0xff] %v1003
        %1068 = vst [vmem:[#allocation2 + $0x58] sm:$0xff] %v1004
        %1069 = vst [vmem:[#allocation2 + $0x60] sm:$0xff] %v1005
        %1070 = vst [vmem:[#allocation2 + $0x68] sm:$0xff] %v1006
        %1071 = vst [vmem:[#allocation2 + $0x70] sm:$0xff] %v1007
        %1072 = vst [vmem:[#allocation2 + $0x78] sm:$0xff] %v1008
        %1073 = vst [vmem:[#allocation2 + $0x80] sm:$0xff] %v1009
        %1074 = vst [vmem:[#allocation2 + $0x88] sm:$0xff] %v1010
        %1075 = vst [vmem:[#allocation2 + $0x90] sm:$0xff] %v1011
        %1076 = vst [vmem:[#allocation2 + $0x98] sm:$0xff] %v1012
        %1077 = vst [vmem:[#allocation2 + $0xa0] sm:$0xff] %v1013
        %1078 = vst [vmem:[#allocation2 + $0xa8] sm:$0xff] %v1014
        %1079 = vst [vmem:[#allocation2 + $0xb0] sm:$0xff] %v1015
        %1080 = vst [vmem:[#allocation2 + $0xb8] sm:$0xff] %v1016
        %1081 = vst [vmem:[#allocation2 + $0xc0] sm:$0xff] %v1017
        %1082 = vst [vmem:[#allocation2 + $0xc8] sm:$0xff] %v1018
        %1083 = vst [vmem:[#allocation2 + $0xd0] sm:$0xff] %v1019
        %1084 = vst [vmem:[#allocation2 + $0xd8] sm:$0xff] %v1020
        %1085 = vst [vmem:[#allocation2 + $0xe0] sm:$0xff] %v1021
        %1086 = vst [vmem:[#allocation2 + $0xe8] sm:$0xff] %v1022
        %1087 = vst [vmem:[#allocation2 + $0xf0] sm:$0xff] %v1023
        %1088 = vst [vmem:[#allocation2 + $0xf8] sm:$0xff] %v1024
        %1089 = vst [vmem:[#allocation2 + $0x100] sm:$0xff] %v1025
        %1090 = vst [vmem:[#allocation2 + $0x108] sm:$0xff] %v1026
        %1091 = vst [vmem:[#allocation2 + $0x110] sm:$0xff] %v1027
        %1092 = vst [vmem:[#allocation2 + $0x118] sm:$0xff] %v1028
        %1093 = vst [vmem:[#allocation2 + $0x120] sm:$0xff] %v1029
        %1094 = vst [vmem:[#allocation2 + $0x128] sm:$0xff] %v1030
        %1095 = vst [vmem:[#allocation2 + $0x130] sm:$0xff] %v1031
        %1096 = vst [vmem:[#allocation2 + $0x138] sm:$0xff] %v1032
        %1097 = vst [vmem:[#allocation2 + $0x140] sm:$0xff] %v1033
        %1098 = vst [vmem:[#allocation2 + $0x148] sm:$0xff] %v1034
        %1099 = vst [vmem:[#allocation2 + $0x150] sm:$0xff] %v1035
        %1100 = vst [vmem:[#allocation2 + $0x158] sm:$0xff] %v1036
        %1101 = vst [vmem:[#allocation2 + $0x160] sm:$0xff] %v1037
        %1102 = vst [vmem:[#allocation2 + $0x168] sm:$0xff] %v1038
        %1103 = vst [vmem:[#allocation2 + $0x170] sm:$0xff] %v1039
        %1104 = vst [vmem:[#allocation2 + $0x178] sm:$0xff] %v1040
        %1105 = vst [vmem:[#allocation2 + $0x180] sm:$0xff] %v1041
        %1106 = vst [vmem:[#allocation2 + $0x188] sm:$0xff] %v1042
        %1107 = vst [vmem:[#allocation2 + $0x190] sm:$0xff] %v1043
        %1108 = vst [vmem:[#allocation2 + $0x198] sm:$0xff] %v1044
        %1109 = vst [vmem:[#allocation2 + $0x1a0] sm:$0xff] %v1045
        %1110 = vst [vmem:[#allocation2 + $0x1a8] sm:$0xff] %v1046
        %1111 = vst [vmem:[#allocation2 + $0x1b0] sm:$0xff] %v1047
        %1112 = vst [vmem:[#allocation2 + $0x1b8] sm:$0xff] %v1048
        %1113 = vst [vmem:[#allocation2 + $0x1c0] sm:$0xff] %v1049
        %1114 = vst [vmem:[#allocation2 + $0x1c8] sm:$0xff] %v1050
        %1115 = vst [vmem:[#allocation2 + $0x1d0] sm:$0xff] %v1051
        %1116 = vst [vmem:[#allocation2 + $0x1d8] sm:$0xff] %v1052
        %1117 = vst [vmem:[#allocation2 + $0x1e0] sm:$0xff] %v1053
        %1118 = vst [vmem:[#allocation2 + $0x1e8] sm:$0xff] %v1054
        %1119 = vst [vmem:[#allocation2 + $0x1f0] sm:$0xff] %v1055
        %1120 = vst [vmem:[#allocation2 + $0x1f8] sm:$0xff] %v1056
        // Predicated region
        $region37: #{causal_self_attention.5} parent=31 // pred_check
          %p1121 = pneg %p252
        $region38: #{causal_self_attention.5} parent=31 // pred_check_branch
          %1123 = sbr.rel (%p1121) target = $region40
        $region39: #{causal_self_attention.5} parent=31 // pred_region
          %v1124 = vld [vmem:[#allocation2] sm:$0xff]
          %v1125 = vld [vmem:[#allocation2 + $0x8] sm:$0xff]
          %v1126 = vld [vmem:[#allocation2 + $0x10] sm:$0xff]
          %v1127 = vld [vmem:[#allocation2 + $0x18] sm:$0xff]
          %v1128 = vld [vmem:[#allocation2 + $0x20] sm:$0xff]
          %v1129 = vld [vmem:[#allocation2 + $0x28] sm:$0xff]
          %v1130 = vld [vmem:[#allocation2 + $0x30] sm:$0xff]
          %v1131 = vld [vmem:[#allocation2 + $0x38] sm:$0xff]
          %v1132 = vld [vmem:[#allocation2 + $0x40] sm:$0xff]
          %v1133 = vld [vmem:[#allocation2 + $0x48] sm:$0xff]
          %v1134 = vld [vmem:[#allocation2 + $0x50] sm:$0xff]
          %v1135 = vld [vmem:[#allocation2 + $0x58] sm:$0xff]
          %v1136 = vld [vmem:[#allocation2 + $0x60] sm:$0xff]
          %v1137 = vld [vmem:[#allocation2 + $0x68] sm:$0xff]
          %v1138 = vld [vmem:[#allocation2 + $0x70] sm:$0xff]
          %v1139 = vld [vmem:[#allocation2 + $0x78] sm:$0xff]
          %v1140 = vld [vmem:[#allocation2 + $0x80] sm:$0xff]
          %v1141 = vld [vmem:[#allocation2 + $0x88] sm:$0xff]
          %v1142 = vld [vmem:[#allocation2 + $0x90] sm:$0xff]
          %v1143 = vld [vmem:[#allocation2 + $0x98] sm:$0xff]
          %v1144 = vld [vmem:[#allocation2 + $0xa0] sm:$0xff]
          %v1145 = vld [vmem:[#allocation2 + $0xa8] sm:$0xff]
          %v1146 = vld [vmem:[#allocation2 + $0xb0] sm:$0xff]
          %v1147 = vld [vmem:[#allocation2 + $0xb8] sm:$0xff]
          %v1148 = vld [vmem:[#allocation2 + $0xc0] sm:$0xff]
          %v1149 = vld [vmem:[#allocation2 + $0xc8] sm:$0xff]
          %v1150 = vld [vmem:[#allocation2 + $0xd0] sm:$0xff]
          %v1151 = vld [vmem:[#allocation2 + $0xd8] sm:$0xff]
          %v1152 = vld [vmem:[#allocation2 + $0xe0] sm:$0xff]
          %v1153 = vld [vmem:[#allocation2 + $0xe8] sm:$0xff]
          %v1154 = vld [vmem:[#allocation2 + $0xf0] sm:$0xff]
          %v1155 = vld [vmem:[#allocation2 + $0xf8] sm:$0xff]
          %v1156 = vld [vmem:[#allocation2 + $0x100] sm:$0xff]
          %v1157 = vld [vmem:[#allocation2 + $0x108] sm:$0xff]
          %v1158 = vld [vmem:[#allocation2 + $0x110] sm:$0xff]
          %v1159 = vld [vmem:[#allocation2 + $0x118] sm:$0xff]
          %v1160 = vld [vmem:[#allocation2 + $0x120] sm:$0xff]
          %v1161 = vld [vmem:[#allocation2 + $0x128] sm:$0xff]
          %v1162 = vld [vmem:[#allocation2 + $0x130] sm:$0xff]
          %v1163 = vld [vmem:[#allocation2 + $0x138] sm:$0xff]
          %v1164 = vld [vmem:[#allocation2 + $0x140] sm:$0xff]
          %v1165 = vld [vmem:[#allocation2 + $0x148] sm:$0xff]
          %v1166 = vld [vmem:[#allocation2 + $0x150] sm:$0xff]
          %v1167 = vld [vmem:[#allocation2 + $0x158] sm:$0xff]
          %v1168 = vld [vmem:[#allocation2 + $0x160] sm:$0xff]
          %v1169 = vld [vmem:[#allocation2 + $0x168] sm:$0xff]
          %v1170 = vld [vmem:[#allocation2 + $0x170] sm:$0xff]
          %v1171 = vld [vmem:[#allocation2 + $0x178] sm:$0xff]
          %v1172 = vld [vmem:[#allocation2 + $0x180] sm:$0xff]
          %v1173 = vld [vmem:[#allocation2 + $0x188] sm:$0xff]
          %v1174 = vld [vmem:[#allocation2 + $0x190] sm:$0xff]
          %v1175 = vld [vmem:[#allocation2 + $0x198] sm:$0xff]
          %v1176 = vld [vmem:[#allocation2 + $0x1a0] sm:$0xff]
          %v1177 = vld [vmem:[#allocation2 + $0x1a8] sm:$0xff]
          %v1178 = vld [vmem:[#allocation2 + $0x1b0] sm:$0xff]
          %v1179 = vld [vmem:[#allocation2 + $0x1b8] sm:$0xff]
          %v1180 = vld [vmem:[#allocation2 + $0x1c0] sm:$0xff]
          %v1181 = vld [vmem:[#allocation2 + $0x1c8] sm:$0xff]
          %v1182 = vld [vmem:[#allocation2 + $0x1d0] sm:$0xff]
          %v1183 = vld [vmem:[#allocation2 + $0x1d8] sm:$0xff]
          %v1184 = vld [vmem:[#allocation2 + $0x1e0] sm:$0xff]
          %v1185 = vld [vmem:[#allocation2 + $0x1e8] sm:$0xff]
          %v1186 = vld [vmem:[#allocation2 + $0x1f0] sm:$0xff]
          %v1187 = vld [vmem:[#allocation2 + $0x1f8] sm:$0xff]
          %v1188 = vld [vmem:[%s249] sm:$0x1]
          %v1190 = vlaneseq
          %v1191 = vshrl.u32 %v1190, 7
          %v1192 = vsub.s32 0, %v1191
          %v1193 = vrot.slane %v1188, %v1192
          %v1195 = vadd.f32 %v1124, %v1193
          %v1196 = vadd.f32 %v1125, %v1193
          %v1197 = vadd.f32 %v1126, %v1193
          %v1198 = vadd.f32 %v1127, %v1193
          %v1199 = vadd.f32 %v1128, %v1193
          %v1200 = vadd.f32 %v1129, %v1193
          %v1201 = vadd.f32 %v1130, %v1193
          %v1202 = vadd.f32 %v1131, %v1193
          %v1203 = vadd.f32 %v1132, %v1193
          %v1204 = vadd.f32 %v1133, %v1193
          %v1205 = vadd.f32 %v1134, %v1193
          %v1206 = vadd.f32 %v1135, %v1193
          %v1207 = vadd.f32 %v1136, %v1193
          %v1208 = vadd.f32 %v1137, %v1193
          %v1209 = vadd.f32 %v1138, %v1193
          %v1210 = vadd.f32 %v1139, %v1193
          %v1211 = vadd.f32 %v1140, %v1193
          %v1212 = vadd.f32 %v1141, %v1193
          %v1213 = vadd.f32 %v1142, %v1193
          %v1214 = vadd.f32 %v1143, %v1193
          %v1215 = vadd.f32 %v1144, %v1193
          %v1216 = vadd.f32 %v1145, %v1193
          %v1217 = vadd.f32 %v1146, %v1193
          %v1218 = vadd.f32 %v1147, %v1193
          %v1219 = vadd.f32 %v1148, %v1193
          %v1220 = vadd.f32 %v1149, %v1193
          %v1221 = vadd.f32 %v1150, %v1193
          %v1222 = vadd.f32 %v1151, %v1193
          %v1223 = vadd.f32 %v1152, %v1193
          %v1224 = vadd.f32 %v1153, %v1193
          %v1225 = vadd.f32 %v1154, %v1193
          %v1226 = vadd.f32 %v1155, %v1193
          %v1227 = vadd.f32 %v1156, %v1193
          %v1228 = vadd.f32 %v1157, %v1193
          %v1229 = vadd.f32 %v1158, %v1193
          %v1230 = vadd.f32 %v1159, %v1193
          %v1231 = vadd.f32 %v1160, %v1193
          %v1232 = vadd.f32 %v1161, %v1193
          %v1233 = vadd.f32 %v1162, %v1193
          %v1234 = vadd.f32 %v1163, %v1193
          %v1235 = vadd.f32 %v1164, %v1193
          %v1236 = vadd.f32 %v1165, %v1193
          %v1237 = vadd.f32 %v1166, %v1193
          %v1238 = vadd.f32 %v1167, %v1193
          %v1239 = vadd.f32 %v1168, %v1193
          %v1240 = vadd.f32 %v1169, %v1193
          %v1241 = vadd.f32 %v1170, %v1193
          %v1242 = vadd.f32 %v1171, %v1193
          %v1243 = vadd.f32 %v1172, %v1193
          %v1244 = vadd.f32 %v1173, %v1193
          %v1245 = vadd.f32 %v1174, %v1193
          %v1246 = vadd.f32 %v1175, %v1193
          %v1247 = vadd.f32 %v1176, %v1193
          %v1248 = vadd.f32 %v1177, %v1193
          %v1249 = vadd.f32 %v1178, %v1193
          %v1250 = vadd.f32 %v1179, %v1193
          %v1251 = vadd.f32 %v1180, %v1193
          %v1252 = vadd.f32 %v1181, %v1193
          %v1253 = vadd.f32 %v1182, %v1193
          %v1254 = vadd.f32 %v1183, %v1193
          %v1255 = vadd.f32 %v1184, %v1193
          %v1256 = vadd.f32 %v1185, %v1193
          %v1257 = vadd.f32 %v1186, %v1193
          %v1258 = vadd.f32 %v1187, %v1193
          %1259 = vst [vmem:[%s228] sm:$0xff] %v1195
          %1260 = vst [vmem:[%s228 + $0x8] sm:$0xff] %v1196
          %1261 = vst [vmem:[%s228 + $0x10] sm:$0xff] %v1197
          %1262 = vst [vmem:[%s228 + $0x18] sm:$0xff] %v1198
          %1263 = vst [vmem:[%s228 + $0x20] sm:$0xff] %v1199
          %1264 = vst [vmem:[%s228 + $0x28] sm:$0xff] %v1200
          %1265 = vst [vmem:[%s228 + $0x30] sm:$0xff] %v1201
          %1266 = vst [vmem:[%s228 + $0x38] sm:$0xff] %v1202
          %1267 = vst [vmem:[%s228 + $0x40] sm:$0xff] %v1203
          %1268 = vst [vmem:[%s228 + $0x48] sm:$0xff] %v1204
          %1269 = vst [vmem:[%s228 + $0x50] sm:$0xff] %v1205
          %1270 = vst [vmem:[%s228 + $0x58] sm:$0xff] %v1206
          %1271 = vst [vmem:[%s228 + $0x60] sm:$0xff] %v1207
          %1272 = vst [vmem:[%s228 + $0x68] sm:$0xff] %v1208
          %1273 = vst [vmem:[%s228 + $0x70] sm:$0xff] %v1209
          %1274 = vst [vmem:[%s228 + $0x78] sm:$0xff] %v1210
          %1275 = vst [vmem:[%s228 + $0x80] sm:$0xff] %v1211
          %1276 = vst [vmem:[%s228 + $0x88] sm:$0xff] %v1212
          %1277 = vst [vmem:[%s228 + $0x90] sm:$0xff] %v1213
          %1278 = vst [vmem:[%s228 + $0x98] sm:$0xff] %v1214
          %1279 = vst [vmem:[%s228 + $0xa0] sm:$0xff] %v1215
          %1280 = vst [vmem:[%s228 + $0xa8] sm:$0xff] %v1216
          %1281 = vst [vmem:[%s228 + $0xb0] sm:$0xff] %v1217
          %1282 = vst [vmem:[%s228 + $0xb8] sm:$0xff] %v1218
          %1283 = vst [vmem:[%s228 + $0xc0] sm:$0xff] %v1219
          %1284 = vst [vmem:[%s228 + $0xc8] sm:$0xff] %v1220
          %1285 = vst [vmem:[%s228 + $0xd0] sm:$0xff] %v1221
          %1286 = vst [vmem:[%s228 + $0xd8] sm:$0xff] %v1222
          %1287 = vst [vmem:[%s228 + $0xe0] sm:$0xff] %v1223
          %1288 = vst [vmem:[%s228 + $0xe8] sm:$0xff] %v1224
          %1289 = vst [vmem:[%s228 + $0xf0] sm:$0xff] %v1225
          %1290 = vst [vmem:[%s228 + $0xf8] sm:$0xff] %v1226
          %1291 = vst [vmem:[%s228 + $0x100] sm:$0xff] %v1227
          %1292 = vst [vmem:[%s228 + $0x108] sm:$0xff] %v1228
          %1293 = vst [vmem:[%s228 + $0x110] sm:$0xff] %v1229
          %1294 = vst [vmem:[%s228 + $0x118] sm:$0xff] %v1230
          %1295 = vst [vmem:[%s228 + $0x120] sm:$0xff] %v1231
          %1296 = vst [vmem:[%s228 + $0x128] sm:$0xff] %v1232
          %1297 = vst [vmem:[%s228 + $0x130] sm:$0xff] %v1233
          %1298 = vst [vmem:[%s228 + $0x138] sm:$0xff] %v1234
          %1299 = vst [vmem:[%s228 + $0x140] sm:$0xff] %v1235
          %1300 = vst [vmem:[%s228 + $0x148] sm:$0xff] %v1236
          %1301 = vst [vmem:[%s228 + $0x150] sm:$0xff] %v1237
          %1302 = vst [vmem:[%s228 + $0x158] sm:$0xff] %v1238
          %1303 = vst [vmem:[%s228 + $0x160] sm:$0xff] %v1239
          %1304 = vst [vmem:[%s228 + $0x168] sm:$0xff] %v1240
          %1305 = vst [vmem:[%s228 + $0x170] sm:$0xff] %v1241
          %1306 = vst [vmem:[%s228 + $0x178] sm:$0xff] %v1242
          %1307 = vst [vmem:[%s228 + $0x180] sm:$0xff] %v1243
          %1308 = vst [vmem:[%s228 + $0x188] sm:$0xff] %v1244
          %1309 = vst [vmem:[%s228 + $0x190] sm:$0xff] %v1245
          %1310 = vst [vmem:[%s228 + $0x198] sm:$0xff] %v1246
          %1311 = vst [vmem:[%s228 + $0x1a0] sm:$0xff] %v1247
          %1312 = vst [vmem:[%s228 + $0x1a8] sm:$0xff] %v1248
          %1313 = vst [vmem:[%s228 + $0x1b0] sm:$0xff] %v1249
          %1314 = vst [vmem:[%s228 + $0x1b8] sm:$0xff] %v1250
          %1315 = vst [vmem:[%s228 + $0x1c0] sm:$0xff] %v1251
          %1316 = vst [vmem:[%s228 + $0x1c8] sm:$0xff] %v1252
          %1317 = vst [vmem:[%s228 + $0x1d0] sm:$0xff] %v1253
          %1318 = vst [vmem:[%s228 + $0x1d8] sm:$0xff] %v1254
          %1319 = vst [vmem:[%s228 + $0x1e0] sm:$0xff] %v1255
          %1320 = vst [vmem:[%s228 + $0x1e8] sm:$0xff] %v1256
          %1321 = vst [vmem:[%s228 + $0x1f0] sm:$0xff] %v1257
          %1322 = vst [vmem:[%s228 + $0x1f8] sm:$0xff] %v1258
        $region40: #{causal_self_attention.5} parent=31 // pred_fallthru
          _
        %s1323 = sand.u32 %s128, 1
        %s1324 = scalar_lea.sflag [#allocation4], %s1323
        %s1325 = sand.u32 %s128, 1
        %s1326 = smul.addr %s1325, 512
        %s1327 = scalar_lea.vmem [#allocation3], %s1326
        // Predicated region
        $region41: #{causal_self_attention.5} parent=31 // pred_check
          %p1328 = pneg %p138
        $region42: #{causal_self_attention.5} parent=31 // pred_check_branch
          %1330 = sbr.rel (%p1328) target = $region44
        $region43: #{causal_self_attention.5} parent=31 // pred_region
          %s1331 = smul.u32 64, %s22
          %s1333 = ssub.s32 8192, 8192
          %1334 = vsyncadd %s1324, %s1333
          %s1335 = sadd.s32 %s23, %s1331
          %s1336 = smul.addr %s1335, 128
          %s1337 = scalar_lea.hbm %s3, %s1336
          %s1338 = sshll.u32 %s1327, 4
          %s1339 = int_to_ptr.vmem [resolvable:$true] %s1338
          %1344 = dma.vmem_to_hbm [thread:$0]  %s1339, 8192, %s1337, %s1324, 128, 128, 8
        $region44: #{causal_self_attention.5} parent=31 // pred_fallthru
          _
      $region32: #{causal_self_attention.5} parent=5 // pred_fallthru
        _
      %p1345 = scmp.le.s32.totalorder 2, %s12
      // Predicated region
      $region45: #{causal_self_attention.5} parent=5 // pred_check
        %p1346 = pneg %p1345
      $region46: #{causal_self_attention.5} parent=5 // pred_check_branch
        %1348 = sbr.rel (%p1346) target = $region48
      $region47: #{causal_self_attention.5} parent=5 // pred_region
        %s1349 = ssub.s32 %s12, 2
        // Predicated region
        $region49: #{causal_self_attention.5} parent=47 // pred_check
          %p1350 = pneg %p144
        $region50: #{causal_self_attention.5} parent=47 // pred_check_branch
          %1352 = sbr.rel (%p1350) target = $region52
        $region51: #{causal_self_attention.5} parent=47 // pred_region
          %s1353 = sand.u32 %s129, 1
          %s1354 = scalar_lea.sflag [#allocation4], %s1353
          %s1355 = sand.u32 %s129, 1
          %s1356 = smul.addr %s1355, 512
          %s1357 = scalar_lea.vmem [#allocation3], %s1356
          %1358 = dma.done %s1354, 8192
        $region52: #{causal_self_attention.5} parent=47 // pred_fallthru
          _
      $region48: #{causal_self_attention.5} parent=5 // pred_fallthru
        _
    $region6: #{causal_self_attention.5} parent=1 // loop_footer
      %s16 = sadd.s32 1, %s12
    $region7: #{causal_self_attention.5} parent=1 // loop_footer_branch
      %11 = sbr.rel target = $region3
    $region8: #{causal_self_attention.5} parent=1 // loop_exit
      _
    %1359 = vsyncpa [#allocation4], 1
    %s1360 = scalar_lea.sflag [#allocation4], 1
    %1361 = vsyncpa %s1360, 1

// kernel: causal_self_attention.3
$region0: #{causal_self_attention.3}
  #allocation0 [shape = 'u32[]', space=smem, size = 0x4, offset = 0x4, fixed_abs, tag = 'smem constant byte address 0x4 - core index']
  #allocation1 [shape = 'u32[144,128]{1,0:T(1,128)}', space=vmem, size = 0x12000, scoped, tag = 'internal scratch']
  #allocation2 [shape = 'f32[256,128]{1,0:T(8,128)}', space=vmem, size = 0x20000, scoped, tag = 'scratch operand']
  #allocation3 [shape = 'f32[256,128]{1,0:T(8,128)}', space=vmem, size = 0x20000, scoped, tag = 'scratch operand']
  #allocation4 [shape = 'f32[256,128]{1,0:T(8,128)}', space=vmem, size = 0x20000, scoped, tag = 'scratch operand']
  %s0 = inlined_call_operand.vmem [shape: bf16[1024,128], index: 0, kind: input, shape index: {}]
  %s1 = inlined_call_operand.vmem [shape: bf16[128,128], index: 1, kind: input, shape index: {}]
  %s2 = inlined_call_operand.vmem [shape: bf16[128,128], index: 2, kind: input, shape index: {}]
  %s3 = inlined_call_operand.vmem [shape: bf16[128,128], index: 3, kind: input, shape index: {}]
  %s4 = inlined_call_operand.vmem [shape: f32[1,128], index: 4, kind: input, shape index: {}]
  %s5 = inlined_call_operand.vmem [shape: f32[1,128], index: 5, kind: input, shape index: {}]
  %s6 = inlined_call_operand.vmem [shape: f32[1,128], index: 6, kind: input, shape index: {}]
  %s7 = inlined_call_operand.vmem [shape: bf16[1024,128], index: 7, kind: output, shape index: {0}]
  %s8 = inlined_call_operand.vmem [shape: bf16[1024,128], index: 8, kind: output, shape index: {1}]
  %s9 = inlined_call_operand.vmem [shape: bf16[1024,128], index: 9, kind: output, shape index: {2}]
  %10 = xla_tuple %s7, %s8, %s9
  %s11 = sld [smem:[#allocation0]]
  $region85: #{causal_self_attention.3} parent=0
    _
  %s13 = ssub.s32 1, %s11
  %s14 = scalar_select 0, %s13, %s11
  loop: start=0, step=1, limit=6
  $region2: #{causal_self_attention.3} parent=0 // loop_pre_header
    _
  $region3: #{causal_self_attention.3} parent=0 // loop_header
    %s16 = sphi 0, %s20
    %p17 = scmp.ge.s32.totalorder %s16, 6
    %s23 = sphi 0, %s35
    %s24 = sphi 0, %s31
    %s25 = sphi 0, %s23
    %s26 = sphi 0, %s24
    %s27 = sphi 0, %s25
    %s28 = sphi 0, %s26
    %s40 = sphi 0, %s42
    %s43 = sphi 0, %s40
    %s44 = sphi 0, %s43
    %s60 = sphi 0, %s44
    %s66 = sphi 0, %s68
    %s69 = sphi 0, %s66
    %s70 = sphi 0, %s69
    %s86 = sphi 0, %s70
    %s92 = sphi 0, %s94
    %s95 = sphi 0, %s92
    %s96 = sphi 0, %s95
    %s112 = sphi 0, %s96
    %s118 = sphi 0, %s120
    %s121 = sphi 0, %s118
    %s122 = sphi 0, %s121
    %s138 = sphi 0, %s122
    %s142 = sphi 0, %s142
    %s144 = sphi 0, %s142
    %s145 = sphi 0, %s144
    %s159 = sphi 0, %s145
    %s163 = sphi 0, %s163
    %s165 = sphi 0, %s163
    %s166 = sphi 0, %s165
    %s180 = sphi 0, %s166
    %s184 = sphi 0, %s184
    %s186 = sphi 0, %s184
    %s187 = sphi 0, %s186
    %s201 = sphi 0, %s187
    %s207 = sphi 0, %s209
    %s210 = sphi 0, %s207
    %s211 = sphi 0, %s210
    %s227 = sphi 0, %s211
    %s233 = sphi 0, %s235
    %s236 = sphi 0, %s233
    %s237 = sphi 0, %s236
    %s253 = sphi 0, %s237
    %s259 = sphi 0, %s261
    %s262 = sphi 0, %s259
    %s263 = sphi 0, %s262
    %s279 = sphi 0, %s263
  $region4: #{causal_self_attention.3} parent=0 // loop_header_branch
    %19 = sbr.rel (%p17) target = $region8
  $region5: #{causal_self_attention.3} parent=0 // loop_body
    %s21 = ssub.s32 %s16, 1
    %s22 = ssub.s32 %s16, 2
    %s29 = sadd.s32 1, %s24
    %p30 = scmp.ge.s32.totalorder %s29, 1
    %s31 = scalar_select %p30, 0, %s29
    %s32 = sadd.s32 1, %s23
    %s33 = scalar_select %p30, %s32, %s23
    %p34 = scmp.ge.s32.totalorder %s33, 4
    %s35 = scalar_select %p34, 0, %s33
    %s36 = ssub.s32 %s23, %s35
    %s37 = ssub.s32 %s24, %s31
    %s38 = sor.u32 %s36, %s37
    %p39 = scmp.eq.s32.totalorder %s38, 0
    %s41 = sadd.s32 %s40, 1
    %s42 = scalar_select %p39, %s40, %s41
    %p45 = pneg %p39
    %p46 = scmp.eq.s32.totalorder %s16, 3
    %p47 = por %p45, %p46
    %p48 = scmp.ne.s32.totalorder %s40, %s43
    %p49 = scmp.eq.s32.totalorder %s16, 0
    %p50 = por %p48, %p49
    %p51 = scmp.ne.s32.totalorder %s40, %s43
    %p52 = scmp.eq.s32.totalorder %s21, 3
    %p53 = por %p51, %p52
    %p54 = scmp.ne.s32.totalorder %s43, %s44
    %p55 = scmp.eq.s32.totalorder %s21, 0
    %p56 = por %p54, %p55
    %p57 = scmp.ne.s32.totalorder %s43, %s44
    %p58 = scmp.eq.s32.totalorder %s22, 3
    %p59 = por %p57, %p58
    %p61 = scmp.ne.s32.totalorder %s44, %s60
    %p62 = scmp.eq.s32.totalorder %s22, 0
    %p63 = por %p61, %p62
    %s64 = ssub.s32 %s24, %s31
    %p65 = scmp.eq.s32.totalorder %s64, 0
    %s67 = sadd.s32 %s66, 1
    %s68 = scalar_select %p65, %s66, %s67
    %p71 = pneg %p65
    %p72 = scmp.eq.s32.totalorder %s16, 3
    %p73 = por %p71, %p72
    %p74 = scmp.ne.s32.totalorder %s66, %s69
    %p75 = scmp.eq.s32.totalorder %s16, 0
    %p76 = por %p74, %p75
    %p77 = scmp.ne.s32.totalorder %s66, %s69
    %p78 = scmp.eq.s32.totalorder %s21, 3
    %p79 = por %p77, %p78
    %p80 = scmp.ne.s32.totalorder %s69, %s70
    %p81 = scmp.eq.s32.totalorder %s21, 0
    %p82 = por %p80, %p81
    %p83 = scmp.ne.s32.totalorder %s69, %s70
    %p84 = scmp.eq.s32.totalorder %s22, 3
    %p85 = por %p83, %p84
    %p87 = scmp.ne.s32.totalorder %s70, %s86
    %p88 = scmp.eq.s32.totalorder %s22, 0
    %p89 = por %p87, %p88
    %s90 = ssub.s32 %s24, %s31
    %p91 = scmp.eq.s32.totalorder %s90, 0
    %s93 = sadd.s32 %s92, 1
    %s94 = scalar_select %p91, %s92, %s93
    %p97 = pneg %p91
    %p98 = scmp.eq.s32.totalorder %s16, 3
    %p99 = por %p97, %p98
    %p100 = scmp.ne.s32.totalorder %s92, %s95
    %p101 = scmp.eq.s32.totalorder %s16, 0
    %p102 = por %p100, %p101
    %p103 = scmp.ne.s32.totalorder %s92, %s95
    %p104 = scmp.eq.s32.totalorder %s21, 3
    %p105 = por %p103, %p104
    %p106 = scmp.ne.s32.totalorder %s95, %s96
    %p107 = scmp.eq.s32.totalorder %s21, 0
    %p108 = por %p106, %p107
    %p109 = scmp.ne.s32.totalorder %s95, %s96
    %p110 = scmp.eq.s32.totalorder %s22, 3
    %p111 = por %p109, %p110
    %p113 = scmp.ne.s32.totalorder %s96, %s112
    %p114 = scmp.eq.s32.totalorder %s22, 0
    %p115 = por %p113, %p114
    %s116 = ssub.s32 %s24, %s31
    %p117 = scmp.eq.s32.totalorder %s116, 0
    %s119 = sadd.s32 %s118, 1
    %s120 = scalar_select %p117, %s118, %s119
    %p123 = pneg %p117
    %p124 = scmp.eq.s32.totalorder %s16, 3
    %p125 = por %p123, %p124
    %p126 = scmp.ne.s32.totalorder %s118, %s121
    %p127 = scmp.eq.s32.totalorder %s16, 0
    %p128 = por %p126, %p127
    %p129 = scmp.ne.s32.totalorder %s118, %s121
    %p130 = scmp.eq.s32.totalorder %s21, 3
    %p131 = por %p129, %p130
    %p132 = scmp.ne.s32.totalorder %s121, %s122
    %p133 = scmp.eq.s32.totalorder %s21, 0
    %p134 = por %p132, %p133
    %p135 = scmp.ne.s32.totalorder %s121, %s122
    %p136 = scmp.eq.s32.totalorder %s22, 3
    %p137 = por %p135, %p136
    %p139 = scmp.ne.s32.totalorder %s122, %s138
    %p140 = scmp.eq.s32.totalorder %s22, 0
    %p141 = por %p139, %p140
    %s143 = sadd.s32 %s142, 1
    %p146 = scmp.eq.s32.totalorder %s16, 3
    %p147 = scmp.ne.s32.totalorder %s142, %s144
    %p148 = scmp.eq.s32.totalorder %s16, 0
    %p149 = por %p147, %p148
    %p150 = scmp.ne.s32.totalorder %s142, %s144
    %p151 = scmp.eq.s32.totalorder %s21, 3
    %p152 = por %p150, %p151
    %p153 = scmp.ne.s32.totalorder %s144, %s145
    %p154 = scmp.eq.s32.totalorder %s21, 0
    %p155 = por %p153, %p154
    %p156 = scmp.ne.s32.totalorder %s144, %s145
    %p157 = scmp.eq.s32.totalorder %s22, 3
    %p158 = por %p156, %p157
    %p160 = scmp.ne.s32.totalorder %s145, %s159
    %p161 = scmp.eq.s32.totalorder %s22, 0
    %p162 = por %p160, %p161
    %s164 = sadd.s32 %s163, 1
    %p167 = scmp.eq.s32.totalorder %s16, 3
    %p168 = scmp.ne.s32.totalorder %s163, %s165
    %p169 = scmp.eq.s32.totalorder %s16, 0
    %p170 = por %p168, %p169
    %p171 = scmp.ne.s32.totalorder %s163, %s165
    %p172 = scmp.eq.s32.totalorder %s21, 3
    %p173 = por %p171, %p172
    %p174 = scmp.ne.s32.totalorder %s165, %s166
    %p175 = scmp.eq.s32.totalorder %s21, 0
    %p176 = por %p174, %p175
    %p177 = scmp.ne.s32.totalorder %s165, %s166
    %p178 = scmp.eq.s32.totalorder %s22, 3
    %p179 = por %p177, %p178
    %p181 = scmp.ne.s32.totalorder %s166, %s180
    %p182 = scmp.eq.s32.totalorder %s22, 0
    %p183 = por %p181, %p182
    %s185 = sadd.s32 %s184, 1
    %p188 = scmp.eq.s32.totalorder %s16, 3
    %p189 = scmp.ne.s32.totalorder %s184, %s186
    %p190 = scmp.eq.s32.totalorder %s16, 0
    %p191 = por %p189, %p190
    %p192 = scmp.ne.s32.totalorder %s184, %s186
    %p193 = scmp.eq.s32.totalorder %s21, 3
    %p194 = por %p192, %p193
    %p195 = scmp.ne.s32.totalorder %s186, %s187
    %p196 = scmp.eq.s32.totalorder %s21, 0
    %p197 = por %p195, %p196
    %p198 = scmp.ne.s32.totalorder %s186, %s187
    %p199 = scmp.eq.s32.totalorder %s22, 3
    %p200 = por %p198, %p199
    %p202 = scmp.ne.s32.totalorder %s187, %s201
    %p203 = scmp.eq.s32.totalorder %s22, 0
    %p204 = por %p202, %p203
    %s205 = ssub.s32 %s23, %s35
    %p206 = scmp.eq.s32.totalorder %s205, 0
    %s208 = sadd.s32 %s207, 1
    %s209 = scalar_select %p206, %s207, %s208
    %p212 = pneg %p206
    %p213 = scmp.eq.s32.totalorder %s16, 3
    %p214 = por %p212, %p213
    %p215 = scmp.ne.s32.totalorder %s207, %s210
    %p216 = scmp.eq.s32.totalorder %s16, 0
    %p217 = por %p215, %p216
    %p218 = scmp.ne.s32.totalorder %s207, %s210
    %p219 = scmp.eq.s32.totalorder %s21, 3
    %p220 = por %p218, %p219
    %p221 = scmp.ne.s32.totalorder %s210, %s211
    %p222 = scmp.eq.s32.totalorder %s21, 0
    %p223 = por %p221, %p222
    %p224 = scmp.ne.s32.totalorder %s210, %s211
    %p225 = scmp.eq.s32.totalorder %s22, 3
    %p226 = por %p224, %p225
    %p228 = scmp.ne.s32.totalorder %s211, %s227
    %p229 = scmp.eq.s32.totalorder %s22, 0
    %p230 = por %p228, %p229
    %s231 = ssub.s32 %s23, %s35
    %p232 = scmp.eq.s32.totalorder %s231, 0
    %s234 = sadd.s32 %s233, 1
    %s235 = scalar_select %p232, %s233, %s234
    %p238 = pneg %p232
    %p239 = scmp.eq.s32.totalorder %s16, 3
    %p240 = por %p238, %p239
    %p241 = scmp.ne.s32.totalorder %s233, %s236
    %p242 = scmp.eq.s32.totalorder %s16, 0
    %p243 = por %p241, %p242
    %p244 = scmp.ne.s32.totalorder %s233, %s236
    %p245 = scmp.eq.s32.totalorder %s21, 3
    %p246 = por %p244, %p245
    %p247 = scmp.ne.s32.totalorder %s236, %s237
    %p248 = scmp.eq.s32.totalorder %s21, 0
    %p249 = por %p247, %p248
    %p250 = scmp.ne.s32.totalorder %s236, %s237
    %p251 = scmp.eq.s32.totalorder %s22, 3
    %p252 = por %p250, %p251
    %p254 = scmp.ne.s32.totalorder %s237, %s253
    %p255 = scmp.eq.s32.totalorder %s22, 0
    %p256 = por %p254, %p255
    %s257 = ssub.s32 %s23, %s35
    %p258 = scmp.eq.s32.totalorder %s257, 0
    %s260 = sadd.s32 %s259, 1
    %s261 = scalar_select %p258, %s259, %s260
    %p264 = pneg %p258
    %p265 = scmp.eq.s32.totalorder %s16, 3
    %p266 = por %p264, %p265
    %p267 = scmp.ne.s32.totalorder %s259, %s262
    %p268 = scmp.eq.s32.totalorder %s16, 0
    %p269 = por %p267, %p268
    %p270 = scmp.ne.s32.totalorder %s259, %s262
    %p271 = scmp.eq.s32.totalorder %s21, 3
    %p272 = por %p270, %p271
    %p273 = scmp.ne.s32.totalorder %s262, %s263
    %p274 = scmp.eq.s32.totalorder %s21, 0
    %p275 = por %p273, %p274
    %p276 = scmp.ne.s32.totalorder %s262, %s263
    %p277 = scmp.eq.s32.totalorder %s22, 3
    %p278 = por %p276, %p277
    %p280 = scmp.ne.s32.totalorder %s263, %s279
    %p281 = scmp.eq.s32.totalorder %s22, 0
    %p282 = por %p280, %p281
    %p283 = scmp.le.s32.totalorder 1, %s16
    %p284 = scmp.lt.s32.totalorder %s16, 5
    %p285 = pnand %p283, %p284
    %p286 = pneg %p285
    // Predicated region
    $region9: #{causal_self_attention.3} parent=5 // pred_check
      _
    $region10: #{causal_self_attention.3} parent=5 // pred_check_branch
      %288 = sbr.rel (%p285) target = $region12
    $region11: #{causal_self_attention.3} parent=5 // pred_region
      %s289 = ssub.s32 %s16, 1
      // Predicated region
      $region13: #{causal_self_attention.3} parent=11 // pred_check
        %p290 = pneg %p82
      $region14: #{causal_self_attention.3} parent=11 // pred_check_branch
        %292 = sbr.rel (%p290) target = $region16
      $region15: #{causal_self_attention.3} parent=11 // pred_region
        %s293 = smul.u32 16, %s26
        %p294 = scmp.lt.s32.totalorder %s293, 15
        %s295 = scalar_select %p294, %s293, 15
        %s296 = smul.addr %s295, 4
        %s297 = scalar_lea.vmem %s1, %s296
        %s298 = smul.u32 16, %s26
      $region16: #{causal_self_attention.3} parent=11 // pred_fallthru
        _
      // Predicated region
      $region17: #{causal_self_attention.3} parent=11 // pred_check
        %p299 = pneg %p108
      $region18: #{causal_self_attention.3} parent=11 // pred_check_branch
        %301 = sbr.rel (%p299) target = $region20
      $region19: #{causal_self_attention.3} parent=11 // pred_region
        %s302 = smul.u32 16, %s26
        %p303 = scmp.lt.s32.totalorder %s302, 15
        %s304 = scalar_select %p303, %s302, 15
        %s305 = smul.addr %s304, 4
        %s306 = scalar_lea.vmem %s2, %s305
        %s307 = smul.u32 16, %s26
      $region20: #{causal_self_attention.3} parent=11 // pred_fallthru
        _
      // Predicated region
      $region21: #{causal_self_attention.3} parent=11 // pred_check
        %p308 = pneg %p134
      $region22: #{causal_self_attention.3} parent=11 // pred_check_branch
        %310 = sbr.rel (%p308) target = $region24
      $region23: #{causal_self_attention.3} parent=11 // pred_region
        %s311 = smul.u32 16, %s26
        %p312 = scmp.lt.s32.totalorder %s311, 15
        %s313 = scalar_select %p312, %s311, 15
        %s314 = smul.addr %s313, 4
        %s315 = scalar_lea.vmem %s3, %s314
        %s316 = smul.u32 16, %s26
      $region24: #{causal_self_attention.3} parent=11 // pred_fallthru
        _
      // Predicated region
      $region25: #{causal_self_attention.3} parent=11 // pred_check
        %p317 = pneg %p155
      $region26: #{causal_self_attention.3} parent=11 // pred_check_branch
        %319 = sbr.rel (%p317) target = $region28
      $region27: #{causal_self_attention.3} parent=11 // pred_region
        _
      $region28: #{causal_self_attention.3} parent=11 // pred_fallthru
        _
      // Predicated region
      $region29: #{causal_self_attention.3} parent=11 // pred_check
        %p320 = pneg %p176
      $region30: #{causal_self_attention.3} parent=11 // pred_check_branch
        %322 = sbr.rel (%p320) target = $region32
      $region31: #{causal_self_attention.3} parent=11 // pred_region
        _
      $region32: #{causal_self_attention.3} parent=11 // pred_fallthru
        _
      // Predicated region
      $region33: #{causal_self_attention.3} parent=11 // pred_check
        %p323 = pneg %p197
      $region34: #{causal_self_attention.3} parent=11 // pred_check_branch
        %325 = sbr.rel (%p323) target = $region36
      $region35: #{causal_self_attention.3} parent=11 // pred_region
        _
      $region36: #{causal_self_attention.3} parent=11 // pred_fallthru
        _
    $region12: #{causal_self_attention.3} parent=5 // pred_fallthru
      _
    %p326 = scmp.lt.s32.totalorder %s16, 4
    // Predicated region
    $region37: #{causal_self_attention.3} parent=5 // pred_check
      %p327 = pneg %p326
    $region38: #{causal_self_attention.3} parent=5 // pred_check_branch
      %329 = sbr.rel (%p327) target = $region40
    $region39: #{causal_self_attention.3} parent=5 // pred_region
      // Predicated region
      $region41: #{causal_self_attention.3} parent=39 // pred_check
        %p330 = pneg %p50
      $region42: #{causal_self_attention.3} parent=39 // pred_check_branch
        %332 = sbr.rel (%p330) target = $region44
      $region43: #{causal_self_attention.3} parent=39 // pred_region
        %s333 = smul.u32 32, %s23
        %p334 = scmp.lt.s32.totalorder %s333, 127
        %s335 = scalar_select %p334, %s333, 127
        %p336 = scmp.lt.s32.totalorder %s24, 0
        %s337 = scalar_select %p336, %s24, 0
        %s338 = sadd.s32 %s337, %s335
        %s339 = smul.addr %s338, 4
        %s340 = scalar_lea.vmem %s0, %s339
        %s341 = smul.u32 32, %s23
      $region44: #{causal_self_attention.3} parent=39 // pred_fallthru
        _
    $region40: #{causal_self_attention.3} parent=5 // pred_fallthru
      _
    %p342 = scmp.le.s32.totalorder 1, %s16
    %p343 = scmp.lt.s32.totalorder %s16, 5
    %p344 = pnand %p342, %p343
    %p345 = pneg %p344
    // Predicated region
    $region45: #{causal_self_attention.3} parent=5 // pred_check
      _
    $region46: #{causal_self_attention.3} parent=5 // pred_check_branch
      %347 = sbr.rel (%p344) target = $region48
    $region47: #{causal_self_attention.3} parent=5 // pred_region
      %s348 = ssub.s32 %s16, 1
      %s349 = smul.u32 32, %s25
      %p350 = scmp.lt.s32.totalorder %s349, 127
      %s351 = scalar_select %p350, %s349, 127
      %p352 = scmp.lt.s32.totalorder %s26, 0
      %s353 = scalar_select %p352, %s26, 0
      %s354 = sadd.s32 %s353, %s351
      %s355 = smul.addr %s354, 4
      %s356 = scalar_lea.vmem %s0, %s355
      %p357 = pneg %p56
      %p358 = pneg %p53
      %s359 = smul.u32 16, %s26
      %p360 = scmp.lt.s32.totalorder %s359, 15
      %s361 = scalar_select %p360, %s359, 15
      %s362 = smul.addr %s361, 4
      %s363 = scalar_lea.vmem %s1, %s362
      %p364 = pneg %p82
      %p365 = pneg %p79
      %s366 = smul.u32 16, %s26
      %p367 = scmp.lt.s32.totalorder %s366, 15
      %s368 = scalar_select %p367, %s366, 15
      %s369 = smul.addr %s368, 4
      %s370 = scalar_lea.vmem %s2, %s369
      %p371 = pneg %p108
      %p372 = pneg %p105
      %s373 = smul.u32 16, %s26
      %p374 = scmp.lt.s32.totalorder %s373, 15
      %s375 = scalar_select %p374, %s373, 15
      %s376 = smul.addr %s375, 4
      %s377 = scalar_lea.vmem %s3, %s376
      %p378 = pneg %p134
      %p379 = pneg %p131
      %p380 = pneg %p155
      %p381 = pneg %p152
      %p382 = pneg %p176
      %p383 = pneg %p173
      %p384 = pneg %p197
      %p385 = pneg %p194
      %p386 = pneg %p223
      %p387 = pneg %p220
      %s388 = smul.u32 32, %s25
      %p389 = scmp.lt.s32.totalorder %s388, 127
      %s390 = scalar_select %p389, %s388, 127
      %s391 = smul.addr %s390, 4
      %s392 = scalar_lea.vmem %s7, %s391
      %p393 = pneg %p249
      %p394 = pneg %p246
      %s395 = smul.u32 32, %s25
      %p396 = scmp.lt.s32.totalorder %s395, 127
      %s397 = scalar_select %p396, %s395, 127
      %s398 = smul.addr %s397, 4
      %s399 = scalar_lea.vmem %s8, %s398
      %p400 = pneg %p275
      %p401 = pneg %p272
      %s402 = smul.u32 32, %s25
      %p403 = scmp.lt.s32.totalorder %s402, 127
      %s404 = scalar_select %p403, %s402, 127
      %s405 = smul.addr %s404, 4
      %s406 = scalar_lea.vmem %s9, %s405
      %s407 = smul.u32 32, %s25
      %p408 = scmp.lt.s32.totalorder %s407, 127
      %s409 = scalar_select %p408, %s407, 127
      %p410 = scmp.lt.s32.totalorder %s26, 0
      %s411 = scalar_select %p410, %s26, 0
      %s412 = sadd.s32 %s411, %s409
      %s413 = smul.addr %s412, 4
      %s414 = scalar_lea.vmem %s0, %s413
      %s415 = smul.u32 32, %s25
      %s416 = smul.u32 16, %s26
      %p417 = scmp.lt.s32.totalorder %s416, 15
      %s418 = scalar_select %p417, %s416, 15
      %s419 = smul.addr %s418, 4
      %s420 = scalar_lea.vmem %s1, %s419
      %s421 = smul.u32 16, %s26
      %s422 = smul.u32 16, %s26
      %p423 = scmp.lt.s32.totalorder %s422, 15
      %s424 = scalar_select %p423, %s422, 15
      %s425 = smul.addr %s424, 4
      %s426 = scalar_lea.vmem %s2, %s425
      %s427 = smul.u32 16, %s26
      %s428 = smul.u32 16, %s26
      %p429 = scmp.lt.s32.totalorder %s428, 15
      %s430 = scalar_select %p429, %s428, 15
      %s431 = smul.addr %s430, 4
      %s432 = scalar_lea.vmem %s3, %s431
      %s433 = smul.u32 16, %s26
      %s434 = smul.u32 32, %s25
      %p435 = scmp.lt.s32.totalorder %s434, 127
      %s436 = scalar_select %p435, %s434, 127
      %s437 = smul.addr %s436, 4
      %s438 = scalar_lea.vmem %s7, %s437
      %s439 = smul.u32 32, %s25
      %s440 = smul.u32 32, %s25
      %p441 = scmp.lt.s32.totalorder %s440, 127
      %s442 = scalar_select %p441, %s440, 127
      %s443 = smul.addr %s442, 4
      %s444 = scalar_lea.vmem %s8, %s443
      %s445 = smul.u32 32, %s25
      %s446 = smul.u32 32, %s25
      %p447 = scmp.lt.s32.totalorder %s446, 127
      %s448 = scalar_select %p447, %s446, 127
      %s449 = smul.addr %s448, 4
      %s450 = scalar_lea.vmem %s9, %s449
      %s451 = smul.u32 32, %s25
      %p453 = scmp.eq.s32.totalorder %s26, 0
      // Predicated region
      $region49: #{causal_self_attention.3} parent=47 // pred_check
        %p454 = pneg %p453
      $region50: #{causal_self_attention.3} parent=47 // pred_check_branch
        %456 = sbr.rel (%p454) target = $region52
      $region51: #{causal_self_attention.3} parent=47 // pred_region
        %457 = vst [vmem:[#allocation2] sm:$0xff] 0.0
        %458 = vst [vmem:[#allocation2 + $0x8] sm:$0xff] 0.0
        %459 = vst [vmem:[#allocation2 + $0x10] sm:$0xff] 0.0
        %460 = vst [vmem:[#allocation2 + $0x18] sm:$0xff] 0.0
        %461 = vst [vmem:[#allocation2 + $0x20] sm:$0xff] 0.0
        %462 = vst [vmem:[#allocation2 + $0x28] sm:$0xff] 0.0
        %463 = vst [vmem:[#allocation2 + $0x30] sm:$0xff] 0.0
        %464 = vst [vmem:[#allocation2 + $0x38] sm:$0xff] 0.0
        %465 = vst [vmem:[#allocation2 + $0x40] sm:$0xff] 0.0
        %466 = vst [vmem:[#allocation2 + $0x48] sm:$0xff] 0.0
        %467 = vst [vmem:[#allocation2 + $0x50] sm:$0xff] 0.0
        %468 = vst [vmem:[#allocation2 + $0x58] sm:$0xff] 0.0
        %469 = vst [vmem:[#allocation2 + $0x60] sm:$0xff] 0.0
        %470 = vst [vmem:[#allocation2 + $0x68] sm:$0xff] 0.0
        %471 = vst [vmem:[#allocation2 + $0x70] sm:$0xff] 0.0
        %472 = vst [vmem:[#allocation2 + $0x78] sm:$0xff] 0.0
        %473 = vst [vmem:[#allocation2 + $0x80] sm:$0xff] 0.0
        %474 = vst [vmem:[#allocation2 + $0x88] sm:$0xff] 0.0
        %475 = vst [vmem:[#allocation2 + $0x90] sm:$0xff] 0.0
        %476 = vst [vmem:[#allocation2 + $0x98] sm:$0xff] 0.0
        %477 = vst [vmem:[#allocation2 + $0xa0] sm:$0xff] 0.0
        %478 = vst [vmem:[#allocation2 + $0xa8] sm:$0xff] 0.0
        %479 = vst [vmem:[#allocation2 + $0xb0] sm:$0xff] 0.0
        %480 = vst [vmem:[#allocation2 + $0xb8] sm:$0xff] 0.0
        %481 = vst [vmem:[#allocation2 + $0xc0] sm:$0xff] 0.0
        %482 = vst [vmem:[#allocation2 + $0xc8] sm:$0xff] 0.0
        %483 = vst [vmem:[#allocation2 + $0xd0] sm:$0xff] 0.0
        %484 = vst [vmem:[#allocation2 + $0xd8] sm:$0xff] 0.0
        %485 = vst [vmem:[#allocation2 + $0xe0] sm:$0xff] 0.0
        %486 = vst [vmem:[#allocation2 + $0xe8] sm:$0xff] 0.0
        %487 = vst [vmem:[#allocation2 + $0xf0] sm:$0xff] 0.0
        %488 = vst [vmem:[#allocation2 + $0xf8] sm:$0xff] 0.0
        %489 = vst [vmem:[#allocation3] sm:$0xff] 0.0
        %490 = vst [vmem:[#allocation3 + $0x8] sm:$0xff] 0.0
        %491 = vst [vmem:[#allocation3 + $0x10] sm:$0xff] 0.0
        %492 = vst [vmem:[#allocation3 + $0x18] sm:$0xff] 0.0
        %493 = vst [vmem:[#allocation3 + $0x20] sm:$0xff] 0.0
        %494 = vst [vmem:[#allocation3 + $0x28] sm:$0xff] 0.0
        %495 = vst [vmem:[#allocation3 + $0x30] sm:$0xff] 0.0
        %496 = vst [vmem:[#allocation3 + $0x38] sm:$0xff] 0.0
        %497 = vst [vmem:[#allocation3 + $0x40] sm:$0xff] 0.0
        %498 = vst [vmem:[#allocation3 + $0x48] sm:$0xff] 0.0
        %499 = vst [vmem:[#allocation3 + $0x50] sm:$0xff] 0.0
        %500 = vst [vmem:[#allocation3 + $0x58] sm:$0xff] 0.0
        %501 = vst [vmem:[#allocation3 + $0x60] sm:$0xff] 0.0
        %502 = vst [vmem:[#allocation3 + $0x68] sm:$0xff] 0.0
        %503 = vst [vmem:[#allocation3 + $0x70] sm:$0xff] 0.0
        %504 = vst [vmem:[#allocation3 + $0x78] sm:$0xff] 0.0
        %505 = vst [vmem:[#allocation3 + $0x80] sm:$0xff] 0.0
        %506 = vst [vmem:[#allocation3 + $0x88] sm:$0xff] 0.0
        %507 = vst [vmem:[#allocation3 + $0x90] sm:$0xff] 0.0
        %508 = vst [vmem:[#allocation3 + $0x98] sm:$0xff] 0.0
        %509 = vst [vmem:[#allocation3 + $0xa0] sm:$0xff] 0.0
        %510 = vst [vmem:[#allocation3 + $0xa8] sm:$0xff] 0.0
        %511 = vst [vmem:[#allocation3 + $0xb0] sm:$0xff] 0.0
        %512 = vst [vmem:[#allocation3 + $0xb8] sm:$0xff] 0.0
        %513 = vst [vmem:[#allocation3 + $0xc0] sm:$0xff] 0.0
        %514 = vst [vmem:[#allocation3 + $0xc8] sm:$0xff] 0.0
        %515 = vst [vmem:[#allocation3 + $0xd0] sm:$0xff] 0.0
        %516 = vst [vmem:[#allocation3 + $0xd8] sm:$0xff] 0.0
        %517 = vst [vmem:[#allocation3 + $0xe0] sm:$0xff] 0.0
        %518 = vst [vmem:[#allocation3 + $0xe8] sm:$0xff] 0.0
        %519 = vst [vmem:[#allocation3 + $0xf0] sm:$0xff] 0.0
        %520 = vst [vmem:[#allocation3 + $0xf8] sm:$0xff] 0.0
        %521 = vst [vmem:[#allocation4] sm:$0xff] 0.0
        %522 = vst [vmem:[#allocation4 + $0x8] sm:$0xff] 0.0
        %523 = vst [vmem:[#allocation4 + $0x10] sm:$0xff] 0.0
        %524 = vst [vmem:[#allocation4 + $0x18] sm:$0xff] 0.0
        %525 = vst [vmem:[#allocation4 + $0x20] sm:$0xff] 0.0
        %526 = vst [vmem:[#allocation4 + $0x28] sm:$0xff] 0.0
        %527 = vst [vmem:[#allocation4 + $0x30] sm:$0xff] 0.0
        %528 = vst [vmem:[#allocation4 + $0x38] sm:$0xff] 0.0
        %529 = vst [vmem:[#allocation4 + $0x40] sm:$0xff] 0.0
        %530 = vst [vmem:[#allocation4 + $0x48] sm:$0xff] 0.0
        %531 = vst [vmem:[#allocation4 + $0x50] sm:$0xff] 0.0
        %532 = vst [vmem:[#allocation4 + $0x58] sm:$0xff] 0.0
        %533 = vst [vmem:[#allocation4 + $0x60] sm:$0xff] 0.0
        %534 = vst [vmem:[#allocation4 + $0x68] sm:$0xff] 0.0
        %535 = vst [vmem:[#allocation4 + $0x70] sm:$0xff] 0.0
        %536 = vst [vmem:[#allocation4 + $0x78] sm:$0xff] 0.0
        %537 = vst [vmem:[#allocation4 + $0x80] sm:$0xff] 0.0
        %538 = vst [vmem:[#allocation4 + $0x88] sm:$0xff] 0.0
        %539 = vst [vmem:[#allocation4 + $0x90] sm:$0xff] 0.0
        %540 = vst [vmem:[#allocation4 + $0x98] sm:$0xff] 0.0
        %541 = vst [vmem:[#allocation4 + $0xa0] sm:$0xff] 0.0
        %542 = vst [vmem:[#allocation4 + $0xa8] sm:$0xff] 0.0
        %543 = vst [vmem:[#allocation4 + $0xb0] sm:$0xff] 0.0
        %544 = vst [vmem:[#allocation4 + $0xb8] sm:$0xff] 0.0
        %545 = vst [vmem:[#allocation4 + $0xc0] sm:$0xff] 0.0
        %546 = vst [vmem:[#allocation4 + $0xc8] sm:$0xff] 0.0
        %547 = vst [vmem:[#allocation4 + $0xd0] sm:$0xff] 0.0
        %548 = vst [vmem:[#allocation4 + $0xd8] sm:$0xff] 0.0
        %549 = vst [vmem:[#allocation4 + $0xe0] sm:$0xff] 0.0
        %550 = vst [vmem:[#allocation4 + $0xe8] sm:$0xff] 0.0
        %551 = vst [vmem:[#allocation4 + $0xf0] sm:$0xff] 0.0
        %552 = vst [vmem:[#allocation4 + $0xf8] sm:$0xff] 0.0
      $region52: #{causal_self_attention.3} parent=47 // pred_fallthru
        _
      %v553 = vld [vmem:[%s414] sm:$0xf]
      %v554 = vld [vmem:[%s414 + $0x4] sm:$0xf]
      %v555 = vld [vmem:[%s414 + $0x8] sm:$0xf]
      %v556 = vld [vmem:[%s414 + $0xc] sm:$0xf]
      %v557 = vld [vmem:[%s414 + $0x10] sm:$0xf]
      %v558 = vld [vmem:[%s414 + $0x14] sm:$0xf]
      %v559 = vld [vmem:[%s414 + $0x18] sm:$0xf]
      %v560 = vld [vmem:[%s414 + $0x1c] sm:$0xf]
      %v561 = vld [vmem:[%s414 + $0x20] sm:$0xf]
      %v562 = vld [vmem:[%s414 + $0x24] sm:$0xf]
      %v563 = vld [vmem:[%s414 + $0x28] sm:$0xf]
      %v564 = vld [vmem:[%s414 + $0x2c] sm:$0xf]
      %v565 = vld [vmem:[%s414 + $0x30] sm:$0xf]
      %v566 = vld [vmem:[%s414 + $0x34] sm:$0xf]
      %v567 = vld [vmem:[%s414 + $0x38] sm:$0xf]
      %v568 = vld [vmem:[%s414 + $0x3c] sm:$0xf]
      %v569 = vld [vmem:[%s414 + $0x40] sm:$0xf]
      %v570 = vld [vmem:[%s414 + $0x44] sm:$0xf]
      %v571 = vld [vmem:[%s414 + $0x48] sm:$0xf]
      %v572 = vld [vmem:[%s414 + $0x4c] sm:$0xf]
      %v573 = vld [vmem:[%s414 + $0x50] sm:$0xf]
      %v574 = vld [vmem:[%s414 + $0x54] sm:$0xf]
      %v575 = vld [vmem:[%s414 + $0x58] sm:$0xf]
      %v576 = vld [vmem:[%s414 + $0x5c] sm:$0xf]
      %v577 = vld [vmem:[%s414 + $0x60] sm:$0xf]
      %v578 = vld [vmem:[%s414 + $0x64] sm:$0xf]
      %v579 = vld [vmem:[%s414 + $0x68] sm:$0xf]
      %v580 = vld [vmem:[%s414 + $0x6c] sm:$0xf]
      %v581 = vld [vmem:[%s414 + $0x70] sm:$0xf]
      %v582 = vld [vmem:[%s414 + $0x74] sm:$0xf]
      %v583 = vld [vmem:[%s414 + $0x78] sm:$0xf]
      %v584 = vld [vmem:[%s414 + $0x7c] sm:$0xf]
      %v585 = vld [vmem:[#allocation2] sm:$0xff]
      %v586 = vld [vmem:[#allocation2 + $0x8] sm:$0xff]
      %v587 = vld [vmem:[#allocation2 + $0x10] sm:$0xff]
      %v588 = vld [vmem:[#allocation2 + $0x18] sm:$0xff]
      %v589 = vld [vmem:[#allocation2 + $0x20] sm:$0xff]
      %v590 = vld [vmem:[#allocation2 + $0x28] sm:$0xff]
      %v591 = vld [vmem:[#allocation2 + $0x30] sm:$0xff]
      %v592 = vld [vmem:[#allocation2 + $0x38] sm:$0xff]
      %v593 = vld [vmem:[#allocation2 + $0x40] sm:$0xff]
      %v594 = vld [vmem:[#allocation2 + $0x48] sm:$0xff]
      %v595 = vld [vmem:[#allocation2 + $0x50] sm:$0xff]
      %v596 = vld [vmem:[#allocation2 + $0x58] sm:$0xff]
      %v597 = vld [vmem:[#allocation2 + $0x60] sm:$0xff]
      %v598 = vld [vmem:[#allocation2 + $0x68] sm:$0xff]
      %v599 = vld [vmem:[#allocation2 + $0x70] sm:$0xff]
      %v600 = vld [vmem:[#allocation2 + $0x78] sm:$0xff]
      %v601 = vld [vmem:[#allocation2 + $0x80] sm:$0xff]
      %v602 = vld [vmem:[#allocation2 + $0x88] sm:$0xff]
      %v603 = vld [vmem:[#allocation2 + $0x90] sm:$0xff]
      %v604 = vld [vmem:[#allocation2 + $0x98] sm:$0xff]
      %v605 = vld [vmem:[#allocation2 + $0xa0] sm:$0xff]
      %v606 = vld [vmem:[#allocation2 + $0xa8] sm:$0xff]
      %v607 = vld [vmem:[#allocation2 + $0xb0] sm:$0xff]
      %v608 = vld [vmem:[#allocation2 + $0xb8] sm:$0xff]
      %v609 = vld [vmem:[#allocation2 + $0xc0] sm:$0xff]
      %v610 = vld [vmem:[#allocation2 + $0xc8] sm:$0xff]
      %v611 = vld [vmem:[#allocation2 + $0xd0] sm:$0xff]
      %v612 = vld [vmem:[#allocation2 + $0xd8] sm:$0xff]
      %v613 = vld [vmem:[#allocation2 + $0xe0] sm:$0xff]
      %v614 = vld [vmem:[#allocation2 + $0xe8] sm:$0xff]
      %v615 = vld [vmem:[#allocation2 + $0xf0] sm:$0xff]
      %v616 = vld [vmem:[#allocation2 + $0xf8] sm:$0xff]
      %v617 = vld [vmem:[%s420] sm:$0xf]
      %v618 = vld [vmem:[%s420 + $0x4] sm:$0xf]
      %v619 = vld [vmem:[%s420 + $0x8] sm:$0xf]
      %v620 = vld [vmem:[%s420 + $0xc] sm:$0xf]
      %v621 = vld [vmem:[%s420 + $0x10] sm:$0xf]
      %v622 = vld [vmem:[%s420 + $0x14] sm:$0xf]
      %v623 = vld [vmem:[%s420 + $0x18] sm:$0xf]
      %v624 = vld [vmem:[%s420 + $0x1c] sm:$0xf]
      %v625 = vld [vmem:[%s420 + $0x20] sm:$0xf]
      %v626 = vld [vmem:[%s420 + $0x24] sm:$0xf]
      %v627 = vld [vmem:[%s420 + $0x28] sm:$0xf]
      %v628 = vld [vmem:[%s420 + $0x2c] sm:$0xf]
      %v629 = vld [vmem:[%s420 + $0x30] sm:$0xf]
      %v630 = vld [vmem:[%s420 + $0x34] sm:$0xf]
      %v631 = vld [vmem:[%s420 + $0x38] sm:$0xf]
      %v632 = vld [vmem:[%s420 + $0x3c] sm:$0xf]
      %v665 = vunpack.c.l.b16 %v553
      %v666 = vunpack.c.l.b16 %v554
      %v667 = vunpack.c.l.b16 %v555
      %v668 = vunpack.c.l.b16 %v556
      %v669 = vunpack.c.l.b16 %v557
      %v670 = vunpack.c.l.b16 %v558
      %v671 = vunpack.c.l.b16 %v559
      %v672 = vunpack.c.l.b16 %v560
      %v673 = vunpack.c.l.b16 %v561
      %v674 = vunpack.c.l.b16 %v562
      %v675 = vunpack.c.l.b16 %v563
      %v676 = vunpack.c.l.b16 %v564
      %v677 = vunpack.c.l.b16 %v565
      %v678 = vunpack.c.l.b16 %v566
      %v679 = vunpack.c.l.b16 %v567
      %v680 = vunpack.c.l.b16 %v568
      %v681 = vunpack.c.l.b16 %v569
      %v682 = vunpack.c.l.b16 %v570
      %v683 = vunpack.c.l.b16 %v571
      %v684 = vunpack.c.l.b16 %v572
      %v685 = vunpack.c.l.b16 %v573
      %v686 = vunpack.c.l.b16 %v574
      %v687 = vunpack.c.l.b16 %v575
      %v688 = vunpack.c.l.b16 %v576
      %v689 = vunpack.c.l.b16 %v577
      %v690 = vunpack.c.l.b16 %v578
      %v691 = vunpack.c.l.b16 %v579
      %v692 = vunpack.c.l.b16 %v580
      %v693 = vunpack.c.l.b16 %v581
      %v694 = vunpack.c.l.b16 %v582
      %v695 = vunpack.c.l.b16 %v583
      %v696 = vunpack.c.l.b16 %v584
      %v697 = vpack.c.b16 %v666, %v665
      %v698 = vpack.c.b16 %v668, %v667
      %v699 = vpack.c.b16 %v670, %v669
      %v700 = vpack.c.b16 %v672, %v671
      %v701 = vpack.c.b16 %v674, %v673
      %v702 = vpack.c.b16 %v676, %v675
      %v703 = vpack.c.b16 %v678, %v677
      %v704 = vpack.c.b16 %v680, %v679
      %v705 = vpack.c.b16 %v682, %v681
      %v706 = vpack.c.b16 %v684, %v683
      %v707 = vpack.c.b16 %v686, %v685
      %v708 = vpack.c.b16 %v688, %v687
      %v709 = vpack.c.b16 %v690, %v689
      %v710 = vpack.c.b16 %v692, %v691
      %v711 = vpack.c.b16 %v694, %v693
      %v712 = vpack.c.b16 %v696, %v695
      %v745 = vunpack.c.l.b16 %v617
      %v746 = vunpack.c.l.b16 %v618
      %v747 = vunpack.c.l.b16 %v619
      %v748 = vunpack.c.l.b16 %v620
      %v749 = vunpack.c.l.b16 %v621
      %v750 = vunpack.c.l.b16 %v622
      %v751 = vunpack.c.l.b16 %v623
      %v752 = vunpack.c.l.b16 %v624
      %v753 = vunpack.c.l.b16 %v625
      %v754 = vunpack.c.l.b16 %v626
      %v755 = vunpack.c.l.b16 %v627
      %v756 = vunpack.c.l.b16 %v628
      %v757 = vunpack.c.l.b16 %v629
      %v758 = vunpack.c.l.b16 %v630
      %v759 = vunpack.c.l.b16 %v631
      %v760 = vunpack.c.l.b16 %v632
      %v761 = vpack.c.b16 %v746, %v745
      %v762 = vpack.c.b16 %v748, %v747
      %v763 = vpack.c.b16 %v750, %v749
      %v764 = vpack.c.b16 %v752, %v751
      %v765 = vpack.c.b16 %v754, %v753
      %v766 = vpack.c.b16 %v756, %v755
      %v767 = vpack.c.b16 %v758, %v757
      %v768 = vpack.c.b16 %v760, %v759
      %777 = vmatprep.subr.bf16.mxu0 0
      %778 = vmatpush1.bf16.msra.mxu0 %v761
      %779 = vmatprep.subr.bf16.mxu0 0
      %780 = vmatpush1.bf16.msra.mxu0 %v762
      %781 = vmatprep.subr.bf16.mxu0 0
      %782 = vmatpush1.bf16.msra.mxu0 %v763
      %783 = vmatprep.subr.bf16.mxu0 0
      %784 = vmatpush1.bf16.msra.mxu0 %v764
      %785 = vmatprep.subr.bf16.mxu0 0
      %786 = vmatpush1.bf16.msra.mxu0 %v765
      %787 = vmatprep.subr.bf16.mxu0 0
      %788 = vmatpush1.bf16.msra.mxu0 %v766
      %789 = vmatprep.subr.bf16.mxu0 0
      %790 = vmatpush1.bf16.msra.mxu0 %v767
      %791 = vmatprep.subr.bf16.mxu0 0
      %792 = vmatpush1.bf16.msra.mxu0 %v768
      %793 = vmatprep.subr.bf16.mxu0 0
      %794 = vmatpush1.bf16.msra.mxu0 0
      %795 = vmatprep.subr.bf16.mxu0 0
      %796 = vmatpush1.bf16.msra.mxu0 0
      %797 = vmatprep.subr.bf16.mxu0 0
      %798 = vmatpush1.bf16.msra.mxu0 0
      %799 = vmatprep.subr.bf16.mxu0 0
      %800 = vmatpush1.bf16.msra.mxu0 0
      %801 = vmatprep.subr.bf16.mxu0 0
      %802 = vmatpush1.bf16.msra.mxu0 0
      %803 = vmatprep.subr.bf16.mxu0 0
      %804 = vmatpush1.bf16.msra.mxu0 0
      %805 = vmatprep.subr.bf16.mxu0 0
      %806 = vmatpush1.bf16.msra.mxu0 0
      %807 = vmatprep.subr.bf16.mxu0 0
      %808 = vmatpush1.bf16.msra.mxu0 0
      %809 = vmatprep.mubr.bf16.mxu0 0
      %810 = vmatmul.mubr.bf16.gmra.mrb[0].mxu0 %v697
      %v811 = vpop.f32.mrb[0].mxu0
      %v812 = vadd.f32 0.0, %v811
      %v813 = vpop.f32.mrb[0].mxu0
      %v814 = vpop.f32.mrb[0].mxu0
      %v815 = vadd.f32 0.0, %v814
      %v816 = vpop.f32.mrb[0].mxu0
      %817 = vmatprep.mubr.bf16.mxu0 0
      %818 = vmatmul.mubr.bf16.gmra.mrb[0].mxu0 %v698
      %v819 = vpop.f32.mrb[0].mxu0
      %v820 = vadd.f32 0.0, %v819
      %v821 = vpop.f32.mrb[0].mxu0
      %v822 = vpop.f32.mrb[0].mxu0
      %v823 = vadd.f32 0.0, %v822
      %v824 = vpop.f32.mrb[0].mxu0
      %825 = vmatprep.mubr.bf16.mxu0 0
      %826 = vmatmul.mubr.bf16.gmra.mrb[0].mxu0 %v699
      %v827 = vpop.f32.mrb[0].mxu0
      %v828 = vadd.f32 0.0, %v827
      %v829 = vpop.f32.mrb[0].mxu0
      %v830 = vpop.f32.mrb[0].mxu0
      %v831 = vadd.f32 0.0, %v830
      %v832 = vpop.f32.mrb[0].mxu0
      %833 = vmatprep.mubr.bf16.mxu0 0
      %834 = vmatmul.mubr.bf16.gmra.mrb[0].mxu0 %v700
      %v835 = vpop.f32.mrb[0].mxu0
      %v836 = vadd.f32 0.0, %v835
      %v837 = vpop.f32.mrb[0].mxu0
      %v838 = vpop.f32.mrb[0].mxu0
      %v839 = vadd.f32 0.0, %v838
      %v840 = vpop.f32.mrb[0].mxu0
      %841 = vmatprep.mubr.bf16.mxu0 0
      %842 = vmatmul.mubr.bf16.gmra.mrb[0].mxu0 %v701
      %v843 = vpop.f32.mrb[0].mxu0
      %v844 = vadd.f32 0.0, %v843
      %v845 = vpop.f32.mrb[0].mxu0
      %v846 = vpop.f32.mrb[0].mxu0
      %v847 = vadd.f32 0.0, %v846
      %v848 = vpop.f32.mrb[0].mxu0
      %849 = vmatprep.mubr.bf16.mxu0 0
      %850 = vmatmul.mubr.bf16.gmra.mrb[0].mxu0 %v702
      %v851 = vpop.f32.mrb[0].mxu0
      %v852 = vadd.f32 0.0, %v851
      %v853 = vpop.f32.mrb[0].mxu0
      %v854 = vpop.f32.mrb[0].mxu0
      %v855 = vadd.f32 0.0, %v854
      %v856 = vpop.f32.mrb[0].mxu0
      %857 = vmatprep.mubr.bf16.mxu0 0
      %858 = vmatmul.mubr.bf16.gmra.mrb[0].mxu0 %v703
      %v859 = vpop.f32.mrb[0].mxu0
      %v860 = vadd.f32 0.0, %v859
      %v861 = vpop.f32.mrb[0].mxu0
      %v862 = vpop.f32.mrb[0].mxu0
      %v863 = vadd.f32 0.0, %v862
      %v864 = vpop.f32.mrb[0].mxu0
      %865 = vmatprep.mubr.bf16.mxu0 0
      %866 = vmatmul.mubr.bf16.gmra.mrb[0].mxu0 %v704
      %v867 = vpop.f32.mrb[0].mxu0
      %v868 = vadd.f32 0.0, %v867
      %v869 = vpop.f32.mrb[0].mxu0
      %v870 = vpop.f32.mrb[0].mxu0
      %v871 = vadd.f32 0.0, %v870
      %v872 = vpop.f32.mrb[0].mxu0
      %873 = vmatprep.mubr.bf16.mxu0 0
      %874 = vmatmul.mubr.bf16.gmra.mrb[0].mxu0 %v705
      %v875 = vpop.f32.mrb[0].mxu0
      %v876 = vadd.f32 0.0, %v875
      %v877 = vpop.f32.mrb[0].mxu0
      %v878 = vpop.f32.mrb[0].mxu0
      %v879 = vadd.f32 0.0, %v878
      %v880 = vpop.f32.mrb[0].mxu0
      %881 = vmatprep.mubr.bf16.mxu0 0
      %882 = vmatmul.mubr.bf16.gmra.mrb[0].mxu0 %v706
      %v883 = vpop.f32.mrb[0].mxu0
      %v884 = vadd.f32 0.0, %v883
      %v885 = vpop.f32.mrb[0].mxu0
      %v886 = vpop.f32.mrb[0].mxu0
      %v887 = vadd.f32 0.0, %v886
      %v888 = vpop.f32.mrb[0].mxu0
      %889 = vmatprep.mubr.bf16.mxu0 0
      %890 = vmatmul.mubr.bf16.gmra.mrb[0].mxu0 %v707
      %v891 = vpop.f32.mrb[0].mxu0
      %v892 = vadd.f32 0.0, %v891
      %v893 = vpop.f32.mrb[0].mxu0
      %v894 = vpop.f32.mrb[0].mxu0
      %v895 = vadd.f32 0.0, %v894
      %v896 = vpop.f32.mrb[0].mxu0
      %897 = vmatprep.mubr.bf16.mxu0 0
      %898 = vmatmul.mubr.bf16.gmra.mrb[0].mxu0 %v708
      %v899 = vpop.f32.mrb[0].mxu0
      %v900 = vadd.f32 0.0, %v899
      %v901 = vpop.f32.mrb[0].mxu0
      %v902 = vpop.f32.mrb[0].mxu0
      %v903 = vadd.f32 0.0, %v902
      %v904 = vpop.f32.mrb[0].mxu0
      %905 = vmatprep.mubr.bf16.mxu0 0
      %906 = vmatmul.mubr.bf16.gmra.mrb[0].mxu0 %v709
      %v907 = vpop.f32.mrb[0].mxu0
      %v908 = vadd.f32 0.0, %v907
      %v909 = vpop.f32.mrb[0].mxu0
      %v910 = vpop.f32.mrb[0].mxu0
      %v911 = vadd.f32 0.0, %v910
      %v912 = vpop.f32.mrb[0].mxu0
      %913 = vmatprep.mubr.bf16.mxu0 0
      %914 = vmatmul.mubr.bf16.gmra.mrb[0].mxu0 %v710
      %v915 = vpop.f32.mrb[0].mxu0
      %v916 = vadd.f32 0.0, %v915
      %v917 = vpop.f32.mrb[0].mxu0
      %v918 = vpop.f32.mrb[0].mxu0
      %v919 = vadd.f32 0.0, %v918
      %v920 = vpop.f32.mrb[0].mxu0
      %921 = vmatprep.mubr.bf16.mxu0 0
      %922 = vmatmul.mubr.bf16.gmra.mrb[0].mxu0 %v711
      %v923 = vpop.f32.mrb[0].mxu0
      %v924 = vadd.f32 0.0, %v923
      %v925 = vpop.f32.mrb[0].mxu0
      %v926 = vpop.f32.mrb[0].mxu0
      %v927 = vadd.f32 0.0, %v926
      %v928 = vpop.f32.mrb[0].mxu0
      %929 = vmatprep.mubr.bf16.mxu0 0
      %930 = vmatmul.mubr.bf16.gmra.mrb[0].mxu0 %v712
      %v931 = vpop.f32.mrb[0].mxu0
      %v932 = vadd.f32 0.0, %v931
      %v933 = vpop.f32.mrb[0].mxu0
      %v934 = vpop.f32.mrb[0].mxu0
      %v935 = vadd.f32 0.0, %v934
      %v936 = vpop.f32.mrb[0].mxu0
      %937 = vdwg.mxu0
      %v938 = vadd.f32 %v585, %v812
      %v939 = vadd.f32 %v586, %v815
      %v940 = vadd.f32 %v587, %v820
      %v941 = vadd.f32 %v588, %v823
      %v942 = vadd.f32 %v589, %v828
      %v943 = vadd.f32 %v590, %v831
      %v944 = vadd.f32 %v591, %v836
      %v945 = vadd.f32 %v592, %v839
      %v946 = vadd.f32 %v593, %v844
      %v947 = vadd.f32 %v594, %v847
      %v948 = vadd.f32 %v595, %v852
      %v949 = vadd.f32 %v596, %v855
      %v950 = vadd.f32 %v597, %v860
      %v951 = vadd.f32 %v598, %v863
      %v952 = vadd.f32 %v599, %v868
      %v953 = vadd.f32 %v600, %v871
      %v954 = vadd.f32 %v601, %v876
      %v955 = vadd.f32 %v602, %v879
      %v956 = vadd.f32 %v603, %v884
      %v957 = vadd.f32 %v604, %v887
      %v958 = vadd.f32 %v605, %v892
      %v959 = vadd.f32 %v606, %v895
      %v960 = vadd.f32 %v607, %v900
      %v961 = vadd.f32 %v608, %v903
      %v962 = vadd.f32 %v609, %v908
      %v963 = vadd.f32 %v610, %v911
      %v964 = vadd.f32 %v611, %v916
      %v965 = vadd.f32 %v612, %v919
      %v966 = vadd.f32 %v613, %v924
      %v967 = vadd.f32 %v614, %v927
      %v968 = vadd.f32 %v615, %v932
      %v969 = vadd.f32 %v616, %v935
      %970 = vst [vmem:[#allocation2] sm:$0xff] %v938
      %971 = vst [vmem:[#allocation2 + $0x8] sm:$0xff] %v939
      %972 = vst [vmem:[#allocation2 + $0x10] sm:$0xff] %v940
      %973 = vst [vmem:[#allocation2 + $0x18] sm:$0xff] %v941
      %974 = vst [vmem:[#allocation2 + $0x20] sm:$0xff] %v942
      %975 = vst [vmem:[#allocation2 + $0x28] sm:$0xff] %v943
      %976 = vst [vmem:[#allocation2 + $0x30] sm:$0xff] %v944
      %977 = vst [vmem:[#allocation2 + $0x38] sm:$0xff] %v945
      %978 = vst [vmem:[#allocation2 + $0x40] sm:$0xff] %v946
      %979 = vst [vmem:[#allocation2 + $0x48] sm:$0xff] %v947
      %980 = vst [vmem:[#allocation2 + $0x50] sm:$0xff] %v948
      %981 = vst [vmem:[#allocation2 + $0x58] sm:$0xff] %v949
      %982 = vst [vmem:[#allocation2 + $0x60] sm:$0xff] %v950
      %983 = vst [vmem:[#allocation2 + $0x68] sm:$0xff] %v951
      %984 = vst [vmem:[#allocation2 + $0x70] sm:$0xff] %v952
      %985 = vst [vmem:[#allocation2 + $0x78] sm:$0xff] %v953
      %986 = vst [vmem:[#allocation2 + $0x80] sm:$0xff] %v954
      %987 = vst [vmem:[#allocation2 + $0x88] sm:$0xff] %v955
      %988 = vst [vmem:[#allocation2 + $0x90] sm:$0xff] %v956
      %989 = vst [vmem:[#allocation2 + $0x98] sm:$0xff] %v957
      %990 = vst [vmem:[#allocation2 + $0xa0] sm:$0xff] %v958
      %991 = vst [vmem:[#allocation2 + $0xa8] sm:$0xff] %v959
      %992 = vst [vmem:[#allocation2 + $0xb0] sm:$0xff] %v960
      %993 = vst [vmem:[#allocation2 + $0xb8] sm:$0xff] %v961
      %994 = vst [vmem:[#allocation2 + $0xc0] sm:$0xff] %v962
      %995 = vst [vmem:[#allocation2 + $0xc8] sm:$0xff] %v963
      %996 = vst [vmem:[#allocation2 + $0xd0] sm:$0xff] %v964
      %997 = vst [vmem:[#allocation2 + $0xd8] sm:$0xff] %v965
      %998 = vst [vmem:[#allocation2 + $0xe0] sm:$0xff] %v966
      %999 = vst [vmem:[#allocation2 + $0xe8] sm:$0xff] %v967
      %1000 = vst [vmem:[#allocation2 + $0xf0] sm:$0xff] %v968
      %1001 = vst [vmem:[#allocation2 + $0xf8] sm:$0xff] %v969
      %v1002 = vld [vmem:[#allocation3] sm:$0xff]
      %v1003 = vld [vmem:[#allocation3 + $0x8] sm:$0xff]
      %v1004 = vld [vmem:[#allocation3 + $0x10] sm:$0xff]
      %v1005 = vld [vmem:[#allocation3 + $0x18] sm:$0xff]
      %v1006 = vld [vmem:[#allocation3 + $0x20] sm:$0xff]
      %v1007 = vld [vmem:[#allocation3 + $0x28] sm:$0xff]
      %v1008 = vld [vmem:[#allocation3 + $0x30] sm:$0xff]
      %v1009 = vld [vmem:[#allocation3 + $0x38] sm:$0xff]
      %v1010 = vld [vmem:[#allocation3 + $0x40] sm:$0xff]
      %v1011 = vld [vmem:[#allocation3 + $0x48] sm:$0xff]
      %v1012 = vld [vmem:[#allocation3 + $0x50] sm:$0xff]
      %v1013 = vld [vmem:[#allocation3 + $0x58] sm:$0xff]
      %v1014 = vld [vmem:[#allocation3 + $0x60] sm:$0xff]
      %v1015 = vld [vmem:[#allocation3 + $0x68] sm:$0xff]
      %v1016 = vld [vmem:[#allocation3 + $0x70] sm:$0xff]
      %v1017 = vld [vmem:[#allocation3 + $0x78] sm:$0xff]
      %v1018 = vld [vmem:[#allocation3 + $0x80] sm:$0xff]
      %v1019 = vld [vmem:[#allocation3 + $0x88] sm:$0xff]
      %v1020 = vld [vmem:[#allocation3 + $0x90] sm:$0xff]
      %v1021 = vld [vmem:[#allocation3 + $0x98] sm:$0xff]
      %v1022 = vld [vmem:[#allocation3 + $0xa0] sm:$0xff]
      %v1023 = vld [vmem:[#allocation3 + $0xa8] sm:$0xff]
      %v1024 = vld [vmem:[#allocation3 + $0xb0] sm:$0xff]
      %v1025 = vld [vmem:[#allocation3 + $0xb8] sm:$0xff]
      %v1026 = vld [vmem:[#allocation3 + $0xc0] sm:$0xff]
      %v1027 = vld [vmem:[#allocation3 + $0xc8] sm:$0xff]
      %v1028 = vld [vmem:[#allocation3 + $0xd0] sm:$0xff]
      %v1029 = vld [vmem:[#allocation3 + $0xd8] sm:$0xff]
      %v1030 = vld [vmem:[#allocation3 + $0xe0] sm:$0xff]
      %v1031 = vld [vmem:[#allocation3 + $0xe8] sm:$0xff]
      %v1032 = vld [vmem:[#allocation3 + $0xf0] sm:$0xff]
      %v1033 = vld [vmem:[#allocation3 + $0xf8] sm:$0xff]
      %v1034 = vld [vmem:[%s426] sm:$0xf]
      %v1035 = vld [vmem:[%s426 + $0x4] sm:$0xf]
      %v1036 = vld [vmem:[%s426 + $0x8] sm:$0xf]
      %v1037 = vld [vmem:[%s426 + $0xc] sm:$0xf]
      %v1038 = vld [vmem:[%s426 + $0x10] sm:$0xf]
      %v1039 = vld [vmem:[%s426 + $0x14] sm:$0xf]
      %v1040 = vld [vmem:[%s426 + $0x18] sm:$0xf]
      %v1041 = vld [vmem:[%s426 + $0x1c] sm:$0xf]
      %v1042 = vld [vmem:[%s426 + $0x20] sm:$0xf]
      %v1043 = vld [vmem:[%s426 + $0x24] sm:$0xf]
      %v1044 = vld [vmem:[%s426 + $0x28] sm:$0xf]
      %v1045 = vld [vmem:[%s426 + $0x2c] sm:$0xf]
      %v1046 = vld [vmem:[%s426 + $0x30] sm:$0xf]
      %v1047 = vld [vmem:[%s426 + $0x34] sm:$0xf]
      %v1048 = vld [vmem:[%s426 + $0x38] sm:$0xf]
      %v1049 = vld [vmem:[%s426 + $0x3c] sm:$0xf]
      %v1066 = vunpack.c.l.b16 %v1034
      %v1067 = vunpack.c.l.b16 %v1035
      %v1068 = vunpack.c.l.b16 %v1036
      %v1069 = vunpack.c.l.b16 %v1037
      %v1070 = vunpack.c.l.b16 %v1038
      %v1071 = vunpack.c.l.b16 %v1039
      %v1072 = vunpack.c.l.b16 %v1040
      %v1073 = vunpack.c.l.b16 %v1041
      %v1074 = vunpack.c.l.b16 %v1042
      %v1075 = vunpack.c.l.b16 %v1043
      %v1076 = vunpack.c.l.b16 %v1044
      %v1077 = vunpack.c.l.b16 %v1045
      %v1078 = vunpack.c.l.b16 %v1046
      %v1079 = vunpack.c.l.b16 %v1047
      %v1080 = vunpack.c.l.b16 %v1048
      %v1081 = vunpack.c.l.b16 %v1049
      %v1082 = vpack.c.b16 %v1067, %v1066
      %v1083 = vpack.c.b16 %v1069, %v1068
      %v1084 = vpack.c.b16 %v1071, %v1070
      %v1085 = vpack.c.b16 %v1073, %v1072
      %v1086 = vpack.c.b16 %v1075, %v1074
      %v1087 = vpack.c.b16 %v1077, %v1076
      %v1088 = vpack.c.b16 %v1079, %v1078
      %v1089 = vpack.c.b16 %v1081, %v1080
      %1098 = vmatprep.subr.bf16.mxu0 0
      %1099 = vmatpush1.bf16.msra.mxu0 %v1082
      %1100 = vmatprep.subr.bf16.mxu0 0
      %1101 = vmatpush1.bf16.msra.mxu0 %v1083
      %1102 = vmatprep.subr.bf16.mxu0 0
      %1103 = vmatpush1.bf16.msra.mxu0 %v1084
      %1104 = vmatprep.subr.bf16.mxu0 0
      %1105 = vmatpush1.bf16.msra.mxu0 %v1085
      %1106 = vmatprep.subr.bf16.mxu0 0
      %1107 = vmatpush1.bf16.msra.mxu0 %v1086
      %1108 = vmatprep.subr.bf16.mxu0 0
      %1109 = vmatpush1.bf16.msra.mxu0 %v1087
      %1110 = vmatprep.subr.bf16.mxu0 0
      %1111 = vmatpush1.bf16.msra.mxu0 %v1088
      %1112 = vmatprep.subr.bf16.mxu0 0
      %1113 = vmatpush1.bf16.msra.mxu0 %v1089
      %1114 = vmatprep.subr.bf16.mxu0 0
      %1115 = vmatpush1.bf16.msra.mxu0 0
      %1116 = vmatprep.subr.bf16.mxu0 0
      %1117 = vmatpush1.bf16.msra.mxu0 0
      %1118 = vmatprep.subr.bf16.mxu0 0
      %1119 = vmatpush1.bf16.msra.mxu0 0
      %1120 = vmatprep.subr.bf16.mxu0 0
      %1121 = vmatpush1.bf16.msra.mxu0 0
      %1122 = vmatprep.subr.bf16.mxu0 0
      %1123 = vmatpush1.bf16.msra.mxu0 0
      %1124 = vmatprep.subr.bf16.mxu0 0
      %1125 = vmatpush1.bf16.msra.mxu0 0
      %1126 = vmatprep.subr.bf16.mxu0 0
      %1127 = vmatpush1.bf16.msra.mxu0 0
      %1128 = vmatprep.subr.bf16.mxu0 0
      %1129 = vmatpush1.bf16.msra.mxu0 0
      %1130 = vmatprep.mubr.bf16.mxu0 0
      %1131 = vmatmul.mubr.bf16.gmra.mrb[0].mxu0 %v697
      %v1132 = vpop.f32.mrb[0].mxu0
      %v1133 = vadd.f32 0.0, %v1132
      %v1134 = vpop.f32.mrb[0].mxu0
      %v1135 = vpop.f32.mrb[0].mxu0
      %v1136 = vadd.f32 0.0, %v1135
      %v1137 = vpop.f32.mrb[0].mxu0
      %1138 = vmatprep.mubr.bf16.mxu0 0
      %1139 = vmatmul.mubr.bf16.gmra.mrb[0].mxu0 %v698
      %v1140 = vpop.f32.mrb[0].mxu0
      %v1141 = vadd.f32 0.0, %v1140
      %v1142 = vpop.f32.mrb[0].mxu0
      %v1143 = vpop.f32.mrb[0].mxu0
      %v1144 = vadd.f32 0.0, %v1143
      %v1145 = vpop.f32.mrb[0].mxu0
      %1146 = vmatprep.mubr.bf16.mxu0 0
      %1147 = vmatmul.mubr.bf16.gmra.mrb[0].mxu0 %v699
      %v1148 = vpop.f32.mrb[0].mxu0
      %v1149 = vadd.f32 0.0, %v1148
      %v1150 = vpop.f32.mrb[0].mxu0
      %v1151 = vpop.f32.mrb[0].mxu0
      %v1152 = vadd.f32 0.0, %v1151
      %v1153 = vpop.f32.mrb[0].mxu0
      %1154 = vmatprep.mubr.bf16.mxu0 0
      %1155 = vmatmul.mubr.bf16.gmra.mrb[0].mxu0 %v700
      %v1156 = vpop.f32.mrb[0].mxu0
      %v1157 = vadd.f32 0.0, %v1156
      %v1158 = vpop.f32.mrb[0].mxu0
      %v1159 = vpop.f32.mrb[0].mxu0
      %v1160 = vadd.f32 0.0, %v1159
      %v1161 = vpop.f32.mrb[0].mxu0
      %1162 = vmatprep.mubr.bf16.mxu0 0
      %1163 = vmatmul.mubr.bf16.gmra.mrb[0].mxu0 %v701
      %v1164 = vpop.f32.mrb[0].mxu0
      %v1165 = vadd.f32 0.0, %v1164
      %v1166 = vpop.f32.mrb[0].mxu0
      %v1167 = vpop.f32.mrb[0].mxu0
      %v1168 = vadd.f32 0.0, %v1167
      %v1169 = vpop.f32.mrb[0].mxu0
      %1170 = vmatprep.mubr.bf16.mxu0 0
      %1171 = vmatmul.mubr.bf16.gmra.mrb[0].mxu0 %v702
      %v1172 = vpop.f32.mrb[0].mxu0
      %v1173 = vadd.f32 0.0, %v1172
      %v1174 = vpop.f32.mrb[0].mxu0
      %v1175 = vpop.f32.mrb[0].mxu0
      %v1176 = vadd.f32 0.0, %v1175
      %v1177 = vpop.f32.mrb[0].mxu0
      %1178 = vmatprep.mubr.bf16.mxu0 0
      %1179 = vmatmul.mubr.bf16.gmra.mrb[0].mxu0 %v703
      %v1180 = vpop.f32.mrb[0].mxu0
      %v1181 = vadd.f32 0.0, %v1180
      %v1182 = vpop.f32.mrb[0].mxu0
      %v1183 = vpop.f32.mrb[0].mxu0
      %v1184 = vadd.f32 0.0, %v1183
      %v1185 = vpop.f32.mrb[0].mxu0
      %1186 = vmatprep.mubr.bf16.mxu0 0
      %1187 = vmatmul.mubr.bf16.gmra.mrb[0].mxu0 %v704
      %v1188 = vpop.f32.mrb[0].mxu0
      %v1189 = vadd.f32 0.0, %v1188
      %v1190 = vpop.f32.mrb[0].mxu0
      %v1191 = vpop.f32.mrb[0].mxu0
      %v1192 = vadd.f32 0.0, %v1191
      %v1193 = vpop.f32.mrb[0].mxu0
      %1194 = vmatprep.mubr.bf16.mxu0 0
      %1195 = vmatmul.mubr.bf16.gmra.mrb[0].mxu0 %v705
      %v1196 = vpop.f32.mrb[0].mxu0
      %v1197 = vadd.f32 0.0, %v1196
      %v1198 = vpop.f32.mrb[0].mxu0
      %v1199 = vpop.f32.mrb[0].mxu0
      %v1200 = vadd.f32 0.0, %v1199
      %v1201 = vpop.f32.mrb[0].mxu0
      %1202 = vmatprep.mubr.bf16.mxu0 0
      %1203 = vmatmul.mubr.bf16.gmra.mrb[0].mxu0 %v706
      %v1204 = vpop.f32.mrb[0].mxu0
      %v1205 = vadd.f32 0.0, %v1204
      %v1206 = vpop.f32.mrb[0].mxu0
      %v1207 = vpop.f32.mrb[0].mxu0
      %v1208 = vadd.f32 0.0, %v1207
      %v1209 = vpop.f32.mrb[0].mxu0
      %1210 = vmatprep.mubr.bf16.mxu0 0
      %1211 = vmatmul.mubr.bf16.gmra.mrb[0].mxu0 %v707
      %v1212 = vpop.f32.mrb[0].mxu0
      %v1213 = vadd.f32 0.0, %v1212
      %v1214 = vpop.f32.mrb[0].mxu0
      %v1215 = vpop.f32.mrb[0].mxu0
      %v1216 = vadd.f32 0.0, %v1215
      %v1217 = vpop.f32.mrb[0].mxu0
      %1218 = vmatprep.mubr.bf16.mxu0 0
      %1219 = vmatmul.mubr.bf16.gmra.mrb[0].mxu0 %v708
      %v1220 = vpop.f32.mrb[0].mxu0
      %v1221 = vadd.f32 0.0, %v1220
      %v1222 = vpop.f32.mrb[0].mxu0
      %v1223 = vpop.f32.mrb[0].mxu0
      %v1224 = vadd.f32 0.0, %v1223
      %v1225 = vpop.f32.mrb[0].mxu0
      %1226 = vmatprep.mubr.bf16.mxu0 0
      %1227 = vmatmul.mubr.bf16.gmra.mrb[0].mxu0 %v709
      %v1228 = vpop.f32.mrb[0].mxu0
      %v1229 = vadd.f32 0.0, %v1228
      %v1230 = vpop.f32.mrb[0].mxu0
      %v1231 = vpop.f32.mrb[0].mxu0
      %v1232 = vadd.f32 0.0, %v1231
      %v1233 = vpop.f32.mrb[0].mxu0
      %1234 = vmatprep.mubr.bf16.mxu0 0
      %1235 = vmatmul.mubr.bf16.gmra.mrb[0].mxu0 %v710
      %v1236 = vpop.f32.mrb[0].mxu0
      %v1237 = vadd.f32 0.0, %v1236
      %v1238 = vpop.f32.mrb[0].mxu0
      %v1239 = vpop.f32.mrb[0].mxu0
      %v1240 = vadd.f32 0.0, %v1239
      %v1241 = vpop.f32.mrb[0].mxu0
      %1242 = vmatprep.mubr.bf16.mxu0 0
      %1243 = vmatmul.mubr.bf16.gmra.mrb[0].mxu0 %v711
      %v1244 = vpop.f32.mrb[0].mxu0
      %v1245 = vadd.f32 0.0, %v1244
      %v1246 = vpop.f32.mrb[0].mxu0
      %v1247 = vpop.f32.mrb[0].mxu0
      %v1248 = vadd.f32 0.0, %v1247
      %v1249 = vpop.f32.mrb[0].mxu0
      %1250 = vmatprep.mubr.bf16.mxu0 0
      %1251 = vmatmul.mubr.bf16.gmra.mrb[0].mxu0 %v712
      %v1252 = vpop.f32.mrb[0].mxu0
      %v1253 = vadd.f32 0.0, %v1252
      %v1254 = vpop.f32.mrb[0].mxu0
      %v1255 = vpop.f32.mrb[0].mxu0
      %v1256 = vadd.f32 0.0, %v1255
      %v1257 = vpop.f32.mrb[0].mxu0
      %1258 = vdwg.mxu0
      %v1259 = vadd.f32 %v1002, %v1133
      %v1260 = vadd.f32 %v1003, %v1136
      %v1261 = vadd.f32 %v1004, %v1141
      %v1262 = vadd.f32 %v1005, %v1144
      %v1263 = vadd.f32 %v1006, %v1149
      %v1264 = vadd.f32 %v1007, %v1152
      %v1265 = vadd.f32 %v1008, %v1157
      %v1266 = vadd.f32 %v1009, %v1160
      %v1267 = vadd.f32 %v1010, %v1165
      %v1268 = vadd.f32 %v1011, %v1168
      %v1269 = vadd.f32 %v1012, %v1173
      %v1270 = vadd.f32 %v1013, %v1176
      %v1271 = vadd.f32 %v1014, %v1181
      %v1272 = vadd.f32 %v1015, %v1184
      %v1273 = vadd.f32 %v1016, %v1189
      %v1274 = vadd.f32 %v1017, %v1192
      %v1275 = vadd.f32 %v1018, %v1197
      %v1276 = vadd.f32 %v1019, %v1200
      %v1277 = vadd.f32 %v1020, %v1205
      %v1278 = vadd.f32 %v1021, %v1208
      %v1279 = vadd.f32 %v1022, %v1213
      %v1280 = vadd.f32 %v1023, %v1216
      %v1281 = vadd.f32 %v1024, %v1221
      %v1282 = vadd.f32 %v1025, %v1224
      %v1283 = vadd.f32 %v1026, %v1229
      %v1284 = vadd.f32 %v1027, %v1232
      %v1285 = vadd.f32 %v1028, %v1237
      %v1286 = vadd.f32 %v1029, %v1240
      %v1287 = vadd.f32 %v1030, %v1245
      %v1288 = vadd.f32 %v1031, %v1248
      %v1289 = vadd.f32 %v1032, %v1253
      %v1290 = vadd.f32 %v1033, %v1256
      %1291 = vst [vmem:[#allocation3] sm:$0xff] %v1259
      %1292 = vst [vmem:[#allocation3 + $0x8] sm:$0xff] %v1260
      %1293 = vst [vmem:[#allocation3 + $0x10] sm:$0xff] %v1261
      %1294 = vst [vmem:[#allocation3 + $0x18] sm:$0xff] %v1262
      %1295 = vst [vmem:[#allocation3 + $0x20] sm:$0xff] %v1263
      %1296 = vst [vmem:[#allocation3 + $0x28] sm:$0xff] %v1264
      %1297 = vst [vmem:[#allocation3 + $0x30] sm:$0xff] %v1265
      %1298 = vst [vmem:[#allocation3 + $0x38] sm:$0xff] %v1266
      %1299 = vst [vmem:[#allocation3 + $0x40] sm:$0xff] %v1267
      %1300 = vst [vmem:[#allocation3 + $0x48] sm:$0xff] %v1268
      %1301 = vst [vmem:[#allocation3 + $0x50] sm:$0xff] %v1269
      %1302 = vst [vmem:[#allocation3 + $0x58] sm:$0xff] %v1270
      %1303 = vst [vmem:[#allocation3 + $0x60] sm:$0xff] %v1271
      %1304 = vst [vmem:[#allocation3 + $0x68] sm:$0xff] %v1272
      %1305 = vst [vmem:[#allocation3 + $0x70] sm:$0xff] %v1273
      %1306 = vst [vmem:[#allocation3 + $0x78] sm:$0xff] %v1274
      %1307 = vst [vmem:[#allocation3 + $0x80] sm:$0xff] %v1275
      %1308 = vst [vmem:[#allocation3 + $0x88] sm:$0xff] %v1276
      %1309 = vst [vmem:[#allocation3 + $0x90] sm:$0xff] %v1277
      %1310 = vst [vmem:[#allocation3 + $0x98] sm:$0xff] %v1278
      %1311 = vst [vmem:[#allocation3 + $0xa0] sm:$0xff] %v1279
      %1312 = vst [vmem:[#allocation3 + $0xa8] sm:$0xff] %v1280
      %1313 = vst [vmem:[#allocation3 + $0xb0] sm:$0xff] %v1281
      %1314 = vst [vmem:[#allocation3 + $0xb8] sm:$0xff] %v1282
      %1315 = vst [vmem:[#allocation3 + $0xc0] sm:$0xff] %v1283
      %1316 = vst [vmem:[#allocation3 + $0xc8] sm:$0xff] %v1284
      %1317 = vst [vmem:[#allocation3 + $0xd0] sm:$0xff] %v1285
      %1318 = vst [vmem:[#allocation3 + $0xd8] sm:$0xff] %v1286
      %1319 = vst [vmem:[#allocation3 + $0xe0] sm:$0xff] %v1287
      %1320 = vst [vmem:[#allocation3 + $0xe8] sm:$0xff] %v1288
      %1321 = vst [vmem:[#allocation3 + $0xf0] sm:$0xff] %v1289
      %1322 = vst [vmem:[#allocation3 + $0xf8] sm:$0xff] %v1290
      %v1323 = vld [vmem:[#allocation4] sm:$0xff]
      %v1324 = vld [vmem:[#allocation4 + $0x8] sm:$0xff]
      %v1325 = vld [vmem:[#allocation4 + $0x10] sm:$0xff]
      %v1326 = vld [vmem:[#allocation4 + $0x18] sm:$0xff]
      %v1327 = vld [vmem:[#allocation4 + $0x20] sm:$0xff]
      %v1328 = vld [vmem:[#allocation4 + $0x28] sm:$0xff]
      %v1329 = vld [vmem:[#allocation4 + $0x30] sm:$0xff]
      %v1330 = vld [vmem:[#allocation4 + $0x38] sm:$0xff]
      %v1331 = vld [vmem:[#allocation4 + $0x40] sm:$0xff]
      %v1332 = vld [vmem:[#allocation4 + $0x48] sm:$0xff]
      %v1333 = vld [vmem:[#allocation4 + $0x50] sm:$0xff]
      %v1334 = vld [vmem:[#allocation4 + $0x58] sm:$0xff]
      %v1335 = vld [vmem:[#allocation4 + $0x60] sm:$0xff]
      %v1336 = vld [vmem:[#allocation4 + $0x68] sm:$0xff]
      %v1337 = vld [vmem:[#allocation4 + $0x70] sm:$0xff]
      %v1338 = vld [vmem:[#allocation4 + $0x78] sm:$0xff]
      %v1339 = vld [vmem:[#allocation4 + $0x80] sm:$0xff]
      %v1340 = vld [vmem:[#allocation4 + $0x88] sm:$0xff]
      %v1341 = vld [vmem:[#allocation4 + $0x90] sm:$0xff]
      %v1342 = vld [vmem:[#allocation4 + $0x98] sm:$0xff]
      %v1343 = vld [vmem:[#allocation4 + $0xa0] sm:$0xff]
      %v1344 = vld [vmem:[#allocation4 + $0xa8] sm:$0xff]
      %v1345 = vld [vmem:[#allocation4 + $0xb0] sm:$0xff]
      %v1346 = vld [vmem:[#allocation4 + $0xb8] sm:$0xff]
      %v1347 = vld [vmem:[#allocation4 + $0xc0] sm:$0xff]
      %v1348 = vld [vmem:[#allocation4 + $0xc8] sm:$0xff]
      %v1349 = vld [vmem:[#allocation4 + $0xd0] sm:$0xff]
      %v1350 = vld [vmem:[#allocation4 + $0xd8] sm:$0xff]
      %v1351 = vld [vmem:[#allocation4 + $0xe0] sm:$0xff]
      %v1352 = vld [vmem:[#allocation4 + $0xe8] sm:$0xff]
      %v1353 = vld [vmem:[#allocation4 + $0xf0] sm:$0xff]
      %v1354 = vld [vmem:[#allocation4 + $0xf8] sm:$0xff]
      %v1355 = vld [vmem:[%s432] sm:$0xf]
      %v1356 = vld [vmem:[%s432 + $0x4] sm:$0xf]
      %v1357 = vld [vmem:[%s432 + $0x8] sm:$0xf]
      %v1358 = vld [vmem:[%s432 + $0xc] sm:$0xf]
      %v1359 = vld [vmem:[%s432 + $0x10] sm:$0xf]
      %v1360 = vld [vmem:[%s432 + $0x14] sm:$0xf]
      %v1361 = vld [vmem:[%s432 + $0x18] sm:$0xf]
      %v1362 = vld [vmem:[%s432 + $0x1c] sm:$0xf]
      %v1363 = vld [vmem:[%s432 + $0x20] sm:$0xf]
      %v1364 = vld [vmem:[%s432 + $0x24] sm:$0xf]
      %v1365 = vld [vmem:[%s432 + $0x28] sm:$0xf]
      %v1366 = vld [vmem:[%s432 + $0x2c] sm:$0xf]
      %v1367 = vld [vmem:[%s432 + $0x30] sm:$0xf]
      %v1368 = vld [vmem:[%s432 + $0x34] sm:$0xf]
      %v1369 = vld [vmem:[%s432 + $0x38] sm:$0xf]
      %v1370 = vld [vmem:[%s432 + $0x3c] sm:$0xf]
      %v1387 = vunpack.c.l.b16 %v1355
      %v1388 = vunpack.c.l.b16 %v1356
      %v1389 = vunpack.c.l.b16 %v1357
      %v1390 = vunpack.c.l.b16 %v1358
      %v1391 = vunpack.c.l.b16 %v1359
      %v1392 = vunpack.c.l.b16 %v1360
      %v1393 = vunpack.c.l.b16 %v1361
      %v1394 = vunpack.c.l.b16 %v1362
      %v1395 = vunpack.c.l.b16 %v1363
      %v1396 = vunpack.c.l.b16 %v1364
      %v1397 = vunpack.c.l.b16 %v1365
      %v1398 = vunpack.c.l.b16 %v1366
      %v1399 = vunpack.c.l.b16 %v1367
      %v1400 = vunpack.c.l.b16 %v1368
      %v1401 = vunpack.c.l.b16 %v1369
      %v1402 = vunpack.c.l.b16 %v1370
      %v1403 = vpack.c.b16 %v1388, %v1387
      %v1404 = vpack.c.b16 %v1390, %v1389
      %v1405 = vpack.c.b16 %v1392, %v1391
      %v1406 = vpack.c.b16 %v1394, %v1393
      %v1407 = vpack.c.b16 %v1396, %v1395
      %v1408 = vpack.c.b16 %v1398, %v1397
      %v1409 = vpack.c.b16 %v1400, %v1399
      %v1410 = vpack.c.b16 %v1402, %v1401
      %1419 = vmatprep.subr.bf16.mxu0 0
      %1420 = vmatpush1.bf16.msra.mxu0 %v1403
      %1421 = vmatprep.subr.bf16.mxu0 0
      %1422 = vmatpush1.bf16.msra.mxu0 %v1404
      %1423 = vmatprep.subr.bf16.mxu0 0
      %1424 = vmatpush1.bf16.msra.mxu0 %v1405
      %1425 = vmatprep.subr.bf16.mxu0 0
      %1426 = vmatpush1.bf16.msra.mxu0 %v1406
      %1427 = vmatprep.subr.bf16.mxu0 0
      %1428 = vmatpush1.bf16.msra.mxu0 %v1407
      %1429 = vmatprep.subr.bf16.mxu0 0
      %1430 = vmatpush1.bf16.msra.mxu0 %v1408
      %1431 = vmatprep.subr.bf16.mxu0 0
      %1432 = vmatpush1.bf16.msra.mxu0 %v1409
      %1433 = vmatprep.subr.bf16.mxu0 0
      %1434 = vmatpush1.bf16.msra.mxu0 %v1410
      %1435 = vmatprep.subr.bf16.mxu0 0
      %1436 = vmatpush1.bf16.msra.mxu0 0
      %1437 = vmatprep.subr.bf16.mxu0 0
      %1438 = vmatpush1.bf16.msra.mxu0 0
      %1439 = vmatprep.subr.bf16.mxu0 0
      %1440 = vmatpush1.bf16.msra.mxu0 0
      %1441 = vmatprep.subr.bf16.mxu0 0
      %1442 = vmatpush1.bf16.msra.mxu0 0
      %1443 = vmatprep.subr.bf16.mxu0 0
      %1444 = vmatpush1.bf16.msra.mxu0 0
      %1445 = vmatprep.subr.bf16.mxu0 0
      %1446 = vmatpush1.bf16.msra.mxu0 0
      %1447 = vmatprep.subr.bf16.mxu0 0
      %1448 = vmatpush1.bf16.msra.mxu0 0
      %1449 = vmatprep.subr.bf16.mxu0 0
      %1450 = vmatpush1.bf16.msra.mxu0 0
      %1451 = vmatprep.mubr.bf16.mxu0 0
      %1452 = vmatmul.mubr.bf16.gmra.mrb[0].mxu0 %v697
      %v1453 = vpop.f32.mrb[0].mxu0
      %v1454 = vadd.f32 0.0, %v1453
      %v1455 = vpop.f32.mrb[0].mxu0
      %v1456 = vpop.f32.mrb[0].mxu0
      %v1457 = vadd.f32 0.0, %v1456
      %v1458 = vpop.f32.mrb[0].mxu0
      %1459 = vmatprep.mubr.bf16.mxu0 0
      %1460 = vmatmul.mubr.bf16.gmra.mrb[0].mxu0 %v698
      %v1461 = vpop.f32.mrb[0].mxu0
      %v1462 = vadd.f32 0.0, %v1461
      %v1463 = vpop.f32.mrb[0].mxu0
      %v1464 = vpop.f32.mrb[0].mxu0
      %v1465 = vadd.f32 0.0, %v1464
      %v1466 = vpop.f32.mrb[0].mxu0
      %1467 = vmatprep.mubr.bf16.mxu0 0
      %1468 = vmatmul.mubr.bf16.gmra.mrb[0].mxu0 %v699
      %v1469 = vpop.f32.mrb[0].mxu0
      %v1470 = vadd.f32 0.0, %v1469
      %v1471 = vpop.f32.mrb[0].mxu0
      %v1472 = vpop.f32.mrb[0].mxu0
      %v1473 = vadd.f32 0.0, %v1472
      %v1474 = vpop.f32.mrb[0].mxu0
      %1475 = vmatprep.mubr.bf16.mxu0 0
      %1476 = vmatmul.mubr.bf16.gmra.mrb[0].mxu0 %v700
      %v1477 = vpop.f32.mrb[0].mxu0
      %v1478 = vadd.f32 0.0, %v1477
      %v1479 = vpop.f32.mrb[0].mxu0
      %v1480 = vpop.f32.mrb[0].mxu0
      %v1481 = vadd.f32 0.0, %v1480
      %v1482 = vpop.f32.mrb[0].mxu0
      %1483 = vmatprep.mubr.bf16.mxu0 0
      %1484 = vmatmul.mubr.bf16.gmra.mrb[0].mxu0 %v701
      %v1485 = vpop.f32.mrb[0].mxu0
      %v1486 = vadd.f32 0.0, %v1485
      %v1487 = vpop.f32.mrb[0].mxu0
      %v1488 = vpop.f32.mrb[0].mxu0
      %v1489 = vadd.f32 0.0, %v1488
      %v1490 = vpop.f32.mrb[0].mxu0
      %1491 = vmatprep.mubr.bf16.mxu0 0
      %1492 = vmatmul.mubr.bf16.gmra.mrb[0].mxu0 %v702
      %v1493 = vpop.f32.mrb[0].mxu0
      %v1494 = vadd.f32 0.0, %v1493
      %v1495 = vpop.f32.mrb[0].mxu0
      %v1496 = vpop.f32.mrb[0].mxu0
      %v1497 = vadd.f32 0.0, %v1496
      %v1498 = vpop.f32.mrb[0].mxu0
      %1499 = vmatprep.mubr.bf16.mxu0 0
      %1500 = vmatmul.mubr.bf16.gmra.mrb[0].mxu0 %v703
      %v1501 = vpop.f32.mrb[0].mxu0
      %v1502 = vadd.f32 0.0, %v1501
      %v1503 = vpop.f32.mrb[0].mxu0
      %v1504 = vpop.f32.mrb[0].mxu0
      %v1505 = vadd.f32 0.0, %v1504
      %v1506 = vpop.f32.mrb[0].mxu0
      %1507 = vmatprep.mubr.bf16.mxu0 0
      %1508 = vmatmul.mubr.bf16.gmra.mrb[0].mxu0 %v704
      %v1509 = vpop.f32.mrb[0].mxu0
      %v1510 = vadd.f32 0.0, %v1509
      %v1511 = vpop.f32.mrb[0].mxu0
      %v1512 = vpop.f32.mrb[0].mxu0
      %v1513 = vadd.f32 0.0, %v1512
      %v1514 = vpop.f32.mrb[0].mxu0
      %1515 = vmatprep.mubr.bf16.mxu0 0
      %1516 = vmatmul.mubr.bf16.gmra.mrb[0].mxu0 %v705
      %v1517 = vpop.f32.mrb[0].mxu0
      %v1518 = vadd.f32 0.0, %v1517
      %v1519 = vpop.f32.mrb[0].mxu0
      %v1520 = vpop.f32.mrb[0].mxu0
      %v1521 = vadd.f32 0.0, %v1520
      %v1522 = vpop.f32.mrb[0].mxu0
      %1523 = vmatprep.mubr.bf16.mxu0 0
      %1524 = vmatmul.mubr.bf16.gmra.mrb[0].mxu0 %v706
      %v1525 = vpop.f32.mrb[0].mxu0
      %v1526 = vadd.f32 0.0, %v1525
      %v1527 = vpop.f32.mrb[0].mxu0
      %v1528 = vpop.f32.mrb[0].mxu0
      %v1529 = vadd.f32 0.0, %v1528
      %v1530 = vpop.f32.mrb[0].mxu0
      %1531 = vmatprep.mubr.bf16.mxu0 0
      %1532 = vmatmul.mubr.bf16.gmra.mrb[0].mxu0 %v707
      %v1533 = vpop.f32.mrb[0].mxu0
      %v1534 = vadd.f32 0.0, %v1533
      %v1535 = vpop.f32.mrb[0].mxu0
      %v1536 = vpop.f32.mrb[0].mxu0
      %v1537 = vadd.f32 0.0, %v1536
      %v1538 = vpop.f32.mrb[0].mxu0
      %1539 = vmatprep.mubr.bf16.mxu0 0
      %1540 = vmatmul.mubr.bf16.gmra.mrb[0].mxu0 %v708
      %v1541 = vpop.f32.mrb[0].mxu0
      %v1542 = vadd.f32 0.0, %v1541
      %v1543 = vpop.f32.mrb[0].mxu0
      %v1544 = vpop.f32.mrb[0].mxu0
      %v1545 = vadd.f32 0.0, %v1544
      %v1546 = vpop.f32.mrb[0].mxu0
      %1547 = vmatprep.mubr.bf16.mxu0 0
      %1548 = vmatmul.mubr.bf16.gmra.mrb[0].mxu0 %v709
      %v1549 = vpop.f32.mrb[0].mxu0
      %v1550 = vadd.f32 0.0, %v1549
      %v1551 = vpop.f32.mrb[0].mxu0
      %v1552 = vpop.f32.mrb[0].mxu0
      %v1553 = vadd.f32 0.0, %v1552
      %v1554 = vpop.f32.mrb[0].mxu0
      %1555 = vmatprep.mubr.bf16.mxu0 0
      %1556 = vmatmul.mubr.bf16.gmra.mrb[0].mxu0 %v710
      %v1557 = vpop.f32.mrb[0].mxu0
      %v1558 = vadd.f32 0.0, %v1557
      %v1559 = vpop.f32.mrb[0].mxu0
      %v1560 = vpop.f32.mrb[0].mxu0
      %v1561 = vadd.f32 0.0, %v1560
      %v1562 = vpop.f32.mrb[0].mxu0
      %1563 = vmatprep.mubr.bf16.mxu0 0
      %1564 = vmatmul.mubr.bf16.gmra.mrb[0].mxu0 %v711
      %v1565 = vpop.f32.mrb[0].mxu0
      %v1566 = vadd.f32 0.0, %v1565
      %v1567 = vpop.f32.mrb[0].mxu0
      %v1568 = vpop.f32.mrb[0].mxu0
      %v1569 = vadd.f32 0.0, %v1568
      %v1570 = vpop.f32.mrb[0].mxu0
      %1571 = vmatprep.mubr.bf16.mxu0 0
      %1572 = vmatmul.mubr.bf16.gmra.mrb[0].mxu0 %v712
      %v1573 = vpop.f32.mrb[0].mxu0
      %v1574 = vadd.f32 0.0, %v1573
      %v1575 = vpop.f32.mrb[0].mxu0
      %v1576 = vpop.f32.mrb[0].mxu0
      %v1577 = vadd.f32 0.0, %v1576
      %v1578 = vpop.f32.mrb[0].mxu0
      %1579 = vdwg.mxu0
      %v1580 = vadd.f32 %v1323, %v1454
      %v1581 = vadd.f32 %v1324, %v1457
      %v1582 = vadd.f32 %v1325, %v1462
      %v1583 = vadd.f32 %v1326, %v1465
      %v1584 = vadd.f32 %v1327, %v1470
      %v1585 = vadd.f32 %v1328, %v1473
      %v1586 = vadd.f32 %v1329, %v1478
      %v1587 = vadd.f32 %v1330, %v1481
      %v1588 = vadd.f32 %v1331, %v1486
      %v1589 = vadd.f32 %v1332, %v1489
      %v1590 = vadd.f32 %v1333, %v1494
      %v1591 = vadd.f32 %v1334, %v1497
      %v1592 = vadd.f32 %v1335, %v1502
      %v1593 = vadd.f32 %v1336, %v1505
      %v1594 = vadd.f32 %v1337, %v1510
      %v1595 = vadd.f32 %v1338, %v1513
      %v1596 = vadd.f32 %v1339, %v1518
      %v1597 = vadd.f32 %v1340, %v1521
      %v1598 = vadd.f32 %v1341, %v1526
      %v1599 = vadd.f32 %v1342, %v1529
      %v1600 = vadd.f32 %v1343, %v1534
      %v1601 = vadd.f32 %v1344, %v1537
      %v1602 = vadd.f32 %v1345, %v1542
      %v1603 = vadd.f32 %v1346, %v1545
      %v1604 = vadd.f32 %v1347, %v1550
      %v1605 = vadd.f32 %v1348, %v1553
      %v1606 = vadd.f32 %v1349, %v1558
      %v1607 = vadd.f32 %v1350, %v1561
      %v1608 = vadd.f32 %v1351, %v1566
      %v1609 = vadd.f32 %v1352, %v1569
      %v1610 = vadd.f32 %v1353, %v1574
      %v1611 = vadd.f32 %v1354, %v1577
      %1612 = vst [vmem:[#allocation4] sm:$0xff] %v1580
      %1613 = vst [vmem:[#allocation4 + $0x8] sm:$0xff] %v1581
      %1614 = vst [vmem:[#allocation4 + $0x10] sm:$0xff] %v1582
      %1615 = vst [vmem:[#allocation4 + $0x18] sm:$0xff] %v1583
      %1616 = vst [vmem:[#allocation4 + $0x20] sm:$0xff] %v1584
      %1617 = vst [vmem:[#allocation4 + $0x28] sm:$0xff] %v1585
      %1618 = vst [vmem:[#allocation4 + $0x30] sm:$0xff] %v1586
      %1619 = vst [vmem:[#allocation4 + $0x38] sm:$0xff] %v1587
      %1620 = vst [vmem:[#allocation4 + $0x40] sm:$0xff] %v1588
      %1621 = vst [vmem:[#allocation4 + $0x48] sm:$0xff] %v1589
      %1622 = vst [vmem:[#allocation4 + $0x50] sm:$0xff] %v1590
      %1623 = vst [vmem:[#allocation4 + $0x58] sm:$0xff] %v1591
      %1624 = vst [vmem:[#allocation4 + $0x60] sm:$0xff] %v1592
      %1625 = vst [vmem:[#allocation4 + $0x68] sm:$0xff] %v1593
      %1626 = vst [vmem:[#allocation4 + $0x70] sm:$0xff] %v1594
      %1627 = vst [vmem:[#allocation4 + $0x78] sm:$0xff] %v1595
      %1628 = vst [vmem:[#allocation4 + $0x80] sm:$0xff] %v1596
      %1629 = vst [vmem:[#allocation4 + $0x88] sm:$0xff] %v1597
      %1630 = vst [vmem:[#allocation4 + $0x90] sm:$0xff] %v1598
      %1631 = vst [vmem:[#allocation4 + $0x98] sm:$0xff] %v1599
      %1632 = vst [vmem:[#allocation4 + $0xa0] sm:$0xff] %v1600
      %1633 = vst [vmem:[#allocation4 + $0xa8] sm:$0xff] %v1601
      %1634 = vst [vmem:[#allocation4 + $0xb0] sm:$0xff] %v1602
      %1635 = vst [vmem:[#allocation4 + $0xb8] sm:$0xff] %v1603
      %1636 = vst [vmem:[#allocation4 + $0xc0] sm:$0xff] %v1604
      %1637 = vst [vmem:[#allocation4 + $0xc8] sm:$0xff] %v1605
      %1638 = vst [vmem:[#allocation4 + $0xd0] sm:$0xff] %v1606
      %1639 = vst [vmem:[#allocation4 + $0xd8] sm:$0xff] %v1607
      %1640 = vst [vmem:[#allocation4 + $0xe0] sm:$0xff] %v1608
      %1641 = vst [vmem:[#allocation4 + $0xe8] sm:$0xff] %v1609
      %1642 = vst [vmem:[#allocation4 + $0xf0] sm:$0xff] %v1610
      %1643 = vst [vmem:[#allocation4 + $0xf8] sm:$0xff] %v1611
      // Predicated region
      $region53: #{causal_self_attention.3} parent=47 // pred_check
        %p1644 = pneg %p453
      $region54: #{causal_self_attention.3} parent=47 // pred_check_branch
        %1646 = sbr.rel (%p1644) target = $region56
      $region55: #{causal_self_attention.3} parent=47 // pred_region
        %v1647 = vld [vmem:[#allocation2] sm:$0xff]
        %v1648 = vld [vmem:[#allocation2 + $0x8] sm:$0xff]
        %v1649 = vld [vmem:[#allocation2 + $0x10] sm:$0xff]
        %v1650 = vld [vmem:[#allocation2 + $0x18] sm:$0xff]
        %v1651 = vld [vmem:[#allocation2 + $0x20] sm:$0xff]
        %v1652 = vld [vmem:[#allocation2 + $0x28] sm:$0xff]
        %v1653 = vld [vmem:[#allocation2 + $0x30] sm:$0xff]
        %v1654 = vld [vmem:[#allocation2 + $0x38] sm:$0xff]
        %v1655 = vld [vmem:[#allocation2 + $0x40] sm:$0xff]
        %v1656 = vld [vmem:[#allocation2 + $0x48] sm:$0xff]
        %v1657 = vld [vmem:[#allocation2 + $0x50] sm:$0xff]
        %v1658 = vld [vmem:[#allocation2 + $0x58] sm:$0xff]
        %v1659 = vld [vmem:[#allocation2 + $0x60] sm:$0xff]
        %v1660 = vld [vmem:[#allocation2 + $0x68] sm:$0xff]
        %v1661 = vld [vmem:[#allocation2 + $0x70] sm:$0xff]
        %v1662 = vld [vmem:[#allocation2 + $0x78] sm:$0xff]
        %v1663 = vld [vmem:[#allocation2 + $0x80] sm:$0xff]
        %v1664 = vld [vmem:[#allocation2 + $0x88] sm:$0xff]
        %v1665 = vld [vmem:[#allocation2 + $0x90] sm:$0xff]
        %v1666 = vld [vmem:[#allocation2 + $0x98] sm:$0xff]
        %v1667 = vld [vmem:[#allocation2 + $0xa0] sm:$0xff]
        %v1668 = vld [vmem:[#allocation2 + $0xa8] sm:$0xff]
        %v1669 = vld [vmem:[#allocation2 + $0xb0] sm:$0xff]
        %v1670 = vld [vmem:[#allocation2 + $0xb8] sm:$0xff]
        %v1671 = vld [vmem:[#allocation2 + $0xc0] sm:$0xff]
        %v1672 = vld [vmem:[#allocation2 + $0xc8] sm:$0xff]
        %v1673 = vld [vmem:[#allocation2 + $0xd0] sm:$0xff]
        %v1674 = vld [vmem:[#allocation2 + $0xd8] sm:$0xff]
        %v1675 = vld [vmem:[#allocation2 + $0xe0] sm:$0xff]
        %v1676 = vld [vmem:[#allocation2 + $0xe8] sm:$0xff]
        %v1677 = vld [vmem:[#allocation2 + $0xf0] sm:$0xff]
        %v1678 = vld [vmem:[#allocation2 + $0xf8] sm:$0xff]
        %v1679 = vld [vmem:[%s4] sm:$0x1]
        %v1681 = vlaneseq
        %v1682 = vshrl.u32 %v1681, 7
        %v1683 = vsub.s32 0, %v1682
        %v1684 = vrot.slane %v1679, %v1683
        %v1686 = vadd.f32 %v1647, %v1684
        %v1687 = vadd.f32 %v1648, %v1684
        %v1688 = vadd.f32 %v1649, %v1684
        %v1689 = vadd.f32 %v1650, %v1684
        %v1690 = vadd.f32 %v1651, %v1684
        %v1691 = vadd.f32 %v1652, %v1684
        %v1692 = vadd.f32 %v1653, %v1684
        %v1693 = vadd.f32 %v1654, %v1684
        %v1694 = vadd.f32 %v1655, %v1684
        %v1695 = vadd.f32 %v1656, %v1684
        %v1696 = vadd.f32 %v1657, %v1684
        %v1697 = vadd.f32 %v1658, %v1684
        %v1698 = vadd.f32 %v1659, %v1684
        %v1699 = vadd.f32 %v1660, %v1684
        %v1700 = vadd.f32 %v1661, %v1684
        %v1701 = vadd.f32 %v1662, %v1684
        %v1702 = vadd.f32 %v1663, %v1684
        %v1703 = vadd.f32 %v1664, %v1684
        %v1704 = vadd.f32 %v1665, %v1684
        %v1705 = vadd.f32 %v1666, %v1684
        %v1706 = vadd.f32 %v1667, %v1684
        %v1707 = vadd.f32 %v1668, %v1684
        %v1708 = vadd.f32 %v1669, %v1684
        %v1709 = vadd.f32 %v1670, %v1684
        %v1710 = vadd.f32 %v1671, %v1684
        %v1711 = vadd.f32 %v1672, %v1684
        %v1712 = vadd.f32 %v1673, %v1684
        %v1713 = vadd.f32 %v1674, %v1684
        %v1714 = vadd.f32 %v1675, %v1684
        %v1715 = vadd.f32 %v1676, %v1684
        %v1716 = vadd.f32 %v1677, %v1684
        %v1717 = vadd.f32 %v1678, %v1684
        %v1718 = vpack.c.bf16 %v1687, %v1686
        %v1719 = vpack.c.bf16 %v1689, %v1688
        %v1720 = vpack.c.bf16 %v1691, %v1690
        %v1721 = vpack.c.bf16 %v1693, %v1692
        %v1722 = vpack.c.bf16 %v1695, %v1694
        %v1723 = vpack.c.bf16 %v1697, %v1696
        %v1724 = vpack.c.bf16 %v1699, %v1698
        %v1725 = vpack.c.bf16 %v1701, %v1700
        %v1726 = vpack.c.bf16 %v1703, %v1702
        %v1727 = vpack.c.bf16 %v1705, %v1704
        %v1728 = vpack.c.bf16 %v1707, %v1706
        %v1729 = vpack.c.bf16 %v1709, %v1708
        %v1730 = vpack.c.bf16 %v1711, %v1710
        %v1731 = vpack.c.bf16 %v1713, %v1712
        %v1732 = vpack.c.bf16 %v1715, %v1714
        %v1733 = vpack.c.bf16 %v1717, %v1716
        %v1750 = vunpack.c.l.b16 %v1718
        %v1751 = vunpack.c.h.b16 %v1718
        %v1752 = vunpack.c.l.b16 %v1719
        %v1753 = vunpack.c.h.b16 %v1719
        %v1754 = vunpack.c.l.b16 %v1720
        %v1755 = vunpack.c.h.b16 %v1720
        %v1756 = vunpack.c.l.b16 %v1721
        %v1757 = vunpack.c.h.b16 %v1721
        %v1758 = vunpack.c.l.b16 %v1722
        %v1759 = vunpack.c.h.b16 %v1722
        %v1760 = vunpack.c.l.b16 %v1723
        %v1761 = vunpack.c.h.b16 %v1723
        %v1762 = vunpack.c.l.b16 %v1724
        %v1763 = vunpack.c.h.b16 %v1724
        %v1764 = vunpack.c.l.b16 %v1725
        %v1765 = vunpack.c.h.b16 %v1725
        %v1766 = vunpack.c.l.b16 %v1726
        %v1767 = vunpack.c.h.b16 %v1726
        %v1768 = vunpack.c.l.b16 %v1727
        %v1769 = vunpack.c.h.b16 %v1727
        %v1770 = vunpack.c.l.b16 %v1728
        %v1771 = vunpack.c.h.b16 %v1728
        %v1772 = vunpack.c.l.b16 %v1729
        %v1773 = vunpack.c.h.b16 %v1729
        %v1774 = vunpack.c.l.b16 %v1730
        %v1775 = vunpack.c.h.b16 %v1730
        %v1776 = vunpack.c.l.b16 %v1731
        %v1777 = vunpack.c.h.b16 %v1731
        %v1778 = vunpack.c.l.b16 %v1732
        %v1779 = vunpack.c.h.b16 %v1732
        %v1780 = vunpack.c.l.b16 %v1733
        %v1781 = vunpack.c.h.b16 %v1733
        %v1782 = vpack.c.b16 %v1750, %v1750
        %v1783 = vpack.c.b16 %v1751, %v1751
        %v1784 = vpack.c.b16 %v1752, %v1752
        %v1785 = vpack.c.b16 %v1753, %v1753
        %v1786 = vpack.c.b16 %v1754, %v1754
        %v1787 = vpack.c.b16 %v1755, %v1755
        %v1788 = vpack.c.b16 %v1756, %v1756
        %v1789 = vpack.c.b16 %v1757, %v1757
        %v1790 = vpack.c.b16 %v1758, %v1758
        %v1791 = vpack.c.b16 %v1759, %v1759
        %v1792 = vpack.c.b16 %v1760, %v1760
        %v1793 = vpack.c.b16 %v1761, %v1761
        %v1794 = vpack.c.b16 %v1762, %v1762
        %v1795 = vpack.c.b16 %v1763, %v1763
        %v1796 = vpack.c.b16 %v1764, %v1764
        %v1797 = vpack.c.b16 %v1765, %v1765
        %v1798 = vpack.c.b16 %v1766, %v1766
        %v1799 = vpack.c.b16 %v1767, %v1767
        %v1800 = vpack.c.b16 %v1768, %v1768
        %v1801 = vpack.c.b16 %v1769, %v1769
        %v1802 = vpack.c.b16 %v1770, %v1770
        %v1803 = vpack.c.b16 %v1771, %v1771
        %v1804 = vpack.c.b16 %v1772, %v1772
        %v1805 = vpack.c.b16 %v1773, %v1773
        %v1806 = vpack.c.b16 %v1774, %v1774
        %v1807 = vpack.c.b16 %v1775, %v1775
        %v1808 = vpack.c.b16 %v1776, %v1776
        %v1809 = vpack.c.b16 %v1777, %v1777
        %v1810 = vpack.c.b16 %v1778, %v1778
        %v1811 = vpack.c.b16 %v1779, %v1779
        %v1812 = vpack.c.b16 %v1780, %v1780
        %v1813 = vpack.c.b16 %v1781, %v1781
        %1846 = vst [vmem:[%s438] sm:$0xf] %v1782
        %1847 = vst [vmem:[%s438 + $0x4] sm:$0xf] %v1783
        %1848 = vst [vmem:[%s438 + $0x8] sm:$0xf] %v1784
        %1849 = vst [vmem:[%s438 + $0xc] sm:$0xf] %v1785
        %1850 = vst [vmem:[%s438 + $0x10] sm:$0xf] %v1786
        %1851 = vst [vmem:[%s438 + $0x14] sm:$0xf] %v1787
        %1852 = vst [vmem:[%s438 + $0x18] sm:$0xf] %v1788
        %1853 = vst [vmem:[%s438 + $0x1c] sm:$0xf] %v1789
        %1854 = vst [vmem:[%s438 + $0x20] sm:$0xf] %v1790
        %1855 = vst [vmem:[%s438 + $0x24] sm:$0xf] %v1791
        %1856 = vst [vmem:[%s438 + $0x28] sm:$0xf] %v1792
        %1857 = vst [vmem:[%s438 + $0x2c] sm:$0xf] %v1793
        %1858 = vst [vmem:[%s438 + $0x30] sm:$0xf] %v1794
        %1859 = vst [vmem:[%s438 + $0x34] sm:$0xf] %v1795
        %1860 = vst [vmem:[%s438 + $0x38] sm:$0xf] %v1796
        %1861 = vst [vmem:[%s438 + $0x3c] sm:$0xf] %v1797
        %1862 = vst [vmem:[%s438 + $0x40] sm:$0xf] %v1798
        %1863 = vst [vmem:[%s438 + $0x44] sm:$0xf] %v1799
        %1864 = vst [vmem:[%s438 + $0x48] sm:$0xf] %v1800
        %1865 = vst [vmem:[%s438 + $0x4c] sm:$0xf] %v1801
        %1866 = vst [vmem:[%s438 + $0x50] sm:$0xf] %v1802
        %1867 = vst [vmem:[%s438 + $0x54] sm:$0xf] %v1803
        %1868 = vst [vmem:[%s438 + $0x58] sm:$0xf] %v1804
        %1869 = vst [vmem:[%s438 + $0x5c] sm:$0xf] %v1805
        %1870 = vst [vmem:[%s438 + $0x60] sm:$0xf] %v1806
        %1871 = vst [vmem:[%s438 + $0x64] sm:$0xf] %v1807
        %1872 = vst [vmem:[%s438 + $0x68] sm:$0xf] %v1808
        %1873 = vst [vmem:[%s438 + $0x6c] sm:$0xf] %v1809
        %1874 = vst [vmem:[%s438 + $0x70] sm:$0xf] %v1810
        %1875 = vst [vmem:[%s438 + $0x74] sm:$0xf] %v1811
        %1876 = vst [vmem:[%s438 + $0x78] sm:$0xf] %v1812
        %1877 = vst [vmem:[%s438 + $0x7c] sm:$0xf] %v1813
        %v1878 = vld [vmem:[#allocation3] sm:$0xff]
        %v1879 = vld [vmem:[#allocation3 + $0x8] sm:$0xff]
        %v1880 = vld [vmem:[#allocation3 + $0x10] sm:$0xff]
        %v1881 = vld [vmem:[#allocation3 + $0x18] sm:$0xff]
        %v1882 = vld [vmem:[#allocation3 + $0x20] sm:$0xff]
        %v1883 = vld [vmem:[#allocation3 + $0x28] sm:$0xff]
        %v1884 = vld [vmem:[#allocation3 + $0x30] sm:$0xff]
        %v1885 = vld [vmem:[#allocation3 + $0x38] sm:$0xff]
        %v1886 = vld [vmem:[#allocation3 + $0x40] sm:$0xff]
        %v1887 = vld [vmem:[#allocation3 + $0x48] sm:$0xff]
        %v1888 = vld [vmem:[#allocation3 + $0x50] sm:$0xff]
        %v1889 = vld [vmem:[#allocation3 + $0x58] sm:$0xff]
        %v1890 = vld [vmem:[#allocation3 + $0x60] sm:$0xff]
        %v1891 = vld [vmem:[#allocation3 + $0x68] sm:$0xff]
        %v1892 = vld [vmem:[#allocation3 + $0x70] sm:$0xff]
        %v1893 = vld [vmem:[#allocation3 + $0x78] sm:$0xff]
        %v1894 = vld [vmem:[#allocation3 + $0x80] sm:$0xff]
        %v1895 = vld [vmem:[#allocation3 + $0x88] sm:$0xff]
        %v1896 = vld [vmem:[#allocation3 + $0x90] sm:$0xff]
        %v1897 = vld [vmem:[#allocation3 + $0x98] sm:$0xff]
        %v1898 = vld [vmem:[#allocation3 + $0xa0] sm:$0xff]
        %v1899 = vld [vmem:[#allocation3 + $0xa8] sm:$0xff]
        %v1900 = vld [vmem:[#allocation3 + $0xb0] sm:$0xff]
        %v1901 = vld [vmem:[#allocation3 + $0xb8] sm:$0xff]
        %v1902 = vld [vmem:[#allocation3 + $0xc0] sm:$0xff]
        %v1903 = vld [vmem:[#allocation3 + $0xc8] sm:$0xff]
        %v1904 = vld [vmem:[#allocation3 + $0xd0] sm:$0xff]
        %v1905 = vld [vmem:[#allocation3 + $0xd8] sm:$0xff]
        %v1906 = vld [vmem:[#allocation3 + $0xe0] sm:$0xff]
        %v1907 = vld [vmem:[#allocation3 + $0xe8] sm:$0xff]
        %v1908 = vld [vmem:[#allocation3 + $0xf0] sm:$0xff]
        %v1909 = vld [vmem:[#allocation3 + $0xf8] sm:$0xff]
        %v1910 = vld [vmem:[%s5] sm:$0x1]
        %v1912 = vlaneseq
        %v1913 = vshrl.u32 %v1912, 7
        %v1914 = vsub.s32 0, %v1913
        %v1915 = vrot.slane %v1910, %v1914
        %v1917 = vadd.f32 %v1878, %v1915
        %v1918 = vadd.f32 %v1879, %v1915
        %v1919 = vadd.f32 %v1880, %v1915
        %v1920 = vadd.f32 %v1881, %v1915
        %v1921 = vadd.f32 %v1882, %v1915
        %v1922 = vadd.f32 %v1883, %v1915
        %v1923 = vadd.f32 %v1884, %v1915
        %v1924 = vadd.f32 %v1885, %v1915
        %v1925 = vadd.f32 %v1886, %v1915
        %v1926 = vadd.f32 %v1887, %v1915
        %v1927 = vadd.f32 %v1888, %v1915
        %v1928 = vadd.f32 %v1889, %v1915
        %v1929 = vadd.f32 %v1890, %v1915
        %v1930 = vadd.f32 %v1891, %v1915
        %v1931 = vadd.f32 %v1892, %v1915
        %v1932 = vadd.f32 %v1893, %v1915
        %v1933 = vadd.f32 %v1894, %v1915
        %v1934 = vadd.f32 %v1895, %v1915
        %v1935 = vadd.f32 %v1896, %v1915
        %v1936 = vadd.f32 %v1897, %v1915
        %v1937 = vadd.f32 %v1898, %v1915
        %v1938 = vadd.f32 %v1899, %v1915
        %v1939 = vadd.f32 %v1900, %v1915
        %v1940 = vadd.f32 %v1901, %v1915
        %v1941 = vadd.f32 %v1902, %v1915
        %v1942 = vadd.f32 %v1903, %v1915
        %v1943 = vadd.f32 %v1904, %v1915
        %v1944 = vadd.f32 %v1905, %v1915
        %v1945 = vadd.f32 %v1906, %v1915
        %v1946 = vadd.f32 %v1907, %v1915
        %v1947 = vadd.f32 %v1908, %v1915
        %v1948 = vadd.f32 %v1909, %v1915
        %v1949 = vpack.c.bf16 %v1918, %v1917
        %v1950 = vpack.c.bf16 %v1920, %v1919
        %v1951 = vpack.c.bf16 %v1922, %v1921
        %v1952 = vpack.c.bf16 %v1924, %v1923
        %v1953 = vpack.c.bf16 %v1926, %v1925
        %v1954 = vpack.c.bf16 %v1928, %v1927
        %v1955 = vpack.c.bf16 %v1930, %v1929
        %v1956 = vpack.c.bf16 %v1932, %v1931
        %v1957 = vpack.c.bf16 %v1934, %v1933
        %v1958 = vpack.c.bf16 %v1936, %v1935
        %v1959 = vpack.c.bf16 %v1938, %v1937
        %v1960 = vpack.c.bf16 %v1940, %v1939
        %v1961 = vpack.c.bf16 %v1942, %v1941
        %v1962 = vpack.c.bf16 %v1944, %v1943
        %v1963 = vpack.c.bf16 %v1946, %v1945
        %v1964 = vpack.c.bf16 %v1948, %v1947
        %v1981 = vunpack.c.l.b16 %v1949
        %v1982 = vunpack.c.h.b16 %v1949
        %v1983 = vunpack.c.l.b16 %v1950
        %v1984 = vunpack.c.h.b16 %v1950
        %v1985 = vunpack.c.l.b16 %v1951
        %v1986 = vunpack.c.h.b16 %v1951
        %v1987 = vunpack.c.l.b16 %v1952
        %v1988 = vunpack.c.h.b16 %v1952
        %v1989 = vunpack.c.l.b16 %v1953
        %v1990 = vunpack.c.h.b16 %v1953
        %v1991 = vunpack.c.l.b16 %v1954
        %v1992 = vunpack.c.h.b16 %v1954
        %v1993 = vunpack.c.l.b16 %v1955
        %v1994 = vunpack.c.h.b16 %v1955
        %v1995 = vunpack.c.l.b16 %v1956
        %v1996 = vunpack.c.h.b16 %v1956
        %v1997 = vunpack.c.l.b16 %v1957
        %v1998 = vunpack.c.h.b16 %v1957
        %v1999 = vunpack.c.l.b16 %v1958
        %v2000 = vunpack.c.h.b16 %v1958
        %v2001 = vunpack.c.l.b16 %v1959
        %v2002 = vunpack.c.h.b16 %v1959
        %v2003 = vunpack.c.l.b16 %v1960
        %v2004 = vunpack.c.h.b16 %v1960
        %v2005 = vunpack.c.l.b16 %v1961
        %v2006 = vunpack.c.h.b16 %v1961
        %v2007 = vunpack.c.l.b16 %v1962
        %v2008 = vunpack.c.h.b16 %v1962
        %v2009 = vunpack.c.l.b16 %v1963
        %v2010 = vunpack.c.h.b16 %v1963
        %v2011 = vunpack.c.l.b16 %v1964
        %v2012 = vunpack.c.h.b16 %v1964
        %v2013 = vpack.c.b16 %v1981, %v1981
        %v2014 = vpack.c.b16 %v1982, %v1982
        %v2015 = vpack.c.b16 %v1983, %v1983
        %v2016 = vpack.c.b16 %v1984, %v1984
        %v2017 = vpack.c.b16 %v1985, %v1985
        %v2018 = vpack.c.b16 %v1986, %v1986
        %v2019 = vpack.c.b16 %v1987, %v1987
        %v2020 = vpack.c.b16 %v1988, %v1988
        %v2021 = vpack.c.b16 %v1989, %v1989
        %v2022 = vpack.c.b16 %v1990, %v1990
        %v2023 = vpack.c.b16 %v1991, %v1991
        %v2024 = vpack.c.b16 %v1992, %v1992
        %v2025 = vpack.c.b16 %v1993, %v1993
        %v2026 = vpack.c.b16 %v1994, %v1994
        %v2027 = vpack.c.b16 %v1995, %v1995
        %v2028 = vpack.c.b16 %v1996, %v1996
        %v2029 = vpack.c.b16 %v1997, %v1997
        %v2030 = vpack.c.b16 %v1998, %v1998
        %v2031 = vpack.c.b16 %v1999, %v1999
        %v2032 = vpack.c.b16 %v2000, %v2000
        %v2033 = vpack.c.b16 %v2001, %v2001
        %v2034 = vpack.c.b16 %v2002, %v2002
        %v2035 = vpack.c.b16 %v2003, %v2003
        %v2036 = vpack.c.b16 %v2004, %v2004
        %v2037 = vpack.c.b16 %v2005, %v2005
        %v2038 = vpack.c.b16 %v2006, %v2006
        %v2039 = vpack.c.b16 %v2007, %v2007
        %v2040 = vpack.c.b16 %v2008, %v2008
        %v2041 = vpack.c.b16 %v2009, %v2009
        %v2042 = vpack.c.b16 %v2010, %v2010
        %v2043 = vpack.c.b16 %v2011, %v2011
        %v2044 = vpack.c.b16 %v2012, %v2012
        %2077 = vst [vmem:[%s444] sm:$0xf] %v2013
        %2078 = vst [vmem:[%s444 + $0x4] sm:$0xf] %v2014
        %2079 = vst [vmem:[%s444 + $0x8] sm:$0xf] %v2015
        %2080 = vst [vmem:[%s444 + $0xc] sm:$0xf] %v2016
        %2081 = vst [vmem:[%s444 + $0x10] sm:$0xf] %v2017
        %2082 = vst [vmem:[%s444 + $0x14] sm:$0xf] %v2018
        %2083 = vst [vmem:[%s444 + $0x18] sm:$0xf] %v2019
        %2084 = vst [vmem:[%s444 + $0x1c] sm:$0xf] %v2020
        %2085 = vst [vmem:[%s444 + $0x20] sm:$0xf] %v2021
        %2086 = vst [vmem:[%s444 + $0x24] sm:$0xf] %v2022
        %2087 = vst [vmem:[%s444 + $0x28] sm:$0xf] %v2023
        %2088 = vst [vmem:[%s444 + $0x2c] sm:$0xf] %v2024
        %2089 = vst [vmem:[%s444 + $0x30] sm:$0xf] %v2025
        %2090 = vst [vmem:[%s444 + $0x34] sm:$0xf] %v2026
        %2091 = vst [vmem:[%s444 + $0x38] sm:$0xf] %v2027
        %2092 = vst [vmem:[%s444 + $0x3c] sm:$0xf] %v2028
        %2093 = vst [vmem:[%s444 + $0x40] sm:$0xf] %v2029
        %2094 = vst [vmem:[%s444 + $0x44] sm:$0xf] %v2030
        %2095 = vst [vmem:[%s444 + $0x48] sm:$0xf] %v2031
        %2096 = vst [vmem:[%s444 + $0x4c] sm:$0xf] %v2032
        %2097 = vst [vmem:[%s444 + $0x50] sm:$0xf] %v2033
        %2098 = vst [vmem:[%s444 + $0x54] sm:$0xf] %v2034
        %2099 = vst [vmem:[%s444 + $0x58] sm:$0xf] %v2035
        %2100 = vst [vmem:[%s444 + $0x5c] sm:$0xf] %v2036
        %2101 = vst [vmem:[%s444 + $0x60] sm:$0xf] %v2037
        %2102 = vst [vmem:[%s444 + $0x64] sm:$0xf] %v2038
        %2103 = vst [vmem:[%s444 + $0x68] sm:$0xf] %v2039
        %2104 = vst [vmem:[%s444 + $0x6c] sm:$0xf] %v2040
        %2105 = vst [vmem:[%s444 + $0x70] sm:$0xf] %v2041
        %2106 = vst [vmem:[%s444 + $0x74] sm:$0xf] %v2042
        %2107 = vst [vmem:[%s444 + $0x78] sm:$0xf] %v2043
        %2108 = vst [vmem:[%s444 + $0x7c] sm:$0xf] %v2044
        %v2109 = vld [vmem:[#allocation4] sm:$0xff]
        %v2110 = vld [vmem:[#allocation4 + $0x8] sm:$0xff]
        %v2111 = vld [vmem:[#allocation4 + $0x10] sm:$0xff]
        %v2112 = vld [vmem:[#allocation4 + $0x18] sm:$0xff]
        %v2113 = vld [vmem:[#allocation4 + $0x20] sm:$0xff]
        %v2114 = vld [vmem:[#allocation4 + $0x28] sm:$0xff]
        %v2115 = vld [vmem:[#allocation4 + $0x30] sm:$0xff]
        %v2116 = vld [vmem:[#allocation4 + $0x38] sm:$0xff]
        %v2117 = vld [vmem:[#allocation4 + $0x40] sm:$0xff]
        %v2118 = vld [vmem:[#allocation4 + $0x48] sm:$0xff]
        %v2119 = vld [vmem:[#allocation4 + $0x50] sm:$0xff]
        %v2120 = vld [vmem:[#allocation4 + $0x58] sm:$0xff]
        %v2121 = vld [vmem:[#allocation4 + $0x60] sm:$0xff]
        %v2122 = vld [vmem:[#allocation4 + $0x68] sm:$0xff]
        %v2123 = vld [vmem:[#allocation4 + $0x70] sm:$0xff]
        %v2124 = vld [vmem:[#allocation4 + $0x78] sm:$0xff]
        %v2125 = vld [vmem:[#allocation4 + $0x80] sm:$0xff]
        %v2126 = vld [vmem:[#allocation4 + $0x88] sm:$0xff]
        %v2127 = vld [vmem:[#allocation4 + $0x90] sm:$0xff]
        %v2128 = vld [vmem:[#allocation4 + $0x98] sm:$0xff]
        %v2129 = vld [vmem:[#allocation4 + $0xa0] sm:$0xff]
        %v2130 = vld [vmem:[#allocation4 + $0xa8] sm:$0xff]
        %v2131 = vld [vmem:[#allocation4 + $0xb0] sm:$0xff]
        %v2132 = vld [vmem:[#allocation4 + $0xb8] sm:$0xff]
        %v2133 = vld [vmem:[#allocation4 + $0xc0] sm:$0xff]
        %v2134 = vld [vmem:[#allocation4 + $0xc8] sm:$0xff]
        %v2135 = vld [vmem:[#allocation4 + $0xd0] sm:$0xff]
        %v2136 = vld [vmem:[#allocation4 + $0xd8] sm:$0xff]
        %v2137 = vld [vmem:[#allocation4 + $0xe0] sm:$0xff]
        %v2138 = vld [vmem:[#allocation4 + $0xe8] sm:$0xff]
        %v2139 = vld [vmem:[#allocation4 + $0xf0] sm:$0xff]
        %v2140 = vld [vmem:[#allocation4 + $0xf8] sm:$0xff]
        %v2141 = vld [vmem:[%s6] sm:$0x1]
        %v2143 = vlaneseq
        %v2144 = vshrl.u32 %v2143, 7
        %v2145 = vsub.s32 0, %v2144
        %v2146 = vrot.slane %v2141, %v2145
        %v2148 = vadd.f32 %v2109, %v2146
        %v2149 = vadd.f32 %v2110, %v2146
        %v2150 = vadd.f32 %v2111, %v2146
        %v2151 = vadd.f32 %v2112, %v2146
        %v2152 = vadd.f32 %v2113, %v2146
        %v2153 = vadd.f32 %v2114, %v2146
        %v2154 = vadd.f32 %v2115, %v2146
        %v2155 = vadd.f32 %v2116, %v2146
        %v2156 = vadd.f32 %v2117, %v2146
        %v2157 = vadd.f32 %v2118, %v2146
        %v2158 = vadd.f32 %v2119, %v2146
        %v2159 = vadd.f32 %v2120, %v2146
        %v2160 = vadd.f32 %v2121, %v2146
        %v2161 = vadd.f32 %v2122, %v2146
        %v2162 = vadd.f32 %v2123, %v2146
        %v2163 = vadd.f32 %v2124, %v2146
        %v2164 = vadd.f32 %v2125, %v2146
        %v2165 = vadd.f32 %v2126, %v2146
        %v2166 = vadd.f32 %v2127, %v2146
        %v2167 = vadd.f32 %v2128, %v2146
        %v2168 = vadd.f32 %v2129, %v2146
        %v2169 = vadd.f32 %v2130, %v2146
        %v2170 = vadd.f32 %v2131, %v2146
        %v2171 = vadd.f32 %v2132, %v2146
        %v2172 = vadd.f32 %v2133, %v2146
        %v2173 = vadd.f32 %v2134, %v2146
        %v2174 = vadd.f32 %v2135, %v2146
        %v2175 = vadd.f32 %v2136, %v2146
        %v2176 = vadd.f32 %v2137, %v2146
        %v2177 = vadd.f32 %v2138, %v2146
        %v2178 = vadd.f32 %v2139, %v2146
        %v2179 = vadd.f32 %v2140, %v2146
        %v2180 = vpack.c.bf16 %v2149, %v2148
        %v2181 = vpack.c.bf16 %v2151, %v2150
        %v2182 = vpack.c.bf16 %v2153, %v2152
        %v2183 = vpack.c.bf16 %v2155, %v2154
        %v2184 = vpack.c.bf16 %v2157, %v2156
        %v2185 = vpack.c.bf16 %v2159, %v2158
        %v2186 = vpack.c.bf16 %v2161, %v2160
        %v2187 = vpack.c.bf16 %v2163, %v2162
        %v2188 = vpack.c.bf16 %v2165, %v2164
        %v2189 = vpack.c.bf16 %v2167, %v2166
        %v2190 = vpack.c.bf16 %v2169, %v2168
        %v2191 = vpack.c.bf16 %v2171, %v2170
        %v2192 = vpack.c.bf16 %v2173, %v2172
        %v2193 = vpack.c.bf16 %v2175, %v2174
        %v2194 = vpack.c.bf16 %v2177, %v2176
        %v2195 = vpack.c.bf16 %v2179, %v2178
        %v2212 = vunpack.c.l.b16 %v2180
        %v2213 = vunpack.c.h.b16 %v2180
        %v2214 = vunpack.c.l.b16 %v2181
        %v2215 = vunpack.c.h.b16 %v2181
        %v2216 = vunpack.c.l.b16 %v2182
        %v2217 = vunpack.c.h.b16 %v2182
        %v2218 = vunpack.c.l.b16 %v2183
        %v2219 = vunpack.c.h.b16 %v2183
        %v2220 = vunpack.c.l.b16 %v2184
        %v2221 = vunpack.c.h.b16 %v2184
        %v2222 = vunpack.c.l.b16 %v2185
        %v2223 = vunpack.c.h.b16 %v2185
        %v2224 = vunpack.c.l.b16 %v2186
        %v2225 = vunpack.c.h.b16 %v2186
        %v2226 = vunpack.c.l.b16 %v2187
        %v2227 = vunpack.c.h.b16 %v2187
        %v2228 = vunpack.c.l.b16 %v2188
        %v2229 = vunpack.c.h.b16 %v2188
        %v2230 = vunpack.c.l.b16 %v2189
        %v2231 = vunpack.c.h.b16 %v2189
        %v2232 = vunpack.c.l.b16 %v2190
        %v2233 = vunpack.c.h.b16 %v2190
        %v2234 = vunpack.c.l.b16 %v2191
        %v2235 = vunpack.c.h.b16 %v2191
        %v2236 = vunpack.c.l.b16 %v2192
        %v2237 = vunpack.c.h.b16 %v2192
        %v2238 = vunpack.c.l.b16 %v2193
        %v2239 = vunpack.c.h.b16 %v2193
        %v2240 = vunpack.c.l.b16 %v2194
        %v2241 = vunpack.c.h.b16 %v2194
        %v2242 = vunpack.c.l.b16 %v2195
        %v2243 = vunpack.c.h.b16 %v2195
        %v2244 = vpack.c.b16 %v2212, %v2212
        %v2245 = vpack.c.b16 %v2213, %v2213
        %v2246 = vpack.c.b16 %v2214, %v2214
        %v2247 = vpack.c.b16 %v2215, %v2215
        %v2248 = vpack.c.b16 %v2216, %v2216
        %v2249 = vpack.c.b16 %v2217, %v2217
        %v2250 = vpack.c.b16 %v2218, %v2218
        %v2251 = vpack.c.b16 %v2219, %v2219
        %v2252 = vpack.c.b16 %v2220, %v2220
        %v2253 = vpack.c.b16 %v2221, %v2221
        %v2254 = vpack.c.b16 %v2222, %v2222
        %v2255 = vpack.c.b16 %v2223, %v2223
        %v2256 = vpack.c.b16 %v2224, %v2224
        %v2257 = vpack.c.b16 %v2225, %v2225
        %v2258 = vpack.c.b16 %v2226, %v2226
        %v2259 = vpack.c.b16 %v2227, %v2227
        %v2260 = vpack.c.b16 %v2228, %v2228
        %v2261 = vpack.c.b16 %v2229, %v2229
        %v2262 = vpack.c.b16 %v2230, %v2230
        %v2263 = vpack.c.b16 %v2231, %v2231
        %v2264 = vpack.c.b16 %v2232, %v2232
        %v2265 = vpack.c.b16 %v2233, %v2233
        %v2266 = vpack.c.b16 %v2234, %v2234
        %v2267 = vpack.c.b16 %v2235, %v2235
        %v2268 = vpack.c.b16 %v2236, %v2236
        %v2269 = vpack.c.b16 %v2237, %v2237
        %v2270 = vpack.c.b16 %v2238, %v2238
        %v2271 = vpack.c.b16 %v2239, %v2239
        %v2272 = vpack.c.b16 %v2240, %v2240
        %v2273 = vpack.c.b16 %v2241, %v2241
        %v2274 = vpack.c.b16 %v2242, %v2242
        %v2275 = vpack.c.b16 %v2243, %v2243
        %2308 = vst [vmem:[%s450] sm:$0xf] %v2244
        %2309 = vst [vmem:[%s450 + $0x4] sm:$0xf] %v2245
        %2310 = vst [vmem:[%s450 + $0x8] sm:$0xf] %v2246
        %2311 = vst [vmem:[%s450 + $0xc] sm:$0xf] %v2247
        %2312 = vst [vmem:[%s450 + $0x10] sm:$0xf] %v2248
        %2313 = vst [vmem:[%s450 + $0x14] sm:$0xf] %v2249
        %2314 = vst [vmem:[%s450 + $0x18] sm:$0xf] %v2250
        %2315 = vst [vmem:[%s450 + $0x1c] sm:$0xf] %v2251
        %2316 = vst [vmem:[%s450 + $0x20] sm:$0xf] %v2252
        %2317 = vst [vmem:[%s450 + $0x24] sm:$0xf] %v2253
        %2318 = vst [vmem:[%s450 + $0x28] sm:$0xf] %v2254
        %2319 = vst [vmem:[%s450 + $0x2c] sm:$0xf] %v2255
        %2320 = vst [vmem:[%s450 + $0x30] sm:$0xf] %v2256
        %2321 = vst [vmem:[%s450 + $0x34] sm:$0xf] %v2257
        %2322 = vst [vmem:[%s450 + $0x38] sm:$0xf] %v2258
        %2323 = vst [vmem:[%s450 + $0x3c] sm:$0xf] %v2259
        %2324 = vst [vmem:[%s450 + $0x40] sm:$0xf] %v2260
        %2325 = vst [vmem:[%s450 + $0x44] sm:$0xf] %v2261
        %2326 = vst [vmem:[%s450 + $0x48] sm:$0xf] %v2262
        %2327 = vst [vmem:[%s450 + $0x4c] sm:$0xf] %v2263
        %2328 = vst [vmem:[%s450 + $0x50] sm:$0xf] %v2264
        %2329 = vst [vmem:[%s450 + $0x54] sm:$0xf] %v2265
        %2330 = vst [vmem:[%s450 + $0x58] sm:$0xf] %v2266
        %2331 = vst [vmem:[%s450 + $0x5c] sm:$0xf] %v2267
        %2332 = vst [vmem:[%s450 + $0x60] sm:$0xf] %v2268
        %2333 = vst [vmem:[%s450 + $0x64] sm:$0xf] %v2269
        %2334 = vst [vmem:[%s450 + $0x68] sm:$0xf] %v2270
        %2335 = vst [vmem:[%s450 + $0x6c] sm:$0xf] %v2271
        %2336 = vst [vmem:[%s450 + $0x70] sm:$0xf] %v2272
        %2337 = vst [vmem:[%s450 + $0x74] sm:$0xf] %v2273
        %2338 = vst [vmem:[%s450 + $0x78] sm:$0xf] %v2274
        %2339 = vst [vmem:[%s450 + $0x7c] sm:$0xf] %v2275
      $region56: #{causal_self_attention.3} parent=47 // pred_fallthru
        _
      %s2340 = smul.u32 32, %s25
      %p2341 = scmp.lt.s32.totalorder %s2340, 127
      %s2342 = scalar_select %p2341, %s2340, 127
      %s2343 = smul.addr %s2342, 4
      %s2344 = scalar_lea.vmem %s7, %s2343
      %s2345 = smul.u32 32, %s25
      %p2346 = scmp.lt.s32.totalorder %s2345, 127
      %s2347 = scalar_select %p2346, %s2345, 127
      %s2348 = smul.addr %s2347, 4
      %s2349 = scalar_lea.vmem %s8, %s2348
      %s2350 = smul.u32 32, %s25
      %p2351 = scmp.lt.s32.totalorder %s2350, 127
      %s2352 = scalar_select %p2351, %s2350, 127
      %s2353 = smul.addr %s2352, 4
      %s2354 = scalar_lea.vmem %s9, %s2353
      // Predicated region
      $region57: #{causal_self_attention.3} parent=47 // pred_check
        %p2355 = pneg %p220
      $region58: #{causal_self_attention.3} parent=47 // pred_check_branch
        %2357 = sbr.rel (%p2355) target = $region60
      $region59: #{causal_self_attention.3} parent=47 // pred_region
        %s2358 = smul.u32 32, %s25
      $region60: #{causal_self_attention.3} parent=47 // pred_fallthru
        _
      // Predicated region
      $region61: #{causal_self_attention.3} parent=47 // pred_check
        %p2359 = pneg %p246
      $region62: #{causal_self_attention.3} parent=47 // pred_check_branch
        %2361 = sbr.rel (%p2359) target = $region64
      $region63: #{causal_self_attention.3} parent=47 // pred_region
        %s2362 = smul.u32 32, %s25
      $region64: #{causal_self_attention.3} parent=47 // pred_fallthru
        _
      // Predicated region
      $region65: #{causal_self_attention.3} parent=47 // pred_check
        %p2363 = pneg %p272
      $region66: #{causal_self_attention.3} parent=47 // pred_check_branch
        %2365 = sbr.rel (%p2363) target = $region68
      $region67: #{causal_self_attention.3} parent=47 // pred_region
        %s2366 = smul.u32 32, %s25
      $region68: #{causal_self_attention.3} parent=47 // pred_fallthru
        _
    $region48: #{causal_self_attention.3} parent=5 // pred_fallthru
      _
    %p2367 = scmp.le.s32.totalorder 2, %s16
    // Predicated region
    $region69: #{causal_self_attention.3} parent=5 // pred_check
      %p2368 = pneg %p2367
    $region70: #{causal_self_attention.3} parent=5 // pred_check_branch
      %2370 = sbr.rel (%p2368) target = $region72
    $region71: #{causal_self_attention.3} parent=5 // pred_region
      %s2371 = ssub.s32 %s16, 2
      // Predicated region
      $region73: #{causal_self_attention.3} parent=71 // pred_check
        %p2372 = pneg %p226
      $region74: #{causal_self_attention.3} parent=71 // pred_check_branch
        %2374 = sbr.rel (%p2372) target = $region76
      $region75: #{causal_self_attention.3} parent=71 // pred_region
        %s2375 = smul.u32 32, %s27
        %p2376 = scmp.lt.s32.totalorder %s2375, 127
        %s2377 = scalar_select %p2376, %s2375, 127
        %s2378 = smul.addr %s2377, 4
        %s2379 = scalar_lea.vmem %s7, %s2378
      $region76: #{causal_self_attention.3} parent=71 // pred_fallthru
        _
      // Predicated region
      $region77: #{causal_self_attention.3} parent=71 // pred_check
        %p2380 = pneg %p252
      $region78: #{causal_self_attention.3} parent=71 // pred_check_branch
        %2382 = sbr.rel (%p2380) target = $region80
      $region79: #{causal_self_attention.3} parent=71 // pred_region
        %s2383 = smul.u32 32, %s27
        %p2384 = scmp.lt.s32.totalorder %s2383, 127
        %s2385 = scalar_select %p2384, %s2383, 127
        %s2386 = smul.addr %s2385, 4
        %s2387 = scalar_lea.vmem %s8, %s2386
      $region80: #{causal_self_attention.3} parent=71 // pred_fallthru
        _
      // Predicated region
      $region81: #{causal_self_attention.3} parent=71 // pred_check
        %p2388 = pneg %p278
      $region82: #{causal_self_attention.3} parent=71 // pred_check_branch
        %2390 = sbr.rel (%p2388) target = $region84
      $region83: #{causal_self_attention.3} parent=71 // pred_region
        %s2391 = smul.u32 32, %s27
        %p2392 = scmp.lt.s32.totalorder %s2391, 127
        %s2393 = scalar_select %p2392, %s2391, 127
        %s2394 = smul.addr %s2393, 4
        %s2395 = scalar_lea.vmem %s9, %s2394
      $region84: #{causal_self_attention.3} parent=71 // pred_fallthru
        _
    $region72: #{causal_self_attention.3} parent=5 // pred_fallthru
      _
  $region6: #{causal_self_attention.3} parent=0 // loop_footer
    %s20 = sadd.s32 1, %s16
  $region7: #{causal_self_attention.3} parent=0 // loop_footer_branch
    %15 = sbr.rel target = $region3
  $region8: #{causal_self_attention.3} parent=0 // loop_exit
    _

// kernel: causal_self_attention.4
$region0: #{causal_self_attention.4}
  #allocation0 [shape = 'u32[]', space=smem, size = 0x4, offset = 0x4, fixed_abs, tag = 'smem constant byte address 0x4 - core index']
  #allocation1 [shape = 'u32[144,128]{1,0:T(1,128)}', space=vmem, size = 0x12000, scoped, tag = 'internal scratch']
  #allocation2 [shape = 'f32[256,1]{1,0:T(8,128)}', space=vmem, size = 0x20000, scoped, tag = 'scratch operand']
  #allocation3 [shape = 'f32[256,1]{1,0:T(8,128)}', space=vmem, size = 0x20000, scoped, tag = 'scratch operand']
  #allocation4 [shape = 'f32[256,128]{1,0:T(8,128)}', space=vmem, size = 0x20000, scoped, tag = 'scratch operand']
  %s0 = inlined_call_operand.vmem [shape: bf16[2,512,128], index: 0, kind: input, shape index: {}]
  %s1 = inlined_call_operand.vmem [shape: bf16[2,512,128], index: 1, kind: input, shape index: {}]
  %s2 = inlined_call_operand.vmem [shape: bf16[2,512,128], index: 2, kind: input, shape index: {}]
  %s3 = inlined_call_operand.vmem [shape: bf16[2,512,128], index: 3, kind: output, shape index: {}]
  %s4 = sld [smem:[#allocation0]]
  $region57: #{causal_self_attention.4} parent=0
    _
  %s6 = ssub.s32 1, %s4
  %s7 = scalar_select 0, %s6, %s4
  loop: start=0, step=1, limit=10
  $region2: #{causal_self_attention.4} parent=0 // loop_pre_header
    _
  $region3: #{causal_self_attention.4} parent=0 // loop_header
    %s9 = sphi 0, %s13
    %p10 = scmp.ge.s32.totalorder %s9, 10
    %s16 = sphi 0, %s35
    %s17 = sphi 0, %s31
    %s18 = sphi 0, %s27
    %s19 = sphi 0, %s16
    %s20 = sphi 0, %s17
    %s21 = sphi 0, %s18
    %s22 = sphi 0, %s19
    %s23 = sphi 0, %s20
    %s24 = sphi 0, %s21
    %s40 = sphi 0, %s42
    %s43 = sphi 0, %s40
    %s44 = sphi 0, %s43
    %s60 = sphi 0, %s44
    %s68 = sphi 0, %s70
    %s71 = sphi 0, %s68
    %s72 = sphi 0, %s71
    %s88 = sphi 0, %s72
    %s96 = sphi 0, %s98
    %s99 = sphi 0, %s96
    %s100 = sphi 0, %s99
    %s116 = sphi 0, %s100
    %s124 = sphi 0, %s126
    %s127 = sphi 0, %s124
    %s128 = sphi 0, %s127
    %s144 = sphi 0, %s128
  $region4: #{causal_self_attention.4} parent=0 // loop_header_branch
    %12 = sbr.rel (%p10) target = $region8
  $region5: #{causal_self_attention.4} parent=0 // loop_body
    %s14 = ssub.s32 %s9, 1
    %s15 = ssub.s32 %s9, 2
    %s25 = sadd.s32 1, %s18
    %p26 = scmp.ge.s32.totalorder %s25, 2
    %s27 = scalar_select %p26, 0, %s25
    %s28 = sadd.s32 1, %s17
    %s29 = scalar_select %p26, %s28, %s17
    %p30 = scmp.ge.s32.totalorder %s29, 2
    %s31 = scalar_select %p30, 0, %s29
    %s32 = sadd.s32 1, %s16
    %s33 = scalar_select %p30, %s32, %s16
    %p34 = scmp.ge.s32.totalorder %s33, 2
    %s35 = scalar_select %p34, 0, %s33
    %s36 = ssub.s32 %s16, %s35
    %s37 = ssub.s32 %s17, %s31
    %s38 = sor.u32 %s36, %s37
    %p39 = scmp.eq.s32.totalorder %s38, 0
    %s41 = sadd.s32 %s40, 1
    %s42 = scalar_select %p39, %s40, %s41
    %p45 = pneg %p39
    %p46 = scmp.eq.s32.totalorder %s9, 7
    %p47 = por %p45, %p46
    %p48 = scmp.ne.s32.totalorder %s40, %s43
    %p49 = scmp.eq.s32.totalorder %s9, 0
    %p50 = por %p48, %p49
    %p51 = scmp.ne.s32.totalorder %s40, %s43
    %p52 = scmp.eq.s32.totalorder %s14, 7
    %p53 = por %p51, %p52
    %p54 = scmp.ne.s32.totalorder %s43, %s44
    %p55 = scmp.eq.s32.totalorder %s14, 0
    %p56 = por %p54, %p55
    %p57 = scmp.ne.s32.totalorder %s43, %s44
    %p58 = scmp.eq.s32.totalorder %s15, 7
    %p59 = por %p57, %p58
    %p61 = scmp.ne.s32.totalorder %s44, %s60
    %p62 = scmp.eq.s32.totalorder %s15, 0
    %p63 = por %p61, %p62
    %s64 = ssub.s32 %s16, %s35
    %s65 = ssub.s32 %s18, %s27
    %s66 = sor.u32 %s64, %s65
    %p67 = scmp.eq.s32.totalorder %s66, 0
    %s69 = sadd.s32 %s68, 1
    %s70 = scalar_select %p67, %s68, %s69
    %p73 = pneg %p67
    %p74 = scmp.eq.s32.totalorder %s9, 7
    %p75 = por %p73, %p74
    %p76 = scmp.ne.s32.totalorder %s68, %s71
    %p77 = scmp.eq.s32.totalorder %s9, 0
    %p78 = por %p76, %p77
    %p79 = scmp.ne.s32.totalorder %s68, %s71
    %p80 = scmp.eq.s32.totalorder %s14, 7
    %p81 = por %p79, %p80
    %p82 = scmp.ne.s32.totalorder %s71, %s72
    %p83 = scmp.eq.s32.totalorder %s14, 0
    %p84 = por %p82, %p83
    %p85 = scmp.ne.s32.totalorder %s71, %s72
    %p86 = scmp.eq.s32.totalorder %s15, 7
    %p87 = por %p85, %p86
    %p89 = scmp.ne.s32.totalorder %s72, %s88
    %p90 = scmp.eq.s32.totalorder %s15, 0
    %p91 = por %p89, %p90
    %s92 = ssub.s32 %s16, %s35
    %s93 = ssub.s32 %s18, %s27
    %s94 = sor.u32 %s92, %s93
    %p95 = scmp.eq.s32.totalorder %s94, 0
    %s97 = sadd.s32 %s96, 1
    %s98 = scalar_select %p95, %s96, %s97
    %p101 = pneg %p95
    %p102 = scmp.eq.s32.totalorder %s9, 7
    %p103 = por %p101, %p102
    %p104 = scmp.ne.s32.totalorder %s96, %s99
    %p105 = scmp.eq.s32.totalorder %s9, 0
    %p106 = por %p104, %p105
    %p107 = scmp.ne.s32.totalorder %s96, %s99
    %p108 = scmp.eq.s32.totalorder %s14, 7
    %p109 = por %p107, %p108
    %p110 = scmp.ne.s32.totalorder %s99, %s100
    %p111 = scmp.eq.s32.totalorder %s14, 0
    %p112 = por %p110, %p111
    %p113 = scmp.ne.s32.totalorder %s99, %s100
    %p114 = scmp.eq.s32.totalorder %s15, 7
    %p115 = por %p113, %p114
    %p117 = scmp.ne.s32.totalorder %s100, %s116
    %p118 = scmp.eq.s32.totalorder %s15, 0
    %p119 = por %p117, %p118
    %s120 = ssub.s32 %s16, %s35
    %s121 = ssub.s32 %s17, %s31
    %s122 = sor.u32 %s120, %s121
    %p123 = scmp.eq.s32.totalorder %s122, 0
    %s125 = sadd.s32 %s124, 1
    %s126 = scalar_select %p123, %s124, %s125
    %p129 = pneg %p123
    %p130 = scmp.eq.s32.totalorder %s9, 7
    %p131 = por %p129, %p130
    %p132 = scmp.ne.s32.totalorder %s124, %s127
    %p133 = scmp.eq.s32.totalorder %s9, 0
    %p134 = por %p132, %p133
    %p135 = scmp.ne.s32.totalorder %s124, %s127
    %p136 = scmp.eq.s32.totalorder %s14, 7
    %p137 = por %p135, %p136
    %p138 = scmp.ne.s32.totalorder %s127, %s128
    %p139 = scmp.eq.s32.totalorder %s14, 0
    %p140 = por %p138, %p139
    %p141 = scmp.ne.s32.totalorder %s127, %s128
    %p142 = scmp.eq.s32.totalorder %s15, 7
    %p143 = por %p141, %p142
    %p145 = scmp.ne.s32.totalorder %s128, %s144
    %p146 = scmp.eq.s32.totalorder %s15, 0
    %p147 = por %p145, %p146
    %p148 = scmp.le.s32.totalorder 1, %s9
    %p149 = scmp.lt.s32.totalorder %s9, 9
    %p150 = pnand %p148, %p149
    %p151 = pneg %p150
    // Predicated region
    $region9: #{causal_self_attention.4} parent=5 // pred_check
      _
    $region10: #{causal_self_attention.4} parent=5 // pred_check_branch
      %153 = sbr.rel (%p150) target = $region12
    $region11: #{causal_self_attention.4} parent=5 // pred_region
      %s154 = ssub.s32 %s9, 1
    $region12: #{causal_self_attention.4} parent=5 // pred_fallthru
      _
    %p155 = scmp.lt.s32.totalorder %s9, 8
    // Predicated region
    $region13: #{causal_self_attention.4} parent=5 // pred_check
      %p156 = pneg %p155
    $region14: #{causal_self_attention.4} parent=5 // pred_check_branch
      %158 = sbr.rel (%p156) target = $region16
    $region15: #{causal_self_attention.4} parent=5 // pred_region
      // Predicated region
      $region17: #{causal_self_attention.4} parent=15 // pred_check
        %p159 = pneg %p50
      $region18: #{causal_self_attention.4} parent=15 // pred_check_branch
        %161 = sbr.rel (%p159) target = $region20
      $region19: #{causal_self_attention.4} parent=15 // pred_region
        %s162 = smul.u32 32, %s17
        %p163 = scmp.lt.s32.totalorder %s16, 1
        %s164 = scalar_select %p163, %s16, 1
        %p165 = scmp.lt.s32.totalorder %s162, 63
        %s166 = scalar_select %p165, %s162, 63
        %s167 = smul.addr %s164, 64
        %s168 = sadd.s32 %s166, %s167
        %s169 = smul.addr %s168, 4
        %s170 = scalar_lea.vmem %s0, %s169
        %s171 = smul.u32 32, %s17
      $region20: #{causal_self_attention.4} parent=15 // pred_fallthru
        _
      // Predicated region
      $region21: #{causal_self_attention.4} parent=15 // pred_check
        %p172 = pneg %p78
      $region22: #{causal_self_attention.4} parent=15 // pred_check_branch
        %174 = sbr.rel (%p172) target = $region24
      $region23: #{causal_self_attention.4} parent=15 // pred_region
        %s175 = smul.u32 32, %s18
        %p176 = scmp.lt.s32.totalorder %s16, 1
        %s177 = scalar_select %p176, %s16, 1
        %p178 = scmp.lt.s32.totalorder %s175, 63
        %s179 = scalar_select %p178, %s175, 63
        %s180 = smul.addr %s177, 64
        %s181 = sadd.s32 %s179, %s180
        %s182 = smul.addr %s181, 4
        %s183 = scalar_lea.vmem %s1, %s182
        %s184 = smul.u32 32, %s18
      $region24: #{causal_self_attention.4} parent=15 // pred_fallthru
        _
      // Predicated region
      $region25: #{causal_self_attention.4} parent=15 // pred_check
        %p185 = pneg %p106
      $region26: #{causal_self_attention.4} parent=15 // pred_check_branch
        %187 = sbr.rel (%p185) target = $region28
      $region27: #{causal_self_attention.4} parent=15 // pred_region
        %s188 = smul.u32 32, %s18
        %p189 = scmp.lt.s32.totalorder %s16, 1
        %s190 = scalar_select %p189, %s16, 1
        %p191 = scmp.lt.s32.totalorder %s188, 63
        %s192 = scalar_select %p191, %s188, 63
        %s193 = smul.addr %s190, 64
        %s194 = sadd.s32 %s192, %s193
        %s195 = smul.addr %s194, 4
        %s196 = scalar_lea.vmem %s2, %s195
        %s197 = smul.u32 32, %s18
      $region28: #{causal_self_attention.4} parent=15 // pred_fallthru
        _
    $region16: #{causal_self_attention.4} parent=5 // pred_fallthru
      _
    %p198 = scmp.le.s32.totalorder 1, %s9
    %p199 = scmp.lt.s32.totalorder %s9, 9
    %p200 = pnand %p198, %p199
    %p201 = pneg %p200
    // Predicated region
    $region29: #{causal_self_attention.4} parent=5 // pred_check
      _
    $region30: #{causal_self_attention.4} parent=5 // pred_check_branch
      %203 = sbr.rel (%p200) target = $region32
    $region31: #{causal_self_attention.4} parent=5 // pred_region
      %s204 = ssub.s32 %s9, 1
      %s205 = smul.u32 32, %s20
      %p206 = scmp.lt.s32.totalorder %s19, 1
      %s207 = scalar_select %p206, %s19, 1
      %p208 = scmp.lt.s32.totalorder %s205, 63
      %s209 = scalar_select %p208, %s205, 63
      %s210 = smul.addr %s207, 64
      %s211 = sadd.s32 %s209, %s210
      %s212 = smul.addr %s211, 4
      %s213 = scalar_lea.vmem %s0, %s212
      %p214 = pneg %p56
      %p215 = pneg %p53
      %s216 = smul.u32 32, %s21
      %p217 = scmp.lt.s32.totalorder %s19, 1
      %s218 = scalar_select %p217, %s19, 1
      %p219 = scmp.lt.s32.totalorder %s216, 63
      %s220 = scalar_select %p219, %s216, 63
      %s221 = smul.addr %s218, 64
      %s222 = sadd.s32 %s220, %s221
      %s223 = smul.addr %s222, 4
      %s224 = scalar_lea.vmem %s1, %s223
      %p225 = pneg %p84
      %p226 = pneg %p81
      %s227 = smul.u32 32, %s21
      %p228 = scmp.lt.s32.totalorder %s19, 1
      %s229 = scalar_select %p228, %s19, 1
      %p230 = scmp.lt.s32.totalorder %s227, 63
      %s231 = scalar_select %p230, %s227, 63
      %s232 = smul.addr %s229, 64
      %s233 = sadd.s32 %s231, %s232
      %s234 = smul.addr %s233, 4
      %s235 = scalar_lea.vmem %s2, %s234
      %p236 = pneg %p112
      %p237 = pneg %p109
      %p238 = pneg %p140
      %p239 = pneg %p137
      %s240 = smul.u32 32, %s20
      %p241 = scmp.lt.s32.totalorder %s19, 1
      %s242 = scalar_select %p241, %s19, 1
      %p243 = scmp.lt.s32.totalorder %s240, 63
      %s244 = scalar_select %p243, %s240, 63
      %s245 = smul.addr %s242, 64
      %s246 = sadd.s32 %s244, %s245
      %s247 = smul.addr %s246, 4
      %s248 = scalar_lea.vmem %s3, %s247
      %s249 = smul.u32 32, %s20
      %p250 = scmp.lt.s32.totalorder %s19, 1
      %s251 = scalar_select %p250, %s19, 1
      %p252 = scmp.lt.s32.totalorder %s249, 63
      %s253 = scalar_select %p252, %s249, 63
      %s254 = smul.addr %s251, 64
      %s255 = sadd.s32 %s253, %s254
      %s256 = smul.addr %s255, 4
      %s257 = scalar_lea.vmem %s0, %s256
      %s258 = smul.u32 32, %s20
      %s259 = smul.u32 32, %s21
      %p260 = scmp.lt.s32.totalorder %s19, 1
      %s261 = scalar_select %p260, %s19, 1
      %p262 = scmp.lt.s32.totalorder %s259, 63
      %s263 = scalar_select %p262, %s259, 63
      %s264 = smul.addr %s261, 64
      %s265 = sadd.s32 %s263, %s264
      %s266 = smul.addr %s265, 4
      %s267 = scalar_lea.vmem %s1, %s266
      %s268 = smul.u32 32, %s21
      %s269 = smul.u32 32, %s21
      %p270 = scmp.lt.s32.totalorder %s19, 1
      %s271 = scalar_select %p270, %s19, 1
      %p272 = scmp.lt.s32.totalorder %s269, 63
      %s273 = scalar_select %p272, %s269, 63
      %s274 = smul.addr %s271, 64
      %s275 = sadd.s32 %s273, %s274
      %s276 = smul.addr %s275, 4
      %s277 = scalar_lea.vmem %s2, %s276
      %s278 = smul.u32 32, %s21
      %s279 = smul.u32 32, %s20
      %p280 = scmp.lt.s32.totalorder %s19, 1
      %s281 = scalar_select %p280, %s19, 1
      %p282 = scmp.lt.s32.totalorder %s279, 63
      %s283 = scalar_select %p282, %s279, 63
      %s284 = smul.addr %s281, 64
      %s285 = sadd.s32 %s283, %s284
      %s286 = smul.addr %s285, 4
      %s287 = scalar_lea.vmem %s3, %s286
      %s288 = smul.u32 32, %s20
      %p290 = scmp.eq.s32.totalorder %s21, 0
      // Predicated region
      $region33: #{causal_self_attention.4} parent=31 // pred_check
        %p291 = pneg %p290
      $region34: #{causal_self_attention.4} parent=31 // pred_check_branch
        %293 = sbr.rel (%p291) target = $region36
      $region35: #{causal_self_attention.4} parent=31 // pred_region
        %vm294 = vcmask 7168
        %295 = vst.msk [vmem:[#allocation2] sm:$0xff] %vm294, -1e+30
        %296 = vst.msk [vmem:[#allocation2 + $0x8] sm:$0xff] %vm294, -1e+30
        %297 = vst.msk [vmem:[#allocation2 + $0x10] sm:$0xff] %vm294, -1e+30
        %298 = vst.msk [vmem:[#allocation2 + $0x18] sm:$0xff] %vm294, -1e+30
        %299 = vst.msk [vmem:[#allocation2 + $0x20] sm:$0xff] %vm294, -1e+30
        %300 = vst.msk [vmem:[#allocation2 + $0x28] sm:$0xff] %vm294, -1e+30
        %301 = vst.msk [vmem:[#allocation2 + $0x30] sm:$0xff] %vm294, -1e+30
        %302 = vst.msk [vmem:[#allocation2 + $0x38] sm:$0xff] %vm294, -1e+30
        %303 = vst.msk [vmem:[#allocation2 + $0x40] sm:$0xff] %vm294, -1e+30
        %304 = vst.msk [vmem:[#allocation2 + $0x48] sm:$0xff] %vm294, -1e+30
        %305 = vst.msk [vmem:[#allocation2 + $0x50] sm:$0xff] %vm294, -1e+30
        %306 = vst.msk [vmem:[#allocation2 + $0x58] sm:$0xff] %vm294, -1e+30
        %307 = vst.msk [vmem:[#allocation2 + $0x60] sm:$0xff] %vm294, -1e+30
        %308 = vst.msk [vmem:[#allocation2 + $0x68] sm:$0xff] %vm294, -1e+30
        %309 = vst.msk [vmem:[#allocation2 + $0x70] sm:$0xff] %vm294, -1e+30
        %310 = vst.msk [vmem:[#allocation2 + $0x78] sm:$0xff] %vm294, -1e+30
        %311 = vst.msk [vmem:[#allocation2 + $0x80] sm:$0xff] %vm294, -1e+30
        %312 = vst.msk [vmem:[#allocation2 + $0x88] sm:$0xff] %vm294, -1e+30
        %313 = vst.msk [vmem:[#allocation2 + $0x90] sm:$0xff] %vm294, -1e+30
        %314 = vst.msk [vmem:[#allocation2 + $0x98] sm:$0xff] %vm294, -1e+30
        %315 = vst.msk [vmem:[#allocation2 + $0xa0] sm:$0xff] %vm294, -1e+30
        %316 = vst.msk [vmem:[#allocation2 + $0xa8] sm:$0xff] %vm294, -1e+30
        %317 = vst.msk [vmem:[#allocation2 + $0xb0] sm:$0xff] %vm294, -1e+30
        %318 = vst.msk [vmem:[#allocation2 + $0xb8] sm:$0xff] %vm294, -1e+30
        %319 = vst.msk [vmem:[#allocation2 + $0xc0] sm:$0xff] %vm294, -1e+30
        %320 = vst.msk [vmem:[#allocation2 + $0xc8] sm:$0xff] %vm294, -1e+30
        %321 = vst.msk [vmem:[#allocation2 + $0xd0] sm:$0xff] %vm294, -1e+30
        %322 = vst.msk [vmem:[#allocation2 + $0xd8] sm:$0xff] %vm294, -1e+30
        %323 = vst.msk [vmem:[#allocation2 + $0xe0] sm:$0xff] %vm294, -1e+30
        %324 = vst.msk [vmem:[#allocation2 + $0xe8] sm:$0xff] %vm294, -1e+30
        %325 = vst.msk [vmem:[#allocation2 + $0xf0] sm:$0xff] %vm294, -1e+30
        %326 = vst.msk [vmem:[#allocation2 + $0xf8] sm:$0xff] %vm294, -1e+30
        %327 = vst.msk [vmem:[#allocation3] sm:$0xff] %vm294, 0.0
        %328 = vst.msk [vmem:[#allocation3 + $0x8] sm:$0xff] %vm294, 0.0
        %329 = vst.msk [vmem:[#allocation3 + $0x10] sm:$0xff] %vm294, 0.0
        %330 = vst.msk [vmem:[#allocation3 + $0x18] sm:$0xff] %vm294, 0.0
        %331 = vst.msk [vmem:[#allocation3 + $0x20] sm:$0xff] %vm294, 0.0
        %332 = vst.msk [vmem:[#allocation3 + $0x28] sm:$0xff] %vm294, 0.0
        %333 = vst.msk [vmem:[#allocation3 + $0x30] sm:$0xff] %vm294, 0.0
        %334 = vst.msk [vmem:[#allocation3 + $0x38] sm:$0xff] %vm294, 0.0
        %335 = vst.msk [vmem:[#allocation3 + $0x40] sm:$0xff] %vm294, 0.0
        %336 = vst.msk [vmem:[#allocation3 + $0x48] sm:$0xff] %vm294, 0.0
        %337 = vst.msk [vmem:[#allocation3 + $0x50] sm:$0xff] %vm294, 0.0
        %338 = vst.msk [vmem:[#allocation3 + $0x58] sm:$0xff] %vm294, 0.0
        %339 = vst.msk [vmem:[#allocation3 + $0x60] sm:$0xff] %vm294, 0.0
        %340 = vst.msk [vmem:[#allocation3 + $0x68] sm:$0xff] %vm294, 0.0
        %341 = vst.msk [vmem:[#allocation3 + $0x70] sm:$0xff] %vm294, 0.0
        %342 = vst.msk [vmem:[#allocation3 + $0x78] sm:$0xff] %vm294, 0.0
        %343 = vst.msk [vmem:[#allocation3 + $0x80] sm:$0xff] %vm294, 0.0
        %344 = vst.msk [vmem:[#allocation3 + $0x88] sm:$0xff] %vm294, 0.0
        %345 = vst.msk [vmem:[#allocation3 + $0x90] sm:$0xff] %vm294, 0.0
        %346 = vst.msk [vmem:[#allocation3 + $0x98] sm:$0xff] %vm294, 0.0
        %347 = vst.msk [vmem:[#allocation3 + $0xa0] sm:$0xff] %vm294, 0.0
        %348 = vst.msk [vmem:[#allocation3 + $0xa8] sm:$0xff] %vm294, 0.0
        %349 = vst.msk [vmem:[#allocation3 + $0xb0] sm:$0xff] %vm294, 0.0
        %350 = vst.msk [vmem:[#allocation3 + $0xb8] sm:$0xff] %vm294, 0.0
        %351 = vst.msk [vmem:[#allocation3 + $0xc0] sm:$0xff] %vm294, 0.0
        %352 = vst.msk [vmem:[#allocation3 + $0xc8] sm:$0xff] %vm294, 0.0
        %353 = vst.msk [vmem:[#allocation3 + $0xd0] sm:$0xff] %vm294, 0.0
        %354 = vst.msk [vmem:[#allocation3 + $0xd8] sm:$0xff] %vm294, 0.0
        %355 = vst.msk [vmem:[#allocation3 + $0xe0] sm:$0xff] %vm294, 0.0
        %356 = vst.msk [vmem:[#allocation3 + $0xe8] sm:$0xff] %vm294, 0.0
        %357 = vst.msk [vmem:[#allocation3 + $0xf0] sm:$0xff] %vm294, 0.0
        %358 = vst.msk [vmem:[#allocation3 + $0xf8] sm:$0xff] %vm294, 0.0
        %359 = vst [vmem:[#allocation4] sm:$0xff] 0.0
        %360 = vst [vmem:[#allocation4 + $0x8] sm:$0xff] 0.0
        %361 = vst [vmem:[#allocation4 + $0x10] sm:$0xff] 0.0
        %362 = vst [vmem:[#allocation4 + $0x18] sm:$0xff] 0.0
        %363 = vst [vmem:[#allocation4 + $0x20] sm:$0xff] 0.0
        %364 = vst [vmem:[#allocation4 + $0x28] sm:$0xff] 0.0
        %365 = vst [vmem:[#allocation4 + $0x30] sm:$0xff] 0.0
        %366 = vst [vmem:[#allocation4 + $0x38] sm:$0xff] 0.0
        %367 = vst [vmem:[#allocation4 + $0x40] sm:$0xff] 0.0
        %368 = vst [vmem:[#allocation4 + $0x48] sm:$0xff] 0.0
        %369 = vst [vmem:[#allocation4 + $0x50] sm:$0xff] 0.0
        %370 = vst [vmem:[#allocation4 + $0x58] sm:$0xff] 0.0
        %371 = vst [vmem:[#allocation4 + $0x60] sm:$0xff] 0.0
        %372 = vst [vmem:[#allocation4 + $0x68] sm:$0xff] 0.0
        %373 = vst [vmem:[#allocation4 + $0x70] sm:$0xff] 0.0
        %374 = vst [vmem:[#allocation4 + $0x78] sm:$0xff] 0.0
        %375 = vst [vmem:[#allocation4 + $0x80] sm:$0xff] 0.0
        %376 = vst [vmem:[#allocation4 + $0x88] sm:$0xff] 0.0
        %377 = vst [vmem:[#allocation4 + $0x90] sm:$0xff] 0.0
        %378 = vst [vmem:[#allocation4 + $0x98] sm:$0xff] 0.0
        %379 = vst [vmem:[#allocation4 + $0xa0] sm:$0xff] 0.0
        %380 = vst [vmem:[#allocation4 + $0xa8] sm:$0xff] 0.0
        %381 = vst [vmem:[#allocation4 + $0xb0] sm:$0xff] 0.0
        %382 = vst [vmem:[#allocation4 + $0xb8] sm:$0xff] 0.0
        %383 = vst [vmem:[#allocation4 + $0xc0] sm:$0xff] 0.0
        %384 = vst [vmem:[#allocation4 + $0xc8] sm:$0xff] 0.0
        %385 = vst [vmem:[#allocation4 + $0xd0] sm:$0xff] 0.0
        %386 = vst [vmem:[#allocation4 + $0xd8] sm:$0xff] 0.0
        %387 = vst [vmem:[#allocation4 + $0xe0] sm:$0xff] 0.0
        %388 = vst [vmem:[#allocation4 + $0xe8] sm:$0xff] 0.0
        %389 = vst [vmem:[#allocation4 + $0xf0] sm:$0xff] 0.0
        %390 = vst [vmem:[#allocation4 + $0xf8] sm:$0xff] 0.0
      $region36: #{causal_self_attention.4} parent=31 // pred_fallthru
        _
      %s391 = sadd.s32 %s20, 1
      %s392 = smul.u32 %s391, 256
      %s393 = ssub.s32 %s392, 1
      %s394 = smul.u32 %s21, 256
      %p395 = scmp.le.s32.totalorder %s394, %s393
      // Predicated region
      $region37: #{causal_self_attention.4} parent=31 // pred_check
        %p396 = pneg %p395
      $region38: #{causal_self_attention.4} parent=31 // pred_check_branch
        %398 = sbr.rel (%p396) target = $region40
      $region39: #{causal_self_attention.4} parent=31 // pred_region
        %v399 = vld [vmem:[%s257] sm:$0xf]
        %v400 = vld [vmem:[%s257 + $0x4] sm:$0xf]
        %v401 = vld [vmem:[%s257 + $0x8] sm:$0xf]
        %v402 = vld [vmem:[%s257 + $0xc] sm:$0xf]
        %v403 = vld [vmem:[%s257 + $0x10] sm:$0xf]
        %v404 = vld [vmem:[%s257 + $0x14] sm:$0xf]
        %v405 = vld [vmem:[%s257 + $0x18] sm:$0xf]
        %v406 = vld [vmem:[%s257 + $0x1c] sm:$0xf]
        %v407 = vld [vmem:[%s257 + $0x20] sm:$0xf]
        %v408 = vld [vmem:[%s257 + $0x24] sm:$0xf]
        %v409 = vld [vmem:[%s257 + $0x28] sm:$0xf]
        %v410 = vld [vmem:[%s257 + $0x2c] sm:$0xf]
        %v411 = vld [vmem:[%s257 + $0x30] sm:$0xf]
        %v412 = vld [vmem:[%s257 + $0x34] sm:$0xf]
        %v413 = vld [vmem:[%s257 + $0x38] sm:$0xf]
        %v414 = vld [vmem:[%s257 + $0x3c] sm:$0xf]
        %v415 = vld [vmem:[%s257 + $0x40] sm:$0xf]
        %v416 = vld [vmem:[%s257 + $0x44] sm:$0xf]
        %v417 = vld [vmem:[%s257 + $0x48] sm:$0xf]
        %v418 = vld [vmem:[%s257 + $0x4c] sm:$0xf]
        %v419 = vld [vmem:[%s257 + $0x50] sm:$0xf]
        %v420 = vld [vmem:[%s257 + $0x54] sm:$0xf]
        %v421 = vld [vmem:[%s257 + $0x58] sm:$0xf]
        %v422 = vld [vmem:[%s257 + $0x5c] sm:$0xf]
        %v423 = vld [vmem:[%s257 + $0x60] sm:$0xf]
        %v424 = vld [vmem:[%s257 + $0x64] sm:$0xf]
        %v425 = vld [vmem:[%s257 + $0x68] sm:$0xf]
        %v426 = vld [vmem:[%s257 + $0x6c] sm:$0xf]
        %v427 = vld [vmem:[%s257 + $0x70] sm:$0xf]
        %v428 = vld [vmem:[%s257 + $0x74] sm:$0xf]
        %v429 = vld [vmem:[%s257 + $0x78] sm:$0xf]
        %v430 = vld [vmem:[%s257 + $0x7c] sm:$0xf]
        %v431 = vld [vmem:[%s267] sm:$0xf]
        %v432 = vld [vmem:[%s267 + $0x4] sm:$0xf]
        %v433 = vld [vmem:[%s267 + $0x8] sm:$0xf]
        %v434 = vld [vmem:[%s267 + $0xc] sm:$0xf]
        %v435 = vld [vmem:[%s267 + $0x10] sm:$0xf]
        %v436 = vld [vmem:[%s267 + $0x14] sm:$0xf]
        %v437 = vld [vmem:[%s267 + $0x18] sm:$0xf]
        %v438 = vld [vmem:[%s267 + $0x1c] sm:$0xf]
        %v439 = vld [vmem:[%s267 + $0x20] sm:$0xf]
        %v440 = vld [vmem:[%s267 + $0x24] sm:$0xf]
        %v441 = vld [vmem:[%s267 + $0x28] sm:$0xf]
        %v442 = vld [vmem:[%s267 + $0x2c] sm:$0xf]
        %v443 = vld [vmem:[%s267 + $0x30] sm:$0xf]
        %v444 = vld [vmem:[%s267 + $0x34] sm:$0xf]
        %v445 = vld [vmem:[%s267 + $0x38] sm:$0xf]
        %v446 = vld [vmem:[%s267 + $0x3c] sm:$0xf]
        %v447 = vld [vmem:[%s267 + $0x40] sm:$0xf]
        %v448 = vld [vmem:[%s267 + $0x44] sm:$0xf]
        %v449 = vld [vmem:[%s267 + $0x48] sm:$0xf]
        %v450 = vld [vmem:[%s267 + $0x4c] sm:$0xf]
        %v451 = vld [vmem:[%s267 + $0x50] sm:$0xf]
        %v452 = vld [vmem:[%s267 + $0x54] sm:$0xf]
        %v453 = vld [vmem:[%s267 + $0x58] sm:$0xf]
        %v454 = vld [vmem:[%s267 + $0x5c] sm:$0xf]
        %v455 = vld [vmem:[%s267 + $0x60] sm:$0xf]
        %v456 = vld [vmem:[%s267 + $0x64] sm:$0xf]
        %v457 = vld [vmem:[%s267 + $0x68] sm:$0xf]
        %v458 = vld [vmem:[%s267 + $0x6c] sm:$0xf]
        %v459 = vld [vmem:[%s267 + $0x70] sm:$0xf]
        %v460 = vld [vmem:[%s267 + $0x74] sm:$0xf]
        %v461 = vld [vmem:[%s267 + $0x78] sm:$0xf]
        %v462 = vld [vmem:[%s267 + $0x7c] sm:$0xf]
        %v463 = vld [vmem:[%s277] sm:$0xf]
        %v464 = vld [vmem:[%s277 + $0x4] sm:$0xf]
        %v465 = vld [vmem:[%s277 + $0x8] sm:$0xf]
        %v466 = vld [vmem:[%s277 + $0xc] sm:$0xf]
        %v467 = vld [vmem:[%s277 + $0x10] sm:$0xf]
        %v468 = vld [vmem:[%s277 + $0x14] sm:$0xf]
        %v469 = vld [vmem:[%s277 + $0x18] sm:$0xf]
        %v470 = vld [vmem:[%s277 + $0x1c] sm:$0xf]
        %v471 = vld [vmem:[%s277 + $0x20] sm:$0xf]
        %v472 = vld [vmem:[%s277 + $0x24] sm:$0xf]
        %v473 = vld [vmem:[%s277 + $0x28] sm:$0xf]
        %v474 = vld [vmem:[%s277 + $0x2c] sm:$0xf]
        %v475 = vld [vmem:[%s277 + $0x30] sm:$0xf]
        %v476 = vld [vmem:[%s277 + $0x34] sm:$0xf]
        %v477 = vld [vmem:[%s277 + $0x38] sm:$0xf]
        %v478 = vld [vmem:[%s277 + $0x3c] sm:$0xf]
        %v479 = vld [vmem:[%s277 + $0x40] sm:$0xf]
        %v480 = vld [vmem:[%s277 + $0x44] sm:$0xf]
        %v481 = vld [vmem:[%s277 + $0x48] sm:$0xf]
        %v482 = vld [vmem:[%s277 + $0x4c] sm:$0xf]
        %v483 = vld [vmem:[%s277 + $0x50] sm:$0xf]
        %v484 = vld [vmem:[%s277 + $0x54] sm:$0xf]
        %v485 = vld [vmem:[%s277 + $0x58] sm:$0xf]
        %v486 = vld [vmem:[%s277 + $0x5c] sm:$0xf]
        %v487 = vld [vmem:[%s277 + $0x60] sm:$0xf]
        %v488 = vld [vmem:[%s277 + $0x64] sm:$0xf]
        %v489 = vld [vmem:[%s277 + $0x68] sm:$0xf]
        %v490 = vld [vmem:[%s277 + $0x6c] sm:$0xf]
        %v491 = vld [vmem:[%s277 + $0x70] sm:$0xf]
        %v492 = vld [vmem:[%s277 + $0x74] sm:$0xf]
        %v493 = vld [vmem:[%s277 + $0x78] sm:$0xf]
        %v494 = vld [vmem:[%s277 + $0x7c] sm:$0xf]
        %v527 = vunpack.c.l.b16 %v399
        %v528 = vunpack.c.l.b16 %v400
        %v529 = vunpack.c.l.b16 %v401
        %v530 = vunpack.c.l.b16 %v402
        %v531 = vunpack.c.l.b16 %v403
        %v532 = vunpack.c.l.b16 %v404
        %v533 = vunpack.c.l.b16 %v405
        %v534 = vunpack.c.l.b16 %v406
        %v535 = vunpack.c.l.b16 %v407
        %v536 = vunpack.c.l.b16 %v408
        %v537 = vunpack.c.l.b16 %v409
        %v538 = vunpack.c.l.b16 %v410
        %v539 = vunpack.c.l.b16 %v411
        %v540 = vunpack.c.l.b16 %v412
        %v541 = vunpack.c.l.b16 %v413
        %v542 = vunpack.c.l.b16 %v414
        %v543 = vunpack.c.l.b16 %v415
        %v544 = vunpack.c.l.b16 %v416
        %v545 = vunpack.c.l.b16 %v417
        %v546 = vunpack.c.l.b16 %v418
        %v547 = vunpack.c.l.b16 %v419
        %v548 = vunpack.c.l.b16 %v420
        %v549 = vunpack.c.l.b16 %v421
        %v550 = vunpack.c.l.b16 %v422
        %v551 = vunpack.c.l.b16 %v423
        %v552 = vunpack.c.l.b16 %v424
        %v553 = vunpack.c.l.b16 %v425
        %v554 = vunpack.c.l.b16 %v426
        %v555 = vunpack.c.l.b16 %v427
        %v556 = vunpack.c.l.b16 %v428
        %v557 = vunpack.c.l.b16 %v429
        %v558 = vunpack.c.l.b16 %v430
        %v559 = vpack.c.b16 %v528, %v527
        %v560 = vpack.c.b16 %v530, %v529
        %v561 = vpack.c.b16 %v532, %v531
        %v562 = vpack.c.b16 %v534, %v533
        %v563 = vpack.c.b16 %v536, %v535
        %v564 = vpack.c.b16 %v538, %v537
        %v565 = vpack.c.b16 %v540, %v539
        %v566 = vpack.c.b16 %v542, %v541
        %v567 = vpack.c.b16 %v544, %v543
        %v568 = vpack.c.b16 %v546, %v545
        %v569 = vpack.c.b16 %v548, %v547
        %v570 = vpack.c.b16 %v550, %v549
        %v571 = vpack.c.b16 %v552, %v551
        %v572 = vpack.c.b16 %v554, %v553
        %v573 = vpack.c.b16 %v556, %v555
        %v574 = vpack.c.b16 %v558, %v557
        %v623 = vunpack.c.l.b16 %v431
        %v624 = vunpack.c.l.b16 %v432
        %v625 = vunpack.c.l.b16 %v433
        %v626 = vunpack.c.l.b16 %v434
        %v627 = vunpack.c.l.b16 %v435
        %v628 = vunpack.c.l.b16 %v436
        %v629 = vunpack.c.l.b16 %v437
        %v630 = vunpack.c.l.b16 %v438
        %v631 = vunpack.c.l.b16 %v439
        %v632 = vunpack.c.l.b16 %v440
        %v633 = vunpack.c.l.b16 %v441
        %v634 = vunpack.c.l.b16 %v442
        %v635 = vunpack.c.l.b16 %v443
        %v636 = vunpack.c.l.b16 %v444
        %v637 = vunpack.c.l.b16 %v445
        %v638 = vunpack.c.l.b16 %v446
        %v639 = vunpack.c.l.b16 %v447
        %v640 = vunpack.c.l.b16 %v448
        %v641 = vunpack.c.l.b16 %v449
        %v642 = vunpack.c.l.b16 %v450
        %v643 = vunpack.c.l.b16 %v451
        %v644 = vunpack.c.l.b16 %v452
        %v645 = vunpack.c.l.b16 %v453
        %v646 = vunpack.c.l.b16 %v454
        %v647 = vunpack.c.l.b16 %v455
        %v648 = vunpack.c.l.b16 %v456
        %v649 = vunpack.c.l.b16 %v457
        %v650 = vunpack.c.l.b16 %v458
        %v651 = vunpack.c.l.b16 %v459
        %v652 = vunpack.c.l.b16 %v460
        %v653 = vunpack.c.l.b16 %v461
        %v654 = vunpack.c.l.b16 %v462
        %v655 = vpack.c.b16 %v624, %v623
        %v656 = vpack.c.b16 %v626, %v625
        %v657 = vpack.c.b16 %v628, %v627
        %v658 = vpack.c.b16 %v630, %v629
        %v659 = vpack.c.b16 %v632, %v631
        %v660 = vpack.c.b16 %v634, %v633
        %v661 = vpack.c.b16 %v636, %v635
        %v662 = vpack.c.b16 %v638, %v637
        %v663 = vpack.c.b16 %v640, %v639
        %v664 = vpack.c.b16 %v642, %v641
        %v665 = vpack.c.b16 %v644, %v643
        %v666 = vpack.c.b16 %v646, %v645
        %v667 = vpack.c.b16 %v648, %v647
        %v668 = vpack.c.b16 %v650, %v649
        %v669 = vpack.c.b16 %v652, %v651
        %v670 = vpack.c.b16 %v654, %v653
        %687 = vmatprep.subr.bf16.mxu0 0
        %688 = vmatpush1.bf16.xpose.msra.mxu0 %v655
        %689 = vmatprep.subr.bf16.mxu0 0
        %690 = vmatpush1.bf16.xpose.msra.mxu0 %v656
        %691 = vmatprep.subr.bf16.mxu0 0
        %692 = vmatpush1.bf16.xpose.msra.mxu0 %v657
        %693 = vmatprep.subr.bf16.mxu0 0
        %694 = vmatpush1.bf16.xpose.msra.mxu0 %v658
        %695 = vmatprep.subr.bf16.mxu0 0
        %696 = vmatpush1.bf16.xpose.msra.mxu0 %v659
        %697 = vmatprep.subr.bf16.mxu0 0
        %698 = vmatpush1.bf16.xpose.msra.mxu0 %v660
        %699 = vmatprep.subr.bf16.mxu0 0
        %700 = vmatpush1.bf16.xpose.msra.mxu0 %v661
        %701 = vmatprep.subr.bf16.mxu0 0
        %702 = vmatpush1.bf16.xpose.msra.mxu0 %v662
        %703 = vmatprep.subr.bf16.mxu0 0
        %704 = vmatpush1.bf16.xpose.msra.mxu0 %v663
        %705 = vmatprep.subr.bf16.mxu0 0
        %706 = vmatpush1.bf16.xpose.msra.mxu0 %v664
        %707 = vmatprep.subr.bf16.mxu0 0
        %708 = vmatpush1.bf16.xpose.msra.mxu0 %v665
        %709 = vmatprep.subr.bf16.mxu0 0
        %710 = vmatpush1.bf16.xpose.msra.mxu0 %v666
        %711 = vmatprep.subr.bf16.mxu0 0
        %712 = vmatpush1.bf16.xpose.msra.mxu0 %v667
        %713 = vmatprep.subr.bf16.mxu0 0
        %714 = vmatpush1.bf16.xpose.msra.mxu0 %v668
        %715 = vmatprep.subr.bf16.mxu0 0
        %716 = vmatpush1.bf16.xpose.msra.mxu0 %v669
        %717 = vmatprep.subr.bf16.mxu0 0
        %718 = vmatpush1.bf16.xpose.msra.mxu0 %v670
        %719 = vmatprep.mubr.bf16.mxu0 0
        %720 = vmatmul.mubr.bf16.gmra.mrb[0].mxu0 %v559
        %v721 = vpop.f32.mrb[0].mxu0
        %v722 = vadd.f32 0.0, %v721
        %v723 = vpop.f32.mrb[0].mxu0
        %v724 = vadd.f32 0.0, %v723
        %v725 = vpop.f32.mrb[0].mxu0
        %v726 = vadd.f32 0.0, %v725
        %v727 = vpop.f32.mrb[0].mxu0
        %v728 = vadd.f32 0.0, %v727
        %729 = vmatprep.mubr.bf16.mxu0 0
        %730 = vmatmul.mubr.bf16.gmra.mrb[0].mxu0 %v560
        %v731 = vpop.f32.mrb[0].mxu0
        %v732 = vadd.f32 0.0, %v731
        %v733 = vpop.f32.mrb[0].mxu0
        %v734 = vadd.f32 0.0, %v733
        %v735 = vpop.f32.mrb[0].mxu0
        %v736 = vadd.f32 0.0, %v735
        %v737 = vpop.f32.mrb[0].mxu0
        %v738 = vadd.f32 0.0, %v737
        %739 = vmatprep.mubr.bf16.mxu0 0
        %740 = vmatmul.mubr.bf16.gmra.mrb[0].mxu0 %v561
        %v741 = vpop.f32.mrb[0].mxu0
        %v742 = vadd.f32 0.0, %v741
        %v743 = vpop.f32.mrb[0].mxu0
        %v744 = vadd.f32 0.0, %v743
        %v745 = vpop.f32.mrb[0].mxu0
        %v746 = vadd.f32 0.0, %v745
        %v747 = vpop.f32.mrb[0].mxu0
        %v748 = vadd.f32 0.0, %v747
        %749 = vmatprep.mubr.bf16.mxu0 0
        %750 = vmatmul.mubr.bf16.gmra.mrb[0].mxu0 %v562
        %v751 = vpop.f32.mrb[0].mxu0
        %v752 = vadd.f32 0.0, %v751
        %v753 = vpop.f32.mrb[0].mxu0
        %v754 = vadd.f32 0.0, %v753
        %v755 = vpop.f32.mrb[0].mxu0
        %v756 = vadd.f32 0.0, %v755
        %v757 = vpop.f32.mrb[0].mxu0
        %v758 = vadd.f32 0.0, %v757
        %759 = vmatprep.mubr.bf16.mxu0 0
        %760 = vmatmul.mubr.bf16.gmra.mrb[0].mxu0 %v563
        %v761 = vpop.f32.mrb[0].mxu0
        %v762 = vadd.f32 0.0, %v761
        %v763 = vpop.f32.mrb[0].mxu0
        %v764 = vadd.f32 0.0, %v763
        %v765 = vpop.f32.mrb[0].mxu0
        %v766 = vadd.f32 0.0, %v765
        %v767 = vpop.f32.mrb[0].mxu0
        %v768 = vadd.f32 0.0, %v767
        %769 = vmatprep.mubr.bf16.mxu0 0
        %770 = vmatmul.mubr.bf16.gmra.mrb[0].mxu0 %v564
        %v771 = vpop.f32.mrb[0].mxu0
        %v772 = vadd.f32 0.0, %v771
        %v773 = vpop.f32.mrb[0].mxu0
        %v774 = vadd.f32 0.0, %v773
        %v775 = vpop.f32.mrb[0].mxu0
        %v776 = vadd.f32 0.0, %v775
        %v777 = vpop.f32.mrb[0].mxu0
        %v778 = vadd.f32 0.0, %v777
        %779 = vmatprep.mubr.bf16.mxu0 0
        %780 = vmatmul.mubr.bf16.gmra.mrb[0].mxu0 %v565
        %v781 = vpop.f32.mrb[0].mxu0
        %v782 = vadd.f32 0.0, %v781
        %v783 = vpop.f32.mrb[0].mxu0
        %v784 = vadd.f32 0.0, %v783
        %v785 = vpop.f32.mrb[0].mxu0
        %v786 = vadd.f32 0.0, %v785
        %v787 = vpop.f32.mrb[0].mxu0
        %v788 = vadd.f32 0.0, %v787
        %789 = vmatprep.mubr.bf16.mxu0 0
        %790 = vmatmul.mubr.bf16.gmra.mrb[0].mxu0 %v566
        %v791 = vpop.f32.mrb[0].mxu0
        %v792 = vadd.f32 0.0, %v791
        %v793 = vpop.f32.mrb[0].mxu0
        %v794 = vadd.f32 0.0, %v793
        %v795 = vpop.f32.mrb[0].mxu0
        %v796 = vadd.f32 0.0, %v795
        %v797 = vpop.f32.mrb[0].mxu0
        %v798 = vadd.f32 0.0, %v797
        %799 = vmatprep.mubr.bf16.mxu0 0
        %800 = vmatmul.mubr.bf16.gmra.mrb[0].mxu0 %v567
        %v801 = vpop.f32.mrb[0].mxu0
        %v802 = vadd.f32 0.0, %v801
        %v803 = vpop.f32.mrb[0].mxu0
        %v804 = vadd.f32 0.0, %v803
        %v805 = vpop.f32.mrb[0].mxu0
        %v806 = vadd.f32 0.0, %v805
        %v807 = vpop.f32.mrb[0].mxu0
        %v808 = vadd.f32 0.0, %v807
        %809 = vmatprep.mubr.bf16.mxu0 0
        %810 = vmatmul.mubr.bf16.gmra.mrb[0].mxu0 %v568
        %v811 = vpop.f32.mrb[0].mxu0
        %v812 = vadd.f32 0.0, %v811
        %v813 = vpop.f32.mrb[0].mxu0
        %v814 = vadd.f32 0.0, %v813
        %v815 = vpop.f32.mrb[0].mxu0
        %v816 = vadd.f32 0.0, %v815
        %v817 = vpop.f32.mrb[0].mxu0
        %v818 = vadd.f32 0.0, %v817
        %819 = vmatprep.mubr.bf16.mxu0 0
        %820 = vmatmul.mubr.bf16.gmra.mrb[0].mxu0 %v569
        %v821 = vpop.f32.mrb[0].mxu0
        %v822 = vadd.f32 0.0, %v821
        %v823 = vpop.f32.mrb[0].mxu0
        %v824 = vadd.f32 0.0, %v823
        %v825 = vpop.f32.mrb[0].mxu0
        %v826 = vadd.f32 0.0, %v825
        %v827 = vpop.f32.mrb[0].mxu0
        %v828 = vadd.f32 0.0, %v827
        %829 = vmatprep.mubr.bf16.mxu0 0
        %830 = vmatmul.mubr.bf16.gmra.mrb[0].mxu0 %v570
        %v831 = vpop.f32.mrb[0].mxu0
        %v832 = vadd.f32 0.0, %v831
        %v833 = vpop.f32.mrb[0].mxu0
        %v834 = vadd.f32 0.0, %v833
        %v835 = vpop.f32.mrb[0].mxu0
        %v836 = vadd.f32 0.0, %v835
        %v837 = vpop.f32.mrb[0].mxu0
        %v838 = vadd.f32 0.0, %v837
        %839 = vmatprep.mubr.bf16.mxu0 0
        %840 = vmatmul.mubr.bf16.gmra.mrb[0].mxu0 %v571
        %v841 = vpop.f32.mrb[0].mxu0
        %v842 = vadd.f32 0.0, %v841
        %v843 = vpop.f32.mrb[0].mxu0
        %v844 = vadd.f32 0.0, %v843
        %v845 = vpop.f32.mrb[0].mxu0
        %v846 = vadd.f32 0.0, %v845
        %v847 = vpop.f32.mrb[0].mxu0
        %v848 = vadd.f32 0.0, %v847
        %849 = vmatprep.mubr.bf16.mxu0 0
        %850 = vmatmul.mubr.bf16.gmra.mrb[0].mxu0 %v572
        %v851 = vpop.f32.mrb[0].mxu0
        %v852 = vadd.f32 0.0, %v851
        %v853 = vpop.f32.mrb[0].mxu0
        %v854 = vadd.f32 0.0, %v853
        %v855 = vpop.f32.mrb[0].mxu0
        %v856 = vadd.f32 0.0, %v855
        %v857 = vpop.f32.mrb[0].mxu0
        %v858 = vadd.f32 0.0, %v857
        %859 = vmatprep.mubr.bf16.mxu0 0
        %860 = vmatmul.mubr.bf16.gmra.mrb[0].mxu0 %v573
        %v861 = vpop.f32.mrb[0].mxu0
        %v862 = vadd.f32 0.0, %v861
        %v863 = vpop.f32.mrb[0].mxu0
        %v864 = vadd.f32 0.0, %v863
        %v865 = vpop.f32.mrb[0].mxu0
        %v866 = vadd.f32 0.0, %v865
        %v867 = vpop.f32.mrb[0].mxu0
        %v868 = vadd.f32 0.0, %v867
        %869 = vmatprep.mubr.bf16.mxu0 0
        %870 = vmatmul.mubr.bf16.gmra.mrb[0].mxu0 %v574
        %v871 = vpop.f32.mrb[0].mxu0
        %v872 = vadd.f32 0.0, %v871
        %v873 = vpop.f32.mrb[0].mxu0
        %v874 = vadd.f32 0.0, %v873
        %v875 = vpop.f32.mrb[0].mxu0
        %v876 = vadd.f32 0.0, %v875
        %v877 = vpop.f32.mrb[0].mxu0
        %v878 = vadd.f32 0.0, %v877
        %879 = vdwg.mxu0
        %v880 = vmul.f32 %v722, 0.088388346
        %v881 = vmul.f32 %v724, 0.088388346
        %v882 = vmul.f32 %v726, 0.088388346
        %v883 = vmul.f32 %v728, 0.088388346
        %v884 = vmul.f32 %v732, 0.088388346
        %v885 = vmul.f32 %v734, 0.088388346
        %v886 = vmul.f32 %v736, 0.088388346
        %v887 = vmul.f32 %v738, 0.088388346
        %v888 = vmul.f32 %v742, 0.088388346
        %v889 = vmul.f32 %v744, 0.088388346
        %v890 = vmul.f32 %v746, 0.088388346
        %v891 = vmul.f32 %v748, 0.088388346
        %v892 = vmul.f32 %v752, 0.088388346
        %v893 = vmul.f32 %v754, 0.088388346
        %v894 = vmul.f32 %v756, 0.088388346
        %v895 = vmul.f32 %v758, 0.088388346
        %v896 = vmul.f32 %v762, 0.088388346
        %v897 = vmul.f32 %v764, 0.088388346
        %v898 = vmul.f32 %v766, 0.088388346
        %v899 = vmul.f32 %v768, 0.088388346
        %v900 = vmul.f32 %v772, 0.088388346
        %v901 = vmul.f32 %v774, 0.088388346
        %v902 = vmul.f32 %v776, 0.088388346
        %v903 = vmul.f32 %v778, 0.088388346
        %v904 = vmul.f32 %v782, 0.088388346
        %v905 = vmul.f32 %v784, 0.088388346
        %v906 = vmul.f32 %v786, 0.088388346
        %v907 = vmul.f32 %v788, 0.088388346
        %v908 = vmul.f32 %v792, 0.088388346
        %v909 = vmul.f32 %v794, 0.088388346
        %v910 = vmul.f32 %v796, 0.088388346
        %v911 = vmul.f32 %v798, 0.088388346
        %v912 = vmul.f32 %v802, 0.088388346
        %v913 = vmul.f32 %v804, 0.088388346
        %v914 = vmul.f32 %v806, 0.088388346
        %v915 = vmul.f32 %v808, 0.088388346
        %v916 = vmul.f32 %v812, 0.088388346
        %v917 = vmul.f32 %v814, 0.088388346
        %v918 = vmul.f32 %v816, 0.088388346
        %v919 = vmul.f32 %v818, 0.088388346
        %v920 = vmul.f32 %v822, 0.088388346
        %v921 = vmul.f32 %v824, 0.088388346
        %v922 = vmul.f32 %v826, 0.088388346
        %v923 = vmul.f32 %v828, 0.088388346
        %v924 = vmul.f32 %v832, 0.088388346
        %v925 = vmul.f32 %v834, 0.088388346
        %v926 = vmul.f32 %v836, 0.088388346
        %v927 = vmul.f32 %v838, 0.088388346
        %v928 = vmul.f32 %v842, 0.088388346
        %v929 = vmul.f32 %v844, 0.088388346
        %v930 = vmul.f32 %v846, 0.088388346
        %v931 = vmul.f32 %v848, 0.088388346
        %v932 = vmul.f32 %v852, 0.088388346
        %v933 = vmul.f32 %v854, 0.088388346
        %v934 = vmul.f32 %v856, 0.088388346
        %v935 = vmul.f32 %v858, 0.088388346
        %v936 = vmul.f32 %v862, 0.088388346
        %v937 = vmul.f32 %v864, 0.088388346
        %v938 = vmul.f32 %v866, 0.088388346
        %v939 = vmul.f32 %v868, 0.088388346
        %v940 = vmul.f32 %v872, 0.088388346
        %v941 = vmul.f32 %v874, 0.088388346
        %v942 = vmul.f32 %v876, 0.088388346
        %v943 = vmul.f32 %v878, 0.088388346
        %s944 = smul.u32 %s20, 256
        %v945 = vlaneseq
        %v946 = vshrl.u32 %v945, 7
        %v947 = vadd.s32 %v946, 8
        %v948 = vadd.s32 %v946, 16
        %v949 = vadd.s32 %v946, 24
        %v950 = vadd.s32 %v946, 32
        %v951 = vadd.s32 %v946, 40
        %v952 = vadd.s32 %v946, 48
        %v953 = vadd.s32 %v946, 56
        %v954 = vadd.s32 %v946, 64
        %v955 = vadd.s32 %v946, 72
        %v956 = vadd.s32 %v946, 80
        %v957 = vadd.s32 %v946, 88
        %v958 = vadd.s32 %v946, 96
        %v959 = vadd.s32 %v946, 104
        %v960 = vadd.s32 %v946, 112
        %v961 = vadd.s32 %v946, 120
        %v962 = vadd.s32 %v946, 128
        %v963 = vadd.s32 %v946, 136
        %v964 = vadd.s32 %v946, 144
        %v965 = vadd.s32 %v946, 152
        %v966 = vadd.s32 %v946, 160
        %v967 = vadd.s32 %v946, 168
        %v968 = vadd.s32 %v946, 176
        %v969 = vadd.s32 %v946, 184
        %v970 = vadd.s32 %v946, 192
        %v971 = vadd.s32 %v946, 200
        %v972 = vadd.s32 %v946, 208
        %v973 = vadd.s32 %v946, 216
        %v974 = vadd.s32 %v946, 224
        %v975 = vadd.s32 %v946, 232
        %v976 = vadd.s32 %v946, 240
        %v977 = vadd.s32 %v946, 248
        %v978 = vstv %s944
        %v979 = vadd.s32 %v978, %v946
        %v980 = vadd.s32 %v978, %v947
        %v981 = vadd.s32 %v978, %v948
        %v982 = vadd.s32 %v978, %v949
        %v983 = vadd.s32 %v978, %v950
        %v984 = vadd.s32 %v978, %v951
        %v985 = vadd.s32 %v978, %v952
        %v986 = vadd.s32 %v978, %v953
        %v987 = vadd.s32 %v978, %v954
        %v988 = vadd.s32 %v978, %v955
        %v989 = vadd.s32 %v978, %v956
        %v990 = vadd.s32 %v978, %v957
        %v991 = vadd.s32 %v978, %v958
        %v992 = vadd.s32 %v978, %v959
        %v993 = vadd.s32 %v978, %v960
        %v994 = vadd.s32 %v978, %v961
        %v995 = vadd.s32 %v978, %v962
        %v996 = vadd.s32 %v978, %v963
        %v997 = vadd.s32 %v978, %v964
        %v998 = vadd.s32 %v978, %v965
        %v999 = vadd.s32 %v978, %v966
        %v1000 = vadd.s32 %v978, %v967
        %v1001 = vadd.s32 %v978, %v968
        %v1002 = vadd.s32 %v978, %v969
        %v1003 = vadd.s32 %v978, %v970
        %v1004 = vadd.s32 %v978, %v971
        %v1005 = vadd.s32 %v978, %v972
        %v1006 = vadd.s32 %v978, %v973
        %v1007 = vadd.s32 %v978, %v974
        %v1008 = vadd.s32 %v978, %v975
        %v1009 = vadd.s32 %v978, %v976
        %v1010 = vadd.s32 %v978, %v977
        %v1011 = vlaneseq
        %v1012 = vand.u32 %v1011, 127
        %v1013 = vadd.s32 %v1012, 128
        %v1014 = vstv %s394
        %v1015 = vadd.s32 %v1014, %v1012
        %v1016 = vadd.s32 %v1014, %v1013
        %vm1017 = vcmp.le.s32.totalorder %v1015, %v979
        %vm1018 = vcmp.le.s32.totalorder %v1016, %v979
        %vm1019 = vcmp.le.s32.totalorder %v1015, %v980
        %vm1020 = vcmp.le.s32.totalorder %v1016, %v980
        %vm1021 = vcmp.le.s32.totalorder %v1015, %v981
        %vm1022 = vcmp.le.s32.totalorder %v1016, %v981
        %vm1023 = vcmp.le.s32.totalorder %v1015, %v982
        %vm1024 = vcmp.le.s32.totalorder %v1016, %v982
        %vm1025 = vcmp.le.s32.totalorder %v1015, %v983
        %vm1026 = vcmp.le.s32.totalorder %v1016, %v983
        %vm1027 = vcmp.le.s32.totalorder %v1015, %v984
        %vm1028 = vcmp.le.s32.totalorder %v1016, %v984
        %vm1029 = vcmp.le.s32.totalorder %v1015, %v985
        %vm1030 = vcmp.le.s32.totalorder %v1016, %v985
        %vm1031 = vcmp.le.s32.totalorder %v1015, %v986
        %vm1032 = vcmp.le.s32.totalorder %v1016, %v986
        %vm1033 = vcmp.le.s32.totalorder %v1015, %v987
        %vm1034 = vcmp.le.s32.totalorder %v1016, %v987
        %vm1035 = vcmp.le.s32.totalorder %v1015, %v988
        %vm1036 = vcmp.le.s32.totalorder %v1016, %v988
        %vm1037 = vcmp.le.s32.totalorder %v1015, %v989
        %vm1038 = vcmp.le.s32.totalorder %v1016, %v989
        %vm1039 = vcmp.le.s32.totalorder %v1015, %v990
        %vm1040 = vcmp.le.s32.totalorder %v1016, %v990
        %vm1041 = vcmp.le.s32.totalorder %v1015, %v991
        %vm1042 = vcmp.le.s32.totalorder %v1016, %v991
        %vm1043 = vcmp.le.s32.totalorder %v1015, %v992
        %vm1044 = vcmp.le.s32.totalorder %v1016, %v992
        %vm1045 = vcmp.le.s32.totalorder %v1015, %v993
        %vm1046 = vcmp.le.s32.totalorder %v1016, %v993
        %vm1047 = vcmp.le.s32.totalorder %v1015, %v994
        %vm1048 = vcmp.le.s32.totalorder %v1016, %v994
        %vm1049 = vcmp.le.s32.totalorder %v1015, %v995
        %vm1050 = vcmp.le.s32.totalorder %v1016, %v995
        %vm1051 = vcmp.le.s32.totalorder %v1015, %v996
        %vm1052 = vcmp.le.s32.totalorder %v1016, %v996
        %vm1053 = vcmp.le.s32.totalorder %v1015, %v997
        %vm1054 = vcmp.le.s32.totalorder %v1016, %v997
        %vm1055 = vcmp.le.s32.totalorder %v1015, %v998
        %vm1056 = vcmp.le.s32.totalorder %v1016, %v998
        %vm1057 = vcmp.le.s32.totalorder %v1015, %v999
        %vm1058 = vcmp.le.s32.totalorder %v1016, %v999
        %vm1059 = vcmp.le.s32.totalorder %v1015, %v1000
        %vm1060 = vcmp.le.s32.totalorder %v1016, %v1000
        %vm1061 = vcmp.le.s32.totalorder %v1015, %v1001
        %vm1062 = vcmp.le.s32.totalorder %v1016, %v1001
        %vm1063 = vcmp.le.s32.totalorder %v1015, %v1002
        %vm1064 = vcmp.le.s32.totalorder %v1016, %v1002
        %vm1065 = vcmp.le.s32.totalorder %v1015, %v1003
        %vm1066 = vcmp.le.s32.totalorder %v1016, %v1003
        %vm1067 = vcmp.le.s32.totalorder %v1015, %v1004
        %vm1068 = vcmp.le.s32.totalorder %v1016, %v1004
        %vm1069 = vcmp.le.s32.totalorder %v1015, %v1005
        %vm1070 = vcmp.le.s32.totalorder %v1016, %v1005
        %vm1071 = vcmp.le.s32.totalorder %v1015, %v1006
        %vm1072 = vcmp.le.s32.totalorder %v1016, %v1006
        %vm1073 = vcmp.le.s32.totalorder %v1015, %v1007
        %vm1074 = vcmp.le.s32.totalorder %v1016, %v1007
        %vm1075 = vcmp.le.s32.totalorder %v1015, %v1008
        %vm1076 = vcmp.le.s32.totalorder %v1016, %v1008
        %vm1077 = vcmp.le.s32.totalorder %v1015, %v1009
        %vm1078 = vcmp.le.s32.totalorder %v1016, %v1009
        %vm1079 = vcmp.le.s32.totalorder %v1015, %v1010
        %vm1080 = vcmp.le.s32.totalorder %v1016, %v1010
        %v1081 = vsel %vm1017, %v880, -1e+30
        %v1082 = vsel %vm1018, %v881, -1e+30
        %v1083 = vsel %vm1019, %v882, -1e+30
        %v1084 = vsel %vm1020, %v883, -1e+30
        %v1085 = vsel %vm1021, %v884, -1e+30
        %v1086 = vsel %vm1022, %v885, -1e+30
        %v1087 = vsel %vm1023, %v886, -1e+30
        %v1088 = vsel %vm1024, %v887, -1e+30
        %v1089 = vsel %vm1025, %v888, -1e+30
        %v1090 = vsel %vm1026, %v889, -1e+30
        %v1091 = vsel %vm1027, %v890, -1e+30
        %v1092 = vsel %vm1028, %v891, -1e+30
        %v1093 = vsel %vm1029, %v892, -1e+30
        %v1094 = vsel %vm1030, %v893, -1e+30
        %v1095 = vsel %vm1031, %v894, -1e+30
        %v1096 = vsel %vm1032, %v895, -1e+30
        %v1097 = vsel %vm1033, %v896, -1e+30
        %v1098 = vsel %vm1034, %v897, -1e+30
        %v1099 = vsel %vm1035, %v898, -1e+30
        %v1100 = vsel %vm1036, %v899, -1e+30
        %v1101 = vsel %vm1037, %v900, -1e+30
        %v1102 = vsel %vm1038, %v901, -1e+30
        %v1103 = vsel %vm1039, %v902, -1e+30
        %v1104 = vsel %vm1040, %v903, -1e+30
        %v1105 = vsel %vm1041, %v904, -1e+30
        %v1106 = vsel %vm1042, %v905, -1e+30
        %v1107 = vsel %vm1043, %v906, -1e+30
        %v1108 = vsel %vm1044, %v907, -1e+30
        %v1109 = vsel %vm1045, %v908, -1e+30
        %v1110 = vsel %vm1046, %v909, -1e+30
        %v1111 = vsel %vm1047, %v910, -1e+30
        %v1112 = vsel %vm1048, %v911, -1e+30
        %v1113 = vsel %vm1049, %v912, -1e+30
        %v1114 = vsel %vm1050, %v913, -1e+30
        %v1115 = vsel %vm1051, %v914, -1e+30
        %v1116 = vsel %vm1052, %v915, -1e+30
        %v1117 = vsel %vm1053, %v916, -1e+30
        %v1118 = vsel %vm1054, %v917, -1e+30
        %v1119 = vsel %vm1055, %v918, -1e+30
        %v1120 = vsel %vm1056, %v919, -1e+30
        %v1121 = vsel %vm1057, %v920, -1e+30
        %v1122 = vsel %vm1058, %v921, -1e+30
        %v1123 = vsel %vm1059, %v922, -1e+30
        %v1124 = vsel %vm1060, %v923, -1e+30
        %v1125 = vsel %vm1061, %v924, -1e+30
        %v1126 = vsel %vm1062, %v925, -1e+30
        %v1127 = vsel %vm1063, %v926, -1e+30
        %v1128 = vsel %vm1064, %v927, -1e+30
        %v1129 = vsel %vm1065, %v928, -1e+30
        %v1130 = vsel %vm1066, %v929, -1e+30
        %v1131 = vsel %vm1067, %v930, -1e+30
        %v1132 = vsel %vm1068, %v931, -1e+30
        %v1133 = vsel %vm1069, %v932, -1e+30
        %v1134 = vsel %vm1070, %v933, -1e+30
        %v1135 = vsel %vm1071, %v934, -1e+30
        %v1136 = vsel %vm1072, %v935, -1e+30
        %v1137 = vsel %vm1073, %v936, -1e+30
        %v1138 = vsel %vm1074, %v937, -1e+30
        %v1139 = vsel %vm1075, %v938, -1e+30
        %v1140 = vsel %vm1076, %v939, -1e+30
        %v1141 = vsel %vm1077, %v940, -1e+30
        %v1142 = vsel %vm1078, %v941, -1e+30
        %v1143 = vsel %vm1079, %v942, -1e+30
        %v1144 = vsel %vm1080, %v943, -1e+30
        %v1145 = vld [vmem:[#allocation2] sm:$0xff]
        %v1146 = vld [vmem:[#allocation2 + $0x8] sm:$0xff]
        %v1147 = vld [vmem:[#allocation2 + $0x10] sm:$0xff]
        %v1148 = vld [vmem:[#allocation2 + $0x18] sm:$0xff]
        %v1149 = vld [vmem:[#allocation2 + $0x20] sm:$0xff]
        %v1150 = vld [vmem:[#allocation2 + $0x28] sm:$0xff]
        %v1151 = vld [vmem:[#allocation2 + $0x30] sm:$0xff]
        %v1152 = vld [vmem:[#allocation2 + $0x38] sm:$0xff]
        %v1153 = vld [vmem:[#allocation2 + $0x40] sm:$0xff]
        %v1154 = vld [vmem:[#allocation2 + $0x48] sm:$0xff]
        %v1155 = vld [vmem:[#allocation2 + $0x50] sm:$0xff]
        %v1156 = vld [vmem:[#allocation2 + $0x58] sm:$0xff]
        %v1157 = vld [vmem:[#allocation2 + $0x60] sm:$0xff]
        %v1158 = vld [vmem:[#allocation2 + $0x68] sm:$0xff]
        %v1159 = vld [vmem:[#allocation2 + $0x70] sm:$0xff]
        %v1160 = vld [vmem:[#allocation2 + $0x78] sm:$0xff]
        %v1161 = vld [vmem:[#allocation2 + $0x80] sm:$0xff]
        %v1162 = vld [vmem:[#allocation2 + $0x88] sm:$0xff]
        %v1163 = vld [vmem:[#allocation2 + $0x90] sm:$0xff]
        %v1164 = vld [vmem:[#allocation2 + $0x98] sm:$0xff]
        %v1165 = vld [vmem:[#allocation2 + $0xa0] sm:$0xff]
        %v1166 = vld [vmem:[#allocation2 + $0xa8] sm:$0xff]
        %v1167 = vld [vmem:[#allocation2 + $0xb0] sm:$0xff]
        %v1168 = vld [vmem:[#allocation2 + $0xb8] sm:$0xff]
        %v1169 = vld [vmem:[#allocation2 + $0xc0] sm:$0xff]
        %v1170 = vld [vmem:[#allocation2 + $0xc8] sm:$0xff]
        %v1171 = vld [vmem:[#allocation2 + $0xd0] sm:$0xff]
        %v1172 = vld [vmem:[#allocation2 + $0xd8] sm:$0xff]
        %v1173 = vld [vmem:[#allocation2 + $0xe0] sm:$0xff]
        %v1174 = vld [vmem:[#allocation2 + $0xe8] sm:$0xff]
        %v1175 = vld [vmem:[#allocation2 + $0xf0] sm:$0xff]
        %v1176 = vld [vmem:[#allocation2 + $0xf8] sm:$0xff]
        %v1177 = vmax.f32 %v1081, %v1082
        %1178 = vmax.xlane.f32.xlu0 %v1177
        %v1179 = vpop.xlane.xlu0 %1178
        %v1180 = vmax.f32 %v1083, %v1084
        %1181 = vmax.xlane.f32.xlu0 %v1180
        %v1182 = vpop.xlane.xlu0 %1181
        %v1183 = vmax.f32 %v1085, %v1086
        %1184 = vmax.xlane.f32.xlu0 %v1183
        %v1185 = vpop.xlane.xlu0 %1184
        %v1186 = vmax.f32 %v1087, %v1088
        %1187 = vmax.xlane.f32.xlu0 %v1186
        %v1188 = vpop.xlane.xlu0 %1187
        %v1189 = vmax.f32 %v1089, %v1090
        %1190 = vmax.xlane.f32.xlu0 %v1189
        %v1191 = vpop.xlane.xlu0 %1190
        %v1192 = vmax.f32 %v1091, %v1092
        %1193 = vmax.xlane.f32.xlu0 %v1192
        %v1194 = vpop.xlane.xlu0 %1193
        %v1195 = vmax.f32 %v1093, %v1094
        %1196 = vmax.xlane.f32.xlu0 %v1195
        %v1197 = vpop.xlane.xlu0 %1196
        %v1198 = vmax.f32 %v1095, %v1096
        %1199 = vmax.xlane.f32.xlu0 %v1198
        %v1200 = vpop.xlane.xlu0 %1199
        %v1201 = vmax.f32 %v1097, %v1098
        %1202 = vmax.xlane.f32.xlu0 %v1201
        %v1203 = vpop.xlane.xlu0 %1202
        %v1204 = vmax.f32 %v1099, %v1100
        %1205 = vmax.xlane.f32.xlu0 %v1204
        %v1206 = vpop.xlane.xlu0 %1205
        %v1207 = vmax.f32 %v1101, %v1102
        %1208 = vmax.xlane.f32.xlu0 %v1207
        %v1209 = vpop.xlane.xlu0 %1208
        %v1210 = vmax.f32 %v1103, %v1104
        %1211 = vmax.xlane.f32.xlu0 %v1210
        %v1212 = vpop.xlane.xlu0 %1211
        %v1213 = vmax.f32 %v1105, %v1106
        %1214 = vmax.xlane.f32.xlu0 %v1213
        %v1215 = vpop.xlane.xlu0 %1214
        %v1216 = vmax.f32 %v1107, %v1108
        %1217 = vmax.xlane.f32.xlu0 %v1216
        %v1218 = vpop.xlane.xlu0 %1217
        %v1219 = vmax.f32 %v1109, %v1110
        %1220 = vmax.xlane.f32.xlu0 %v1219
        %v1221 = vpop.xlane.xlu0 %1220
        %v1222 = vmax.f32 %v1111, %v1112
        %1223 = vmax.xlane.f32.xlu0 %v1222
        %v1224 = vpop.xlane.xlu0 %1223
        %v1225 = vmax.f32 %v1113, %v1114
        %1226 = vmax.xlane.f32.xlu0 %v1225
        %v1227 = vpop.xlane.xlu0 %1226
        %v1228 = vmax.f32 %v1115, %v1116
        %1229 = vmax.xlane.f32.xlu0 %v1228
        %v1230 = vpop.xlane.xlu0 %1229
        %v1231 = vmax.f32 %v1117, %v1118
        %1232 = vmax.xlane.f32.xlu0 %v1231
        %v1233 = vpop.xlane.xlu0 %1232
        %v1234 = vmax.f32 %v1119, %v1120
        %1235 = vmax.xlane.f32.xlu0 %v1234
        %v1236 = vpop.xlane.xlu0 %1235
        %v1237 = vmax.f32 %v1121, %v1122
        %1238 = vmax.xlane.f32.xlu0 %v1237
        %v1239 = vpop.xlane.xlu0 %1238
        %v1240 = vmax.f32 %v1123, %v1124
        %1241 = vmax.xlane.f32.xlu0 %v1240
        %v1242 = vpop.xlane.xlu0 %1241
        %v1243 = vmax.f32 %v1125, %v1126
        %1244 = vmax.xlane.f32.xlu0 %v1243
        %v1245 = vpop.xlane.xlu0 %1244
        %v1246 = vmax.f32 %v1127, %v1128
        %1247 = vmax.xlane.f32.xlu0 %v1246
        %v1248 = vpop.xlane.xlu0 %1247
        %v1249 = vmax.f32 %v1129, %v1130
        %1250 = vmax.xlane.f32.xlu0 %v1249
        %v1251 = vpop.xlane.xlu0 %1250
        %v1252 = vmax.f32 %v1131, %v1132
        %1253 = vmax.xlane.f32.xlu0 %v1252
        %v1254 = vpop.xlane.xlu0 %1253
        %v1255 = vmax.f32 %v1133, %v1134
        %1256 = vmax.xlane.f32.xlu0 %v1255
        %v1257 = vpop.xlane.xlu0 %1256
        %v1258 = vmax.f32 %v1135, %v1136
        %1259 = vmax.xlane.f32.xlu0 %v1258
        %v1260 = vpop.xlane.xlu0 %1259
        %v1261 = vmax.f32 %v1137, %v1138
        %1262 = vmax.xlane.f32.xlu0 %v1261
        %v1263 = vpop.xlane.xlu0 %1262
        %v1264 = vmax.f32 %v1139, %v1140
        %1265 = vmax.xlane.f32.xlu0 %v1264
        %v1266 = vpop.xlane.xlu0 %1265
        %v1267 = vmax.f32 %v1141, %v1142
        %1268 = vmax.xlane.f32.xlu0 %v1267
        %v1269 = vpop.xlane.xlu0 %1268
        %v1270 = vmax.f32 %v1143, %v1144
        %1271 = vmax.xlane.f32.xlu0 %v1270
        %v1272 = vpop.xlane.xlu0 %1271
        %v1273 = vmax.f32 %v1145, %v1179
        %v1274 = vmax.f32 %v1146, %v1182
        %v1275 = vmax.f32 %v1147, %v1185
        %v1276 = vmax.f32 %v1148, %v1188
        %v1277 = vmax.f32 %v1149, %v1191
        %v1278 = vmax.f32 %v1150, %v1194
        %v1279 = vmax.f32 %v1151, %v1197
        %v1280 = vmax.f32 %v1152, %v1200
        %v1281 = vmax.f32 %v1153, %v1203
        %v1282 = vmax.f32 %v1154, %v1206
        %v1283 = vmax.f32 %v1155, %v1209
        %v1284 = vmax.f32 %v1156, %v1212
        %v1285 = vmax.f32 %v1157, %v1215
        %v1286 = vmax.f32 %v1158, %v1218
        %v1287 = vmax.f32 %v1159, %v1221
        %v1288 = vmax.f32 %v1160, %v1224
        %v1289 = vmax.f32 %v1161, %v1227
        %v1290 = vmax.f32 %v1162, %v1230
        %v1291 = vmax.f32 %v1163, %v1233
        %v1292 = vmax.f32 %v1164, %v1236
        %v1293 = vmax.f32 %v1165, %v1239
        %v1294 = vmax.f32 %v1166, %v1242
        %v1295 = vmax.f32 %v1167, %v1245
        %v1296 = vmax.f32 %v1168, %v1248
        %v1297 = vmax.f32 %v1169, %v1251
        %v1298 = vmax.f32 %v1170, %v1254
        %v1299 = vmax.f32 %v1171, %v1257
        %v1300 = vmax.f32 %v1172, %v1260
        %v1301 = vmax.f32 %v1173, %v1263
        %v1302 = vmax.f32 %v1174, %v1266
        %v1303 = vmax.f32 %v1175, %v1269
        %v1304 = vmax.f32 %v1176, %v1272
        %v1305 = vsub.f32 %v1145, %v1273
        %v1306 = vsub.f32 %v1146, %v1274
        %v1307 = vsub.f32 %v1147, %v1275
        %v1308 = vsub.f32 %v1148, %v1276
        %v1309 = vsub.f32 %v1149, %v1277
        %v1310 = vsub.f32 %v1150, %v1278
        %v1311 = vsub.f32 %v1151, %v1279
        %v1312 = vsub.f32 %v1152, %v1280
        %v1313 = vsub.f32 %v1153, %v1281
        %v1314 = vsub.f32 %v1154, %v1282
        %v1315 = vsub.f32 %v1155, %v1283
        %v1316 = vsub.f32 %v1156, %v1284
        %v1317 = vsub.f32 %v1157, %v1285
        %v1318 = vsub.f32 %v1158, %v1286
        %v1319 = vsub.f32 %v1159, %v1287
        %v1320 = vsub.f32 %v1160, %v1288
        %v1321 = vsub.f32 %v1161, %v1289
        %v1322 = vsub.f32 %v1162, %v1290
        %v1323 = vsub.f32 %v1163, %v1291
        %v1324 = vsub.f32 %v1164, %v1292
        %v1325 = vsub.f32 %v1165, %v1293
        %v1326 = vsub.f32 %v1166, %v1294
        %v1327 = vsub.f32 %v1167, %v1295
        %v1328 = vsub.f32 %v1168, %v1296
        %v1329 = vsub.f32 %v1169, %v1297
        %v1330 = vsub.f32 %v1170, %v1298
        %v1331 = vsub.f32 %v1171, %v1299
        %v1332 = vsub.f32 %v1172, %v1300
        %v1333 = vsub.f32 %v1173, %v1301
        %v1334 = vsub.f32 %v1174, %v1302
        %v1335 = vsub.f32 %v1175, %v1303
        %v1336 = vsub.f32 %v1176, %v1304
        %v1337 = vmul.f32 %v1305, 1.442695
        %v1338 = vpow.pop %v1337
        %v1339 = vmul.f32 %v1306, 1.442695
        %v1340 = vpow.pop %v1339
        %v1341 = vmul.f32 %v1307, 1.442695
        %v1342 = vpow.pop %v1341
        %v1343 = vmul.f32 %v1308, 1.442695
        %v1344 = vpow.pop %v1343
        %v1345 = vmul.f32 %v1309, 1.442695
        %v1346 = vpow.pop %v1345
        %v1347 = vmul.f32 %v1310, 1.442695
        %v1348 = vpow.pop %v1347
        %v1349 = vmul.f32 %v1311, 1.442695
        %v1350 = vpow.pop %v1349
        %v1351 = vmul.f32 %v1312, 1.442695
        %v1352 = vpow.pop %v1351
        %v1353 = vmul.f32 %v1313, 1.442695
        %v1354 = vpow.pop %v1353
        %v1355 = vmul.f32 %v1314, 1.442695
        %v1356 = vpow.pop %v1355
        %v1357 = vmul.f32 %v1315, 1.442695
        %v1358 = vpow.pop %v1357
        %v1359 = vmul.f32 %v1316, 1.442695
        %v1360 = vpow.pop %v1359
        %v1361 = vmul.f32 %v1317, 1.442695
        %v1362 = vpow.pop %v1361
        %v1363 = vmul.f32 %v1318, 1.442695
        %v1364 = vpow.pop %v1363
        %v1365 = vmul.f32 %v1319, 1.442695
        %v1366 = vpow.pop %v1365
        %v1367 = vmul.f32 %v1320, 1.442695
        %v1368 = vpow.pop %v1367
        %v1369 = vmul.f32 %v1321, 1.442695
        %v1370 = vpow.pop %v1369
        %v1371 = vmul.f32 %v1322, 1.442695
        %v1372 = vpow.pop %v1371
        %v1373 = vmul.f32 %v1323, 1.442695
        %v1374 = vpow.pop %v1373
        %v1375 = vmul.f32 %v1324, 1.442695
        %v1376 = vpow.pop %v1375
        %v1377 = vmul.f32 %v1325, 1.442695
        %v1378 = vpow.pop %v1377
        %v1379 = vmul.f32 %v1326, 1.442695
        %v1380 = vpow.pop %v1379
        %v1381 = vmul.f32 %v1327, 1.442695
        %v1382 = vpow.pop %v1381
        %v1383 = vmul.f32 %v1328, 1.442695
        %v1384 = vpow.pop %v1383
        %v1385 = vmul.f32 %v1329, 1.442695
        %v1386 = vpow.pop %v1385
        %v1387 = vmul.f32 %v1330, 1.442695
        %v1388 = vpow.pop %v1387
        %v1389 = vmul.f32 %v1331, 1.442695
        %v1390 = vpow.pop %v1389
        %v1391 = vmul.f32 %v1332, 1.442695
        %v1392 = vpow.pop %v1391
        %v1393 = vmul.f32 %v1333, 1.442695
        %v1394 = vpow.pop %v1393
        %v1395 = vmul.f32 %v1334, 1.442695
        %v1396 = vpow.pop %v1395
        %v1397 = vmul.f32 %v1335, 1.442695
        %v1398 = vpow.pop %v1397
        %v1399 = vmul.f32 %v1336, 1.442695
        %v1400 = vpow.pop %v1399
        %1402 = vset.pattern.permute.xlu0 0
        %1403 = vperm.xlu0 %1402, %v1273
        %v1404 = vpop.permute.xlu0 %1403
        %1407 = vset.pattern.permute.xlu0 0
        %1408 = vperm.xlu0 %1407, %v1274
        %v1409 = vpop.permute.xlu0 %1408
        %1412 = vset.pattern.permute.xlu0 0
        %1413 = vperm.xlu0 %1412, %v1275
        %v1414 = vpop.permute.xlu0 %1413
        %1417 = vset.pattern.permute.xlu0 0
        %1418 = vperm.xlu0 %1417, %v1276
        %v1419 = vpop.permute.xlu0 %1418
        %1422 = vset.pattern.permute.xlu0 0
        %1423 = vperm.xlu0 %1422, %v1277
        %v1424 = vpop.permute.xlu0 %1423
        %1427 = vset.pattern.permute.xlu0 0
        %1428 = vperm.xlu0 %1427, %v1278
        %v1429 = vpop.permute.xlu0 %1428
        %1432 = vset.pattern.permute.xlu0 0
        %1433 = vperm.xlu0 %1432, %v1279
        %v1434 = vpop.permute.xlu0 %1433
        %1437 = vset.pattern.permute.xlu0 0
        %1438 = vperm.xlu0 %1437, %v1280
        %v1439 = vpop.permute.xlu0 %1438
        %1442 = vset.pattern.permute.xlu0 0
        %1443 = vperm.xlu0 %1442, %v1281
        %v1444 = vpop.permute.xlu0 %1443
        %1447 = vset.pattern.permute.xlu0 0
        %1448 = vperm.xlu0 %1447, %v1282
        %v1449 = vpop.permute.xlu0 %1448
        %1452 = vset.pattern.permute.xlu0 0
        %1453 = vperm.xlu0 %1452, %v1283
        %v1454 = vpop.permute.xlu0 %1453
        %1457 = vset.pattern.permute.xlu0 0
        %1458 = vperm.xlu0 %1457, %v1284
        %v1459 = vpop.permute.xlu0 %1458
        %1462 = vset.pattern.permute.xlu0 0
        %1463 = vperm.xlu0 %1462, %v1285
        %v1464 = vpop.permute.xlu0 %1463
        %1467 = vset.pattern.permute.xlu0 0
        %1468 = vperm.xlu0 %1467, %v1286
        %v1469 = vpop.permute.xlu0 %1468
        %1472 = vset.pattern.permute.xlu0 0
        %1473 = vperm.xlu0 %1472, %v1287
        %v1474 = vpop.permute.xlu0 %1473
        %1477 = vset.pattern.permute.xlu0 0
        %1478 = vperm.xlu0 %1477, %v1288
        %v1479 = vpop.permute.xlu0 %1478
        %1482 = vset.pattern.permute.xlu0 0
        %1483 = vperm.xlu0 %1482, %v1289
        %v1484 = vpop.permute.xlu0 %1483
        %1487 = vset.pattern.permute.xlu0 0
        %1488 = vperm.xlu0 %1487, %v1290
        %v1489 = vpop.permute.xlu0 %1488
        %1492 = vset.pattern.permute.xlu0 0
        %1493 = vperm.xlu0 %1492, %v1291
        %v1494 = vpop.permute.xlu0 %1493
        %1497 = vset.pattern.permute.xlu0 0
        %1498 = vperm.xlu0 %1497, %v1292
        %v1499 = vpop.permute.xlu0 %1498
        %1502 = vset.pattern.permute.xlu0 0
        %1503 = vperm.xlu0 %1502, %v1293
        %v1504 = vpop.permute.xlu0 %1503
        %1507 = vset.pattern.permute.xlu0 0
        %1508 = vperm.xlu0 %1507, %v1294
        %v1509 = vpop.permute.xlu0 %1508
        %1512 = vset.pattern.permute.xlu0 0
        %1513 = vperm.xlu0 %1512, %v1295
        %v1514 = vpop.permute.xlu0 %1513
        %1517 = vset.pattern.permute.xlu0 0
        %1518 = vperm.xlu0 %1517, %v1296
        %v1519 = vpop.permute.xlu0 %1518
        %1522 = vset.pattern.permute.xlu0 0
        %1523 = vperm.xlu0 %1522, %v1297
        %v1524 = vpop.permute.xlu0 %1523
        %1527 = vset.pattern.permute.xlu0 0
        %1528 = vperm.xlu0 %1527, %v1298
        %v1529 = vpop.permute.xlu0 %1528
        %1532 = vset.pattern.permute.xlu0 0
        %1533 = vperm.xlu0 %1532, %v1299
        %v1534 = vpop.permute.xlu0 %1533
        %1537 = vset.pattern.permute.xlu0 0
        %1538 = vperm.xlu0 %1537, %v1300
        %v1539 = vpop.permute.xlu0 %1538
        %1542 = vset.pattern.permute.xlu0 0
        %1543 = vperm.xlu0 %1542, %v1301
        %v1544 = vpop.permute.xlu0 %1543
        %1547 = vset.pattern.permute.xlu0 0
        %1548 = vperm.xlu0 %1547, %v1302
        %v1549 = vpop.permute.xlu0 %1548
        %1552 = vset.pattern.permute.xlu0 0
        %1553 = vperm.xlu0 %1552, %v1303
        %v1554 = vpop.permute.xlu0 %1553
        %1557 = vset.pattern.permute.xlu0 0
        %1558 = vperm.xlu0 %1557, %v1304
        %v1559 = vpop.permute.xlu0 %1558
        %v1561 = vsub.f32 %v1081, %v1404
        %v1562 = vsub.f32 %v1082, %v1404
        %v1563 = vsub.f32 %v1083, %v1409
        %v1564 = vsub.f32 %v1084, %v1409
        %v1565 = vsub.f32 %v1085, %v1414
        %v1566 = vsub.f32 %v1086, %v1414
        %v1567 = vsub.f32 %v1087, %v1419
        %v1568 = vsub.f32 %v1088, %v1419
        %v1569 = vsub.f32 %v1089, %v1424
        %v1570 = vsub.f32 %v1090, %v1424
        %v1571 = vsub.f32 %v1091, %v1429
        %v1572 = vsub.f32 %v1092, %v1429
        %v1573 = vsub.f32 %v1093, %v1434
        %v1574 = vsub.f32 %v1094, %v1434
        %v1575 = vsub.f32 %v1095, %v1439
        %v1576 = vsub.f32 %v1096, %v1439
        %v1577 = vsub.f32 %v1097, %v1444
        %v1578 = vsub.f32 %v1098, %v1444
        %v1579 = vsub.f32 %v1099, %v1449
        %v1580 = vsub.f32 %v1100, %v1449
        %v1581 = vsub.f32 %v1101, %v1454
        %v1582 = vsub.f32 %v1102, %v1454
        %v1583 = vsub.f32 %v1103, %v1459
        %v1584 = vsub.f32 %v1104, %v1459
        %v1585 = vsub.f32 %v1105, %v1464
        %v1586 = vsub.f32 %v1106, %v1464
        %v1587 = vsub.f32 %v1107, %v1469
        %v1588 = vsub.f32 %v1108, %v1469
        %v1589 = vsub.f32 %v1109, %v1474
        %v1590 = vsub.f32 %v1110, %v1474
        %v1591 = vsub.f32 %v1111, %v1479
        %v1592 = vsub.f32 %v1112, %v1479
        %v1593 = vsub.f32 %v1113, %v1484
        %v1594 = vsub.f32 %v1114, %v1484
        %v1595 = vsub.f32 %v1115, %v1489
        %v1596 = vsub.f32 %v1116, %v1489
        %v1597 = vsub.f32 %v1117, %v1494
        %v1598 = vsub.f32 %v1118, %v1494
        %v1599 = vsub.f32 %v1119, %v1499
        %v1600 = vsub.f32 %v1120, %v1499
        %v1601 = vsub.f32 %v1121, %v1504
        %v1602 = vsub.f32 %v1122, %v1504
        %v1603 = vsub.f32 %v1123, %v1509
        %v1604 = vsub.f32 %v1124, %v1509
        %v1605 = vsub.f32 %v1125, %v1514
        %v1606 = vsub.f32 %v1126, %v1514
        %v1607 = vsub.f32 %v1127, %v1519
        %v1608 = vsub.f32 %v1128, %v1519
        %v1609 = vsub.f32 %v1129, %v1524
        %v1610 = vsub.f32 %v1130, %v1524
        %v1611 = vsub.f32 %v1131, %v1529
        %v1612 = vsub.f32 %v1132, %v1529
        %v1613 = vsub.f32 %v1133, %v1534
        %v1614 = vsub.f32 %v1134, %v1534
        %v1615 = vsub.f32 %v1135, %v1539
        %v1616 = vsub.f32 %v1136, %v1539
        %v1617 = vsub.f32 %v1137, %v1544
        %v1618 = vsub.f32 %v1138, %v1544
        %v1619 = vsub.f32 %v1139, %v1549
        %v1620 = vsub.f32 %v1140, %v1549
        %v1621 = vsub.f32 %v1141, %v1554
        %v1622 = vsub.f32 %v1142, %v1554
        %v1623 = vsub.f32 %v1143, %v1559
        %v1624 = vsub.f32 %v1144, %v1559
        %v1625 = vmul.f32 %v1561, 1.442695
        %v1626 = vpow.pop %v1625
        %v1627 = vmul.f32 %v1562, 1.442695
        %v1628 = vpow.pop %v1627
        %v1629 = vmul.f32 %v1563, 1.442695
        %v1630 = vpow.pop %v1629
        %v1631 = vmul.f32 %v1564, 1.442695
        %v1632 = vpow.pop %v1631
        %v1633 = vmul.f32 %v1565, 1.442695
        %v1634 = vpow.pop %v1633
        %v1635 = vmul.f32 %v1566, 1.442695
        %v1636 = vpow.pop %v1635
        %v1637 = vmul.f32 %v1567, 1.442695
        %v1638 = vpow.pop %v1637
        %v1639 = vmul.f32 %v1568, 1.442695
        %v1640 = vpow.pop %v1639
        %v1641 = vmul.f32 %v1569, 1.442695
        %v1642 = vpow.pop %v1641
        %v1643 = vmul.f32 %v1570, 1.442695
        %v1644 = vpow.pop %v1643
        %v1645 = vmul.f32 %v1571, 1.442695
        %v1646 = vpow.pop %v1645
        %v1647 = vmul.f32 %v1572, 1.442695
        %v1648 = vpow.pop %v1647
        %v1649 = vmul.f32 %v1573, 1.442695
        %v1650 = vpow.pop %v1649
        %v1651 = vmul.f32 %v1574, 1.442695
        %v1652 = vpow.pop %v1651
        %v1653 = vmul.f32 %v1575, 1.442695
        %v1654 = vpow.pop %v1653
        %v1655 = vmul.f32 %v1576, 1.442695
        %v1656 = vpow.pop %v1655
        %v1657 = vmul.f32 %v1577, 1.442695
        %v1658 = vpow.pop %v1657
        %v1659 = vmul.f32 %v1578, 1.442695
        %v1660 = vpow.pop %v1659
        %v1661 = vmul.f32 %v1579, 1.442695
        %v1662 = vpow.pop %v1661
        %v1663 = vmul.f32 %v1580, 1.442695
        %v1664 = vpow.pop %v1663
        %v1665 = vmul.f32 %v1581, 1.442695
        %v1666 = vpow.pop %v1665
        %v1667 = vmul.f32 %v1582, 1.442695
        %v1668 = vpow.pop %v1667
        %v1669 = vmul.f32 %v1583, 1.442695
        %v1670 = vpow.pop %v1669
        %v1671 = vmul.f32 %v1584, 1.442695
        %v1672 = vpow.pop %v1671
        %v1673 = vmul.f32 %v1585, 1.442695
        %v1674 = vpow.pop %v1673
        %v1675 = vmul.f32 %v1586, 1.442695
        %v1676 = vpow.pop %v1675
        %v1677 = vmul.f32 %v1587, 1.442695
        %v1678 = vpow.pop %v1677
        %v1679 = vmul.f32 %v1588, 1.442695
        %v1680 = vpow.pop %v1679
        %v1681 = vmul.f32 %v1589, 1.442695
        %v1682 = vpow.pop %v1681
        %v1683 = vmul.f32 %v1590, 1.442695
        %v1684 = vpow.pop %v1683
        %v1685 = vmul.f32 %v1591, 1.442695
        %v1686 = vpow.pop %v1685
        %v1687 = vmul.f32 %v1592, 1.442695
        %v1688 = vpow.pop %v1687
        %v1689 = vmul.f32 %v1593, 1.442695
        %v1690 = vpow.pop %v1689
        %v1691 = vmul.f32 %v1594, 1.442695
        %v1692 = vpow.pop %v1691
        %v1693 = vmul.f32 %v1595, 1.442695
        %v1694 = vpow.pop %v1693
        %v1695 = vmul.f32 %v1596, 1.442695
        %v1696 = vpow.pop %v1695
        %v1697 = vmul.f32 %v1597, 1.442695
        %v1698 = vpow.pop %v1697
        %v1699 = vmul.f32 %v1598, 1.442695
        %v1700 = vpow.pop %v1699
        %v1701 = vmul.f32 %v1599, 1.442695
        %v1702 = vpow.pop %v1701
        %v1703 = vmul.f32 %v1600, 1.442695
        %v1704 = vpow.pop %v1703
        %v1705 = vmul.f32 %v1601, 1.442695
        %v1706 = vpow.pop %v1705
        %v1707 = vmul.f32 %v1602, 1.442695
        %v1708 = vpow.pop %v1707
        %v1709 = vmul.f32 %v1603, 1.442695
        %v1710 = vpow.pop %v1709
        %v1711 = vmul.f32 %v1604, 1.442695
        %v1712 = vpow.pop %v1711
        %v1713 = vmul.f32 %v1605, 1.442695
        %v1714 = vpow.pop %v1713
        %v1715 = vmul.f32 %v1606, 1.442695
        %v1716 = vpow.pop %v1715
        %v1717 = vmul.f32 %v1607, 1.442695
        %v1718 = vpow.pop %v1717
        %v1719 = vmul.f32 %v1608, 1.442695
        %v1720 = vpow.pop %v1719
        %v1721 = vmul.f32 %v1609, 1.442695
        %v1722 = vpow.pop %v1721
        %v1723 = vmul.f32 %v1610, 1.442695
        %v1724 = vpow.pop %v1723
        %v1725 = vmul.f32 %v1611, 1.442695
        %v1726 = vpow.pop %v1725
        %v1727 = vmul.f32 %v1612, 1.442695
        %v1728 = vpow.pop %v1727
        %v1729 = vmul.f32 %v1613, 1.442695
        %v1730 = vpow.pop %v1729
        %v1731 = vmul.f32 %v1614, 1.442695
        %v1732 = vpow.pop %v1731
        %v1733 = vmul.f32 %v1615, 1.442695
        %v1734 = vpow.pop %v1733
        %v1735 = vmul.f32 %v1616, 1.442695
        %v1736 = vpow.pop %v1735
        %v1737 = vmul.f32 %v1617, 1.442695
        %v1738 = vpow.pop %v1737
        %v1739 = vmul.f32 %v1618, 1.442695
        %v1740 = vpow.pop %v1739
        %v1741 = vmul.f32 %v1619, 1.442695
        %v1742 = vpow.pop %v1741
        %v1743 = vmul.f32 %v1620, 1.442695
        %v1744 = vpow.pop %v1743
        %v1745 = vmul.f32 %v1621, 1.442695
        %v1746 = vpow.pop %v1745
        %v1747 = vmul.f32 %v1622, 1.442695
        %v1748 = vpow.pop %v1747
        %v1749 = vmul.f32 %v1623, 1.442695
        %v1750 = vpow.pop %v1749
        %v1751 = vmul.f32 %v1624, 1.442695
        %v1752 = vpow.pop %v1751
        %v1753 = vld [vmem:[#allocation3] sm:$0xff]
        %v1754 = vld [vmem:[#allocation3 + $0x8] sm:$0xff]
        %v1755 = vld [vmem:[#allocation3 + $0x10] sm:$0xff]
        %v1756 = vld [vmem:[#allocation3 + $0x18] sm:$0xff]
        %v1757 = vld [vmem:[#allocation3 + $0x20] sm:$0xff]
        %v1758 = vld [vmem:[#allocation3 + $0x28] sm:$0xff]
        %v1759 = vld [vmem:[#allocation3 + $0x30] sm:$0xff]
        %v1760 = vld [vmem:[#allocation3 + $0x38] sm:$0xff]
        %v1761 = vld [vmem:[#allocation3 + $0x40] sm:$0xff]
        %v1762 = vld [vmem:[#allocation3 + $0x48] sm:$0xff]
        %v1763 = vld [vmem:[#allocation3 + $0x50] sm:$0xff]
        %v1764 = vld [vmem:[#allocation3 + $0x58] sm:$0xff]
        %v1765 = vld [vmem:[#allocation3 + $0x60] sm:$0xff]
        %v1766 = vld [vmem:[#allocation3 + $0x68] sm:$0xff]
        %v1767 = vld [vmem:[#allocation3 + $0x70] sm:$0xff]
        %v1768 = vld [vmem:[#allocation3 + $0x78] sm:$0xff]
        %v1769 = vld [vmem:[#allocation3 + $0x80] sm:$0xff]
        %v1770 = vld [vmem:[#allocation3 + $0x88] sm:$0xff]
        %v1771 = vld [vmem:[#allocation3 + $0x90] sm:$0xff]
        %v1772 = vld [vmem:[#allocation3 + $0x98] sm:$0xff]
        %v1773 = vld [vmem:[#allocation3 + $0xa0] sm:$0xff]
        %v1774 = vld [vmem:[#allocation3 + $0xa8] sm:$0xff]
        %v1775 = vld [vmem:[#allocation3 + $0xb0] sm:$0xff]
        %v1776 = vld [vmem:[#allocation3 + $0xb8] sm:$0xff]
        %v1777 = vld [vmem:[#allocation3 + $0xc0] sm:$0xff]
        %v1778 = vld [vmem:[#allocation3 + $0xc8] sm:$0xff]
        %v1779 = vld [vmem:[#allocation3 + $0xd0] sm:$0xff]
        %v1780 = vld [vmem:[#allocation3 + $0xd8] sm:$0xff]
        %v1781 = vld [vmem:[#allocation3 + $0xe0] sm:$0xff]
        %v1782 = vld [vmem:[#allocation3 + $0xe8] sm:$0xff]
        %v1783 = vld [vmem:[#allocation3 + $0xf0] sm:$0xff]
        %v1784 = vld [vmem:[#allocation3 + $0xf8] sm:$0xff]
        %v1785 = vmul.f32 %v1338, %v1753
        %v1786 = vmul.f32 %v1340, %v1754
        %v1787 = vmul.f32 %v1342, %v1755
        %v1788 = vmul.f32 %v1344, %v1756
        %v1789 = vmul.f32 %v1346, %v1757
        %v1790 = vmul.f32 %v1348, %v1758
        %v1791 = vmul.f32 %v1350, %v1759
        %v1792 = vmul.f32 %v1352, %v1760
        %v1793 = vmul.f32 %v1354, %v1761
        %v1794 = vmul.f32 %v1356, %v1762
        %v1795 = vmul.f32 %v1358, %v1763
        %v1796 = vmul.f32 %v1360, %v1764
        %v1797 = vmul.f32 %v1362, %v1765
        %v1798 = vmul.f32 %v1364, %v1766
        %v1799 = vmul.f32 %v1366, %v1767
        %v1800 = vmul.f32 %v1368, %v1768
        %v1801 = vmul.f32 %v1370, %v1769
        %v1802 = vmul.f32 %v1372, %v1770
        %v1803 = vmul.f32 %v1374, %v1771
        %v1804 = vmul.f32 %v1376, %v1772
        %v1805 = vmul.f32 %v1378, %v1773
        %v1806 = vmul.f32 %v1380, %v1774
        %v1807 = vmul.f32 %v1382, %v1775
        %v1808 = vmul.f32 %v1384, %v1776
        %v1809 = vmul.f32 %v1386, %v1777
        %v1810 = vmul.f32 %v1388, %v1778
        %v1811 = vmul.f32 %v1390, %v1779
        %v1812 = vmul.f32 %v1392, %v1780
        %v1813 = vmul.f32 %v1394, %v1781
        %v1814 = vmul.f32 %v1396, %v1782
        %v1815 = vmul.f32 %v1398, %v1783
        %v1816 = vmul.f32 %v1400, %v1784
        %v1817 = vadd.f32 %v1626, %v1628
        %1818 = vadd.xlane.f32.xlu0 %v1817
        %v1819 = vpop.xlane.xlu0 %1818
        %v1820 = vadd.f32 %v1630, %v1632
        %1821 = vadd.xlane.f32.xlu0 %v1820
        %v1822 = vpop.xlane.xlu0 %1821
        %v1823 = vadd.f32 %v1634, %v1636
        %1824 = vadd.xlane.f32.xlu0 %v1823
        %v1825 = vpop.xlane.xlu0 %1824
        %v1826 = vadd.f32 %v1638, %v1640
        %1827 = vadd.xlane.f32.xlu0 %v1826
        %v1828 = vpop.xlane.xlu0 %1827
        %v1829 = vadd.f32 %v1642, %v1644
        %1830 = vadd.xlane.f32.xlu0 %v1829
        %v1831 = vpop.xlane.xlu0 %1830
        %v1832 = vadd.f32 %v1646, %v1648
        %1833 = vadd.xlane.f32.xlu0 %v1832
        %v1834 = vpop.xlane.xlu0 %1833
        %v1835 = vadd.f32 %v1650, %v1652
        %1836 = vadd.xlane.f32.xlu0 %v1835
        %v1837 = vpop.xlane.xlu0 %1836
        %v1838 = vadd.f32 %v1654, %v1656
        %1839 = vadd.xlane.f32.xlu0 %v1838
        %v1840 = vpop.xlane.xlu0 %1839
        %v1841 = vadd.f32 %v1658, %v1660
        %1842 = vadd.xlane.f32.xlu0 %v1841
        %v1843 = vpop.xlane.xlu0 %1842
        %v1844 = vadd.f32 %v1662, %v1664
        %1845 = vadd.xlane.f32.xlu0 %v1844
        %v1846 = vpop.xlane.xlu0 %1845
        %v1847 = vadd.f32 %v1666, %v1668
        %1848 = vadd.xlane.f32.xlu0 %v1847
        %v1849 = vpop.xlane.xlu0 %1848
        %v1850 = vadd.f32 %v1670, %v1672
        %1851 = vadd.xlane.f32.xlu0 %v1850
        %v1852 = vpop.xlane.xlu0 %1851
        %v1853 = vadd.f32 %v1674, %v1676
        %1854 = vadd.xlane.f32.xlu0 %v1853
        %v1855 = vpop.xlane.xlu0 %1854
        %v1856 = vadd.f32 %v1678, %v1680
        %1857 = vadd.xlane.f32.xlu0 %v1856
        %v1858 = vpop.xlane.xlu0 %1857
        %v1859 = vadd.f32 %v1682, %v1684
        %1860 = vadd.xlane.f32.xlu0 %v1859
        %v1861 = vpop.xlane.xlu0 %1860
        %v1862 = vadd.f32 %v1686, %v1688
        %1863 = vadd.xlane.f32.xlu0 %v1862
        %v1864 = vpop.xlane.xlu0 %1863
        %v1865 = vadd.f32 %v1690, %v1692
        %1866 = vadd.xlane.f32.xlu0 %v1865
        %v1867 = vpop.xlane.xlu0 %1866
        %v1868 = vadd.f32 %v1694, %v1696
        %1869 = vadd.xlane.f32.xlu0 %v1868
        %v1870 = vpop.xlane.xlu0 %1869
        %v1871 = vadd.f32 %v1698, %v1700
        %1872 = vadd.xlane.f32.xlu0 %v1871
        %v1873 = vpop.xlane.xlu0 %1872
        %v1874 = vadd.f32 %v1702, %v1704
        %1875 = vadd.xlane.f32.xlu0 %v1874
        %v1876 = vpop.xlane.xlu0 %1875
        %v1877 = vadd.f32 %v1706, %v1708
        %1878 = vadd.xlane.f32.xlu0 %v1877
        %v1879 = vpop.xlane.xlu0 %1878
        %v1880 = vadd.f32 %v1710, %v1712
        %1881 = vadd.xlane.f32.xlu0 %v1880
        %v1882 = vpop.xlane.xlu0 %1881
        %v1883 = vadd.f32 %v1714, %v1716
        %1884 = vadd.xlane.f32.xlu0 %v1883
        %v1885 = vpop.xlane.xlu0 %1884
        %v1886 = vadd.f32 %v1718, %v1720
        %1887 = vadd.xlane.f32.xlu0 %v1886
        %v1888 = vpop.xlane.xlu0 %1887
        %v1889 = vadd.f32 %v1722, %v1724
        %1890 = vadd.xlane.f32.xlu0 %v1889
        %v1891 = vpop.xlane.xlu0 %1890
        %v1892 = vadd.f32 %v1726, %v1728
        %1893 = vadd.xlane.f32.xlu0 %v1892
        %v1894 = vpop.xlane.xlu0 %1893
        %v1895 = vadd.f32 %v1730, %v1732
        %1896 = vadd.xlane.f32.xlu0 %v1895
        %v1897 = vpop.xlane.xlu0 %1896
        %v1898 = vadd.f32 %v1734, %v1736
        %1899 = vadd.xlane.f32.xlu0 %v1898
        %v1900 = vpop.xlane.xlu0 %1899
        %v1901 = vadd.f32 %v1738, %v1740
        %1902 = vadd.xlane.f32.xlu0 %v1901
        %v1903 = vpop.xlane.xlu0 %1902
        %v1904 = vadd.f32 %v1742, %v1744
        %1905 = vadd.xlane.f32.xlu0 %v1904
        %v1906 = vpop.xlane.xlu0 %1905
        %v1907 = vadd.f32 %v1746, %v1748
        %1908 = vadd.xlane.f32.xlu0 %v1907
        %v1909 = vpop.xlane.xlu0 %1908
        %v1910 = vadd.f32 %v1750, %v1752
        %1911 = vadd.xlane.f32.xlu0 %v1910
        %v1912 = vpop.xlane.xlu0 %1911
        %v1913 = vadd.f32 %v1785, %v1819
        %v1914 = vadd.f32 %v1786, %v1822
        %v1915 = vadd.f32 %v1787, %v1825
        %v1916 = vadd.f32 %v1788, %v1828
        %v1917 = vadd.f32 %v1789, %v1831
        %v1918 = vadd.f32 %v1790, %v1834
        %v1919 = vadd.f32 %v1791, %v1837
        %v1920 = vadd.f32 %v1792, %v1840
        %v1921 = vadd.f32 %v1793, %v1843
        %v1922 = vadd.f32 %v1794, %v1846
        %v1923 = vadd.f32 %v1795, %v1849
        %v1924 = vadd.f32 %v1796, %v1852
        %v1925 = vadd.f32 %v1797, %v1855
        %v1926 = vadd.f32 %v1798, %v1858
        %v1927 = vadd.f32 %v1799, %v1861
        %v1928 = vadd.f32 %v1800, %v1864
        %v1929 = vadd.f32 %v1801, %v1867
        %v1930 = vadd.f32 %v1802, %v1870
        %v1931 = vadd.f32 %v1803, %v1873
        %v1932 = vadd.f32 %v1804, %v1876
        %v1933 = vadd.f32 %v1805, %v1879
        %v1934 = vadd.f32 %v1806, %v1882
        %v1935 = vadd.f32 %v1807, %v1885
        %v1936 = vadd.f32 %v1808, %v1888
        %v1937 = vadd.f32 %v1809, %v1891
        %v1938 = vadd.f32 %v1810, %v1894
        %v1939 = vadd.f32 %v1811, %v1897
        %v1940 = vadd.f32 %v1812, %v1900
        %v1941 = vadd.f32 %v1813, %v1903
        %v1942 = vadd.f32 %v1814, %v1906
        %v1943 = vadd.f32 %v1815, %v1909
        %v1944 = vadd.f32 %v1816, %v1912
        %vm1945 = vcmask 7168
        %1946 = vst.msk [vmem:[#allocation3] sm:$0xff] %vm1945, %v1913
        %1947 = vst.msk [vmem:[#allocation3 + $0x8] sm:$0xff] %vm1945, %v1914
        %1948 = vst.msk [vmem:[#allocation3 + $0x10] sm:$0xff] %vm1945, %v1915
        %1949 = vst.msk [vmem:[#allocation3 + $0x18] sm:$0xff] %vm1945, %v1916
        %1950 = vst.msk [vmem:[#allocation3 + $0x20] sm:$0xff] %vm1945, %v1917
        %1951 = vst.msk [vmem:[#allocation3 + $0x28] sm:$0xff] %vm1945, %v1918
        %1952 = vst.msk [vmem:[#allocation3 + $0x30] sm:$0xff] %vm1945, %v1919
        %1953 = vst.msk [vmem:[#allocation3 + $0x38] sm:$0xff] %vm1945, %v1920
        %1954 = vst.msk [vmem:[#allocation3 + $0x40] sm:$0xff] %vm1945, %v1921
        %1955 = vst.msk [vmem:[#allocation3 + $0x48] sm:$0xff] %vm1945, %v1922
        %1956 = vst.msk [vmem:[#allocation3 + $0x50] sm:$0xff] %vm1945, %v1923
        %1957 = vst.msk [vmem:[#allocation3 + $0x58] sm:$0xff] %vm1945, %v1924
        %1958 = vst.msk [vmem:[#allocation3 + $0x60] sm:$0xff] %vm1945, %v1925
        %1959 = vst.msk [vmem:[#allocation3 + $0x68] sm:$0xff] %vm1945, %v1926
        %1960 = vst.msk [vmem:[#allocation3 + $0x70] sm:$0xff] %vm1945, %v1927
        %1961 = vst.msk [vmem:[#allocation3 + $0x78] sm:$0xff] %vm1945, %v1928
        %1962 = vst.msk [vmem:[#allocation3 + $0x80] sm:$0xff] %vm1945, %v1929
        %1963 = vst.msk [vmem:[#allocation3 + $0x88] sm:$0xff] %vm1945, %v1930
        %1964 = vst.msk [vmem:[#allocation3 + $0x90] sm:$0xff] %vm1945, %v1931
        %1965 = vst.msk [vmem:[#allocation3 + $0x98] sm:$0xff] %vm1945, %v1932
        %1966 = vst.msk [vmem:[#allocation3 + $0xa0] sm:$0xff] %vm1945, %v1933
        %1967 = vst.msk [vmem:[#allocation3 + $0xa8] sm:$0xff] %vm1945, %v1934
        %1968 = vst.msk [vmem:[#allocation3 + $0xb0] sm:$0xff] %vm1945, %v1935
        %1969 = vst.msk [vmem:[#allocation3 + $0xb8] sm:$0xff] %vm1945, %v1936
        %1970 = vst.msk [vmem:[#allocation3 + $0xc0] sm:$0xff] %vm1945, %v1937
        %1971 = vst.msk [vmem:[#allocation3 + $0xc8] sm:$0xff] %vm1945, %v1938
        %1972 = vst.msk [vmem:[#allocation3 + $0xd0] sm:$0xff] %vm1945, %v1939
        %1973 = vst.msk [vmem:[#allocation3 + $0xd8] sm:$0xff] %vm1945, %v1940
        %1974 = vst.msk [vmem:[#allocation3 + $0xe0] sm:$0xff] %vm1945, %v1941
        %1975 = vst.msk [vmem:[#allocation3 + $0xe8] sm:$0xff] %vm1945, %v1942
        %1976 = vst.msk [vmem:[#allocation3 + $0xf0] sm:$0xff] %vm1945, %v1943
        %1977 = vst.msk [vmem:[#allocation3 + $0xf8] sm:$0xff] %vm1945, %v1944
        %v1978 = vld [vmem:[#allocation4] sm:$0xff]
        %v1979 = vld [vmem:[#allocation4 + $0x8] sm:$0xff]
        %v1980 = vld [vmem:[#allocation4 + $0x10] sm:$0xff]
        %v1981 = vld [vmem:[#allocation4 + $0x18] sm:$0xff]
        %v1982 = vld [vmem:[#allocation4 + $0x20] sm:$0xff]
        %v1983 = vld [vmem:[#allocation4 + $0x28] sm:$0xff]
        %v1984 = vld [vmem:[#allocation4 + $0x30] sm:$0xff]
        %v1985 = vld [vmem:[#allocation4 + $0x38] sm:$0xff]
        %v1986 = vld [vmem:[#allocation4 + $0x40] sm:$0xff]
        %v1987 = vld [vmem:[#allocation4 + $0x48] sm:$0xff]
        %v1988 = vld [vmem:[#allocation4 + $0x50] sm:$0xff]
        %v1989 = vld [vmem:[#allocation4 + $0x58] sm:$0xff]
        %v1990 = vld [vmem:[#allocation4 + $0x60] sm:$0xff]
        %v1991 = vld [vmem:[#allocation4 + $0x68] sm:$0xff]
        %v1992 = vld [vmem:[#allocation4 + $0x70] sm:$0xff]
        %v1993 = vld [vmem:[#allocation4 + $0x78] sm:$0xff]
        %v1994 = vld [vmem:[#allocation4 + $0x80] sm:$0xff]
        %v1995 = vld [vmem:[#allocation4 + $0x88] sm:$0xff]
        %v1996 = vld [vmem:[#allocation4 + $0x90] sm:$0xff]
        %v1997 = vld [vmem:[#allocation4 + $0x98] sm:$0xff]
        %v1998 = vld [vmem:[#allocation4 + $0xa0] sm:$0xff]
        %v1999 = vld [vmem:[#allocation4 + $0xa8] sm:$0xff]
        %v2000 = vld [vmem:[#allocation4 + $0xb0] sm:$0xff]
        %v2001 = vld [vmem:[#allocation4 + $0xb8] sm:$0xff]
        %v2002 = vld [vmem:[#allocation4 + $0xc0] sm:$0xff]
        %v2003 = vld [vmem:[#allocation4 + $0xc8] sm:$0xff]
        %v2004 = vld [vmem:[#allocation4 + $0xd0] sm:$0xff]
        %v2005 = vld [vmem:[#allocation4 + $0xd8] sm:$0xff]
        %v2006 = vld [vmem:[#allocation4 + $0xe0] sm:$0xff]
        %v2007 = vld [vmem:[#allocation4 + $0xe8] sm:$0xff]
        %v2008 = vld [vmem:[#allocation4 + $0xf0] sm:$0xff]
        %v2009 = vld [vmem:[#allocation4 + $0xf8] sm:$0xff]
        %2011 = vset.pattern.permute.xlu0 0
        %2012 = vperm.xlu0 %2011, %v1338
        %v2013 = vpop.permute.xlu0 %2012
        %2016 = vset.pattern.permute.xlu0 0
        %2017 = vperm.xlu0 %2016, %v1340
        %v2018 = vpop.permute.xlu0 %2017
        %2021 = vset.pattern.permute.xlu0 0
        %2022 = vperm.xlu0 %2021, %v1342
        %v2023 = vpop.permute.xlu0 %2022
        %2026 = vset.pattern.permute.xlu0 0
        %2027 = vperm.xlu0 %2026, %v1344
        %v2028 = vpop.permute.xlu0 %2027
        %2031 = vset.pattern.permute.xlu0 0
        %2032 = vperm.xlu0 %2031, %v1346
        %v2033 = vpop.permute.xlu0 %2032
        %2036 = vset.pattern.permute.xlu0 0
        %2037 = vperm.xlu0 %2036, %v1348
        %v2038 = vpop.permute.xlu0 %2037
        %2041 = vset.pattern.permute.xlu0 0
        %2042 = vperm.xlu0 %2041, %v1350
        %v2043 = vpop.permute.xlu0 %2042
        %2046 = vset.pattern.permute.xlu0 0
        %2047 = vperm.xlu0 %2046, %v1352
        %v2048 = vpop.permute.xlu0 %2047
        %2051 = vset.pattern.permute.xlu0 0
        %2052 = vperm.xlu0 %2051, %v1354
        %v2053 = vpop.permute.xlu0 %2052
        %2056 = vset.pattern.permute.xlu0 0
        %2057 = vperm.xlu0 %2056, %v1356
        %v2058 = vpop.permute.xlu0 %2057
        %2061 = vset.pattern.permute.xlu0 0
        %2062 = vperm.xlu0 %2061, %v1358
        %v2063 = vpop.permute.xlu0 %2062
        %2066 = vset.pattern.permute.xlu0 0
        %2067 = vperm.xlu0 %2066, %v1360
        %v2068 = vpop.permute.xlu0 %2067
        %2071 = vset.pattern.permute.xlu0 0
        %2072 = vperm.xlu0 %2071, %v1362
        %v2073 = vpop.permute.xlu0 %2072
        %2076 = vset.pattern.permute.xlu0 0
        %2077 = vperm.xlu0 %2076, %v1364
        %v2078 = vpop.permute.xlu0 %2077
        %2081 = vset.pattern.permute.xlu0 0
        %2082 = vperm.xlu0 %2081, %v1366
        %v2083 = vpop.permute.xlu0 %2082
        %2086 = vset.pattern.permute.xlu0 0
        %2087 = vperm.xlu0 %2086, %v1368
        %v2088 = vpop.permute.xlu0 %2087
        %2091 = vset.pattern.permute.xlu0 0
        %2092 = vperm.xlu0 %2091, %v1370
        %v2093 = vpop.permute.xlu0 %2092
        %2096 = vset.pattern.permute.xlu0 0
        %2097 = vperm.xlu0 %2096, %v1372
        %v2098 = vpop.permute.xlu0 %2097
        %2101 = vset.pattern.permute.xlu0 0
        %2102 = vperm.xlu0 %2101, %v1374
        %v2103 = vpop.permute.xlu0 %2102
        %2106 = vset.pattern.permute.xlu0 0
        %2107 = vperm.xlu0 %2106, %v1376
        %v2108 = vpop.permute.xlu0 %2107
        %2111 = vset.pattern.permute.xlu0 0
        %2112 = vperm.xlu0 %2111, %v1378
        %v2113 = vpop.permute.xlu0 %2112
        %2116 = vset.pattern.permute.xlu0 0
        %2117 = vperm.xlu0 %2116, %v1380
        %v2118 = vpop.permute.xlu0 %2117
        %2121 = vset.pattern.permute.xlu0 0
        %2122 = vperm.xlu0 %2121, %v1382
        %v2123 = vpop.permute.xlu0 %2122
        %2126 = vset.pattern.permute.xlu0 0
        %2127 = vperm.xlu0 %2126, %v1384
        %v2128 = vpop.permute.xlu0 %2127
        %2131 = vset.pattern.permute.xlu0 0
        %2132 = vperm.xlu0 %2131, %v1386
        %v2133 = vpop.permute.xlu0 %2132
        %2136 = vset.pattern.permute.xlu0 0
        %2137 = vperm.xlu0 %2136, %v1388
        %v2138 = vpop.permute.xlu0 %2137
        %2141 = vset.pattern.permute.xlu0 0
        %2142 = vperm.xlu0 %2141, %v1390
        %v2143 = vpop.permute.xlu0 %2142
        %2146 = vset.pattern.permute.xlu0 0
        %2147 = vperm.xlu0 %2146, %v1392
        %v2148 = vpop.permute.xlu0 %2147
        %2151 = vset.pattern.permute.xlu0 0
        %2152 = vperm.xlu0 %2151, %v1394
        %v2153 = vpop.permute.xlu0 %2152
        %2156 = vset.pattern.permute.xlu0 0
        %2157 = vperm.xlu0 %2156, %v1396
        %v2158 = vpop.permute.xlu0 %2157
        %2161 = vset.pattern.permute.xlu0 0
        %2162 = vperm.xlu0 %2161, %v1398
        %v2163 = vpop.permute.xlu0 %2162
        %2166 = vset.pattern.permute.xlu0 0
        %2167 = vperm.xlu0 %2166, %v1400
        %v2168 = vpop.permute.xlu0 %2167
        %v2170 = vmul.f32 %v2013, %v1978
        %v2171 = vmul.f32 %v2018, %v1979
        %v2172 = vmul.f32 %v2023, %v1980
        %v2173 = vmul.f32 %v2028, %v1981
        %v2174 = vmul.f32 %v2033, %v1982
        %v2175 = vmul.f32 %v2038, %v1983
        %v2176 = vmul.f32 %v2043, %v1984
        %v2177 = vmul.f32 %v2048, %v1985
        %v2178 = vmul.f32 %v2053, %v1986
        %v2179 = vmul.f32 %v2058, %v1987
        %v2180 = vmul.f32 %v2063, %v1988
        %v2181 = vmul.f32 %v2068, %v1989
        %v2182 = vmul.f32 %v2073, %v1990
        %v2183 = vmul.f32 %v2078, %v1991
        %v2184 = vmul.f32 %v2083, %v1992
        %v2185 = vmul.f32 %v2088, %v1993
        %v2186 = vmul.f32 %v2093, %v1994
        %v2187 = vmul.f32 %v2098, %v1995
        %v2188 = vmul.f32 %v2103, %v1996
        %v2189 = vmul.f32 %v2108, %v1997
        %v2190 = vmul.f32 %v2113, %v1998
        %v2191 = vmul.f32 %v2118, %v1999
        %v2192 = vmul.f32 %v2123, %v2000
        %v2193 = vmul.f32 %v2128, %v2001
        %v2194 = vmul.f32 %v2133, %v2002
        %v2195 = vmul.f32 %v2138, %v2003
        %v2196 = vmul.f32 %v2143, %v2004
        %v2197 = vmul.f32 %v2148, %v2005
        %v2198 = vmul.f32 %v2153, %v2006
        %v2199 = vmul.f32 %v2158, %v2007
        %v2200 = vmul.f32 %v2163, %v2008
        %v2201 = vmul.f32 %v2168, %v2009
        %v2202 = vpack.c.bf16 %v1630, %v1626
        %v2203 = vpack.c.bf16 %v1632, %v1628
        %v2204 = vpack.c.bf16 %v1638, %v1634
        %v2205 = vpack.c.bf16 %v1640, %v1636
        %v2206 = vpack.c.bf16 %v1646, %v1642
        %v2207 = vpack.c.bf16 %v1648, %v1644
        %v2208 = vpack.c.bf16 %v1654, %v1650
        %v2209 = vpack.c.bf16 %v1656, %v1652
        %v2210 = vpack.c.bf16 %v1662, %v1658
        %v2211 = vpack.c.bf16 %v1664, %v1660
        %v2212 = vpack.c.bf16 %v1670, %v1666
        %v2213 = vpack.c.bf16 %v1672, %v1668
        %v2214 = vpack.c.bf16 %v1678, %v1674
        %v2215 = vpack.c.bf16 %v1680, %v1676
        %v2216 = vpack.c.bf16 %v1686, %v1682
        %v2217 = vpack.c.bf16 %v1688, %v1684
        %v2218 = vpack.c.bf16 %v1694, %v1690
        %v2219 = vpack.c.bf16 %v1696, %v1692
        %v2220 = vpack.c.bf16 %v1702, %v1698
        %v2221 = vpack.c.bf16 %v1704, %v1700
        %v2222 = vpack.c.bf16 %v1710, %v1706
        %v2223 = vpack.c.bf16 %v1712, %v1708
        %v2224 = vpack.c.bf16 %v1718, %v1714
        %v2225 = vpack.c.bf16 %v1720, %v1716
        %v2226 = vpack.c.bf16 %v1726, %v1722
        %v2227 = vpack.c.bf16 %v1728, %v1724
        %v2228 = vpack.c.bf16 %v1734, %v1730
        %v2229 = vpack.c.bf16 %v1736, %v1732
        %v2230 = vpack.c.bf16 %v1742, %v1738
        %v2231 = vpack.c.bf16 %v1744, %v1740
        %v2232 = vpack.c.bf16 %v1750, %v1746
        %v2233 = vpack.c.bf16 %v1752, %v1748
        %v2266 = vunpack.c.l.b16 %v463
        %v2267 = vunpack.c.l.b16 %v464
        %v2268 = vunpack.c.l.b16 %v465
        %v2269 = vunpack.c.l.b16 %v466
        %v2270 = vunpack.c.l.b16 %v467
        %v2271 = vunpack.c.l.b16 %v468
        %v2272 = vunpack.c.l.b16 %v469
        %v2273 = vunpack.c.l.b16 %v470
        %v2274 = vunpack.c.l.b16 %v471
        %v2275 = vunpack.c.l.b16 %v472
        %v2276 = vunpack.c.l.b16 %v473
        %v2277 = vunpack.c.l.b16 %v474
        %v2278 = vunpack.c.l.b16 %v475
        %v2279 = vunpack.c.l.b16 %v476
        %v2280 = vunpack.c.l.b16 %v477
        %v2281 = vunpack.c.l.b16 %v478
        %v2282 = vunpack.c.l.b16 %v479
        %v2283 = vunpack.c.l.b16 %v480
        %v2284 = vunpack.c.l.b16 %v481
        %v2285 = vunpack.c.l.b16 %v482
        %v2286 = vunpack.c.l.b16 %v483
        %v2287 = vunpack.c.l.b16 %v484
        %v2288 = vunpack.c.l.b16 %v485
        %v2289 = vunpack.c.l.b16 %v486
        %v2290 = vunpack.c.l.b16 %v487
        %v2291 = vunpack.c.l.b16 %v488
        %v2292 = vunpack.c.l.b16 %v489
        %v2293 = vunpack.c.l.b16 %v490
        %v2294 = vunpack.c.l.b16 %v491
        %v2295 = vunpack.c.l.b16 %v492
        %v2296 = vunpack.c.l.b16 %v493
        %v2297 = vunpack.c.l.b16 %v494
        %v2298 = vpack.c.b16 %v2267, %v2266
        %v2299 = vpack.c.b16 %v2269, %v2268
        %v2300 = vpack.c.b16 %v2271, %v2270
        %v2301 = vpack.c.b16 %v2273, %v2272
        %v2302 = vpack.c.b16 %v2275, %v2274
        %v2303 = vpack.c.b16 %v2277, %v2276
        %v2304 = vpack.c.b16 %v2279, %v2278
        %v2305 = vpack.c.b16 %v2281, %v2280
        %v2306 = vpack.c.b16 %v2283, %v2282
        %v2307 = vpack.c.b16 %v2285, %v2284
        %v2308 = vpack.c.b16 %v2287, %v2286
        %v2309 = vpack.c.b16 %v2289, %v2288
        %v2310 = vpack.c.b16 %v2291, %v2290
        %v2311 = vpack.c.b16 %v2293, %v2292
        %v2312 = vpack.c.b16 %v2295, %v2294
        %v2313 = vpack.c.b16 %v2297, %v2296
        %2330 = vmatprep.subr.bf16.mxu0 0
        %2331 = vmatpush1.bf16.msra.mxu0 %v2298
        %2332 = vmatprep.subr.bf16.mxu0 0
        %2333 = vmatpush1.bf16.msra.mxu0 %v2299
        %2334 = vmatprep.subr.bf16.mxu0 0
        %2335 = vmatpush1.bf16.msra.mxu0 %v2300
        %2336 = vmatprep.subr.bf16.mxu0 0
        %2337 = vmatpush1.bf16.msra.mxu0 %v2301
        %2338 = vmatprep.subr.bf16.mxu0 0
        %2339 = vmatpush1.bf16.msra.mxu0 %v2302
        %2340 = vmatprep.subr.bf16.mxu0 0
        %2341 = vmatpush1.bf16.msra.mxu0 %v2303
        %2342 = vmatprep.subr.bf16.mxu0 0
        %2343 = vmatpush1.bf16.msra.mxu0 %v2304
        %2344 = vmatprep.subr.bf16.mxu0 0
        %2345 = vmatpush1.bf16.msra.mxu0 %v2305
        %2346 = vmatprep.subr.bf16.mxu0 0
        %2347 = vmatpush1.bf16.msra.mxu0 %v2306
        %2348 = vmatprep.subr.bf16.mxu0 0
        %2349 = vmatpush1.bf16.msra.mxu0 %v2307
        %2350 = vmatprep.subr.bf16.mxu0 0
        %2351 = vmatpush1.bf16.msra.mxu0 %v2308
        %2352 = vmatprep.subr.bf16.mxu0 0
        %2353 = vmatpush1.bf16.msra.mxu0 %v2309
        %2354 = vmatprep.subr.bf16.mxu0 0
        %2355 = vmatpush1.bf16.msra.mxu0 %v2310
        %2356 = vmatprep.subr.bf16.mxu0 0
        %2357 = vmatpush1.bf16.msra.mxu0 %v2311
        %2358 = vmatprep.subr.bf16.mxu0 0
        %2359 = vmatpush1.bf16.msra.mxu0 %v2312
        %2360 = vmatprep.subr.bf16.mxu0 0
        %2361 = vmatpush1.bf16.msra.mxu0 %v2313
        %2362 = vmatprep.mubr.bf16.mxu0 %v2203
        %2363 = vmatmul.mubr.bf16.gmra.mrb[0].mxu0 %v2202
        %v2364 = vpop.f32.mrb[0].mxu0
        %v2365 = vadd.f32 0.0, %v2364
        %v2366 = vpop.f32.mrb[0].mxu0
        %v2367 = vpop.f32.mrb[0].mxu0
        %v2368 = vadd.f32 0.0, %v2367
        %v2369 = vpop.f32.mrb[0].mxu0
        %2370 = vmatprep.mubr.bf16.mxu0 %v2205
        %2371 = vmatmul.mubr.bf16.gmra.mrb[0].mxu0 %v2204
        %v2372 = vpop.f32.mrb[0].mxu0
        %v2373 = vadd.f32 0.0, %v2372
        %v2374 = vpop.f32.mrb[0].mxu0
        %v2375 = vpop.f32.mrb[0].mxu0
        %v2376 = vadd.f32 0.0, %v2375
        %v2377 = vpop.f32.mrb[0].mxu0
        %2378 = vmatprep.mubr.bf16.mxu0 %v2207
        %2379 = vmatmul.mubr.bf16.gmra.mrb[0].mxu0 %v2206
        %v2380 = vpop.f32.mrb[0].mxu0
        %v2381 = vadd.f32 0.0, %v2380
        %v2382 = vpop.f32.mrb[0].mxu0
        %v2383 = vpop.f32.mrb[0].mxu0
        %v2384 = vadd.f32 0.0, %v2383
        %v2385 = vpop.f32.mrb[0].mxu0
        %2386 = vmatprep.mubr.bf16.mxu0 %v2209
        %2387 = vmatmul.mubr.bf16.gmra.mrb[0].mxu0 %v2208
        %v2388 = vpop.f32.mrb[0].mxu0
        %v2389 = vadd.f32 0.0, %v2388
        %v2390 = vpop.f32.mrb[0].mxu0
        %v2391 = vpop.f32.mrb[0].mxu0
        %v2392 = vadd.f32 0.0, %v2391
        %v2393 = vpop.f32.mrb[0].mxu0
        %2394 = vmatprep.mubr.bf16.mxu0 %v2211
        %2395 = vmatmul.mubr.bf16.gmra.mrb[0].mxu0 %v2210
        %v2396 = vpop.f32.mrb[0].mxu0
        %v2397 = vadd.f32 0.0, %v2396
        %v2398 = vpop.f32.mrb[0].mxu0
        %v2399 = vpop.f32.mrb[0].mxu0
        %v2400 = vadd.f32 0.0, %v2399
        %v2401 = vpop.f32.mrb[0].mxu0
        %2402 = vmatprep.mubr.bf16.mxu0 %v2213
        %2403 = vmatmul.mubr.bf16.gmra.mrb[0].mxu0 %v2212
        %v2404 = vpop.f32.mrb[0].mxu0
        %v2405 = vadd.f32 0.0, %v2404
        %v2406 = vpop.f32.mrb[0].mxu0
        %v2407 = vpop.f32.mrb[0].mxu0
        %v2408 = vadd.f32 0.0, %v2407
        %v2409 = vpop.f32.mrb[0].mxu0
        %2410 = vmatprep.mubr.bf16.mxu0 %v2215
        %2411 = vmatmul.mubr.bf16.gmra.mrb[0].mxu0 %v2214
        %v2412 = vpop.f32.mrb[0].mxu0
        %v2413 = vadd.f32 0.0, %v2412
        %v2414 = vpop.f32.mrb[0].mxu0
        %v2415 = vpop.f32.mrb[0].mxu0
        %v2416 = vadd.f32 0.0, %v2415
        %v2417 = vpop.f32.mrb[0].mxu0
        %2418 = vmatprep.mubr.bf16.mxu0 %v2217
        %2419 = vmatmul.mubr.bf16.gmra.mrb[0].mxu0 %v2216
        %v2420 = vpop.f32.mrb[0].mxu0
        %v2421 = vadd.f32 0.0, %v2420
        %v2422 = vpop.f32.mrb[0].mxu0
        %v2423 = vpop.f32.mrb[0].mxu0
        %v2424 = vadd.f32 0.0, %v2423
        %v2425 = vpop.f32.mrb[0].mxu0
        %2426 = vmatprep.mubr.bf16.mxu0 %v2219
        %2427 = vmatmul.mubr.bf16.gmra.mrb[0].mxu0 %v2218
        %v2428 = vpop.f32.mrb[0].mxu0
        %v2429 = vadd.f32 0.0, %v2428
        %v2430 = vpop.f32.mrb[0].mxu0
        %v2431 = vpop.f32.mrb[0].mxu0
        %v2432 = vadd.f32 0.0, %v2431
        %v2433 = vpop.f32.mrb[0].mxu0
        %2434 = vmatprep.mubr.bf16.mxu0 %v2221
        %2435 = vmatmul.mubr.bf16.gmra.mrb[0].mxu0 %v2220
        %v2436 = vpop.f32.mrb[0].mxu0
        %v2437 = vadd.f32 0.0, %v2436
        %v2438 = vpop.f32.mrb[0].mxu0
        %v2439 = vpop.f32.mrb[0].mxu0
        %v2440 = vadd.f32 0.0, %v2439
        %v2441 = vpop.f32.mrb[0].mxu0
        %2442 = vmatprep.mubr.bf16.mxu0 %v2223
        %2443 = vmatmul.mubr.bf16.gmra.mrb[0].mxu0 %v2222
        %v2444 = vpop.f32.mrb[0].mxu0
        %v2445 = vadd.f32 0.0, %v2444
        %v2446 = vpop.f32.mrb[0].mxu0
        %v2447 = vpop.f32.mrb[0].mxu0
        %v2448 = vadd.f32 0.0, %v2447
        %v2449 = vpop.f32.mrb[0].mxu0
        %2450 = vmatprep.mubr.bf16.mxu0 %v2225
        %2451 = vmatmul.mubr.bf16.gmra.mrb[0].mxu0 %v2224
        %v2452 = vpop.f32.mrb[0].mxu0
        %v2453 = vadd.f32 0.0, %v2452
        %v2454 = vpop.f32.mrb[0].mxu0
        %v2455 = vpop.f32.mrb[0].mxu0
        %v2456 = vadd.f32 0.0, %v2455
        %v2457 = vpop.f32.mrb[0].mxu0
        %2458 = vmatprep.mubr.bf16.mxu0 %v2227
        %2459 = vmatmul.mubr.bf16.gmra.mrb[0].mxu0 %v2226
        %v2460 = vpop.f32.mrb[0].mxu0
        %v2461 = vadd.f32 0.0, %v2460
        %v2462 = vpop.f32.mrb[0].mxu0
        %v2463 = vpop.f32.mrb[0].mxu0
        %v2464 = vadd.f32 0.0, %v2463
        %v2465 = vpop.f32.mrb[0].mxu0
        %2466 = vmatprep.mubr.bf16.mxu0 %v2229
        %2467 = vmatmul.mubr.bf16.gmra.mrb[0].mxu0 %v2228
        %v2468 = vpop.f32.mrb[0].mxu0
        %v2469 = vadd.f32 0.0, %v2468
        %v2470 = vpop.f32.mrb[0].mxu0
        %v2471 = vpop.f32.mrb[0].mxu0
        %v2472 = vadd.f32 0.0, %v2471
        %v2473 = vpop.f32.mrb[0].mxu0
        %2474 = vmatprep.mubr.bf16.mxu0 %v2231
        %2475 = vmatmul.mubr.bf16.gmra.mrb[0].mxu0 %v2230
        %v2476 = vpop.f32.mrb[0].mxu0
        %v2477 = vadd.f32 0.0, %v2476
        %v2478 = vpop.f32.mrb[0].mxu0
        %v2479 = vpop.f32.mrb[0].mxu0
        %v2480 = vadd.f32 0.0, %v2479
        %v2481 = vpop.f32.mrb[0].mxu0
        %2482 = vmatprep.mubr.bf16.mxu0 %v2233
        %2483 = vmatmul.mubr.bf16.gmra.mrb[0].mxu0 %v2232
        %v2484 = vpop.f32.mrb[0].mxu0
        %v2485 = vadd.f32 0.0, %v2484
        %v2486 = vpop.f32.mrb[0].mxu0
        %v2487 = vpop.f32.mrb[0].mxu0
        %v2488 = vadd.f32 0.0, %v2487
        %v2489 = vpop.f32.mrb[0].mxu0
        %2490 = vdwg.mxu0
        %v2491 = vadd.f32 %v2170, %v2365
        %v2492 = vadd.f32 %v2171, %v2368
        %v2493 = vadd.f32 %v2172, %v2373
        %v2494 = vadd.f32 %v2173, %v2376
        %v2495 = vadd.f32 %v2174, %v2381
        %v2496 = vadd.f32 %v2175, %v2384
        %v2497 = vadd.f32 %v2176, %v2389
        %v2498 = vadd.f32 %v2177, %v2392
        %v2499 = vadd.f32 %v2178, %v2397
        %v2500 = vadd.f32 %v2179, %v2400
        %v2501 = vadd.f32 %v2180, %v2405
        %v2502 = vadd.f32 %v2181, %v2408
        %v2503 = vadd.f32 %v2182, %v2413
        %v2504 = vadd.f32 %v2183, %v2416
        %v2505 = vadd.f32 %v2184, %v2421
        %v2506 = vadd.f32 %v2185, %v2424
        %v2507 = vadd.f32 %v2186, %v2429
        %v2508 = vadd.f32 %v2187, %v2432
        %v2509 = vadd.f32 %v2188, %v2437
        %v2510 = vadd.f32 %v2189, %v2440
        %v2511 = vadd.f32 %v2190, %v2445
        %v2512 = vadd.f32 %v2191, %v2448
        %v2513 = vadd.f32 %v2192, %v2453
        %v2514 = vadd.f32 %v2193, %v2456
        %v2515 = vadd.f32 %v2194, %v2461
        %v2516 = vadd.f32 %v2195, %v2464
        %v2517 = vadd.f32 %v2196, %v2469
        %v2518 = vadd.f32 %v2197, %v2472
        %v2519 = vadd.f32 %v2198, %v2477
        %v2520 = vadd.f32 %v2199, %v2480
        %v2521 = vadd.f32 %v2200, %v2485
        %v2522 = vadd.f32 %v2201, %v2488
        %2523 = vst [vmem:[#allocation4] sm:$0xff] %v2491
        %2524 = vst [vmem:[#allocation4 + $0x8] sm:$0xff] %v2492
        %2525 = vst [vmem:[#allocation4 + $0x10] sm:$0xff] %v2493
        %2526 = vst [vmem:[#allocation4 + $0x18] sm:$0xff] %v2494
        %2527 = vst [vmem:[#allocation4 + $0x20] sm:$0xff] %v2495
        %2528 = vst [vmem:[#allocation4 + $0x28] sm:$0xff] %v2496
        %2529 = vst [vmem:[#allocation4 + $0x30] sm:$0xff] %v2497
        %2530 = vst [vmem:[#allocation4 + $0x38] sm:$0xff] %v2498
        %2531 = vst [vmem:[#allocation4 + $0x40] sm:$0xff] %v2499
        %2532 = vst [vmem:[#allocation4 + $0x48] sm:$0xff] %v2500
        %2533 = vst [vmem:[#allocation4 + $0x50] sm:$0xff] %v2501
        %2534 = vst [vmem:[#allocation4 + $0x58] sm:$0xff] %v2502
        %2535 = vst [vmem:[#allocation4 + $0x60] sm:$0xff] %v2503
        %2536 = vst [vmem:[#allocation4 + $0x68] sm:$0xff] %v2504
        %2537 = vst [vmem:[#allocation4 + $0x70] sm:$0xff] %v2505
        %2538 = vst [vmem:[#allocation4 + $0x78] sm:$0xff] %v2506
        %2539 = vst [vmem:[#allocation4 + $0x80] sm:$0xff] %v2507
        %2540 = vst [vmem:[#allocation4 + $0x88] sm:$0xff] %v2508
        %2541 = vst [vmem:[#allocation4 + $0x90] sm:$0xff] %v2509
        %2542 = vst [vmem:[#allocation4 + $0x98] sm:$0xff] %v2510
        %2543 = vst [vmem:[#allocation4 + $0xa0] sm:$0xff] %v2511
        %2544 = vst [vmem:[#allocation4 + $0xa8] sm:$0xff] %v2512
        %2545 = vst [vmem:[#allocation4 + $0xb0] sm:$0xff] %v2513
        %2546 = vst [vmem:[#allocation4 + $0xb8] sm:$0xff] %v2514
        %2547 = vst [vmem:[#allocation4 + $0xc0] sm:$0xff] %v2515
        %2548 = vst [vmem:[#allocation4 + $0xc8] sm:$0xff] %v2516
        %2549 = vst [vmem:[#allocation4 + $0xd0] sm:$0xff] %v2517
        %2550 = vst [vmem:[#allocation4 + $0xd8] sm:$0xff] %v2518
        %2551 = vst [vmem:[#allocation4 + $0xe0] sm:$0xff] %v2519
        %2552 = vst [vmem:[#allocation4 + $0xe8] sm:$0xff] %v2520
        %2553 = vst [vmem:[#allocation4 + $0xf0] sm:$0xff] %v2521
        %2554 = vst [vmem:[#allocation4 + $0xf8] sm:$0xff] %v2522
        %2555 = vst.msk [vmem:[#allocation2] sm:$0xff] %vm1945, %v1273
        %2556 = vst.msk [vmem:[#allocation2 + $0x8] sm:$0xff] %vm1945, %v1274
        %2557 = vst.msk [vmem:[#allocation2 + $0x10] sm:$0xff] %vm1945, %v1275
        %2558 = vst.msk [vmem:[#allocation2 + $0x18] sm:$0xff] %vm1945, %v1276
        %2559 = vst.msk [vmem:[#allocation2 + $0x20] sm:$0xff] %vm1945, %v1277
        %2560 = vst.msk [vmem:[#allocation2 + $0x28] sm:$0xff] %vm1945, %v1278
        %2561 = vst.msk [vmem:[#allocation2 + $0x30] sm:$0xff] %vm1945, %v1279
        %2562 = vst.msk [vmem:[#allocation2 + $0x38] sm:$0xff] %vm1945, %v1280
        %2563 = vst.msk [vmem:[#allocation2 + $0x40] sm:$0xff] %vm1945, %v1281
        %2564 = vst.msk [vmem:[#allocation2 + $0x48] sm:$0xff] %vm1945, %v1282
        %2565 = vst.msk [vmem:[#allocation2 + $0x50] sm:$0xff] %vm1945, %v1283
        %2566 = vst.msk [vmem:[#allocation2 + $0x58] sm:$0xff] %vm1945, %v1284
        %2567 = vst.msk [vmem:[#allocation2 + $0x60] sm:$0xff] %vm1945, %v1285
        %2568 = vst.msk [vmem:[#allocation2 + $0x68] sm:$0xff] %vm1945, %v1286
        %2569 = vst.msk [vmem:[#allocation2 + $0x70] sm:$0xff] %vm1945, %v1287
        %2570 = vst.msk [vmem:[#allocation2 + $0x78] sm:$0xff] %vm1945, %v1288
        %2571 = vst.msk [vmem:[#allocation2 + $0x80] sm:$0xff] %vm1945, %v1289
        %2572 = vst.msk [vmem:[#allocation2 + $0x88] sm:$0xff] %vm1945, %v1290
        %2573 = vst.msk [vmem:[#allocation2 + $0x90] sm:$0xff] %vm1945, %v1291
        %2574 = vst.msk [vmem:[#allocation2 + $0x98] sm:$0xff] %vm1945, %v1292
        %2575 = vst.msk [vmem:[#allocation2 + $0xa0] sm:$0xff] %vm1945, %v1293
        %2576 = vst.msk [vmem:[#allocation2 + $0xa8] sm:$0xff] %vm1945, %v1294
        %2577 = vst.msk [vmem:[#allocation2 + $0xb0] sm:$0xff] %vm1945, %v1295
        %2578 = vst.msk [vmem:[#allocation2 + $0xb8] sm:$0xff] %vm1945, %v1296
        %2579 = vst.msk [vmem:[#allocation2 + $0xc0] sm:$0xff] %vm1945, %v1297
        %2580 = vst.msk [vmem:[#allocation2 + $0xc8] sm:$0xff] %vm1945, %v1298
        %2581 = vst.msk [vmem:[#allocation2 + $0xd0] sm:$0xff] %vm1945, %v1299
        %2582 = vst.msk [vmem:[#allocation2 + $0xd8] sm:$0xff] %vm1945, %v1300
        %2583 = vst.msk [vmem:[#allocation2 + $0xe0] sm:$0xff] %vm1945, %v1301
        %2584 = vst.msk [vmem:[#allocation2 + $0xe8] sm:$0xff] %vm1945, %v1302
        %2585 = vst.msk [vmem:[#allocation2 + $0xf0] sm:$0xff] %vm1945, %v1303
        %2586 = vst.msk [vmem:[#allocation2 + $0xf8] sm:$0xff] %vm1945, %v1304
      $region40: #{causal_self_attention.4} parent=31 // pred_fallthru
        _
      %p2587 = scmp.eq.s32.totalorder %s21, 1
      // Predicated region
      $region41: #{causal_self_attention.4} parent=31 // pred_check
        %p2588 = pneg %p2587
      $region42: #{causal_self_attention.4} parent=31 // pred_check_branch
        %2590 = sbr.rel (%p2588) target = $region44
      $region43: #{causal_self_attention.4} parent=31 // pred_region
        %v2591 = vld [vmem:[#allocation3] sm:$0xff]
        %v2592 = vld [vmem:[#allocation3 + $0x8] sm:$0xff]
        %v2593 = vld [vmem:[#allocation3 + $0x10] sm:$0xff]
        %v2594 = vld [vmem:[#allocation3 + $0x18] sm:$0xff]
        %v2595 = vld [vmem:[#allocation3 + $0x20] sm:$0xff]
        %v2596 = vld [vmem:[#allocation3 + $0x28] sm:$0xff]
        %v2597 = vld [vmem:[#allocation3 + $0x30] sm:$0xff]
        %v2598 = vld [vmem:[#allocation3 + $0x38] sm:$0xff]
        %v2599 = vld [vmem:[#allocation3 + $0x40] sm:$0xff]
        %v2600 = vld [vmem:[#allocation3 + $0x48] sm:$0xff]
        %v2601 = vld [vmem:[#allocation3 + $0x50] sm:$0xff]
        %v2602 = vld [vmem:[#allocation3 + $0x58] sm:$0xff]
        %v2603 = vld [vmem:[#allocation3 + $0x60] sm:$0xff]
        %v2604 = vld [vmem:[#allocation3 + $0x68] sm:$0xff]
        %v2605 = vld [vmem:[#allocation3 + $0x70] sm:$0xff]
        %v2606 = vld [vmem:[#allocation3 + $0x78] sm:$0xff]
        %v2607 = vld [vmem:[#allocation3 + $0x80] sm:$0xff]
        %v2608 = vld [vmem:[#allocation3 + $0x88] sm:$0xff]
        %v2609 = vld [vmem:[#allocation3 + $0x90] sm:$0xff]
        %v2610 = vld [vmem:[#allocation3 + $0x98] sm:$0xff]
        %v2611 = vld [vmem:[#allocation3 + $0xa0] sm:$0xff]
        %v2612 = vld [vmem:[#allocation3 + $0xa8] sm:$0xff]
        %v2613 = vld [vmem:[#allocation3 + $0xb0] sm:$0xff]
        %v2614 = vld [vmem:[#allocation3 + $0xb8] sm:$0xff]
        %v2615 = vld [vmem:[#allocation3 + $0xc0] sm:$0xff]
        %v2616 = vld [vmem:[#allocation3 + $0xc8] sm:$0xff]
        %v2617 = vld [vmem:[#allocation3 + $0xd0] sm:$0xff]
        %v2618 = vld [vmem:[#allocation3 + $0xd8] sm:$0xff]
        %v2619 = vld [vmem:[#allocation3 + $0xe0] sm:$0xff]
        %v2620 = vld [vmem:[#allocation3 + $0xe8] sm:$0xff]
        %v2621 = vld [vmem:[#allocation3 + $0xf0] sm:$0xff]
        %v2622 = vld [vmem:[#allocation3 + $0xf8] sm:$0xff]
        %v2623 = vrcp.pop %v2591
        %v2624 = vrcp.pop %v2592
        %v2625 = vrcp.pop %v2593
        %v2626 = vrcp.pop %v2594
        %v2627 = vrcp.pop %v2595
        %v2628 = vrcp.pop %v2596
        %v2629 = vrcp.pop %v2597
        %v2630 = vrcp.pop %v2598
        %v2631 = vrcp.pop %v2599
        %v2632 = vrcp.pop %v2600
        %v2633 = vrcp.pop %v2601
        %v2634 = vrcp.pop %v2602
        %v2635 = vrcp.pop %v2603
        %v2636 = vrcp.pop %v2604
        %v2637 = vrcp.pop %v2605
        %v2638 = vrcp.pop %v2606
        %v2639 = vrcp.pop %v2607
        %v2640 = vrcp.pop %v2608
        %v2641 = vrcp.pop %v2609
        %v2642 = vrcp.pop %v2610
        %v2643 = vrcp.pop %v2611
        %v2644 = vrcp.pop %v2612
        %v2645 = vrcp.pop %v2613
        %v2646 = vrcp.pop %v2614
        %v2647 = vrcp.pop %v2615
        %v2648 = vrcp.pop %v2616
        %v2649 = vrcp.pop %v2617
        %v2650 = vrcp.pop %v2618
        %v2651 = vrcp.pop %v2619
        %v2652 = vrcp.pop %v2620
        %v2653 = vrcp.pop %v2621
        %v2654 = vrcp.pop %v2622
        %v2655 = vld [vmem:[#allocation4] sm:$0xff]
        %v2656 = vld [vmem:[#allocation4 + $0x8] sm:$0xff]
        %v2657 = vld [vmem:[#allocation4 + $0x10] sm:$0xff]
        %v2658 = vld [vmem:[#allocation4 + $0x18] sm:$0xff]
        %v2659 = vld [vmem:[#allocation4 + $0x20] sm:$0xff]
        %v2660 = vld [vmem:[#allocation4 + $0x28] sm:$0xff]
        %v2661 = vld [vmem:[#allocation4 + $0x30] sm:$0xff]
        %v2662 = vld [vmem:[#allocation4 + $0x38] sm:$0xff]
        %v2663 = vld [vmem:[#allocation4 + $0x40] sm:$0xff]
        %v2664 = vld [vmem:[#allocation4 + $0x48] sm:$0xff]
        %v2665 = vld [vmem:[#allocation4 + $0x50] sm:$0xff]
        %v2666 = vld [vmem:[#allocation4 + $0x58] sm:$0xff]
        %v2667 = vld [vmem:[#allocation4 + $0x60] sm:$0xff]
        %v2668 = vld [vmem:[#allocation4 + $0x68] sm:$0xff]
        %v2669 = vld [vmem:[#allocation4 + $0x70] sm:$0xff]
        %v2670 = vld [vmem:[#allocation4 + $0x78] sm:$0xff]
        %v2671 = vld [vmem:[#allocation4 + $0x80] sm:$0xff]
        %v2672 = vld [vmem:[#allocation4 + $0x88] sm:$0xff]
        %v2673 = vld [vmem:[#allocation4 + $0x90] sm:$0xff]
        %v2674 = vld [vmem:[#allocation4 + $0x98] sm:$0xff]
        %v2675 = vld [vmem:[#allocation4 + $0xa0] sm:$0xff]
        %v2676 = vld [vmem:[#allocation4 + $0xa8] sm:$0xff]
        %v2677 = vld [vmem:[#allocation4 + $0xb0] sm:$0xff]
        %v2678 = vld [vmem:[#allocation4 + $0xb8] sm:$0xff]
        %v2679 = vld [vmem:[#allocation4 + $0xc0] sm:$0xff]
        %v2680 = vld [vmem:[#allocation4 + $0xc8] sm:$0xff]
        %v2681 = vld [vmem:[#allocation4 + $0xd0] sm:$0xff]
        %v2682 = vld [vmem:[#allocation4 + $0xd8] sm:$0xff]
        %v2683 = vld [vmem:[#allocation4 + $0xe0] sm:$0xff]
        %v2684 = vld [vmem:[#allocation4 + $0xe8] sm:$0xff]
        %v2685 = vld [vmem:[#allocation4 + $0xf0] sm:$0xff]
        %v2686 = vld [vmem:[#allocation4 + $0xf8] sm:$0xff]
        %2688 = vset.pattern.permute.xlu0 0
        %2689 = vperm.xlu0 %2688, %v2623
        %v2690 = vpop.permute.xlu0 %2689
        %2693 = vset.pattern.permute.xlu0 0
        %2694 = vperm.xlu0 %2693, %v2624
        %v2695 = vpop.permute.xlu0 %2694
        %2698 = vset.pattern.permute.xlu0 0
        %2699 = vperm.xlu0 %2698, %v2625
        %v2700 = vpop.permute.xlu0 %2699
        %2703 = vset.pattern.permute.xlu0 0
        %2704 = vperm.xlu0 %2703, %v2626
        %v2705 = vpop.permute.xlu0 %2704
        %2708 = vset.pattern.permute.xlu0 0
        %2709 = vperm.xlu0 %2708, %v2627
        %v2710 = vpop.permute.xlu0 %2709
        %2713 = vset.pattern.permute.xlu0 0
        %2714 = vperm.xlu0 %2713, %v2628
        %v2715 = vpop.permute.xlu0 %2714
        %2718 = vset.pattern.permute.xlu0 0
        %2719 = vperm.xlu0 %2718, %v2629
        %v2720 = vpop.permute.xlu0 %2719
        %2723 = vset.pattern.permute.xlu0 0
        %2724 = vperm.xlu0 %2723, %v2630
        %v2725 = vpop.permute.xlu0 %2724
        %2728 = vset.pattern.permute.xlu0 0
        %2729 = vperm.xlu0 %2728, %v2631
        %v2730 = vpop.permute.xlu0 %2729
        %2733 = vset.pattern.permute.xlu0 0
        %2734 = vperm.xlu0 %2733, %v2632
        %v2735 = vpop.permute.xlu0 %2734
        %2738 = vset.pattern.permute.xlu0 0
        %2739 = vperm.xlu0 %2738, %v2633
        %v2740 = vpop.permute.xlu0 %2739
        %2743 = vset.pattern.permute.xlu0 0
        %2744 = vperm.xlu0 %2743, %v2634
        %v2745 = vpop.permute.xlu0 %2744
        %2748 = vset.pattern.permute.xlu0 0
        %2749 = vperm.xlu0 %2748, %v2635
        %v2750 = vpop.permute.xlu0 %2749
        %2753 = vset.pattern.permute.xlu0 0
        %2754 = vperm.xlu0 %2753, %v2636
        %v2755 = vpop.permute.xlu0 %2754
        %2758 = vset.pattern.permute.xlu0 0
        %2759 = vperm.xlu0 %2758, %v2637
        %v2760 = vpop.permute.xlu0 %2759
        %2763 = vset.pattern.permute.xlu0 0
        %2764 = vperm.xlu0 %2763, %v2638
        %v2765 = vpop.permute.xlu0 %2764
        %2768 = vset.pattern.permute.xlu0 0
        %2769 = vperm.xlu0 %2768, %v2639
        %v2770 = vpop.permute.xlu0 %2769
        %2773 = vset.pattern.permute.xlu0 0
        %2774 = vperm.xlu0 %2773, %v2640
        %v2775 = vpop.permute.xlu0 %2774
        %2778 = vset.pattern.permute.xlu0 0
        %2779 = vperm.xlu0 %2778, %v2641
        %v2780 = vpop.permute.xlu0 %2779
        %2783 = vset.pattern.permute.xlu0 0
        %2784 = vperm.xlu0 %2783, %v2642
        %v2785 = vpop.permute.xlu0 %2784
        %2788 = vset.pattern.permute.xlu0 0
        %2789 = vperm.xlu0 %2788, %v2643
        %v2790 = vpop.permute.xlu0 %2789
        %2793 = vset.pattern.permute.xlu0 0
        %2794 = vperm.xlu0 %2793, %v2644
        %v2795 = vpop.permute.xlu0 %2794
        %2798 = vset.pattern.permute.xlu0 0
        %2799 = vperm.xlu0 %2798, %v2645
        %v2800 = vpop.permute.xlu0 %2799
        %2803 = vset.pattern.permute.xlu0 0
        %2804 = vperm.xlu0 %2803, %v2646
        %v2805 = vpop.permute.xlu0 %2804
        %2808 = vset.pattern.permute.xlu0 0
        %2809 = vperm.xlu0 %2808, %v2647
        %v2810 = vpop.permute.xlu0 %2809
        %2813 = vset.pattern.permute.xlu0 0
        %2814 = vperm.xlu0 %2813, %v2648
        %v2815 = vpop.permute.xlu0 %2814
        %2818 = vset.pattern.permute.xlu0 0
        %2819 = vperm.xlu0 %2818, %v2649
        %v2820 = vpop.permute.xlu0 %2819
        %2823 = vset.pattern.permute.xlu0 0
        %2824 = vperm.xlu0 %2823, %v2650
        %v2825 = vpop.permute.xlu0 %2824
        %2828 = vset.pattern.permute.xlu0 0
        %2829 = vperm.xlu0 %2828, %v2651
        %v2830 = vpop.permute.xlu0 %2829
        %2833 = vset.pattern.permute.xlu0 0
        %2834 = vperm.xlu0 %2833, %v2652
        %v2835 = vpop.permute.xlu0 %2834
        %2838 = vset.pattern.permute.xlu0 0
        %2839 = vperm.xlu0 %2838, %v2653
        %v2840 = vpop.permute.xlu0 %2839
        %2843 = vset.pattern.permute.xlu0 0
        %2844 = vperm.xlu0 %2843, %v2654
        %v2845 = vpop.permute.xlu0 %2844
        %v2847 = vmul.f32 %v2655, %v2690
        %v2848 = vmul.f32 %v2656, %v2695
        %v2849 = vmul.f32 %v2657, %v2700
        %v2850 = vmul.f32 %v2658, %v2705
        %v2851 = vmul.f32 %v2659, %v2710
        %v2852 = vmul.f32 %v2660, %v2715
        %v2853 = vmul.f32 %v2661, %v2720
        %v2854 = vmul.f32 %v2662, %v2725
        %v2855 = vmul.f32 %v2663, %v2730
        %v2856 = vmul.f32 %v2664, %v2735
        %v2857 = vmul.f32 %v2665, %v2740
        %v2858 = vmul.f32 %v2666, %v2745
        %v2859 = vmul.f32 %v2667, %v2750
        %v2860 = vmul.f32 %v2668, %v2755
        %v2861 = vmul.f32 %v2669, %v2760
        %v2862 = vmul.f32 %v2670, %v2765
        %v2863 = vmul.f32 %v2671, %v2770
        %v2864 = vmul.f32 %v2672, %v2775
        %v2865 = vmul.f32 %v2673, %v2780
        %v2866 = vmul.f32 %v2674, %v2785
        %v2867 = vmul.f32 %v2675, %v2790
        %v2868 = vmul.f32 %v2676, %v2795
        %v2869 = vmul.f32 %v2677, %v2800
        %v2870 = vmul.f32 %v2678, %v2805
        %v2871 = vmul.f32 %v2679, %v2810
        %v2872 = vmul.f32 %v2680, %v2815
        %v2873 = vmul.f32 %v2681, %v2820
        %v2874 = vmul.f32 %v2682, %v2825
        %v2875 = vmul.f32 %v2683, %v2830
        %v2876 = vmul.f32 %v2684, %v2835
        %v2877 = vmul.f32 %v2685, %v2840
        %v2878 = vmul.f32 %v2686, %v2845
        %v2879 = vpack.c.bf16 %v2848, %v2847
        %v2880 = vpack.c.bf16 %v2850, %v2849
        %v2881 = vpack.c.bf16 %v2852, %v2851
        %v2882 = vpack.c.bf16 %v2854, %v2853
        %v2883 = vpack.c.bf16 %v2856, %v2855
        %v2884 = vpack.c.bf16 %v2858, %v2857
        %v2885 = vpack.c.bf16 %v2860, %v2859
        %v2886 = vpack.c.bf16 %v2862, %v2861
        %v2887 = vpack.c.bf16 %v2864, %v2863
        %v2888 = vpack.c.bf16 %v2866, %v2865
        %v2889 = vpack.c.bf16 %v2868, %v2867
        %v2890 = vpack.c.bf16 %v2870, %v2869
        %v2891 = vpack.c.bf16 %v2872, %v2871
        %v2892 = vpack.c.bf16 %v2874, %v2873
        %v2893 = vpack.c.bf16 %v2876, %v2875
        %v2894 = vpack.c.bf16 %v2878, %v2877
        %v2911 = vunpack.c.l.b16 %v2879
        %v2912 = vunpack.c.h.b16 %v2879
        %v2913 = vunpack.c.l.b16 %v2880
        %v2914 = vunpack.c.h.b16 %v2880
        %v2915 = vunpack.c.l.b16 %v2881
        %v2916 = vunpack.c.h.b16 %v2881
        %v2917 = vunpack.c.l.b16 %v2882
        %v2918 = vunpack.c.h.b16 %v2882
        %v2919 = vunpack.c.l.b16 %v2883
        %v2920 = vunpack.c.h.b16 %v2883
        %v2921 = vunpack.c.l.b16 %v2884
        %v2922 = vunpack.c.h.b16 %v2884
        %v2923 = vunpack.c.l.b16 %v2885
        %v2924 = vunpack.c.h.b16 %v2885
        %v2925 = vunpack.c.l.b16 %v2886
        %v2926 = vunpack.c.h.b16 %v2886
        %v2927 = vunpack.c.l.b16 %v2887
        %v2928 = vunpack.c.h.b16 %v2887
        %v2929 = vunpack.c.l.b16 %v2888
        %v2930 = vunpack.c.h.b16 %v2888
        %v2931 = vunpack.c.l.b16 %v2889
        %v2932 = vunpack.c.h.b16 %v2889
        %v2933 = vunpack.c.l.b16 %v2890
        %v2934 = vunpack.c.h.b16 %v2890
        %v2935 = vunpack.c.l.b16 %v2891
        %v2936 = vunpack.c.h.b16 %v2891
        %v2937 = vunpack.c.l.b16 %v2892
        %v2938 = vunpack.c.h.b16 %v2892
        %v2939 = vunpack.c.l.b16 %v2893
        %v2940 = vunpack.c.h.b16 %v2893
        %v2941 = vunpack.c.l.b16 %v2894
        %v2942 = vunpack.c.h.b16 %v2894
        %v2943 = vpack.c.b16 %v2911, %v2911
        %v2944 = vpack.c.b16 %v2912, %v2912
        %v2945 = vpack.c.b16 %v2913, %v2913
        %v2946 = vpack.c.b16 %v2914, %v2914
        %v2947 = vpack.c.b16 %v2915, %v2915
        %v2948 = vpack.c.b16 %v2916, %v2916
        %v2949 = vpack.c.b16 %v2917, %v2917
        %v2950 = vpack.c.b16 %v2918, %v2918
        %v2951 = vpack.c.b16 %v2919, %v2919
        %v2952 = vpack.c.b16 %v2920, %v2920
        %v2953 = vpack.c.b16 %v2921, %v2921
        %v2954 = vpack.c.b16 %v2922, %v2922
        %v2955 = vpack.c.b16 %v2923, %v2923
        %v2956 = vpack.c.b16 %v2924, %v2924
        %v2957 = vpack.c.b16 %v2925, %v2925
        %v2958 = vpack.c.b16 %v2926, %v2926
        %v2959 = vpack.c.b16 %v2927, %v2927
        %v2960 = vpack.c.b16 %v2928, %v2928
        %v2961 = vpack.c.b16 %v2929, %v2929
        %v2962 = vpack.c.b16 %v2930, %v2930
        %v2963 = vpack.c.b16 %v2931, %v2931
        %v2964 = vpack.c.b16 %v2932, %v2932
        %v2965 = vpack.c.b16 %v2933, %v2933
        %v2966 = vpack.c.b16 %v2934, %v2934
        %v2967 = vpack.c.b16 %v2935, %v2935
        %v2968 = vpack.c.b16 %v2936, %v2936
        %v2969 = vpack.c.b16 %v2937, %v2937
        %v2970 = vpack.c.b16 %v2938, %v2938
        %v2971 = vpack.c.b16 %v2939, %v2939
        %v2972 = vpack.c.b16 %v2940, %v2940
        %v2973 = vpack.c.b16 %v2941, %v2941
        %v2974 = vpack.c.b16 %v2942, %v2942
        %3007 = vst [vmem:[%s287] sm:$0xf] %v2943
        %3008 = vst [vmem:[%s287 + $0x4] sm:$0xf] %v2944
        %3009 = vst [vmem:[%s287 + $0x8] sm:$0xf] %v2945
        %3010 = vst [vmem:[%s287 + $0xc] sm:$0xf] %v2946
        %3011 = vst [vmem:[%s287 + $0x10] sm:$0xf] %v2947
        %3012 = vst [vmem:[%s287 + $0x14] sm:$0xf] %v2948
        %3013 = vst [vmem:[%s287 + $0x18] sm:$0xf] %v2949
        %3014 = vst [vmem:[%s287 + $0x1c] sm:$0xf] %v2950
        %3015 = vst [vmem:[%s287 + $0x20] sm:$0xf] %v2951
        %3016 = vst [vmem:[%s287 + $0x24] sm:$0xf] %v2952
        %3017 = vst [vmem:[%s287 + $0x28] sm:$0xf] %v2953
        %3018 = vst [vmem:[%s287 + $0x2c] sm:$0xf] %v2954
        %3019 = vst [vmem:[%s287 + $0x30] sm:$0xf] %v2955
        %3020 = vst [vmem:[%s287 + $0x34] sm:$0xf] %v2956
        %3021 = vst [vmem:[%s287 + $0x38] sm:$0xf] %v2957
        %3022 = vst [vmem:[%s287 + $0x3c] sm:$0xf] %v2958
        %3023 = vst [vmem:[%s287 + $0x40] sm:$0xf] %v2959
        %3024 = vst [vmem:[%s287 + $0x44] sm:$0xf] %v2960
        %3025 = vst [vmem:[%s287 + $0x48] sm:$0xf] %v2961
        %3026 = vst [vmem:[%s287 + $0x4c] sm:$0xf] %v2962
        %3027 = vst [vmem:[%s287 + $0x50] sm:$0xf] %v2963
        %3028 = vst [vmem:[%s287 + $0x54] sm:$0xf] %v2964
        %3029 = vst [vmem:[%s287 + $0x58] sm:$0xf] %v2965
        %3030 = vst [vmem:[%s287 + $0x5c] sm:$0xf] %v2966
        %3031 = vst [vmem:[%s287 + $0x60] sm:$0xf] %v2967
        %3032 = vst [vmem:[%s287 + $0x64] sm:$0xf] %v2968
        %3033 = vst [vmem:[%s287 + $0x68] sm:$0xf] %v2969
        %3034 = vst [vmem:[%s287 + $0x6c] sm:$0xf] %v2970
        %3035 = vst [vmem:[%s287 + $0x70] sm:$0xf] %v2971
        %3036 = vst [vmem:[%s287 + $0x74] sm:$0xf] %v2972
        %3037 = vst [vmem:[%s287 + $0x78] sm:$0xf] %v2973
        %3038 = vst [vmem:[%s287 + $0x7c] sm:$0xf] %v2974
      $region44: #{causal_self_attention.4} parent=31 // pred_fallthru
        _
      %s3039 = smul.u32 32, %s20
      %p3040 = scmp.lt.s32.totalorder %s19, 1
      %s3041 = scalar_select %p3040, %s19, 1
      %p3042 = scmp.lt.s32.totalorder %s3039, 63
      %s3043 = scalar_select %p3042, %s3039, 63
      %s3044 = smul.addr %s3041, 64
      %s3045 = sadd.s32 %s3043, %s3044
      %s3046 = smul.addr %s3045, 4
      %s3047 = scalar_lea.vmem %s3, %s3046
      // Predicated region
      $region45: #{causal_self_attention.4} parent=31 // pred_check
        %p3048 = pneg %p137
      $region46: #{causal_self_attention.4} parent=31 // pred_check_branch
        %3050 = sbr.rel (%p3048) target = $region48
      $region47: #{causal_self_attention.4} parent=31 // pred_region
        %s3051 = smul.u32 32, %s20
      $region48: #{causal_self_attention.4} parent=31 // pred_fallthru
        _
    $region32: #{causal_self_attention.4} parent=5 // pred_fallthru
      _
    %p3052 = scmp.le.s32.totalorder 2, %s9
    // Predicated region
    $region49: #{causal_self_attention.4} parent=5 // pred_check
      %p3053 = pneg %p3052
    $region50: #{causal_self_attention.4} parent=5 // pred_check_branch
      %3055 = sbr.rel (%p3053) target = $region52
    $region51: #{causal_self_attention.4} parent=5 // pred_region
      %s3056 = ssub.s32 %s9, 2
      // Predicated region
      $region53: #{causal_self_attention.4} parent=51 // pred_check
        %p3057 = pneg %p143
      $region54: #{causal_self_attention.4} parent=51 // pred_check_branch
        %3059 = sbr.rel (%p3057) target = $region56
      $region55: #{causal_self_attention.4} parent=51 // pred_region
        %s3060 = smul.u32 32, %s23
        %p3061 = scmp.lt.s32.totalorder %s22, 1
        %s3062 = scalar_select %p3061, %s22, 1
        %p3063 = scmp.lt.s32.totalorder %s3060, 63
        %s3064 = scalar_select %p3063, %s3060, 63
        %s3065 = smul.addr %s3062, 64
        %s3066 = sadd.s32 %s3064, %s3065
        %s3067 = smul.addr %s3066, 4
        %s3068 = scalar_lea.vmem %s3, %s3067
      $region56: #{causal_self_attention.4} parent=51 // pred_fallthru
        _
    $region52: #{causal_self_attention.4} parent=5 // pred_fallthru
      _
  $region6: #{causal_self_attention.4} parent=0 // loop_footer
    %s13 = sadd.s32 1, %s9
  $region7: #{causal_self_attention.4} parent=0 // loop_footer_branch
    %8 = sbr.rel target = $region3
  $region8: #{causal_self_attention.4} parent=0 // loop_exit
    _

</llo_original>
